<compile_context>
chip_gen: v7x
topology: tpu7x:2x2x1
jax: 0.10.0
libtpu: 0.0.40
codegen_flags: <defaults>
</compile_context>

<pallas_src>
import math
import jax
import jax.numpy as jnp
from jax.experimental import pallas as pl
from jax.experimental.pallas import tpu as pltpu

HIDDEN = 512
PLANES = 512                 # self.planes
N_HEADS = 2                  # self.layers
HEAD_OUT = PLANES * 2        # 1024 per head (Sigmoid output width)


def _mapping_kernel(alphas_ref,                       # SMEM (6,) f32 PReLU slopes
                    x_ref,                            # (TILE_B, in_dim) f32
                    w1, b1, w2, b2, w3, b3, w4, b4,   # mlp_in: bf16 W, f32 b (resident)
                    wh0a, bh0a, wh1a, bh1a,           # per-head layer-1 (512->512)
                    wh0b0, bh0b0, wh0b1, bh0b1,       # head0 layer-2, chunk0 / chunk1 (512->512)
                    wh1b0, bh1b0, wh1b1, bh1b1,       # head1 layer-2, chunk0 / chunk1
                    o00_ref, o01_ref, o10_ref, o11_ref):  # 4x (TILE_B, 512) f32
    def linb(vb, w_ref, b_ref):
        # bf16 x bf16 on the MXU, f32 accumulate; bias add stays in f32.
        return jnp.dot(vb, w_ref[...], preferred_element_type=jnp.float32) + b_ref[...]

    def prelu(v, a):
        # a is an SMEM scalar -> broadcast comes from the scalar path.
        return jnp.where(v >= 0, v, a * v)

    def sigmoid(o):
        # exp on the EUP; approximate reciprocal also on the EUP (keeps VALU free).
        return pl.reciprocal(1.0 + jnp.exp(-o), approx=True)

    a0 = alphas_ref[0]
    a1 = alphas_ref[1]
    a2 = alphas_ref[2]
    a3 = alphas_ref[3]
    a4 = alphas_ref[4]
    a5 = alphas_ref[5]

    # mlp_in: 4x (Linear -> PReLU); cast once to bf16 after each PReLU.
    h = x_ref[...].astype(jnp.bfloat16)
    h = prelu(linb(h, w1, b1), a0).astype(jnp.bfloat16)
    h = prelu(linb(h, w2, b2), a1).astype(jnp.bfloat16)
    h = prelu(linb(h, w3, b3), a2).astype(jnp.bfloat16)
    h = prelu(linb(h, w4, b4), a3).astype(jnp.bfloat16)

    # head 0: Linear(512,512) -> PReLU -> 2x Linear(512,512) -> Sigmoid (chunked output)
    h0 = prelu(linb(h, wh0a, bh0a), a4).astype(jnp.bfloat16)
    o00_ref[...] = sigmoid(linb(h0, wh0b0, bh0b0))
    o01_ref[...] = sigmoid(linb(h0, wh0b1, bh0b1))

    # head 1
    h1 = prelu(linb(h, wh1a, bh1a), a5).astype(jnp.bfloat16)
    o10_ref[...] = sigmoid(linb(h1, wh1b0, bh1b0))
    o11_ref[...] = sigmoid(linb(h1, wh1b1, bh1b1))


def make_params(in_dim, key):
    """Deterministic params mirroring the PyTorch __init__:
       kaiming_normal_ on Linear weights (fan_in, gain=sqrt(2)), zero bias,
       PReLU slope = 0.25 (PyTorch default). Weights stored bf16, (in, out) layout."""
    def kaiming(k, fan_in, fan_out):
        std = math.sqrt(2.0 / fan_in)
        w = jax.random.normal(k, (fan_in, fan_out), jnp.float32) * std
        return w.astype(jnp.bfloat16)

    keys = jax.random.split(key, 8)
    params = {}
    # mlp_in: Linear(in_dim,512) + 3x Linear(512,512)
    dims = [(in_dim, HIDDEN), (HIDDEN, HIDDEN), (HIDDEN, HIDDEN), (HIDDEN, HIDDEN)]
    params["mlp_in"] = [(kaiming(keys[i], fi, fo), jnp.zeros((1, fo), jnp.float32))
                        for i, (fi, fo) in enumerate(dims)]
    # per-head first Linear(512,512)
    params["head_a"] = [(kaiming(keys[4 + 2 * h], HIDDEN, HIDDEN),
                         jnp.zeros((1, HIDDEN), jnp.float32)) for h in range(N_HEADS)]
    # per-head second Linear(512, 1024)
    params["head_b"] = [(kaiming(keys[5 + 2 * h], HIDDEN, HEAD_OUT),
                         jnp.zeros((1, HEAD_OUT), jnp.float32)) for h in range(N_HEADS)]
    # 6 PReLU slopes: 4 in mlp_in, 1 per head
    params["alphas"] = jnp.full((6,), 0.25, jnp.float32)
    return params


def _vmem_capacity_bytes():
    try:
        info = pltpu.get_tpu_info()
        cap = getattr(info, "vmem_capacity_bytes", None)
        if cap:
            return int(cap)
    except Exception:
        pass
    return None


def _auto_tile_and_vmem(tile_b, vmem_limit_bytes):
    """Size the batch tile and the scoped-VMEM limit per TPU generation."""
    cap = _vmem_capacity_bytes()
    big_vmem = cap is not None and cap >= 100 * 1024 * 1024   # v5e / v6e (128 MiB)
    if tile_b is None:
        tile_b = 1024 if big_vmem else 512                    # v7x (64 MiB) prefers 512
    if vmem_limit_bytes is None:
        vmem_limit_bytes = (96 if big_vmem else 52) * 1024 * 1024
    return tile_b, vmem_limit_bytes


def mapping_forward(x, params, tile_b=None, vmem_limit_bytes=None):
    B, in_dim = x.shape
    tile_b, vmem_limit_bytes = _auto_tile_and_vmem(tile_b, vmem_limit_bytes)

    # No host-side padding / output slicing: ragged last block handled by Pallas.
    TILE_B = min(tile_b, B)
    grid = (pl.cdiv(B, TILE_B),)

    (w1, b1), (w2, b2), (w3, b3), (w4, b4) = params["mlp_in"]
    (wh0a, bh0a), (wh1a, bh1a) = params["head_a"]
    (wh0b, bh0b), (wh1b, bh1b) = params["head_b"]
    # Split each head's second Linear into its two chunk halves so every kernel
    # output is a lane-dense (TILE_B, 512) store and the chunk() glue is free.
    wh0b0, wh0b1 = wh0b[:, :PLANES], wh0b[:, PLANES:]
    bh0b0, bh0b1 = bh0b[:, :PLANES], bh0b[:, PLANES:]
    wh1b0, wh1b1 = wh1b[:, :PLANES], wh1b[:, PLANES:]
    bh1b0, bh1b1 = bh1b[:, :PLANES], bh1b[:, PLANES:]
    alphas = params["alphas"]

    def act_spec(cols):
        return pl.BlockSpec((TILE_B, cols), lambda i: (i, 0))

    def res_spec(shape):
        # Constant block index -> fetched once, resident in VMEM for the whole grid;
        # single-buffered (no point double-buffering a constant-index input).
        return pl.BlockSpec(shape, lambda i: (0, 0), pipeline_mode=pl.Buffered(1))

    in_specs = [
        pl.BlockSpec(memory_space=pltpu.MemorySpace.SMEM),       # 6 PReLU alphas (scalars)
        act_spec(in_dim),                                        # x tile
        res_spec((in_dim, HIDDEN)), res_spec((1, HIDDEN)),       # mlp_in 1
        res_spec((HIDDEN, HIDDEN)), res_spec((1, HIDDEN)),       # mlp_in 2
        res_spec((HIDDEN, HIDDEN)), res_spec((1, HIDDEN)),       # mlp_in 3
        res_spec((HIDDEN, HIDDEN)), res_spec((1, HIDDEN)),       # mlp_in 4
        res_spec((HIDDEN, HIDDEN)), res_spec((1, HIDDEN)),       # head0 L1
        res_spec((HIDDEN, HIDDEN)), res_spec((1, HIDDEN)),       # head1 L1
        res_spec((HIDDEN, PLANES)), res_spec((1, PLANES)),       # head0 L2 chunk0
        res_spec((HIDDEN, PLANES)), res_spec((1, PLANES)),       # head0 L2 chunk1
        res_spec((HIDDEN, PLANES)), res_spec((1, PLANES)),       # head1 L2 chunk0
        res_spec((HIDDEN, PLANES)), res_spec((1, PLANES)),       # head1 L2 chunk1
    ]
    out_spec = pl.BlockSpec((TILE_B, PLANES), lambda i: (i, 0))
    out_shape = [jax.ShapeDtypeStruct((B, PLANES), jnp.float32)] * 4

    o00, o01, o10, o11 = pl.pallas_call(
        _mapping_kernel,
        out_shape=out_shape,
        grid_spec=pltpu.PrefetchScalarGridSpec(
            num_scalar_prefetch=0,
            grid=grid,
            in_specs=in_specs,
            out_specs=[out_spec] * 4,
        ),
        compiler_params=pltpu.CompilerParams(
            # TODO(synk): on v7x, verify in the profile that the batch axis shards across
            # both TensorCores; if one TC idles, switch to pltpu.CORE_PARALLEL / pl.core_map.
            dimension_semantics=("parallel",),
            vmem_limit_bytes=vmem_limit_bytes,
        ),
    )(alphas, x,
      w1, b1, w2, b2, w3, b3, w4, b4,
      wh0a, bh0a, wh1a, bh1a,
      wh0b0, bh0b0, wh0b1, bh0b1,
      wh1b0, bh1b0, wh1b1, bh1b1)

    # glue: .view(B, -1, 1, 1) + torch.chunk(..., 2, dim=1) -> pure reshapes (no copies).
    def as4d(o):
        return o.reshape(B, PLANES, 1, 1)

    return [[as4d(o00), as4d(o01)], [as4d(o10), as4d(o11)]]


def mapping_reference(x, params):
    """Plain-JAX reference (same bf16-weight / f32-accumulate numerics, exact sigmoid)."""
    a = params["alphas"]

    def prelu(v, s):
        return jnp.where(v >= 0, v, s * v)

    def lin(v, w, b):
        return jnp.dot(v.astype(jnp.bfloat16), w,
                       preferred_element_type=jnp.float32) + b

    h = x
    for i, (w, b) in enumerate(params["mlp_in"]):
        h = prelu(lin(h, w, b), a[i])

    s_list = []
    for hd in range(N_HEADS):
        wa, ba = params["head_a"][hd]
        wb, bb = params["head_b"][hd]
        z = prelu(lin(h, wa, ba), a[4 + hd])
        o = jax.nn.sigmoid(lin(z, wb, bb)).reshape(x.shape[0], HEAD_OUT, 1, 1)
        s_list.append([o[:, :PLANES], o[:, PLANES:]])
    return s_list


if __name__ == "__main__":
    key = jax.random.PRNGKey(0)
    kx, kp, kx2 = jax.random.split(key, 3)

    in_dim = 32
    params = make_params(in_dim, kp)

    # Small-shape test (matches the PyTorch harness scale): grid = 1, full-batch tile.
    B = 2
    x = jax.random.normal(kx, (B, in_dim), jnp.float32)
    s_list = mapping_forward(x, params)
    jax.block_until_ready(s_list)

    # Tolerance 2e-3: the kernel uses the EUP approximate reciprocal for sigmoid
    # (~1e-3 relative); the bf16 x bf16 -> f32 matmul numerics match the reference.
    ref = mapping_reference(x, params)
    for i in range(N_HEADS):
        for j in range(2):
            assert s_list[i][j].shape == (B, PLANES, 1, 1)
            assert jnp.allclose(s_list[i][j], ref[i][j], atol=2e-3, rtol=2e-3)

    # Multi-step grid + ragged last block (300 rows, 128-row tiles -> grid 3,
    # last block 44 valid rows, no host-side pad or output slice).
    B2 = 300
    x2 = jax.random.normal(kx2, (B2, in_dim), jnp.float32)
    s2 = mapping_forward(x2, params, tile_b=128)
    jax.block_until_ready(s2)

    ref2 = mapping_reference(x2, params)
    for i in range(N_HEADS):
        for j in range(2):
            assert s2[i][j].shape == (B2, PLANES, 1, 1)
            assert jnp.allclose(s2[i][j], ref2[i][j], atol=2e-3, rtol=2e-3)

    print("KERNEL_OK")
</pallas_src>

<mosaic_0001>
module attributes {stable_mosaic.version = 11 : i64} {
  func.func @_mapping_kernel(%arg0: i32, %arg1: memref<6xf32, #tpu.memory_space<smem>>, %arg2: memref<2x32xf32, #tpu.memory_space<vmem>>, %arg3: memref<32x512xbf16, #tpu.memory_space<vmem>>, %arg4: memref<1x512xf32, #tpu.memory_space<vmem>>, %arg5: memref<512x512xbf16, #tpu.memory_space<vmem>>, %arg6: memref<1x512xf32, #tpu.memory_space<vmem>>, %arg7: memref<512x512xbf16, #tpu.memory_space<vmem>>, %arg8: memref<1x512xf32, #tpu.memory_space<vmem>>, %arg9: memref<512x512xbf16, #tpu.memory_space<vmem>>, %arg10: memref<1x512xf32, #tpu.memory_space<vmem>>, %arg11: memref<512x512xbf16, #tpu.memory_space<vmem>>, %arg12: memref<1x512xf32, #tpu.memory_space<vmem>>, %arg13: memref<512x512xbf16, #tpu.memory_space<vmem>>, %arg14: memref<1x512xf32, #tpu.memory_space<vmem>>, %arg15: memref<512x512xbf16, #tpu.memory_space<vmem>>, %arg16: memref<1x512xf32, #tpu.memory_space<vmem>>, %arg17: memref<512x512xbf16, #tpu.memory_space<vmem>>, %arg18: memref<1x512xf32, #tpu.memory_space<vmem>>, %arg19: memref<512x512xbf16, #tpu.memory_space<vmem>>, %arg20: memref<1x512xf32, #tpu.memory_space<vmem>>, %arg21: memref<512x512xbf16, #tpu.memory_space<vmem>>, %arg22: memref<1x512xf32, #tpu.memory_space<vmem>>, %arg23: memref<2x512xf32, #tpu.memory_space<vmem>>, %arg24: memref<2x512xf32, #tpu.memory_space<vmem>>, %arg25: memref<2x512xf32, #tpu.memory_space<vmem>>, %arg26: memref<2x512xf32, #tpu.memory_space<vmem>>) attributes {dimension_semantics = [#tpu.dimension_semantics<parallel>], iteration_bounds = array<i64: 1>, scalar_prefetch = 0 : i64, scratch_operands = 0 : i64, tpu.core_type = #tpu.core_type<tc>, window_params = [{transform_indices = @transform_0, window_bounds = array<i64: 6>}, {transform_indices = @transform_1, window_bounds = array<i64: 2, 32>}, {pipeline_mode = #tpu.pipeline_mode<synchronous>, transform_indices = @transform_2, window_bounds = array<i64: 32, 512>}, {pipeline_mode = #tpu.pipeline_mode<synchronous>, transform_indices = @transform_3, window_bounds = array<i64: 1, 512>}, {pipeline_mode = #tpu.pipeline_mode<synchronous>, transform_indices = @transform_4, window_bounds = array<i64: 512, 512>}, {pipeline_mode = #tpu.pipeline_mode<synchronous>, transform_indices = @transform_5, window_bounds = array<i64: 1, 512>}, {pipeline_mode = #tpu.pipeline_mode<synchronous>, transform_indices = @transform_6, window_bounds = array<i64: 512, 512>}, {pipeline_mode = #tpu.pipeline_mode<synchronous>, transform_indices = @transform_7, window_bounds = array<i64: 1, 512>}, {pipeline_mode = #tpu.pipeline_mode<synchronous>, transform_indices = @transform_8, window_bounds = array<i64: 512, 512>}, {pipeline_mode = #tpu.pipeline_mode<synchronous>, transform_indices = @transform_9, window_bounds = array<i64: 1, 512>}, {pipeline_mode = #tpu.pipeline_mode<synchronous>, transform_indices = @transform_10, window_bounds = array<i64: 512, 512>}, {pipeline_mode = #tpu.pipeline_mode<synchronous>, transform_indices = @transform_11, window_bounds = array<i64: 1, 512>}, {pipeline_mode = #tpu.pipeline_mode<synchronous>, transform_indices = @transform_12, window_bounds = array<i64: 512, 512>}, {pipeline_mode = #tpu.pipeline_mode<synchronous>, transform_indices = @transform_13, window_bounds = array<i64: 1, 512>}, {pipeline_mode = #tpu.pipeline_mode<synchronous>, transform_indices = @transform_14, window_bounds = array<i64: 512, 512>}, {pipeline_mode = #tpu.pipeline_mode<synchronous>, transform_indices = @transform_15, window_bounds = array<i64: 1, 512>}, {pipeline_mode = #tpu.pipeline_mode<synchronous>, transform_indices = @transform_16, window_bounds = array<i64: 512, 512>}, {pipeline_mode = #tpu.pipeline_mode<synchronous>, transform_indices = @transform_17, window_bounds = array<i64: 1, 512>}, {pipeline_mode = #tpu.pipeline_mode<synchronous>, transform_indices = @transform_18, window_bounds = array<i64: 512, 512>}, {pipeline_mode = #tpu.pipeline_mode<synchronous>, transform_indices = @transform_19, window_bounds = array<i64: 1, 512>}, {pipeline_mode = #tpu.pipeline_mode<synchronous>, transform_indices = @transform_20, window_bounds = array<i64: 512, 512>}, {pipeline_mode = #tpu.pipeline_mode<synchronous>, transform_indices = @transform_21, window_bounds = array<i64: 1, 512>}, {transform_indices = @transform_22, window_bounds = array<i64: 2, 512>}, {transform_indices = @transform_23, window_bounds = array<i64: 2, 512>}, {transform_indices = @transform_24, window_bounds = array<i64: 2, 512>}, {transform_indices = @transform_25, window_bounds = array<i64: 2, 512>}]} {
    %c0 = arith.constant 0 : index
    %0 = memref.load %arg1[%c0] : memref<6xf32, #tpu.memory_space<smem>>
    %c1 = arith.constant 1 : index
    %1 = memref.load %arg1[%c1] : memref<6xf32, #tpu.memory_space<smem>>
    %c2 = arith.constant 2 : index
    %2 = memref.load %arg1[%c2] : memref<6xf32, #tpu.memory_space<smem>>
    %c3 = arith.constant 3 : index
    %3 = memref.load %arg1[%c3] : memref<6xf32, #tpu.memory_space<smem>>
    %c4 = arith.constant 4 : index
    %4 = memref.load %arg1[%c4] : memref<6xf32, #tpu.memory_space<smem>>
    %c5 = arith.constant 5 : index
    %5 = memref.load %arg1[%c5] : memref<6xf32, #tpu.memory_space<smem>>
    %c0_0 = arith.constant 0 : index
    %c0_1 = arith.constant 0 : index
    %6 = vector.load %arg2[%c0_0, %c0_1] : memref<2x32xf32, #tpu.memory_space<vmem>>, vector<2x32xf32>
    %7 = arith.truncf %6 : vector<2x32xf32> to vector<2x32xbf16>
    %c0_2 = arith.constant 0 : index
    %c0_3 = arith.constant 0 : index
    %8 = vector.load %arg3[%c0_2, %c0_3] : memref<32x512xbf16, #tpu.memory_space<vmem>>, vector<32x512xbf16>
    %cst = arith.constant dense<0.000000e+00> : vector<2x512xf32>
    %9 = tpu.matmul %7, %8, %cst {dimension_numbers = #tpu.dot_dimension_numbers<[1], [0], [0], [1], [0, 0, 1, 1], [], []>} : vector<2x32xbf16>, vector<32x512xbf16>, vector<2x512xf32> -> vector<2x512xf32>
    %c0_4 = arith.constant 0 : index
    %c0_5 = arith.constant 0 : index
    %10 = vector.load %arg4[%c0_4, %c0_5] : memref<1x512xf32, #tpu.memory_space<vmem>>, vector<1x512xf32>
    %11 = vector.broadcast %10 : vector<1x512xf32> to vector<2x512xf32>
    %12 = arith.addf %9, %11 : vector<2x512xf32>
    %cst_6 = arith.constant 0.000000e+00 : f32
    %13 = vector.broadcast %cst_6 : f32 to vector<2x512xf32>
    %14 = arith.cmpf oge, %12, %13 : vector<2x512xf32>
    %15 = vector.broadcast %0 : f32 to vector<2x512xf32>
    %16 = arith.mulf %15, %12 : vector<2x512xf32>
    %17 = arith.select %14, %12, %16 : vector<2x512xi1>, vector<2x512xf32>
    %18 = arith.truncf %17 : vector<2x512xf32> to vector<2x512xbf16>
    %c0_7 = arith.constant 0 : index
    %c0_8 = arith.constant 0 : index
    %19 = vector.load %arg5[%c0_7, %c0_8] : memref<512x512xbf16, #tpu.memory_space<vmem>>, vector<512x512xbf16>
    %cst_9 = arith.constant dense<0.000000e+00> : vector<2x512xf32>
    %20 = tpu.matmul %18, %19, %cst_9 {dimension_numbers = #tpu.dot_dimension_numbers<[1], [0], [0], [1], [0, 0, 1, 1], [], []>} : vector<2x512xbf16>, vector<512x512xbf16>, vector<2x512xf32> -> vector<2x512xf32>
    %c0_10 = arith.constant 0 : index
    %c0_11 = arith.constant 0 : index
    %21 = vector.load %arg6[%c0_10, %c0_11] : memref<1x512xf32, #tpu.memory_space<vmem>>, vector<1x512xf32>
    %22 = vector.broadcast %21 : vector<1x512xf32> to vector<2x512xf32>
    %23 = arith.addf %20, %22 : vector<2x512xf32>
    %cst_12 = arith.constant 0.000000e+00 : f32
    %24 = vector.broadcast %cst_12 : f32 to vector<2x512xf32>
    %25 = arith.cmpf oge, %23, %24 : vector<2x512xf32>
    %26 = vector.broadcast %1 : f32 to vector<2x512xf32>
    %27 = arith.mulf %26, %23 : vector<2x512xf32>
    %28 = arith.select %25, %23, %27 : vector<2x512xi1>, vector<2x512xf32>
    %29 = arith.truncf %28 : vector<2x512xf32> to vector<2x512xbf16>
    %c0_13 = arith.constant 0 : index
    %c0_14 = arith.constant 0 : index
    %30 = vector.load %arg7[%c0_13, %c0_14] : memref<512x512xbf16, #tpu.memory_space<vmem>>, vector<512x512xbf16>
    %cst_15 = arith.constant dense<0.000000e+00> : vector<2x512xf32>
    %31 = tpu.matmul %29, %30, %cst_15 {dimension_numbers = #tpu.dot_dimension_numbers<[1], [0], [0], [1], [0, 0, 1, 1], [], []>} : vector<2x512xbf16>, vector<512x512xbf16>, vector<2x512xf32> -> vector<2x512xf32>
    %c0_16 = arith.constant 0 : index
    %c0_17 = arith.constant 0 : index
    %32 = vector.load %arg8[%c0_16, %c0_17] : memref<1x512xf32, #tpu.memory_space<vmem>>, vector<1x512xf32>
    %33 = vector.broadcast %32 : vector<1x512xf32> to vector<2x512xf32>
    %34 = arith.addf %31, %33 : vector<2x512xf32>
    %cst_18 = arith.constant 0.000000e+00 : f32
    %35 = vector.broadcast %cst_18 : f32 to vector<2x512xf32>
    %36 = arith.cmpf oge, %34, %35 : vector<2x512xf32>
    %37 = vector.broadcast %2 : f32 to vector<2x512xf32>
    %38 = arith.mulf %37, %34 : vector<2x512xf32>
    %39 = arith.select %36, %34, %38 : vector<2x512xi1>, vector<2x512xf32>
    %40 = arith.truncf %39 : vector<2x512xf32> to vector<2x512xbf16>
    %c0_19 = arith.constant 0 : index
    %c0_20 = arith.constant 0 : index
    %41 = vector.load %arg9[%c0_19, %c0_20] : memref<512x512xbf16, #tpu.memory_space<vmem>>, vector<512x512xbf16>
    %cst_21 = arith.constant dense<0.000000e+00> : vector<2x512xf32>
    %42 = tpu.matmul %40, %41, %cst_21 {dimension_numbers = #tpu.dot_dimension_numbers<[1], [0], [0], [1], [0, 0, 1, 1], [], []>} : vector<2x512xbf16>, vector<512x512xbf16>, vector<2x512xf32> -> vector<2x512xf32>
    %c0_22 = arith.constant 0 : index
    %c0_23 = arith.constant 0 : index
    %43 = vector.load %arg10[%c0_22, %c0_23] : memref<1x512xf32, #tpu.memory_space<vmem>>, vector<1x512xf32>
    %44 = vector.broadcast %43 : vector<1x512xf32> to vector<2x512xf32>
    %45 = arith.addf %42, %44 : vector<2x512xf32>
    %cst_24 = arith.constant 0.000000e+00 : f32
    %46 = vector.broadcast %cst_24 : f32 to vector<2x512xf32>
    %47 = arith.cmpf oge, %45, %46 : vector<2x512xf32>
    %48 = vector.broadcast %3 : f32 to vector<2x512xf32>
    %49 = arith.mulf %48, %45 : vector<2x512xf32>
    %50 = arith.select %47, %45, %49 : vector<2x512xi1>, vector<2x512xf32>
    %51 = arith.truncf %50 : vector<2x512xf32> to vector<2x512xbf16>
    %c0_25 = arith.constant 0 : index
    %c0_26 = arith.constant 0 : index
    %52 = vector.load %arg11[%c0_25, %c0_26] : memref<512x512xbf16, #tpu.memory_space<vmem>>, vector<512x512xbf16>
    %cst_27 = arith.constant dense<0.000000e+00> : vector<2x512xf32>
    %53 = tpu.matmul %51, %52, %cst_27 {dimension_numbers = #tpu.dot_dimension_numbers<[1], [0], [0], [1], [0, 0, 1, 1], [], []>} : vector<2x512xbf16>, vector<512x512xbf16>, vector<2x512xf32> -> vector<2x512xf32>
    %c0_28 = arith.constant 0 : index
    %c0_29 = arith.constant 0 : index
    %54 = vector.load %arg12[%c0_28, %c0_29] : memref<1x512xf32, #tpu.memory_space<vmem>>, vector<1x512xf32>
    %55 = vector.broadcast %54 : vector<1x512xf32> to vector<2x512xf32>
    %56 = arith.addf %53, %55 : vector<2x512xf32>
    %cst_30 = arith.constant 0.000000e+00 : f32
    %57 = vector.broadcast %cst_30 : f32 to vector<2x512xf32>
    %58 = arith.cmpf oge, %56, %57 : vector<2x512xf32>
    %59 = vector.broadcast %4 : f32 to vector<2x512xf32>
    %60 = arith.mulf %59, %56 : vector<2x512xf32>
    %61 = arith.select %58, %56, %60 : vector<2x512xi1>, vector<2x512xf32>
    %62 = arith.truncf %61 : vector<2x512xf32> to vector<2x512xbf16>
    %c0_31 = arith.constant 0 : index
    %c0_32 = arith.constant 0 : index
    %63 = vector.load %arg15[%c0_31, %c0_32] : memref<512x512xbf16, #tpu.memory_space<vmem>>, vector<512x512xbf16>
    %cst_33 = arith.constant dense<0.000000e+00> : vector<2x512xf32>
    %64 = tpu.matmul %62, %63, %cst_33 {dimension_numbers = #tpu.dot_dimension_numbers<[1], [0], [0], [1], [0, 0, 1, 1], [], []>} : vector<2x512xbf16>, vector<512x512xbf16>, vector<2x512xf32> -> vector<2x512xf32>
    %c0_34 = arith.constant 0 : index
    %c0_35 = arith.constant 0 : index
    %65 = vector.load %arg16[%c0_34, %c0_35] : memref<1x512xf32, #tpu.memory_space<vmem>>, vector<1x512xf32>
    %66 = vector.broadcast %65 : vector<1x512xf32> to vector<2x512xf32>
    %67 = arith.addf %64, %66 : vector<2x512xf32>
    %cst_36 = arith.constant 0.000000e+00 : f32
    %68 = vector.broadcast %cst_36 : f32 to vector<2x512xf32>
    %69 = arith.subf %68, %67 : vector<2x512xf32>
    %70 = math.exp %69 : vector<2x512xf32>
    %cst_37 = arith.constant 1.000000e+00 : f32
    %71 = vector.broadcast %cst_37 : f32 to vector<2x512xf32>
    %72 = arith.addf %71, %70 : vector<2x512xf32>
    %73 = tpu.reciprocal %72 {approx = true} : vector<2x512xf32> -> vector<2x512xf32>
    %c0_38 = arith.constant 0 : index
    %c0_39 = arith.constant 0 : index
    %74 = vector.load %arg23[%c0_38, %c0_39] : memref<2x512xf32, #tpu.memory_space<vmem>>, vector<2x512xf32>
    tpu.vector_store %arg23[%c0_38, %c0_39], %73 {strides = array<i32>} : memref<2x512xf32, #tpu.memory_space<vmem>>, vector<2x512xf32>,
    %c0_40 = arith.constant 0 : index
    %c0_41 = arith.constant 0 : index
    %75 = vector.load %arg17[%c0_40, %c0_41] : memref<512x512xbf16, #tpu.memory_space<vmem>>, vector<512x512xbf16>
    %cst_42 = arith.constant dense<0.000000e+00> : vector<2x512xf32>
    %76 = tpu.matmul %62, %75, %cst_42 {dimension_numbers = #tpu.dot_dimension_numbers<[1], [0], [0], [1], [0, 0, 1, 1], [], []>} : vector<2x512xbf16>, vector<512x512xbf16>, vector<2x512xf32> -> vector<2x512xf32>
    %c0_43 = arith.constant 0 : index
    %c0_44 = arith.constant 0 : index
    %77 = vector.load %arg18[%c0_43, %c0_44] : memref<1x512xf32, #tpu.memory_space<vmem>>, vector<1x512xf32>
    %78 = vector.broadcast %77 : vector<1x512xf32> to vector<2x512xf32>
    %79 = arith.addf %76, %78 : vector<2x512xf32>
    %cst_45 = arith.constant 0.000000e+00 : f32
    %80 = vector.broadcast %cst_45 : f32 to vector<2x512xf32>
    %81 = arith.subf %80, %79 : vector<2x512xf32>
    %82 = math.exp %81 : vector<2x512xf32>
    %cst_46 = arith.constant 1.000000e+00 : f32
    %83 = vector.broadcast %cst_46 : f32 to vector<2x512xf32>
    %84 = arith.addf %83, %82 : vector<2x512xf32>
    %85 = tpu.reciprocal %84 {approx = true} : vector<2x512xf32> -> vector<2x512xf32>
    %c0_47 = arith.constant 0 : index
    %c0_48 = arith.constant 0 : index
    %86 = vector.load %arg24[%c0_47, %c0_48] : memref<2x512xf32, #tpu.memory_space<vmem>>, vector<2x512xf32>
    tpu.vector_store %arg24[%c0_47, %c0_48], %85 {strides = array<i32>} : memref<2x512xf32, #tpu.memory_space<vmem>>, vector<2x512xf32>,
    %c0_49 = arith.constant 0 : index
    %c0_50 = arith.constant 0 : index
    %87 = vector.load %arg13[%c0_49, %c0_50] : memref<512x512xbf16, #tpu.memory_space<vmem>>, vector<512x512xbf16>
    %cst_51 = arith.constant dense<0.000000e+00> : vector<2x512xf32>
    %88 = tpu.matmul %51, %87, %cst_51 {dimension_numbers = #tpu.dot_dimension_numbers<[1], [0], [0], [1], [0, 0, 1, 1], [], []>} : vector<2x512xbf16>, vector<512x512xbf16>, vector<2x512xf32> -> vector<2x512xf32>
    %c0_52 = arith.constant 0 : index
    %c0_53 = arith.constant 0 : index
    %89 = vector.load %arg14[%c0_52, %c0_53] : memref<1x512xf32, #tpu.memory_space<vmem>>, vector<1x512xf32>
    %90 = vector.broadcast %89 : vector<1x512xf32> to vector<2x512xf32>
    %91 = arith.addf %88, %90 : vector<2x512xf32>
    %cst_54 = arith.constant 0.000000e+00 : f32
    %92 = vector.broadcast %cst_54 : f32 to vector<2x512xf32>
    %93 = arith.cmpf oge, %91, %92 : vector<2x512xf32>
    %94 = vector.broadcast %5 : f32 to vector<2x512xf32>
    %95 = arith.mulf %94, %91 : vector<2x512xf32>
    %96 = arith.select %93, %91, %95 : vector<2x512xi1>, vector<2x512xf32>
    %97 = arith.truncf %96 : vector<2x512xf32> to vector<2x512xbf16>
    %c0_55 = arith.constant 0 : index
    %c0_56 = arith.constant 0 : index
    %98 = vector.load %arg19[%c0_55, %c0_56] : memref<512x512xbf16, #tpu.memory_space<vmem>>, vector<512x512xbf16>
    %cst_57 = arith.constant dense<0.000000e+00> : vector<2x512xf32>
    %99 = tpu.matmul %97, %98, %cst_57 {dimension_numbers = #tpu.dot_dimension_numbers<[1], [0], [0], [1], [0, 0, 1, 1], [], []>} : vector<2x512xbf16>, vector<512x512xbf16>, vector<2x512xf32> -> vector<2x512xf32>
    %c0_58 = arith.constant 0 : index
    %c0_59 = arith.constant 0 : index
    %100 = vector.load %arg20[%c0_58, %c0_59] : memref<1x512xf32, #tpu.memory_space<vmem>>, vector<1x512xf32>
    %101 = vector.broadcast %100 : vector<1x512xf32> to vector<2x512xf32>
    %102 = arith.addf %99, %101 : vector<2x512xf32>
    %cst_60 = arith.constant 0.000000e+00 : f32
    %103 = vector.broadcast %cst_60 : f32 to vector<2x512xf32>
    %104 = arith.subf %103, %102 : vector<2x512xf32>
    %105 = math.exp %104 : vector<2x512xf32>
    %cst_61 = arith.constant 1.000000e+00 : f32
    %106 = vector.broadcast %cst_61 : f32 to vector<2x512xf32>
    %107 = arith.addf %106, %105 : vector<2x512xf32>
    %108 = tpu.reciprocal %107 {approx = true} : vector<2x512xf32> -> vector<2x512xf32>
    %c0_62 = arith.constant 0 : index
    %c0_63 = arith.constant 0 : index
    %109 = vector.load %arg25[%c0_62, %c0_63] : memref<2x512xf32, #tpu.memory_space<vmem>>, vector<2x512xf32>
    tpu.vector_store %arg25[%c0_62, %c0_63], %108 {strides = array<i32>} : memref<2x512xf32, #tpu.memory_space<vmem>>, vector<2x512xf32>,
    %c0_64 = arith.constant 0 : index
    %c0_65 = arith.constant 0 : index
    %110 = vector.load %arg21[%c0_64, %c0_65] : memref<512x512xbf16, #tpu.memory_space<vmem>>, vector<512x512xbf16>
    %cst_66 = arith.constant dense<0.000000e+00> : vector<2x512xf32>
    %111 = tpu.matmul %97, %110, %cst_66 {dimension_numbers = #tpu.dot_dimension_numbers<[1], [0], [0], [1], [0, 0, 1, 1], [], []>} : vector<2x512xbf16>, vector<512x512xbf16>, vector<2x512xf32> -> vector<2x512xf32>
    %c0_67 = arith.constant 0 : index
    %c0_68 = arith.constant 0 : index
    %112 = vector.load %arg22[%c0_67, %c0_68] : memref<1x512xf32, #tpu.memory_space<vmem>>, vector<1x512xf32>
    %113 = vector.broadcast %112 : vector<1x512xf32> to vector<2x512xf32>
    %114 = arith.addf %111, %113 : vector<2x512xf32>
    %cst_69 = arith.constant 0.000000e+00 : f32
    %115 = vector.broadcast %cst_69 : f32 to vector<2x512xf32>
    %116 = arith.subf %115, %114 : vector<2x512xf32>
    %117 = math.exp %116 : vector<2x512xf32>
    %cst_70 = arith.constant 1.000000e+00 : f32
    %118 = vector.broadcast %cst_70 : f32 to vector<2x512xf32>
    %119 = arith.addf %118, %117 : vector<2x512xf32>
    %120 = tpu.reciprocal %119 {approx = true} : vector<2x512xf32> -> vector<2x512xf32>
    %c0_71 = arith.constant 0 : index
    %c0_72 = arith.constant 0 : index
    %121 = vector.load %arg26[%c0_71, %c0_72] : memref<2x512xf32, #tpu.memory_space<vmem>>, vector<2x512xf32>
    tpu.vector_store %arg26[%c0_71, %c0_72], %120 {strides = array<i32>} : memref<2x512xf32, #tpu.memory_space<vmem>>, vector<2x512xf32>,
    return
  }
  func.func @transform_0(%arg0: i32) -> i32 {
    %c0_i32 = arith.constant 0 : i32
    %c0_i32_0 = arith.constant 0 : i32
    return %c0_i32 : i32
  }
  func.func @transform_1(%arg0: i32) -> (i32, i32) {
    %c0_i32 = arith.constant 0 : i32
    %c0_i32_0 = arith.constant 0 : i32
    return %arg0, %c0_i32 : i32, i32
  }
  func.func @transform_2(%arg0: i32) -> (i32, i32) {
    %c0_i32 = arith.constant 0 : i32
    %c0_i32_0 = arith.constant 0 : i32
    %c0_i32_1 = arith.constant 0 : i32
    return %c0_i32, %c0_i32_0 : i32, i32
  }
  func.func @transform_3(%arg0: i32) -> (i32, i32) {
    %c0_i32 = arith.constant 0 : i32
    %c0_i32_0 = arith.constant 0 : i32
    %c0_i32_1 = arith.constant 0 : i32
    return %c0_i32, %c0_i32_0 : i32, i32
  }
  func.func @transform_4(%arg0: i32) -> (i32, i32) {
    %c0_i32 = arith.constant 0 : i32
    %c0_i32_0 = arith.constant 0 : i32
    %c0_i32_1 = arith.constant 0 : i32
    return %c0_i32, %c0_i32_0 : i32, i32
  }
  func.func @transform_5(%arg0: i32) -> (i32, i32) {
    %c0_i32 = arith.constant 0 : i32
    %c0_i32_0 = arith.constant 0 : i32
    %c0_i32_1 = arith.constant 0 : i32
    return %c0_i32, %c0_i32_0 : i32, i32
  }
  func.func @transform_6(%arg0: i32) -> (i32, i32) {
    %c0_i32 = arith.constant 0 : i32
    %c0_i32_0 = arith.constant 0 : i32
    %c0_i32_1 = arith.constant 0 : i32
    return %c0_i32, %c0_i32_0 : i32, i32
  }
  func.func @transform_7(%arg0: i32) -> (i32, i32) {
    %c0_i32 = arith.constant 0 : i32
    %c0_i32_0 = arith.constant 0 : i32
    %c0_i32_1 = arith.constant 0 : i32
    return %c0_i32, %c0_i32_0 : i32, i32
  }
  func.func @transform_8(%arg0: i32) -> (i32, i32) {
    %c0_i32 = arith.constant 0 : i32
    %c0_i32_0 = arith.constant 0 : i32
    %c0_i32_1 = arith.constant 0 : i32
    return %c0_i32, %c0_i32_0 : i32, i32
  }
  func.func @transform_9(%arg0: i32) -> (i32, i32) {
    %c0_i32 = arith.constant 0 : i32
    %c0_i32_0 = arith.constant 0 : i32
    %c0_i32_1 = arith.constant 0 : i32
    return %c0_i32, %c0_i32_0 : i32, i32
  }
  func.func @transform_10(%arg0: i32) -> (i32, i32) {
    %c0_i32 = arith.constant 0 : i32
    %c0_i32_0 = arith.constant 0 : i32
    %c0_i32_1 = arith.constant 0 : i32
    return %c0_i32, %c0_i32_0 : i32, i32
  }
  func.func @transform_11(%arg0: i32) -> (i32, i32) {
    %c0_i32 = arith.constant 0 : i32
    %c0_i32_0 = arith.constant 0 : i32
    %c0_i32_1 = arith.constant 0 : i32
    return %c0_i32, %c0_i32_0 : i32, i32
  }
  func.func @transform_12(%arg0: i32) -> (i32, i32) {
    %c0_i32 = arith.constant 0 : i32
    %c0_i32_0 = arith.constant 0 : i32
    %c0_i32_1 = arith.constant 0 : i32
    return %c0_i32, %c0_i32_0 : i32, i32
  }
  func.func @transform_13(%arg0: i32) -> (i32, i32) {
    %c0_i32 = arith.constant 0 : i32
    %c0_i32_0 = arith.constant 0 : i32
    %c0_i32_1 = arith.constant 0 : i32
    return %c0_i32, %c0_i32_0 : i32, i32
  }
  func.func @transform_14(%arg0: i32) -> (i32, i32) {
    %c0_i32 = arith.constant 0 : i32
    %c0_i32_0 = arith.constant 0 : i32
    %c0_i32_1 = arith.constant 0 : i32
    return %c0_i32, %c0_i32_0 : i32, i32
  }
  func.func @transform_15(%arg0: i32) -> (i32, i32) {
    %c0_i32 = arith.constant 0 : i32
    %c0_i32_0 = arith.constant 0 : i32
    %c0_i32_1 = arith.constant 0 : i32
    return %c0_i32, %c0_i32_0 : i32, i32
  }
  func.func @transform_16(%arg0: i32) -> (i32, i32) {
    %c0_i32 = arith.constant 0 : i32
    %c0_i32_0 = arith.constant 0 : i32
    %c0_i32_1 = arith.constant 0 : i32
    return %c0_i32, %c0_i32_0 : i32, i32
  }
  func.func @transform_17(%arg0: i32) -> (i32, i32) {
    %c0_i32 = arith.constant 0 : i32
    %c0_i32_0 = arith.constant 0 : i32
    %c0_i32_1 = arith.constant 0 : i32
    return %c0_i32, %c0_i32_0 : i32, i32
  }
  func.func @transform_18(%arg0: i32) -> (i32, i32) {
    %c0_i32 = arith.constant 0 : i32
    %c0_i32_0 = arith.constant 0 : i32
    %c0_i32_1 = arith.constant 0 : i32
    return %c0_i32, %c0_i32_0 : i32, i32
  }
  func.func @transform_19(%arg0: i32) -> (i32, i32) {
    %c0_i32 = arith.constant 0 : i32
    %c0_i32_0 = arith.constant 0 : i32
    %c0_i32_1 = arith.constant 0 : i32
    return %c0_i32, %c0_i32_0 : i32, i32
  }
  func.func @transform_20(%arg0: i32) -> (i32, i32) {
    %c0_i32 = arith.constant 0 : i32
    %c0_i32_0 = arith.constant 0 : i32
    %c0_i32_1 = arith.constant 0 : i32
    return %c0_i32, %c0_i32_0 : i32, i32
  }
  func.func @transform_21(%arg0: i32) -> (i32, i32) {
    %c0_i32 = arith.constant 0 : i32
    %c0_i32_0 = arith.constant 0 : i32
    %c0_i32_1 = arith.constant 0 : i32
    return %c0_i32, %c0_i32_0 : i32, i32
  }
  func.func @transform_22(%arg0: i32) -> (i32, i32) {
    %c0_i32 = arith.constant 0 : i32
    %c0_i32_0 = arith.constant 0 : i32
    return %arg0, %c0_i32 : i32, i32
  }
  func.func @transform_23(%arg0: i32) -> (i32, i32) {
    %c0_i32 = arith.constant 0 : i32
    %c0_i32_0 = arith.constant 0 : i32
    return %arg0, %c0_i32 : i32, i32
  }
  func.func @transform_24(%arg0: i32) -> (i32, i32) {
    %c0_i32 = arith.constant 0 : i32
    %c0_i32_0 = arith.constant 0 : i32
    return %arg0, %c0_i32 : i32, i32
  }
  func.func @transform_25(%arg0: i32) -> (i32, i32) {
    %c0_i32 = arith.constant 0 : i32
    %c0_i32_0 = arith.constant 0 : i32
    return %arg0, %c0_i32 : i32, i32
  }
}

</mosaic_0001>

<llo_original>
// kernel: tpu_custom_call.1
$region0: #{tpu_custom_call.1}
  #allocation0 [shape = 'u32[]', space=smem, size = 0x4, offset = 0x4, fixed_abs, tag = 'smem constant byte address 0x4 - core index']
  #allocation1 [shape = 'u32[144,128]{1,0:T(1,128)}', space=vmem, size = 0x12000, scoped, tag = 'internal scratch']
  %s0 = inlined_call_operand.hbm [shape: f32[6], index: 0, kind: input, shape index: {}]
  %s1 = inlined_call_operand.hbm [shape: f32[2,32], index: 1, kind: input, shape index: {}]
  %s2 = inlined_call_operand.hbm [shape: bf16[32,512], index: 2, kind: input, shape index: {}]
  %s3 = inlined_call_operand.vmem [shape: f32[1,512], index: 3, kind: input, shape index: {}]
  %s4 = inlined_call_operand.hbm [shape: bf16[512,512], index: 4, kind: input, shape index: {}]
  %s5 = inlined_call_operand.vmem [shape: f32[1,512], index: 5, kind: input, shape index: {}]
  %s6 = inlined_call_operand.hbm [shape: bf16[512,512], index: 6, kind: input, shape index: {}]
  %s7 = inlined_call_operand.vmem [shape: f32[1,512], index: 7, kind: input, shape index: {}]
  %s8 = inlined_call_operand.hbm [shape: bf16[512,512], index: 8, kind: input, shape index: {}]
  %s9 = inlined_call_operand.vmem [shape: f32[1,512], index: 9, kind: input, shape index: {}]
  %s10 = inlined_call_operand.hbm [shape: bf16[512,512], index: 10, kind: input, shape index: {}]
  %s11 = inlined_call_operand.vmem [shape: f32[1,512], index: 11, kind: input, shape index: {}]
  %s12 = inlined_call_operand.hbm [shape: bf16[512,512], index: 12, kind: input, shape index: {}]
  %s13 = inlined_call_operand.vmem [shape: f32[1,512], index: 13, kind: input, shape index: {}]
  %s14 = inlined_call_operand.hbm [shape: bf16[512,512], index: 14, kind: input, shape index: {}]
  %s15 = inlined_call_operand.vmem [shape: f32[1,512], index: 15, kind: input, shape index: {}]
  %s16 = inlined_call_operand.hbm [shape: bf16[512,512], index: 16, kind: input, shape index: {}]
  %s17 = inlined_call_operand.vmem [shape: f32[1,512], index: 17, kind: input, shape index: {}]
  %s18 = inlined_call_operand.hbm [shape: bf16[512,512], index: 18, kind: input, shape index: {}]
  %s19 = inlined_call_operand.vmem [shape: f32[1,512], index: 19, kind: input, shape index: {}]
  %s20 = inlined_call_operand.hbm [shape: bf16[512,512], index: 20, kind: input, shape index: {}]
  %s21 = inlined_call_operand.vmem [shape: f32[1,512], index: 21, kind: input, shape index: {}]
  %s22 = inlined_call_operand.hbm [shape: f32[2,512], index: 22, kind: output, shape index: {0}]
  %s23 = inlined_call_operand.hbm [shape: f32[2,512], index: 23, kind: output, shape index: {1}]
  %s24 = inlined_call_operand.hbm [shape: f32[2,512], index: 24, kind: output, shape index: {2}]
  %s25 = inlined_call_operand.hbm [shape: f32[2,512], index: 25, kind: output, shape index: {3}]
  %26 = xla_tuple %s22, %s23, %s24, %s25
  %s27 = sld [smem:[#allocation0]]
  $region170: #{tpu_custom_call.1} parent=0
    _
  %s29 = ssub.s32 1, %s27
  %s30 = scalar_select 0, %s29, %s27
  $region1: #{tpu_custom_call.1} parent=0
    #allocation2 [shape = 'u8[512]{0}', space=smem, size = 0x200, scoped, tag = 'input window, operand 0, single buffered']
    #allocation3 [shape = 's32[1]{0}', space=sflag, size = 0x4, scoped, tag = 'scoped memory for tpu_custom_call.1']
    #allocation4 [shape = 's32[1]{0}', space=sflag, size = 0x4, scoped, tag = 'scoped memory for tpu_custom_call.1']
    #allocation5 [shape = 's32[1]{0}', space=sflag, size = 0x4, scoped, tag = 'scoped memory for tpu_custom_call.1']
    #allocation6 [shape = 'u8[1024]{0}', space=vmem, size = 0x400, scoped, tag = 'input window, operand 1, single buffered']
    #allocation7 [shape = 'u8[32768]{0}', space=vmem, size = 0x8000, scoped, tag = 'input window, operand 2, single buffered']
    #allocation8 [shape = 's32[1]{0}', space=sflag, size = 0x4, scoped, tag = 'scoped memory for tpu_custom_call.1']
    #allocation9 [shape = 'u8[524288]{0}', space=vmem, size = 0x80000, scoped, tag = 'input window, operand 4, single buffered']
    #allocation10 [shape = 'u8[524288]{0}', space=vmem, size = 0x80000, scoped, tag = 'input window, operand 6, single buffered']
    #allocation11 [shape = 's32[1]{0}', space=sflag, size = 0x4, scoped, tag = 'scoped memory for tpu_custom_call.1']
    #allocation12 [shape = 'u8[524288]{0}', space=vmem, size = 0x80000, scoped, tag = 'input window, operand 8, single buffered']
    #allocation13 [shape = 'u8[524288]{0}', space=vmem, size = 0x80000, scoped, tag = 'input window, operand 10, single buffered']
    #allocation14 [shape = 's32[1]{0}', space=sflag, size = 0x4, scoped, tag = 'scoped memory for tpu_custom_call.1']
    #allocation15 [shape = 'u8[524288]{0}', space=vmem, size = 0x80000, scoped, tag = 'input window, operand 12, single buffered']
    #allocation16 [shape = 'u8[524288]{0}', space=vmem, size = 0x80000, scoped, tag = 'input window, operand 14, single buffered']
    #allocation17 [shape = 's32[1]{0}', space=sflag, size = 0x4, scoped, tag = 'scoped memory for tpu_custom_call.1']
    #allocation18 [shape = 'u8[524288]{0}', space=vmem, size = 0x80000, scoped, tag = 'input window, operand 16, single buffered']
    #allocation19 [shape = 'u8[524288]{0}', space=vmem, size = 0x80000, scoped, tag = 'input window, operand 18, single buffered']
    #allocation20 [shape = 's32[1]{0}', space=sflag, size = 0x4, scoped, tag = 'scoped memory for tpu_custom_call.1']
    #allocation21 [shape = 'u8[524288]{0}', space=vmem, size = 0x80000, scoped, tag = 'input window, operand 20, single buffered']
    #allocation22 [shape = 'u8[4096]{0}', space=vmem, size = 0x1000, scoped, tag = 'output window, operand 0, single buffered']
    #allocation23 [shape = 'u8[4096]{0}', space=vmem, size = 0x1000, scoped, tag = 'output window, operand 1, single buffered']
    #allocation24 [shape = 's32[1]{0}', space=sflag, size = 0x4, scoped, tag = 'scoped memory for tpu_custom_call.1']
    #allocation25 [shape = 'u8[4096]{0}', space=vmem, size = 0x1000, scoped, tag = 'output window, operand 2, single buffered']
    #allocation26 [shape = 'u8[4096]{0}', space=vmem, size = 0x1000, scoped, tag = 'output window, operand 3, single buffered']
    #allocation27 [shape = 's32[1]{0}', space=sflag, size = 0x4, scoped, tag = 'scoped memory for tpu_custom_call.1']
    %31 = vsyncpa [#allocation5], 0
    %32 = vsyncpa [#allocation3], 0
    %33 = vsyncpa [#allocation8], 0
    %34 = vsyncpa [#allocation11], 0
    %35 = vsyncpa [#allocation14], 0
    %36 = vsyncpa [#allocation17], 0
    %37 = vsyncpa [#allocation20], 0
    %38 = vsyncpa [#allocation4], 0
    %39 = vsyncpa [#allocation24], 0
    %40 = vsyncpa [#allocation27], 0
    // Predicated region
    $region2: #{tpu_custom_call.1} parent=1 // pred_check
      _
    $region3: #{tpu_custom_call.1} parent=1 // pred_check_branch
      %42 = sbr.rel (0) target = $region5
    $region4: #{tpu_custom_call.1} parent=1 // pred_region
      %s44 = ssub.s32 16, 16
      %45 = vsyncadd [#allocation5], %s44
      %48 = dma.hbm_to_smem %s0, 16, [#allocation2], [#allocation5]
    $region5: #{tpu_custom_call.1} parent=1 // pred_fallthru
      _
    // Predicated region
    $region6: #{tpu_custom_call.1} parent=1 // pred_check
      _
    $region7: #{tpu_custom_call.1} parent=1 // pred_check_branch
      %50 = sbr.rel (0) target = $region9
    $region8: #{tpu_custom_call.1} parent=1 // pred_region
      %s52 = ssub.s32 32, 32
      %53 = vsyncadd [#allocation3], %s52
      %s55 = sshll.u32 [#allocation6], 4
      %s56 = int_to_ptr.vmem [resolvable:$true] %s55
      %58 = dma.hbm_to_vmem [thread:$0]  %s1, 32, %s56, [#allocation3]
    $region9: #{tpu_custom_call.1} parent=1 // pred_fallthru
      _
    // Predicated region
    $region10: #{tpu_custom_call.1} parent=1 // pred_check
      _
    $region11: #{tpu_custom_call.1} parent=1 // pred_check_branch
      %60 = sbr.rel (0) target = $region13
    $region12: #{tpu_custom_call.1} parent=1 // pred_region
      %s62 = ssub.s32 1024, 1024
      %63 = vsyncadd [#allocation8], %s62
      %s64 = sshll.u32 [#allocation7], 4
      %s65 = int_to_ptr.vmem [resolvable:$true] %s64
      %70 = dma.hbm_to_vmem [thread:$0]  %s2, 1024, %s65, [#allocation8], 256, 256, 16
    $region13: #{tpu_custom_call.1} parent=1 // pred_fallthru
      _
    // Predicated region
    $region14: #{tpu_custom_call.1} parent=1 // pred_check
      _
    $region15: #{tpu_custom_call.1} parent=1 // pred_check_branch
      %72 = sbr.rel (0) target = $region17
    $region16: #{tpu_custom_call.1} parent=1 // pred_region
      _
    $region17: #{tpu_custom_call.1} parent=1 // pred_fallthru
      _
    // Predicated region
    $region18: #{tpu_custom_call.1} parent=1 // pred_check
      _
    $region19: #{tpu_custom_call.1} parent=1 // pred_check_branch
      %74 = sbr.rel (0) target = $region21
    $region20: #{tpu_custom_call.1} parent=1 // pred_region
      %s76 = ssub.s32 16384, 16384
      %77 = vsyncadd [#allocation8], %s76
      %s78 = sshll.u32 [#allocation9], 4
      %s79 = int_to_ptr.vmem [resolvable:$true] %s78
      %84 = dma.hbm_to_vmem [thread:$0]  %s4, 16384, %s79, [#allocation8], 256, 256, 16
    $region21: #{tpu_custom_call.1} parent=1 // pred_fallthru
      _
    // Predicated region
    $region22: #{tpu_custom_call.1} parent=1 // pred_check
      _
    $region23: #{tpu_custom_call.1} parent=1 // pred_check_branch
      %86 = sbr.rel (0) target = $region25
    $region24: #{tpu_custom_call.1} parent=1 // pred_region
      _
    $region25: #{tpu_custom_call.1} parent=1 // pred_fallthru
      _
    // Predicated region
    $region26: #{tpu_custom_call.1} parent=1 // pred_check
      _
    $region27: #{tpu_custom_call.1} parent=1 // pred_check_branch
      %88 = sbr.rel (0) target = $region29
    $region28: #{tpu_custom_call.1} parent=1 // pred_region
      %s90 = ssub.s32 16384, 16384
      %91 = vsyncadd [#allocation11], %s90
      %s92 = sshll.u32 [#allocation10], 4
      %s93 = int_to_ptr.vmem [resolvable:$true] %s92
      %98 = dma.hbm_to_vmem [thread:$0]  %s6, 16384, %s93, [#allocation11], 256, 256, 16
    $region29: #{tpu_custom_call.1} parent=1 // pred_fallthru
      _
    // Predicated region
    $region30: #{tpu_custom_call.1} parent=1 // pred_check
      _
    $region31: #{tpu_custom_call.1} parent=1 // pred_check_branch
      %100 = sbr.rel (0) target = $region33
    $region32: #{tpu_custom_call.1} parent=1 // pred_region
      _
    $region33: #{tpu_custom_call.1} parent=1 // pred_fallthru
      _
    // Predicated region
    $region34: #{tpu_custom_call.1} parent=1 // pred_check
      _
    $region35: #{tpu_custom_call.1} parent=1 // pred_check_branch
      %102 = sbr.rel (0) target = $region37
    $region36: #{tpu_custom_call.1} parent=1 // pred_region
      %s104 = ssub.s32 16384, 16384
      %105 = vsyncadd [#allocation11], %s104
      %s106 = sshll.u32 [#allocation12], 4
      %s107 = int_to_ptr.vmem [resolvable:$true] %s106
      %112 = dma.hbm_to_vmem [thread:$0]  %s8, 16384, %s107, [#allocation11], 256, 256, 16
    $region37: #{tpu_custom_call.1} parent=1 // pred_fallthru
      _
    // Predicated region
    $region38: #{tpu_custom_call.1} parent=1 // pred_check
      _
    $region39: #{tpu_custom_call.1} parent=1 // pred_check_branch
      %114 = sbr.rel (0) target = $region41
    $region40: #{tpu_custom_call.1} parent=1 // pred_region
      _
    $region41: #{tpu_custom_call.1} parent=1 // pred_fallthru
      _
    // Predicated region
    $region42: #{tpu_custom_call.1} parent=1 // pred_check
      _
    $region43: #{tpu_custom_call.1} parent=1 // pred_check_branch
      %116 = sbr.rel (0) target = $region45
    $region44: #{tpu_custom_call.1} parent=1 // pred_region
      %s118 = ssub.s32 16384, 16384
      %119 = vsyncadd [#allocation14], %s118
      %s120 = sshll.u32 [#allocation13], 4
      %s121 = int_to_ptr.vmem [resolvable:$true] %s120
      %126 = dma.hbm_to_vmem [thread:$0]  %s10, 16384, %s121, [#allocation14], 256, 256, 16
    $region45: #{tpu_custom_call.1} parent=1 // pred_fallthru
      _
    // Predicated region
    $region46: #{tpu_custom_call.1} parent=1 // pred_check
      _
    $region47: #{tpu_custom_call.1} parent=1 // pred_check_branch
      %128 = sbr.rel (0) target = $region49
    $region48: #{tpu_custom_call.1} parent=1 // pred_region
      _
    $region49: #{tpu_custom_call.1} parent=1 // pred_fallthru
      _
    // Predicated region
    $region50: #{tpu_custom_call.1} parent=1 // pred_check
      _
    $region51: #{tpu_custom_call.1} parent=1 // pred_check_branch
      %130 = sbr.rel (0) target = $region53
    $region52: #{tpu_custom_call.1} parent=1 // pred_region
      %s132 = ssub.s32 16384, 16384
      %133 = vsyncadd [#allocation14], %s132
      %s134 = sshll.u32 [#allocation15], 4
      %s135 = int_to_ptr.vmem [resolvable:$true] %s134
      %140 = dma.hbm_to_vmem [thread:$0]  %s12, 16384, %s135, [#allocation14], 256, 256, 16
    $region53: #{tpu_custom_call.1} parent=1 // pred_fallthru
      _
    // Predicated region
    $region54: #{tpu_custom_call.1} parent=1 // pred_check
      _
    $region55: #{tpu_custom_call.1} parent=1 // pred_check_branch
      %142 = sbr.rel (0) target = $region57
    $region56: #{tpu_custom_call.1} parent=1 // pred_region
      _
    $region57: #{tpu_custom_call.1} parent=1 // pred_fallthru
      _
    // Predicated region
    $region58: #{tpu_custom_call.1} parent=1 // pred_check
      _
    $region59: #{tpu_custom_call.1} parent=1 // pred_check_branch
      %144 = sbr.rel (0) target = $region61
    $region60: #{tpu_custom_call.1} parent=1 // pred_region
      %s146 = ssub.s32 16384, 16384
      %147 = vsyncadd [#allocation17], %s146
      %s148 = sshll.u32 [#allocation16], 4
      %s149 = int_to_ptr.vmem [resolvable:$true] %s148
      %154 = dma.hbm_to_vmem [thread:$0]  %s14, 16384, %s149, [#allocation17], 256, 256, 16
    $region61: #{tpu_custom_call.1} parent=1 // pred_fallthru
      _
    // Predicated region
    $region62: #{tpu_custom_call.1} parent=1 // pred_check
      _
    $region63: #{tpu_custom_call.1} parent=1 // pred_check_branch
      %156 = sbr.rel (0) target = $region65
    $region64: #{tpu_custom_call.1} parent=1 // pred_region
      _
    $region65: #{tpu_custom_call.1} parent=1 // pred_fallthru
      _
    // Predicated region
    $region66: #{tpu_custom_call.1} parent=1 // pred_check
      _
    $region67: #{tpu_custom_call.1} parent=1 // pred_check_branch
      %158 = sbr.rel (0) target = $region69
    $region68: #{tpu_custom_call.1} parent=1 // pred_region
      %s160 = ssub.s32 16384, 16384
      %161 = vsyncadd [#allocation17], %s160
      %s162 = sshll.u32 [#allocation18], 4
      %s163 = int_to_ptr.vmem [resolvable:$true] %s162
      %168 = dma.hbm_to_vmem [thread:$0]  %s16, 16384, %s163, [#allocation17], 256, 256, 16
    $region69: #{tpu_custom_call.1} parent=1 // pred_fallthru
      _
    // Predicated region
    $region70: #{tpu_custom_call.1} parent=1 // pred_check
      _
    $region71: #{tpu_custom_call.1} parent=1 // pred_check_branch
      %170 = sbr.rel (0) target = $region73
    $region72: #{tpu_custom_call.1} parent=1 // pred_region
      _
    $region73: #{tpu_custom_call.1} parent=1 // pred_fallthru
      _
    // Predicated region
    $region74: #{tpu_custom_call.1} parent=1 // pred_check
      _
    $region75: #{tpu_custom_call.1} parent=1 // pred_check_branch
      %172 = sbr.rel (0) target = $region77
    $region76: #{tpu_custom_call.1} parent=1 // pred_region
      %s174 = ssub.s32 16384, 16384
      %175 = vsyncadd [#allocation20], %s174
      %s176 = sshll.u32 [#allocation19], 4
      %s177 = int_to_ptr.vmem [resolvable:$true] %s176
      %182 = dma.hbm_to_vmem [thread:$0]  %s18, 16384, %s177, [#allocation20], 256, 256, 16
    $region77: #{tpu_custom_call.1} parent=1 // pred_fallthru
      _
    // Predicated region
    $region78: #{tpu_custom_call.1} parent=1 // pred_check
      _
    $region79: #{tpu_custom_call.1} parent=1 // pred_check_branch
      %184 = sbr.rel (0) target = $region81
    $region80: #{tpu_custom_call.1} parent=1 // pred_region
      _
    $region81: #{tpu_custom_call.1} parent=1 // pred_fallthru
      _
    // Predicated region
    $region82: #{tpu_custom_call.1} parent=1 // pred_check
      _
    $region83: #{tpu_custom_call.1} parent=1 // pred_check_branch
      %186 = sbr.rel (0) target = $region85
    $region84: #{tpu_custom_call.1} parent=1 // pred_region
      %s188 = ssub.s32 16384, 16384
      %189 = vsyncadd [#allocation20], %s188
      %s190 = sshll.u32 [#allocation21], 4
      %s191 = int_to_ptr.vmem [resolvable:$true] %s190
      %196 = dma.hbm_to_vmem [thread:$0]  %s20, 16384, %s191, [#allocation20], 256, 256, 16
    $region85: #{tpu_custom_call.1} parent=1 // pred_fallthru
      _
    // Predicated region
    $region86: #{tpu_custom_call.1} parent=1 // pred_check
      _
    $region87: #{tpu_custom_call.1} parent=1 // pred_check_branch
      %198 = sbr.rel (0) target = $region89
    $region88: #{tpu_custom_call.1} parent=1 // pred_region
      _
    $region89: #{tpu_custom_call.1} parent=1 // pred_fallthru
      _
    // Predicated region
    $region90: #{tpu_custom_call.1} parent=1 // pred_check
      _
    $region91: #{tpu_custom_call.1} parent=1 // pred_check_branch
      %200 = sbr.rel (0) target = $region93
    $region92: #{tpu_custom_call.1} parent=1 // pred_region
      %201 = dma.done [#allocation5], 16
    $region93: #{tpu_custom_call.1} parent=1 // pred_fallthru
      _
    // Predicated region
    $region94: #{tpu_custom_call.1} parent=1 // pred_check
      _
    $region95: #{tpu_custom_call.1} parent=1 // pred_check_branch
      %203 = sbr.rel (0) target = $region97
    $region96: #{tpu_custom_call.1} parent=1 // pred_region
      %204 = dma.done [#allocation3], 32
    $region97: #{tpu_custom_call.1} parent=1 // pred_fallthru
      _
    // Predicated region
    $region98: #{tpu_custom_call.1} parent=1 // pred_check
      _
    $region99: #{tpu_custom_call.1} parent=1 // pred_check_branch
      %206 = sbr.rel (0) target = $region101
    $region100: #{tpu_custom_call.1} parent=1 // pred_region
      %207 = dma.done [#allocation8], 1024
    $region101: #{tpu_custom_call.1} parent=1 // pred_fallthru
      _
    // Predicated region
    $region102: #{tpu_custom_call.1} parent=1 // pred_check
      _
    $region103: #{tpu_custom_call.1} parent=1 // pred_check_branch
      %209 = sbr.rel (0) target = $region105
    $region104: #{tpu_custom_call.1} parent=1 // pred_region
      %210 = dma.done [#allocation8], 16384
    $region105: #{tpu_custom_call.1} parent=1 // pred_fallthru
      _
    // Predicated region
    $region106: #{tpu_custom_call.1} parent=1 // pred_check
      _
    $region107: #{tpu_custom_call.1} parent=1 // pred_check_branch
      %212 = sbr.rel (0) target = $region109
    $region108: #{tpu_custom_call.1} parent=1 // pred_region
      %213 = dma.done [#allocation11], 16384
    $region109: #{tpu_custom_call.1} parent=1 // pred_fallthru
      _
    // Predicated region
    $region110: #{tpu_custom_call.1} parent=1 // pred_check
      _
    $region111: #{tpu_custom_call.1} parent=1 // pred_check_branch
      %215 = sbr.rel (0) target = $region113
    $region112: #{tpu_custom_call.1} parent=1 // pred_region
      %216 = dma.done [#allocation11], 16384
    $region113: #{tpu_custom_call.1} parent=1 // pred_fallthru
      _
    // Predicated region
    $region114: #{tpu_custom_call.1} parent=1 // pred_check
      _
    $region115: #{tpu_custom_call.1} parent=1 // pred_check_branch
      %218 = sbr.rel (0) target = $region117
    $region116: #{tpu_custom_call.1} parent=1 // pred_region
      %219 = dma.done [#allocation14], 16384
    $region117: #{tpu_custom_call.1} parent=1 // pred_fallthru
      _
    // Predicated region
    $region118: #{tpu_custom_call.1} parent=1 // pred_check
      _
    $region119: #{tpu_custom_call.1} parent=1 // pred_check_branch
      %221 = sbr.rel (0) target = $region121
    $region120: #{tpu_custom_call.1} parent=1 // pred_region
      %222 = dma.done [#allocation14], 16384
    $region121: #{tpu_custom_call.1} parent=1 // pred_fallthru
      _
    // Predicated region
    $region122: #{tpu_custom_call.1} parent=1 // pred_check
      _
    $region123: #{tpu_custom_call.1} parent=1 // pred_check_branch
      %224 = sbr.rel (0) target = $region125
    $region124: #{tpu_custom_call.1} parent=1 // pred_region
      %225 = dma.done [#allocation17], 16384
    $region125: #{tpu_custom_call.1} parent=1 // pred_fallthru
      _
    // Predicated region
    $region126: #{tpu_custom_call.1} parent=1 // pred_check
      _
    $region127: #{tpu_custom_call.1} parent=1 // pred_check_branch
      %227 = sbr.rel (0) target = $region129
    $region128: #{tpu_custom_call.1} parent=1 // pred_region
      %228 = dma.done [#allocation17], 16384
    $region129: #{tpu_custom_call.1} parent=1 // pred_fallthru
      _
    // Predicated region
    $region130: #{tpu_custom_call.1} parent=1 // pred_check
      _
    $region131: #{tpu_custom_call.1} parent=1 // pred_check_branch
      %230 = sbr.rel (0) target = $region133
    $region132: #{tpu_custom_call.1} parent=1 // pred_region
      %231 = dma.done [#allocation20], 16384
    $region133: #{tpu_custom_call.1} parent=1 // pred_fallthru
      _
    // Predicated region
    $region134: #{tpu_custom_call.1} parent=1 // pred_check
      _
    $region135: #{tpu_custom_call.1} parent=1 // pred_check_branch
      %233 = sbr.rel (0) target = $region137
    $region136: #{tpu_custom_call.1} parent=1 // pred_region
      %234 = dma.done [#allocation20], 16384
    $region137: #{tpu_custom_call.1} parent=1 // pred_fallthru
      _
    %235 = sfence
    %s237 = sld [smem:[#allocation2]]
    %s238 = sld [smem:[#allocation2 + $0x1]]
    %s239 = sld [smem:[#allocation2 + $0x2]]
    %s240 = sld [smem:[#allocation2 + $0x3]]
    %s241 = sld [smem:[#allocation2 + $0x4]]
    %s242 = sld [smem:[#allocation2 + $0x5]]
    %v243 = vld [vmem:[#allocation6] sm:$0x3]
    %v244 = vpack.c.bf16 %v243, %v243
    %v245 = vld [vmem:[#allocation7] sm:$0xff]
    %v246 = vld [vmem:[#allocation7 + $0x8] sm:$0xff]
    %v247 = vld [vmem:[#allocation7 + $0x10] sm:$0xff]
    %v248 = vld [vmem:[#allocation7 + $0x18] sm:$0xff]
    %v249 = vld [vmem:[#allocation7 + $0x20] sm:$0xff]
    %v250 = vld [vmem:[#allocation7 + $0x28] sm:$0xff]
    %v251 = vld [vmem:[#allocation7 + $0x30] sm:$0xff]
    %v252 = vld [vmem:[#allocation7 + $0x38] sm:$0xff]
    %v253 = vld [vmem:[%s3] sm:$0xf]
    %v255 = vlaneseq
    %v256 = vshrl.u32 %v255, 7
    %v257 = vsub.s32 0, %v256
    %v258 = vrot.slane %v253, %v257
    %v259 = vlaneseq
    %v260 = vshrl.u32 %v259, 7
    %v261 = vsub.s32 1, %v260
    %v262 = vrot.slane %v253, %v261
    %v263 = vlaneseq
    %v264 = vshrl.u32 %v263, 7
    %v265 = vsub.s32 2, %v264
    %v266 = vrot.slane %v253, %v265
    %v267 = vlaneseq
    %v268 = vshrl.u32 %v267, 7
    %v269 = vsub.s32 3, %v268
    %v270 = vrot.slane %v253, %v269
    %v283 = vunpack.c.l.b16 %v245
    %v284 = vunpack.c.h.b16 %v245
    %v285 = vunpack.c.l.b16 %v246
    %v286 = vunpack.c.h.b16 %v246
    %v287 = vunpack.c.l.b16 %v247
    %v288 = vunpack.c.h.b16 %v247
    %v289 = vunpack.c.l.b16 %v248
    %v290 = vunpack.c.h.b16 %v248
    %v291 = vunpack.c.l.b16 %v249
    %v292 = vunpack.c.h.b16 %v249
    %v293 = vunpack.c.l.b16 %v250
    %v294 = vunpack.c.h.b16 %v250
    %v295 = vunpack.c.l.b16 %v251
    %v296 = vunpack.c.h.b16 %v251
    %v297 = vunpack.c.l.b16 %v252
    %v298 = vunpack.c.h.b16 %v252
    %v299 = vpack.c.b16 %v287, %v283
    %v300 = vpack.c.b16 %v288, %v284
    %v301 = vpack.c.b16 %v289, %v285
    %v302 = vpack.c.b16 %v290, %v286
    %v303 = vpack.c.b16 %v295, %v291
    %v304 = vpack.c.b16 %v296, %v292
    %v305 = vpack.c.b16 %v297, %v293
    %v306 = vpack.c.b16 %v298, %v294
    %vm315 = vcmask 261120
    %v317 = vsel %vm315, %v244, 0
    %319 = vmatprep.subr.bf16.mxu0 %v300
    %320 = vmatpush1.bf16.msra.mxu0 %v299
    %321 = vmatprep.subr.bf16.mxu0 %v304
    %322 = vmatpush1.bf16.msra.mxu0 %v303
    %323 = vmatprep.subr.bf16.mxu0 0
    %324 = vmatpush1.bf16.msra.mxu0 0
    %325 = vmatprep.subr.bf16.mxu0 0
    %326 = vmatpush1.bf16.msra.mxu0 0
    %327 = vmatprep.subr.bf16.mxu0 0
    %328 = vmatpush1.bf16.msra.mxu0 0
    %329 = vmatprep.subr.bf16.mxu0 0
    %330 = vmatpush1.bf16.msra.mxu0 0
    %331 = vmatprep.subr.bf16.mxu0 0
    %332 = vmatpush1.bf16.msra.mxu0 0
    %333 = vmatprep.subr.bf16.mxu0 0
    %334 = vmatpush1.bf16.msra.mxu0 0
    %335 = vmatprep.subr.bf16.mxu0 0
    %336 = vmatpush1.bf16.msra.mxu0 0
    %337 = vmatprep.subr.bf16.mxu0 0
    %338 = vmatpush1.bf16.msra.mxu0 0
    %339 = vmatprep.subr.bf16.mxu0 0
    %340 = vmatpush1.bf16.msra.mxu0 0
    %341 = vmatprep.subr.bf16.mxu0 0
    %342 = vmatpush1.bf16.msra.mxu0 0
    %343 = vmatprep.subr.bf16.mxu0 0
    %344 = vmatpush1.bf16.msra.mxu0 0
    %345 = vmatprep.subr.bf16.mxu0 0
    %346 = vmatpush1.bf16.msra.mxu0 0
    %347 = vmatprep.subr.bf16.mxu0 0
    %348 = vmatpush1.bf16.msra.mxu0 0
    %349 = vmatprep.subr.bf16.mxu0 0
    %350 = vmatpush1.bf16.msra.mxu0 0
    %351 = vmatprep.mubr.bf16.mxu0 0
    %352 = vmatmul.mubr.bf16.gmra.mrb[0].mxu0 %v317
    %v353 = vpop.f32.mrb[0].mxu0
    %v354 = vadd.f32 %v258, %v353
    %v355 = vpop.f32.mrb[0].mxu0
    %v356 = vadd.f32 %v262, %v355
    %v357 = vpop.f32.mrb[0].mxu0
    %v358 = vpop.f32.mrb[0].mxu0
    %359 = vdwg.mxu0
    %360 = vmatprep.subr.bf16.mxu0 %v302
    %361 = vmatpush1.bf16.msra.mxu0 %v301
    %362 = vmatprep.subr.bf16.mxu0 %v306
    %363 = vmatpush1.bf16.msra.mxu0 %v305
    %364 = vmatprep.subr.bf16.mxu0 0
    %365 = vmatpush1.bf16.msra.mxu0 0
    %366 = vmatprep.subr.bf16.mxu0 0
    %367 = vmatpush1.bf16.msra.mxu0 0
    %368 = vmatprep.subr.bf16.mxu0 0
    %369 = vmatpush1.bf16.msra.mxu0 0
    %370 = vmatprep.subr.bf16.mxu0 0
    %371 = vmatpush1.bf16.msra.mxu0 0
    %372 = vmatprep.subr.bf16.mxu0 0
    %373 = vmatpush1.bf16.msra.mxu0 0
    %374 = vmatprep.subr.bf16.mxu0 0
    %375 = vmatpush1.bf16.msra.mxu0 0
    %376 = vmatprep.subr.bf16.mxu0 0
    %377 = vmatpush1.bf16.msra.mxu0 0
    %378 = vmatprep.subr.bf16.mxu0 0
    %379 = vmatpush1.bf16.msra.mxu0 0
    %380 = vmatprep.subr.bf16.mxu0 0
    %381 = vmatpush1.bf16.msra.mxu0 0
    %382 = vmatprep.subr.bf16.mxu0 0
    %383 = vmatpush1.bf16.msra.mxu0 0
    %384 = vmatprep.subr.bf16.mxu0 0
    %385 = vmatpush1.bf16.msra.mxu0 0
    %386 = vmatprep.subr.bf16.mxu0 0
    %387 = vmatpush1.bf16.msra.mxu0 0
    %388 = vmatprep.subr.bf16.mxu0 0
    %389 = vmatpush1.bf16.msra.mxu0 0
    %390 = vmatprep.subr.bf16.mxu0 0
    %391 = vmatpush1.bf16.msra.mxu0 0
    %392 = vmatprep.mubr.bf16.mxu0 0
    %393 = vmatmul.mubr.bf16.gmra.mrb[0].mxu0 %v317
    %v394 = vpop.f32.mrb[0].mxu0
    %v395 = vadd.f32 %v266, %v394
    %v396 = vpop.f32.mrb[0].mxu0
    %v397 = vadd.f32 %v270, %v396
    %v398 = vpop.f32.mrb[0].mxu0
    %v399 = vpop.f32.mrb[0].mxu0
    %400 = vdwg.mxu0
    %vm401 = vcmp.ge.f32.partialorder %v354, 0.0
    %vm402 = vcmp.ge.f32.partialorder %v356, 0.0
    %vm403 = vcmp.ge.f32.partialorder %v395, 0.0
    %vm404 = vcmp.ge.f32.partialorder %v397, 0.0
    %v405 = vstv %s237
    %v406 = vmul.f32 %v405, %v354
    %v407 = vmul.f32 %v405, %v356
    %v408 = vmul.f32 %v405, %v395
    %v409 = vmul.f32 %v405, %v397
    %v410 = vsel %vm401, %v354, %v406
    %v411 = vsel %vm402, %v356, %v407
    %v412 = vsel %vm403, %v395, %v408
    %v413 = vsel %vm404, %v397, %v409
    %v414 = vpack.c.bf16 %v410, %v410
    %v415 = vpack.c.bf16 %v411, %v411
    %v416 = vpack.c.bf16 %v412, %v412
    %v417 = vpack.c.bf16 %v413, %v413
    %v418 = vld [vmem:[#allocation9] sm:$0xff]
    %v419 = vld [vmem:[#allocation9 + $0x8] sm:$0xff]
    %v420 = vld [vmem:[#allocation9 + $0x10] sm:$0xff]
    %v421 = vld [vmem:[#allocation9 + $0x18] sm:$0xff]
    %v422 = vld [vmem:[#allocation9 + $0x20] sm:$0xff]
    %v423 = vld [vmem:[#allocation9 + $0x28] sm:$0xff]
    %v424 = vld [vmem:[#allocation9 + $0x30] sm:$0xff]
    %v425 = vld [vmem:[#allocation9 + $0x38] sm:$0xff]
    %v426 = vld [vmem:[#allocation9 + $0x40] sm:$0xff]
    %v427 = vld [vmem:[#allocation9 + $0x48] sm:$0xff]
    %v428 = vld [vmem:[#allocation9 + $0x50] sm:$0xff]
    %v429 = vld [vmem:[#allocation9 + $0x58] sm:$0xff]
    %v430 = vld [vmem:[#allocation9 + $0x60] sm:$0xff]
    %v431 = vld [vmem:[#allocation9 + $0x68] sm:$0xff]
    %v432 = vld [vmem:[#allocation9 + $0x70] sm:$0xff]
    %v433 = vld [vmem:[#allocation9 + $0x78] sm:$0xff]
    %v434 = vld [vmem:[#allocation9 + $0x80] sm:$0xff]
    %v435 = vld [vmem:[#allocation9 + $0x88] sm:$0xff]
    %v436 = vld [vmem:[#allocation9 + $0x90] sm:$0xff]
    %v437 = vld [vmem:[#allocation9 + $0x98] sm:$0xff]
    %v438 = vld [vmem:[#allocation9 + $0xa0] sm:$0xff]
    %v439 = vld [vmem:[#allocation9 + $0xa8] sm:$0xff]
    %v440 = vld [vmem:[#allocation9 + $0xb0] sm:$0xff]
    %v441 = vld [vmem:[#allocation9 + $0xb8] sm:$0xff]
    %v442 = vld [vmem:[#allocation9 + $0xc0] sm:$0xff]
    %v443 = vld [vmem:[#allocation9 + $0xc8] sm:$0xff]
    %v444 = vld [vmem:[#allocation9 + $0xd0] sm:$0xff]
    %v445 = vld [vmem:[#allocation9 + $0xd8] sm:$0xff]
    %v446 = vld [vmem:[#allocation9 + $0xe0] sm:$0xff]
    %v447 = vld [vmem:[#allocation9 + $0xe8] sm:$0xff]
    %v448 = vld [vmem:[#allocation9 + $0xf0] sm:$0xff]
    %v449 = vld [vmem:[#allocation9 + $0xf8] sm:$0xff]
    %v450 = vld [vmem:[#allocation9 + $0x100] sm:$0xff]
    %v451 = vld [vmem:[#allocation9 + $0x108] sm:$0xff]
    %v452 = vld [vmem:[#allocation9 + $0x110] sm:$0xff]
    %v453 = vld [vmem:[#allocation9 + $0x118] sm:$0xff]
    %v454 = vld [vmem:[#allocation9 + $0x120] sm:$0xff]
    %v455 = vld [vmem:[#allocation9 + $0x128] sm:$0xff]
    %v456 = vld [vmem:[#allocation9 + $0x130] sm:$0xff]
    %v457 = vld [vmem:[#allocation9 + $0x138] sm:$0xff]
    %v458 = vld [vmem:[#allocation9 + $0x140] sm:$0xff]
    %v459 = vld [vmem:[#allocation9 + $0x148] sm:$0xff]
    %v460 = vld [vmem:[#allocation9 + $0x150] sm:$0xff]
    %v461 = vld [vmem:[#allocation9 + $0x158] sm:$0xff]
    %v462 = vld [vmem:[#allocation9 + $0x160] sm:$0xff]
    %v463 = vld [vmem:[#allocation9 + $0x168] sm:$0xff]
    %v464 = vld [vmem:[#allocation9 + $0x170] sm:$0xff]
    %v465 = vld [vmem:[#allocation9 + $0x178] sm:$0xff]
    %v466 = vld [vmem:[#allocation9 + $0x180] sm:$0xff]
    %v467 = vld [vmem:[#allocation9 + $0x188] sm:$0xff]
    %v468 = vld [vmem:[#allocation9 + $0x190] sm:$0xff]
    %v469 = vld [vmem:[#allocation9 + $0x198] sm:$0xff]
    %v470 = vld [vmem:[#allocation9 + $0x1a0] sm:$0xff]
    %v471 = vld [vmem:[#allocation9 + $0x1a8] sm:$0xff]
    %v472 = vld [vmem:[#allocation9 + $0x1b0] sm:$0xff]
    %v473 = vld [vmem:[#allocation9 + $0x1b8] sm:$0xff]
    %v474 = vld [vmem:[#allocation9 + $0x1c0] sm:$0xff]
    %v475 = vld [vmem:[#allocation9 + $0x1c8] sm:$0xff]
    %v476 = vld [vmem:[#allocation9 + $0x1d0] sm:$0xff]
    %v477 = vld [vmem:[#allocation9 + $0x1d8] sm:$0xff]
    %v478 = vld [vmem:[#allocation9 + $0x1e0] sm:$0xff]
    %v479 = vld [vmem:[#allocation9 + $0x1e8] sm:$0xff]
    %v480 = vld [vmem:[#allocation9 + $0x1f0] sm:$0xff]
    %v481 = vld [vmem:[#allocation9 + $0x1f8] sm:$0xff]
    %v482 = vld [vmem:[#allocation9 + $0x200] sm:$0xff]
    %v483 = vld [vmem:[#allocation9 + $0x208] sm:$0xff]
    %v484 = vld [vmem:[#allocation9 + $0x210] sm:$0xff]
    %v485 = vld [vmem:[#allocation9 + $0x218] sm:$0xff]
    %v486 = vld [vmem:[#allocation9 + $0x220] sm:$0xff]
    %v487 = vld [vmem:[#allocation9 + $0x228] sm:$0xff]
    %v488 = vld [vmem:[#allocation9 + $0x230] sm:$0xff]
    %v489 = vld [vmem:[#allocation9 + $0x238] sm:$0xff]
    %v490 = vld [vmem:[#allocation9 + $0x240] sm:$0xff]
    %v491 = vld [vmem:[#allocation9 + $0x248] sm:$0xff]
    %v492 = vld [vmem:[#allocation9 + $0x250] sm:$0xff]
    %v493 = vld [vmem:[#allocation9 + $0x258] sm:$0xff]
    %v494 = vld [vmem:[#allocation9 + $0x260] sm:$0xff]
    %v495 = vld [vmem:[#allocation9 + $0x268] sm:$0xff]
    %v496 = vld [vmem:[#allocation9 + $0x270] sm:$0xff]
    %v497 = vld [vmem:[#allocation9 + $0x278] sm:$0xff]
    %v498 = vld [vmem:[#allocation9 + $0x280] sm:$0xff]
    %v499 = vld [vmem:[#allocation9 + $0x288] sm:$0xff]
    %v500 = vld [vmem:[#allocation9 + $0x290] sm:$0xff]
    %v501 = vld [vmem:[#allocation9 + $0x298] sm:$0xff]
    %v502 = vld [vmem:[#allocation9 + $0x2a0] sm:$0xff]
    %v503 = vld [vmem:[#allocation9 + $0x2a8] sm:$0xff]
    %v504 = vld [vmem:[#allocation9 + $0x2b0] sm:$0xff]
    %v505 = vld [vmem:[#allocation9 + $0x2b8] sm:$0xff]
    %v506 = vld [vmem:[#allocation9 + $0x2c0] sm:$0xff]
    %v507 = vld [vmem:[#allocation9 + $0x2c8] sm:$0xff]
    %v508 = vld [vmem:[#allocation9 + $0x2d0] sm:$0xff]
    %v509 = vld [vmem:[#allocation9 + $0x2d8] sm:$0xff]
    %v510 = vld [vmem:[#allocation9 + $0x2e0] sm:$0xff]
    %v511 = vld [vmem:[#allocation9 + $0x2e8] sm:$0xff]
    %v512 = vld [vmem:[#allocation9 + $0x2f0] sm:$0xff]
    %v513 = vld [vmem:[#allocation9 + $0x2f8] sm:$0xff]
    %v514 = vld [vmem:[#allocation9 + $0x300] sm:$0xff]
    %v515 = vld [vmem:[#allocation9 + $0x308] sm:$0xff]
    %v516 = vld [vmem:[#allocation9 + $0x310] sm:$0xff]
    %v517 = vld [vmem:[#allocation9 + $0x318] sm:$0xff]
    %v518 = vld [vmem:[#allocation9 + $0x320] sm:$0xff]
    %v519 = vld [vmem:[#allocation9 + $0x328] sm:$0xff]
    %v520 = vld [vmem:[#allocation9 + $0x330] sm:$0xff]
    %v521 = vld [vmem:[#allocation9 + $0x338] sm:$0xff]
    %v522 = vld [vmem:[#allocation9 + $0x340] sm:$0xff]
    %v523 = vld [vmem:[#allocation9 + $0x348] sm:$0xff]
    %v524 = vld [vmem:[#allocation9 + $0x350] sm:$0xff]
    %v525 = vld [vmem:[#allocation9 + $0x358] sm:$0xff]
    %v526 = vld [vmem:[#allocation9 + $0x360] sm:$0xff]
    %v527 = vld [vmem:[#allocation9 + $0x368] sm:$0xff]
    %v528 = vld [vmem:[#allocation9 + $0x370] sm:$0xff]
    %v529 = vld [vmem:[#allocation9 + $0x378] sm:$0xff]
    %v530 = vld [vmem:[#allocation9 + $0x380] sm:$0xff]
    %v531 = vld [vmem:[#allocation9 + $0x388] sm:$0xff]
    %v532 = vld [vmem:[#allocation9 + $0x390] sm:$0xff]
    %v533 = vld [vmem:[#allocation9 + $0x398] sm:$0xff]
    %v534 = vld [vmem:[#allocation9 + $0x3a0] sm:$0xff]
    %v535 = vld [vmem:[#allocation9 + $0x3a8] sm:$0xff]
    %v536 = vld [vmem:[#allocation9 + $0x3b0] sm:$0xff]
    %v537 = vld [vmem:[#allocation9 + $0x3b8] sm:$0xff]
    %v538 = vld [vmem:[#allocation9 + $0x3c0] sm:$0xff]
    %v539 = vld [vmem:[#allocation9 + $0x3c8] sm:$0xff]
    %v540 = vld [vmem:[#allocation9 + $0x3d0] sm:$0xff]
    %v541 = vld [vmem:[#allocation9 + $0x3d8] sm:$0xff]
    %v542 = vld [vmem:[#allocation9 + $0x3e0] sm:$0xff]
    %v543 = vld [vmem:[#allocation9 + $0x3e8] sm:$0xff]
    %v544 = vld [vmem:[#allocation9 + $0x3f0] sm:$0xff]
    %v545 = vld [vmem:[#allocation9 + $0x3f8] sm:$0xff]
    %v546 = vld [vmem:[%s5] sm:$0xf]
    %v548 = vlaneseq
    %v549 = vshrl.u32 %v548, 7
    %v550 = vsub.s32 0, %v549
    %v551 = vrot.slane %v546, %v550
    %v552 = vlaneseq
    %v553 = vshrl.u32 %v552, 7
    %v554 = vsub.s32 1, %v553
    %v555 = vrot.slane %v546, %v554
    %v556 = vlaneseq
    %v557 = vshrl.u32 %v556, 7
    %v558 = vsub.s32 2, %v557
    %v559 = vrot.slane %v546, %v558
    %v560 = vlaneseq
    %v561 = vshrl.u32 %v560, 7
    %v562 = vsub.s32 3, %v561
    %v563 = vrot.slane %v546, %v562
    %v696 = vunpack.c.l.b16 %v418
    %v697 = vunpack.c.h.b16 %v418
    %v698 = vunpack.c.l.b16 %v419
    %v699 = vunpack.c.h.b16 %v419
    %v700 = vunpack.c.l.b16 %v420
    %v701 = vunpack.c.h.b16 %v420
    %v702 = vunpack.c.l.b16 %v421
    %v703 = vunpack.c.h.b16 %v421
    %v704 = vunpack.c.l.b16 %v422
    %v705 = vunpack.c.h.b16 %v422
    %v706 = vunpack.c.l.b16 %v423
    %v707 = vunpack.c.h.b16 %v423
    %v708 = vunpack.c.l.b16 %v424
    %v709 = vunpack.c.h.b16 %v424
    %v710 = vunpack.c.l.b16 %v425
    %v711 = vunpack.c.h.b16 %v425
    %v712 = vunpack.c.l.b16 %v426
    %v713 = vunpack.c.h.b16 %v426
    %v714 = vunpack.c.l.b16 %v427
    %v715 = vunpack.c.h.b16 %v427
    %v716 = vunpack.c.l.b16 %v428
    %v717 = vunpack.c.h.b16 %v428
    %v718 = vunpack.c.l.b16 %v429
    %v719 = vunpack.c.h.b16 %v429
    %v720 = vunpack.c.l.b16 %v430
    %v721 = vunpack.c.h.b16 %v430
    %v722 = vunpack.c.l.b16 %v431
    %v723 = vunpack.c.h.b16 %v431
    %v724 = vunpack.c.l.b16 %v432
    %v725 = vunpack.c.h.b16 %v432
    %v726 = vunpack.c.l.b16 %v433
    %v727 = vunpack.c.h.b16 %v433
    %v728 = vunpack.c.l.b16 %v434
    %v729 = vunpack.c.h.b16 %v434
    %v730 = vunpack.c.l.b16 %v435
    %v731 = vunpack.c.h.b16 %v435
    %v732 = vunpack.c.l.b16 %v436
    %v733 = vunpack.c.h.b16 %v436
    %v734 = vunpack.c.l.b16 %v437
    %v735 = vunpack.c.h.b16 %v437
    %v736 = vunpack.c.l.b16 %v438
    %v737 = vunpack.c.h.b16 %v438
    %v738 = vunpack.c.l.b16 %v439
    %v739 = vunpack.c.h.b16 %v439
    %v740 = vunpack.c.l.b16 %v440
    %v741 = vunpack.c.h.b16 %v440
    %v742 = vunpack.c.l.b16 %v441
    %v743 = vunpack.c.h.b16 %v441
    %v744 = vunpack.c.l.b16 %v442
    %v745 = vunpack.c.h.b16 %v442
    %v746 = vunpack.c.l.b16 %v443
    %v747 = vunpack.c.h.b16 %v443
    %v748 = vunpack.c.l.b16 %v444
    %v749 = vunpack.c.h.b16 %v444
    %v750 = vunpack.c.l.b16 %v445
    %v751 = vunpack.c.h.b16 %v445
    %v752 = vunpack.c.l.b16 %v446
    %v753 = vunpack.c.h.b16 %v446
    %v754 = vunpack.c.l.b16 %v447
    %v755 = vunpack.c.h.b16 %v447
    %v756 = vunpack.c.l.b16 %v448
    %v757 = vunpack.c.h.b16 %v448
    %v758 = vunpack.c.l.b16 %v449
    %v759 = vunpack.c.h.b16 %v449
    %v760 = vunpack.c.l.b16 %v450
    %v761 = vunpack.c.h.b16 %v450
    %v762 = vunpack.c.l.b16 %v451
    %v763 = vunpack.c.h.b16 %v451
    %v764 = vunpack.c.l.b16 %v452
    %v765 = vunpack.c.h.b16 %v452
    %v766 = vunpack.c.l.b16 %v453
    %v767 = vunpack.c.h.b16 %v453
    %v768 = vunpack.c.l.b16 %v454
    %v769 = vunpack.c.h.b16 %v454
    %v770 = vunpack.c.l.b16 %v455
    %v771 = vunpack.c.h.b16 %v455
    %v772 = vunpack.c.l.b16 %v456
    %v773 = vunpack.c.h.b16 %v456
    %v774 = vunpack.c.l.b16 %v457
    %v775 = vunpack.c.h.b16 %v457
    %v776 = vunpack.c.l.b16 %v458
    %v777 = vunpack.c.h.b16 %v458
    %v778 = vunpack.c.l.b16 %v459
    %v779 = vunpack.c.h.b16 %v459
    %v780 = vunpack.c.l.b16 %v460
    %v781 = vunpack.c.h.b16 %v460
    %v782 = vunpack.c.l.b16 %v461
    %v783 = vunpack.c.h.b16 %v461
    %v784 = vunpack.c.l.b16 %v462
    %v785 = vunpack.c.h.b16 %v462
    %v786 = vunpack.c.l.b16 %v463
    %v787 = vunpack.c.h.b16 %v463
    %v788 = vunpack.c.l.b16 %v464
    %v789 = vunpack.c.h.b16 %v464
    %v790 = vunpack.c.l.b16 %v465
    %v791 = vunpack.c.h.b16 %v465
    %v792 = vunpack.c.l.b16 %v466
    %v793 = vunpack.c.h.b16 %v466
    %v794 = vunpack.c.l.b16 %v467
    %v795 = vunpack.c.h.b16 %v467
    %v796 = vunpack.c.l.b16 %v468
    %v797 = vunpack.c.h.b16 %v468
    %v798 = vunpack.c.l.b16 %v469
    %v799 = vunpack.c.h.b16 %v469
    %v800 = vunpack.c.l.b16 %v470
    %v801 = vunpack.c.h.b16 %v470
    %v802 = vunpack.c.l.b16 %v471
    %v803 = vunpack.c.h.b16 %v471
    %v804 = vunpack.c.l.b16 %v472
    %v805 = vunpack.c.h.b16 %v472
    %v806 = vunpack.c.l.b16 %v473
    %v807 = vunpack.c.h.b16 %v473
    %v808 = vunpack.c.l.b16 %v474
    %v809 = vunpack.c.h.b16 %v474
    %v810 = vunpack.c.l.b16 %v475
    %v811 = vunpack.c.h.b16 %v475
    %v812 = vunpack.c.l.b16 %v476
    %v813 = vunpack.c.h.b16 %v476
    %v814 = vunpack.c.l.b16 %v477
    %v815 = vunpack.c.h.b16 %v477
    %v816 = vunpack.c.l.b16 %v478
    %v817 = vunpack.c.h.b16 %v478
    %v818 = vunpack.c.l.b16 %v479
    %v819 = vunpack.c.h.b16 %v479
    %v820 = vunpack.c.l.b16 %v480
    %v821 = vunpack.c.h.b16 %v480
    %v822 = vunpack.c.l.b16 %v481
    %v823 = vunpack.c.h.b16 %v481
    %v824 = vunpack.c.l.b16 %v482
    %v825 = vunpack.c.h.b16 %v482
    %v826 = vunpack.c.l.b16 %v483
    %v827 = vunpack.c.h.b16 %v483
    %v828 = vunpack.c.l.b16 %v484
    %v829 = vunpack.c.h.b16 %v484
    %v830 = vunpack.c.l.b16 %v485
    %v831 = vunpack.c.h.b16 %v485
    %v832 = vunpack.c.l.b16 %v486
    %v833 = vunpack.c.h.b16 %v486
    %v834 = vunpack.c.l.b16 %v487
    %v835 = vunpack.c.h.b16 %v487
    %v836 = vunpack.c.l.b16 %v488
    %v837 = vunpack.c.h.b16 %v488
    %v838 = vunpack.c.l.b16 %v489
    %v839 = vunpack.c.h.b16 %v489
    %v840 = vunpack.c.l.b16 %v490
    %v841 = vunpack.c.h.b16 %v490
    %v842 = vunpack.c.l.b16 %v491
    %v843 = vunpack.c.h.b16 %v491
    %v844 = vunpack.c.l.b16 %v492
    %v845 = vunpack.c.h.b16 %v492
    %v846 = vunpack.c.l.b16 %v493
    %v847 = vunpack.c.h.b16 %v493
    %v848 = vunpack.c.l.b16 %v494
    %v849 = vunpack.c.h.b16 %v494
    %v850 = vunpack.c.l.b16 %v495
    %v851 = vunpack.c.h.b16 %v495
    %v852 = vunpack.c.l.b16 %v496
    %v853 = vunpack.c.h.b16 %v496
    %v854 = vunpack.c.l.b16 %v497
    %v855 = vunpack.c.h.b16 %v497
    %v856 = vunpack.c.l.b16 %v498
    %v857 = vunpack.c.h.b16 %v498
    %v858 = vunpack.c.l.b16 %v499
    %v859 = vunpack.c.h.b16 %v499
    %v860 = vunpack.c.l.b16 %v500
    %v861 = vunpack.c.h.b16 %v500
    %v862 = vunpack.c.l.b16 %v501
    %v863 = vunpack.c.h.b16 %v501
    %v864 = vunpack.c.l.b16 %v502
    %v865 = vunpack.c.h.b16 %v502
    %v866 = vunpack.c.l.b16 %v503
    %v867 = vunpack.c.h.b16 %v503
    %v868 = vunpack.c.l.b16 %v504
    %v869 = vunpack.c.h.b16 %v504
    %v870 = vunpack.c.l.b16 %v505
    %v871 = vunpack.c.h.b16 %v505
    %v872 = vunpack.c.l.b16 %v506
    %v873 = vunpack.c.h.b16 %v506
    %v874 = vunpack.c.l.b16 %v507
    %v875 = vunpack.c.h.b16 %v507
    %v876 = vunpack.c.l.b16 %v508
    %v877 = vunpack.c.h.b16 %v508
    %v878 = vunpack.c.l.b16 %v509
    %v879 = vunpack.c.h.b16 %v509
    %v880 = vunpack.c.l.b16 %v510
    %v881 = vunpack.c.h.b16 %v510
    %v882 = vunpack.c.l.b16 %v511
    %v883 = vunpack.c.h.b16 %v511
    %v884 = vunpack.c.l.b16 %v512
    %v885 = vunpack.c.h.b16 %v512
    %v886 = vunpack.c.l.b16 %v513
    %v887 = vunpack.c.h.b16 %v513
    %v888 = vunpack.c.l.b16 %v514
    %v889 = vunpack.c.h.b16 %v514
    %v890 = vunpack.c.l.b16 %v515
    %v891 = vunpack.c.h.b16 %v515
    %v892 = vunpack.c.l.b16 %v516
    %v893 = vunpack.c.h.b16 %v516
    %v894 = vunpack.c.l.b16 %v517
    %v895 = vunpack.c.h.b16 %v517
    %v896 = vunpack.c.l.b16 %v518
    %v897 = vunpack.c.h.b16 %v518
    %v898 = vunpack.c.l.b16 %v519
    %v899 = vunpack.c.h.b16 %v519
    %v900 = vunpack.c.l.b16 %v520
    %v901 = vunpack.c.h.b16 %v520
    %v902 = vunpack.c.l.b16 %v521
    %v903 = vunpack.c.h.b16 %v521
    %v904 = vunpack.c.l.b16 %v522
    %v905 = vunpack.c.h.b16 %v522
    %v906 = vunpack.c.l.b16 %v523
    %v907 = vunpack.c.h.b16 %v523
    %v908 = vunpack.c.l.b16 %v524
    %v909 = vunpack.c.h.b16 %v524
    %v910 = vunpack.c.l.b16 %v525
    %v911 = vunpack.c.h.b16 %v525
    %v912 = vunpack.c.l.b16 %v526
    %v913 = vunpack.c.h.b16 %v526
    %v914 = vunpack.c.l.b16 %v527
    %v915 = vunpack.c.h.b16 %v527
    %v916 = vunpack.c.l.b16 %v528
    %v917 = vunpack.c.h.b16 %v528
    %v918 = vunpack.c.l.b16 %v529
    %v919 = vunpack.c.h.b16 %v529
    %v920 = vunpack.c.l.b16 %v530
    %v921 = vunpack.c.h.b16 %v530
    %v922 = vunpack.c.l.b16 %v531
    %v923 = vunpack.c.h.b16 %v531
    %v924 = vunpack.c.l.b16 %v532
    %v925 = vunpack.c.h.b16 %v532
    %v926 = vunpack.c.l.b16 %v533
    %v927 = vunpack.c.h.b16 %v533
    %v928 = vunpack.c.l.b16 %v534
    %v929 = vunpack.c.h.b16 %v534
    %v930 = vunpack.c.l.b16 %v535
    %v931 = vunpack.c.h.b16 %v535
    %v932 = vunpack.c.l.b16 %v536
    %v933 = vunpack.c.h.b16 %v536
    %v934 = vunpack.c.l.b16 %v537
    %v935 = vunpack.c.h.b16 %v537
    %v936 = vunpack.c.l.b16 %v538
    %v937 = vunpack.c.h.b16 %v538
    %v938 = vunpack.c.l.b16 %v539
    %v939 = vunpack.c.h.b16 %v539
    %v940 = vunpack.c.l.b16 %v540
    %v941 = vunpack.c.h.b16 %v540
    %v942 = vunpack.c.l.b16 %v541
    %v943 = vunpack.c.h.b16 %v541
    %v944 = vunpack.c.l.b16 %v542
    %v945 = vunpack.c.h.b16 %v542
    %v946 = vunpack.c.l.b16 %v543
    %v947 = vunpack.c.h.b16 %v543
    %v948 = vunpack.c.l.b16 %v544
    %v949 = vunpack.c.h.b16 %v544
    %v950 = vunpack.c.l.b16 %v545
    %v951 = vunpack.c.h.b16 %v545
    %v952 = vpack.c.b16 %v700, %v696
    %v953 = vpack.c.b16 %v701, %v697
    %v954 = vpack.c.b16 %v702, %v698
    %v955 = vpack.c.b16 %v703, %v699
    %v956 = vpack.c.b16 %v708, %v704
    %v957 = vpack.c.b16 %v709, %v705
    %v958 = vpack.c.b16 %v710, %v706
    %v959 = vpack.c.b16 %v711, %v707
    %v960 = vpack.c.b16 %v716, %v712
    %v961 = vpack.c.b16 %v717, %v713
    %v962 = vpack.c.b16 %v718, %v714
    %v963 = vpack.c.b16 %v719, %v715
    %v964 = vpack.c.b16 %v724, %v720
    %v965 = vpack.c.b16 %v725, %v721
    %v966 = vpack.c.b16 %v726, %v722
    %v967 = vpack.c.b16 %v727, %v723
    %v968 = vpack.c.b16 %v732, %v728
    %v969 = vpack.c.b16 %v733, %v729
    %v970 = vpack.c.b16 %v734, %v730
    %v971 = vpack.c.b16 %v735, %v731
    %v972 = vpack.c.b16 %v740, %v736
    %v973 = vpack.c.b16 %v741, %v737
    %v974 = vpack.c.b16 %v742, %v738
    %v975 = vpack.c.b16 %v743, %v739
    %v976 = vpack.c.b16 %v748, %v744
    %v977 = vpack.c.b16 %v749, %v745
    %v978 = vpack.c.b16 %v750, %v746
    %v979 = vpack.c.b16 %v751, %v747
    %v980 = vpack.c.b16 %v756, %v752
    %v981 = vpack.c.b16 %v757, %v753
    %v982 = vpack.c.b16 %v758, %v754
    %v983 = vpack.c.b16 %v759, %v755
    %v984 = vpack.c.b16 %v764, %v760
    %v985 = vpack.c.b16 %v765, %v761
    %v986 = vpack.c.b16 %v766, %v762
    %v987 = vpack.c.b16 %v767, %v763
    %v988 = vpack.c.b16 %v772, %v768
    %v989 = vpack.c.b16 %v773, %v769
    %v990 = vpack.c.b16 %v774, %v770
    %v991 = vpack.c.b16 %v775, %v771
    %v992 = vpack.c.b16 %v780, %v776
    %v993 = vpack.c.b16 %v781, %v777
    %v994 = vpack.c.b16 %v782, %v778
    %v995 = vpack.c.b16 %v783, %v779
    %v996 = vpack.c.b16 %v788, %v784
    %v997 = vpack.c.b16 %v789, %v785
    %v998 = vpack.c.b16 %v790, %v786
    %v999 = vpack.c.b16 %v791, %v787
    %v1000 = vpack.c.b16 %v796, %v792
    %v1001 = vpack.c.b16 %v797, %v793
    %v1002 = vpack.c.b16 %v798, %v794
    %v1003 = vpack.c.b16 %v799, %v795
    %v1004 = vpack.c.b16 %v804, %v800
    %v1005 = vpack.c.b16 %v805, %v801
    %v1006 = vpack.c.b16 %v806, %v802
    %v1007 = vpack.c.b16 %v807, %v803
    %v1008 = vpack.c.b16 %v812, %v808
    %v1009 = vpack.c.b16 %v813, %v809
    %v1010 = vpack.c.b16 %v814, %v810
    %v1011 = vpack.c.b16 %v815, %v811
    %v1012 = vpack.c.b16 %v820, %v816
    %v1013 = vpack.c.b16 %v821, %v817
    %v1014 = vpack.c.b16 %v822, %v818
    %v1015 = vpack.c.b16 %v823, %v819
    %v1016 = vpack.c.b16 %v828, %v824
    %v1017 = vpack.c.b16 %v829, %v825
    %v1018 = vpack.c.b16 %v830, %v826
    %v1019 = vpack.c.b16 %v831, %v827
    %v1020 = vpack.c.b16 %v836, %v832
    %v1021 = vpack.c.b16 %v837, %v833
    %v1022 = vpack.c.b16 %v838, %v834
    %v1023 = vpack.c.b16 %v839, %v835
    %v1024 = vpack.c.b16 %v844, %v840
    %v1025 = vpack.c.b16 %v845, %v841
    %v1026 = vpack.c.b16 %v846, %v842
    %v1027 = vpack.c.b16 %v847, %v843
    %v1028 = vpack.c.b16 %v852, %v848
    %v1029 = vpack.c.b16 %v853, %v849
    %v1030 = vpack.c.b16 %v854, %v850
    %v1031 = vpack.c.b16 %v855, %v851
    %v1032 = vpack.c.b16 %v860, %v856
    %v1033 = vpack.c.b16 %v861, %v857
    %v1034 = vpack.c.b16 %v862, %v858
    %v1035 = vpack.c.b16 %v863, %v859
    %v1036 = vpack.c.b16 %v868, %v864
    %v1037 = vpack.c.b16 %v869, %v865
    %v1038 = vpack.c.b16 %v870, %v866
    %v1039 = vpack.c.b16 %v871, %v867
    %v1040 = vpack.c.b16 %v876, %v872
    %v1041 = vpack.c.b16 %v877, %v873
    %v1042 = vpack.c.b16 %v878, %v874
    %v1043 = vpack.c.b16 %v879, %v875
    %v1044 = vpack.c.b16 %v884, %v880
    %v1045 = vpack.c.b16 %v885, %v881
    %v1046 = vpack.c.b16 %v886, %v882
    %v1047 = vpack.c.b16 %v887, %v883
    %v1048 = vpack.c.b16 %v892, %v888
    %v1049 = vpack.c.b16 %v893, %v889
    %v1050 = vpack.c.b16 %v894, %v890
    %v1051 = vpack.c.b16 %v895, %v891
    %v1052 = vpack.c.b16 %v900, %v896
    %v1053 = vpack.c.b16 %v901, %v897
    %v1054 = vpack.c.b16 %v902, %v898
    %v1055 = vpack.c.b16 %v903, %v899
    %v1056 = vpack.c.b16 %v908, %v904
    %v1057 = vpack.c.b16 %v909, %v905
    %v1058 = vpack.c.b16 %v910, %v906
    %v1059 = vpack.c.b16 %v911, %v907
    %v1060 = vpack.c.b16 %v916, %v912
    %v1061 = vpack.c.b16 %v917, %v913
    %v1062 = vpack.c.b16 %v918, %v914
    %v1063 = vpack.c.b16 %v919, %v915
    %v1064 = vpack.c.b16 %v924, %v920
    %v1065 = vpack.c.b16 %v925, %v921
    %v1066 = vpack.c.b16 %v926, %v922
    %v1067 = vpack.c.b16 %v927, %v923
    %v1068 = vpack.c.b16 %v932, %v928
    %v1069 = vpack.c.b16 %v933, %v929
    %v1070 = vpack.c.b16 %v934, %v930
    %v1071 = vpack.c.b16 %v935, %v931
    %v1072 = vpack.c.b16 %v940, %v936
    %v1073 = vpack.c.b16 %v941, %v937
    %v1074 = vpack.c.b16 %v942, %v938
    %v1075 = vpack.c.b16 %v943, %v939
    %v1076 = vpack.c.b16 %v948, %v944
    %v1077 = vpack.c.b16 %v949, %v945
    %v1078 = vpack.c.b16 %v950, %v946
    %v1079 = vpack.c.b16 %v951, %v947
    %1208 = vmatprep.subr.bf16.mxu0 %v953
    %1209 = vmatpush1.bf16.msra.mxu0 %v952
    %1210 = vmatprep.subr.bf16.mxu0 %v957
    %1211 = vmatpush1.bf16.msra.mxu0 %v956
    %1212 = vmatprep.subr.bf16.mxu0 %v961
    %1213 = vmatpush1.bf16.msra.mxu0 %v960
    %1214 = vmatprep.subr.bf16.mxu0 %v965
    %1215 = vmatpush1.bf16.msra.mxu0 %v964
    %1216 = vmatprep.subr.bf16.mxu0 %v969
    %1217 = vmatpush1.bf16.msra.mxu0 %v968
    %1218 = vmatprep.subr.bf16.mxu0 %v973
    %1219 = vmatpush1.bf16.msra.mxu0 %v972
    %1220 = vmatprep.subr.bf16.mxu0 %v977
    %1221 = vmatpush1.bf16.msra.mxu0 %v976
    %1222 = vmatprep.subr.bf16.mxu0 %v981
    %1223 = vmatpush1.bf16.msra.mxu0 %v980
    %1224 = vmatprep.subr.bf16.mxu0 %v985
    %1225 = vmatpush1.bf16.msra.mxu0 %v984
    %1226 = vmatprep.subr.bf16.mxu0 %v989
    %1227 = vmatpush1.bf16.msra.mxu0 %v988
    %1228 = vmatprep.subr.bf16.mxu0 %v993
    %1229 = vmatpush1.bf16.msra.mxu0 %v992
    %1230 = vmatprep.subr.bf16.mxu0 %v997
    %1231 = vmatpush1.bf16.msra.mxu0 %v996
    %1232 = vmatprep.subr.bf16.mxu0 %v1001
    %1233 = vmatpush1.bf16.msra.mxu0 %v1000
    %1234 = vmatprep.subr.bf16.mxu0 %v1005
    %1235 = vmatpush1.bf16.msra.mxu0 %v1004
    %1236 = vmatprep.subr.bf16.mxu0 %v1009
    %1237 = vmatpush1.bf16.msra.mxu0 %v1008
    %1238 = vmatprep.subr.bf16.mxu0 %v1013
    %1239 = vmatpush1.bf16.msra.mxu0 %v1012
    %1240 = vmatprep.mubr.bf16.mxu0 %v415
    %1241 = vmatmul.mubr.bf16.gmra.mrb[0].mxu0 %v414
    %v1242 = vpop.f32.mrb[0].mxu0
    %v1243 = vadd.f32 %v551, %v1242
    %v1244 = vpop.f32.mrb[0].mxu0
    %v1245 = vadd.f32 %v555, %v1244
    %v1246 = vpop.f32.mrb[0].mxu0
    %v1247 = vpop.f32.mrb[0].mxu0
    %1248 = vdwg.mxu0
    %1249 = vmatprep.subr.bf16.mxu0 %v1017
    %1250 = vmatpush1.bf16.msra.mxu0 %v1016
    %1251 = vmatprep.subr.bf16.mxu0 %v1021
    %1252 = vmatpush1.bf16.msra.mxu0 %v1020
    %1253 = vmatprep.subr.bf16.mxu0 %v1025
    %1254 = vmatpush1.bf16.msra.mxu0 %v1024
    %1255 = vmatprep.subr.bf16.mxu0 %v1029
    %1256 = vmatpush1.bf16.msra.mxu0 %v1028
    %1257 = vmatprep.subr.bf16.mxu0 %v1033
    %1258 = vmatpush1.bf16.msra.mxu0 %v1032
    %1259 = vmatprep.subr.bf16.mxu0 %v1037
    %1260 = vmatpush1.bf16.msra.mxu0 %v1036
    %1261 = vmatprep.subr.bf16.mxu0 %v1041
    %1262 = vmatpush1.bf16.msra.mxu0 %v1040
    %1263 = vmatprep.subr.bf16.mxu0 %v1045
    %1264 = vmatpush1.bf16.msra.mxu0 %v1044
    %1265 = vmatprep.subr.bf16.mxu0 %v1049
    %1266 = vmatpush1.bf16.msra.mxu0 %v1048
    %1267 = vmatprep.subr.bf16.mxu0 %v1053
    %1268 = vmatpush1.bf16.msra.mxu0 %v1052
    %1269 = vmatprep.subr.bf16.mxu0 %v1057
    %1270 = vmatpush1.bf16.msra.mxu0 %v1056
    %1271 = vmatprep.subr.bf16.mxu0 %v1061
    %1272 = vmatpush1.bf16.msra.mxu0 %v1060
    %1273 = vmatprep.subr.bf16.mxu0 %v1065
    %1274 = vmatpush1.bf16.msra.mxu0 %v1064
    %1275 = vmatprep.subr.bf16.mxu0 %v1069
    %1276 = vmatpush1.bf16.msra.mxu0 %v1068
    %1277 = vmatprep.subr.bf16.mxu0 %v1073
    %1278 = vmatpush1.bf16.msra.mxu0 %v1072
    %1279 = vmatprep.subr.bf16.mxu0 %v1077
    %1280 = vmatpush1.bf16.msra.mxu0 %v1076
    %1281 = vmatprep.mubr.bf16.mxu0 %v417
    %1282 = vmatmul.mubr.bf16.gmra.mrb[0].mxu0 %v416
    %v1283 = vpop.f32.mrb[0].mxu0
    %v1284 = vadd.f32 %v1243, %v1283
    %v1285 = vpop.f32.mrb[0].mxu0
    %v1286 = vadd.f32 %v1245, %v1285
    %v1287 = vpop.f32.mrb[0].mxu0
    %v1288 = vpop.f32.mrb[0].mxu0
    %1289 = vdwg.mxu0
    %1290 = vmatprep.subr.bf16.mxu0 %v955
    %1291 = vmatpush1.bf16.msra.mxu0 %v954
    %1292 = vmatprep.subr.bf16.mxu0 %v959
    %1293 = vmatpush1.bf16.msra.mxu0 %v958
    %1294 = vmatprep.subr.bf16.mxu0 %v963
    %1295 = vmatpush1.bf16.msra.mxu0 %v962
    %1296 = vmatprep.subr.bf16.mxu0 %v967
    %1297 = vmatpush1.bf16.msra.mxu0 %v966
    %1298 = vmatprep.subr.bf16.mxu0 %v971
    %1299 = vmatpush1.bf16.msra.mxu0 %v970
    %1300 = vmatprep.subr.bf16.mxu0 %v975
    %1301 = vmatpush1.bf16.msra.mxu0 %v974
    %1302 = vmatprep.subr.bf16.mxu0 %v979
    %1303 = vmatpush1.bf16.msra.mxu0 %v978
    %1304 = vmatprep.subr.bf16.mxu0 %v983
    %1305 = vmatpush1.bf16.msra.mxu0 %v982
    %1306 = vmatprep.subr.bf16.mxu0 %v987
    %1307 = vmatpush1.bf16.msra.mxu0 %v986
    %1308 = vmatprep.subr.bf16.mxu0 %v991
    %1309 = vmatpush1.bf16.msra.mxu0 %v990
    %1310 = vmatprep.subr.bf16.mxu0 %v995
    %1311 = vmatpush1.bf16.msra.mxu0 %v994
    %1312 = vmatprep.subr.bf16.mxu0 %v999
    %1313 = vmatpush1.bf16.msra.mxu0 %v998
    %1314 = vmatprep.subr.bf16.mxu0 %v1003
    %1315 = vmatpush1.bf16.msra.mxu0 %v1002
    %1316 = vmatprep.subr.bf16.mxu0 %v1007
    %1317 = vmatpush1.bf16.msra.mxu0 %v1006
    %1318 = vmatprep.subr.bf16.mxu0 %v1011
    %1319 = vmatpush1.bf16.msra.mxu0 %v1010
    %1320 = vmatprep.subr.bf16.mxu0 %v1015
    %1321 = vmatpush1.bf16.msra.mxu0 %v1014
    %1322 = vmatprep.mubr.bf16.mxu0 %v415
    %1323 = vmatmul.mubr.bf16.gmra.mrb[0].mxu0 %v414
    %v1324 = vpop.f32.mrb[0].mxu0
    %v1325 = vadd.f32 %v559, %v1324
    %v1326 = vpop.f32.mrb[0].mxu0
    %v1327 = vadd.f32 %v563, %v1326
    %v1328 = vpop.f32.mrb[0].mxu0
    %v1329 = vpop.f32.mrb[0].mxu0
    %1330 = vdwg.mxu0
    %1331 = vmatprep.subr.bf16.mxu0 %v1019
    %1332 = vmatpush1.bf16.msra.mxu0 %v1018
    %1333 = vmatprep.subr.bf16.mxu0 %v1023
    %1334 = vmatpush1.bf16.msra.mxu0 %v1022
    %1335 = vmatprep.subr.bf16.mxu0 %v1027
    %1336 = vmatpush1.bf16.msra.mxu0 %v1026
    %1337 = vmatprep.subr.bf16.mxu0 %v1031
    %1338 = vmatpush1.bf16.msra.mxu0 %v1030
    %1339 = vmatprep.subr.bf16.mxu0 %v1035
    %1340 = vmatpush1.bf16.msra.mxu0 %v1034
    %1341 = vmatprep.subr.bf16.mxu0 %v1039
    %1342 = vmatpush1.bf16.msra.mxu0 %v1038
    %1343 = vmatprep.subr.bf16.mxu0 %v1043
    %1344 = vmatpush1.bf16.msra.mxu0 %v1042
    %1345 = vmatprep.subr.bf16.mxu0 %v1047
    %1346 = vmatpush1.bf16.msra.mxu0 %v1046
    %1347 = vmatprep.subr.bf16.mxu0 %v1051
    %1348 = vmatpush1.bf16.msra.mxu0 %v1050
    %1349 = vmatprep.subr.bf16.mxu0 %v1055
    %1350 = vmatpush1.bf16.msra.mxu0 %v1054
    %1351 = vmatprep.subr.bf16.mxu0 %v1059
    %1352 = vmatpush1.bf16.msra.mxu0 %v1058
    %1353 = vmatprep.subr.bf16.mxu0 %v1063
    %1354 = vmatpush1.bf16.msra.mxu0 %v1062
    %1355 = vmatprep.subr.bf16.mxu0 %v1067
    %1356 = vmatpush1.bf16.msra.mxu0 %v1066
    %1357 = vmatprep.subr.bf16.mxu0 %v1071
    %1358 = vmatpush1.bf16.msra.mxu0 %v1070
    %1359 = vmatprep.subr.bf16.mxu0 %v1075
    %1360 = vmatpush1.bf16.msra.mxu0 %v1074
    %1361 = vmatprep.subr.bf16.mxu0 %v1079
    %1362 = vmatpush1.bf16.msra.mxu0 %v1078
    %1363 = vmatprep.mubr.bf16.mxu0 %v417
    %1364 = vmatmul.mubr.bf16.gmra.mrb[0].mxu0 %v416
    %v1365 = vpop.f32.mrb[0].mxu0
    %v1366 = vadd.f32 %v1325, %v1365
    %v1367 = vpop.f32.mrb[0].mxu0
    %v1368 = vadd.f32 %v1327, %v1367
    %v1369 = vpop.f32.mrb[0].mxu0
    %v1370 = vpop.f32.mrb[0].mxu0
    %1371 = vdwg.mxu0
    %vm1372 = vcmp.ge.f32.partialorder %v1284, 0.0
    %vm1373 = vcmp.ge.f32.partialorder %v1286, 0.0
    %vm1374 = vcmp.ge.f32.partialorder %v1366, 0.0
    %vm1375 = vcmp.ge.f32.partialorder %v1368, 0.0
    %v1376 = vstv %s238
    %v1377 = vmul.f32 %v1376, %v1284
    %v1378 = vmul.f32 %v1376, %v1286
    %v1379 = vmul.f32 %v1376, %v1366
    %v1380 = vmul.f32 %v1376, %v1368
    %v1381 = vsel %vm1372, %v1284, %v1377
    %v1382 = vsel %vm1373, %v1286, %v1378
    %v1383 = vsel %vm1374, %v1366, %v1379
    %v1384 = vsel %vm1375, %v1368, %v1380
    %v1385 = vpack.c.bf16 %v1381, %v1381
    %v1386 = vpack.c.bf16 %v1382, %v1382
    %v1387 = vpack.c.bf16 %v1383, %v1383
    %v1388 = vpack.c.bf16 %v1384, %v1384
    %v1389 = vld [vmem:[#allocation10] sm:$0xff]
    %v1390 = vld [vmem:[#allocation10 + $0x8] sm:$0xff]
    %v1391 = vld [vmem:[#allocation10 + $0x10] sm:$0xff]
    %v1392 = vld [vmem:[#allocation10 + $0x18] sm:$0xff]
    %v1393 = vld [vmem:[#allocation10 + $0x20] sm:$0xff]
    %v1394 = vld [vmem:[#allocation10 + $0x28] sm:$0xff]
    %v1395 = vld [vmem:[#allocation10 + $0x30] sm:$0xff]
    %v1396 = vld [vmem:[#allocation10 + $0x38] sm:$0xff]
    %v1397 = vld [vmem:[#allocation10 + $0x40] sm:$0xff]
    %v1398 = vld [vmem:[#allocation10 + $0x48] sm:$0xff]
    %v1399 = vld [vmem:[#allocation10 + $0x50] sm:$0xff]
    %v1400 = vld [vmem:[#allocation10 + $0x58] sm:$0xff]
    %v1401 = vld [vmem:[#allocation10 + $0x60] sm:$0xff]
    %v1402 = vld [vmem:[#allocation10 + $0x68] sm:$0xff]
    %v1403 = vld [vmem:[#allocation10 + $0x70] sm:$0xff]
    %v1404 = vld [vmem:[#allocation10 + $0x78] sm:$0xff]
    %v1405 = vld [vmem:[#allocation10 + $0x80] sm:$0xff]
    %v1406 = vld [vmem:[#allocation10 + $0x88] sm:$0xff]
    %v1407 = vld [vmem:[#allocation10 + $0x90] sm:$0xff]
    %v1408 = vld [vmem:[#allocation10 + $0x98] sm:$0xff]
    %v1409 = vld [vmem:[#allocation10 + $0xa0] sm:$0xff]
    %v1410 = vld [vmem:[#allocation10 + $0xa8] sm:$0xff]
    %v1411 = vld [vmem:[#allocation10 + $0xb0] sm:$0xff]
    %v1412 = vld [vmem:[#allocation10 + $0xb8] sm:$0xff]
    %v1413 = vld [vmem:[#allocation10 + $0xc0] sm:$0xff]
    %v1414 = vld [vmem:[#allocation10 + $0xc8] sm:$0xff]
    %v1415 = vld [vmem:[#allocation10 + $0xd0] sm:$0xff]
    %v1416 = vld [vmem:[#allocation10 + $0xd8] sm:$0xff]
    %v1417 = vld [vmem:[#allocation10 + $0xe0] sm:$0xff]
    %v1418 = vld [vmem:[#allocation10 + $0xe8] sm:$0xff]
    %v1419 = vld [vmem:[#allocation10 + $0xf0] sm:$0xff]
    %v1420 = vld [vmem:[#allocation10 + $0xf8] sm:$0xff]
    %v1421 = vld [vmem:[#allocation10 + $0x100] sm:$0xff]
    %v1422 = vld [vmem:[#allocation10 + $0x108] sm:$0xff]
    %v1423 = vld [vmem:[#allocation10 + $0x110] sm:$0xff]
    %v1424 = vld [vmem:[#allocation10 + $0x118] sm:$0xff]
    %v1425 = vld [vmem:[#allocation10 + $0x120] sm:$0xff]
    %v1426 = vld [vmem:[#allocation10 + $0x128] sm:$0xff]
    %v1427 = vld [vmem:[#allocation10 + $0x130] sm:$0xff]
    %v1428 = vld [vmem:[#allocation10 + $0x138] sm:$0xff]
    %v1429 = vld [vmem:[#allocation10 + $0x140] sm:$0xff]
    %v1430 = vld [vmem:[#allocation10 + $0x148] sm:$0xff]
    %v1431 = vld [vmem:[#allocation10 + $0x150] sm:$0xff]
    %v1432 = vld [vmem:[#allocation10 + $0x158] sm:$0xff]
    %v1433 = vld [vmem:[#allocation10 + $0x160] sm:$0xff]
    %v1434 = vld [vmem:[#allocation10 + $0x168] sm:$0xff]
    %v1435 = vld [vmem:[#allocation10 + $0x170] sm:$0xff]
    %v1436 = vld [vmem:[#allocation10 + $0x178] sm:$0xff]
    %v1437 = vld [vmem:[#allocation10 + $0x180] sm:$0xff]
    %v1438 = vld [vmem:[#allocation10 + $0x188] sm:$0xff]
    %v1439 = vld [vmem:[#allocation10 + $0x190] sm:$0xff]
    %v1440 = vld [vmem:[#allocation10 + $0x198] sm:$0xff]
    %v1441 = vld [vmem:[#allocation10 + $0x1a0] sm:$0xff]
    %v1442 = vld [vmem:[#allocation10 + $0x1a8] sm:$0xff]
    %v1443 = vld [vmem:[#allocation10 + $0x1b0] sm:$0xff]
    %v1444 = vld [vmem:[#allocation10 + $0x1b8] sm:$0xff]
    %v1445 = vld [vmem:[#allocation10 + $0x1c0] sm:$0xff]
    %v1446 = vld [vmem:[#allocation10 + $0x1c8] sm:$0xff]
    %v1447 = vld [vmem:[#allocation10 + $0x1d0] sm:$0xff]
    %v1448 = vld [vmem:[#allocation10 + $0x1d8] sm:$0xff]
    %v1449 = vld [vmem:[#allocation10 + $0x1e0] sm:$0xff]
    %v1450 = vld [vmem:[#allocation10 + $0x1e8] sm:$0xff]
    %v1451 = vld [vmem:[#allocation10 + $0x1f0] sm:$0xff]
    %v1452 = vld [vmem:[#allocation10 + $0x1f8] sm:$0xff]
    %v1453 = vld [vmem:[#allocation10 + $0x200] sm:$0xff]
    %v1454 = vld [vmem:[#allocation10 + $0x208] sm:$0xff]
    %v1455 = vld [vmem:[#allocation10 + $0x210] sm:$0xff]
    %v1456 = vld [vmem:[#allocation10 + $0x218] sm:$0xff]
    %v1457 = vld [vmem:[#allocation10 + $0x220] sm:$0xff]
    %v1458 = vld [vmem:[#allocation10 + $0x228] sm:$0xff]
    %v1459 = vld [vmem:[#allocation10 + $0x230] sm:$0xff]
    %v1460 = vld [vmem:[#allocation10 + $0x238] sm:$0xff]
    %v1461 = vld [vmem:[#allocation10 + $0x240] sm:$0xff]
    %v1462 = vld [vmem:[#allocation10 + $0x248] sm:$0xff]
    %v1463 = vld [vmem:[#allocation10 + $0x250] sm:$0xff]
    %v1464 = vld [vmem:[#allocation10 + $0x258] sm:$0xff]
    %v1465 = vld [vmem:[#allocation10 + $0x260] sm:$0xff]
    %v1466 = vld [vmem:[#allocation10 + $0x268] sm:$0xff]
    %v1467 = vld [vmem:[#allocation10 + $0x270] sm:$0xff]
    %v1468 = vld [vmem:[#allocation10 + $0x278] sm:$0xff]
    %v1469 = vld [vmem:[#allocation10 + $0x280] sm:$0xff]
    %v1470 = vld [vmem:[#allocation10 + $0x288] sm:$0xff]
    %v1471 = vld [vmem:[#allocation10 + $0x290] sm:$0xff]
    %v1472 = vld [vmem:[#allocation10 + $0x298] sm:$0xff]
    %v1473 = vld [vmem:[#allocation10 + $0x2a0] sm:$0xff]
    %v1474 = vld [vmem:[#allocation10 + $0x2a8] sm:$0xff]
    %v1475 = vld [vmem:[#allocation10 + $0x2b0] sm:$0xff]
    %v1476 = vld [vmem:[#allocation10 + $0x2b8] sm:$0xff]
    %v1477 = vld [vmem:[#allocation10 + $0x2c0] sm:$0xff]
    %v1478 = vld [vmem:[#allocation10 + $0x2c8] sm:$0xff]
    %v1479 = vld [vmem:[#allocation10 + $0x2d0] sm:$0xff]
    %v1480 = vld [vmem:[#allocation10 + $0x2d8] sm:$0xff]
    %v1481 = vld [vmem:[#allocation10 + $0x2e0] sm:$0xff]
    %v1482 = vld [vmem:[#allocation10 + $0x2e8] sm:$0xff]
    %v1483 = vld [vmem:[#allocation10 + $0x2f0] sm:$0xff]
    %v1484 = vld [vmem:[#allocation10 + $0x2f8] sm:$0xff]
    %v1485 = vld [vmem:[#allocation10 + $0x300] sm:$0xff]
    %v1486 = vld [vmem:[#allocation10 + $0x308] sm:$0xff]
    %v1487 = vld [vmem:[#allocation10 + $0x310] sm:$0xff]
    %v1488 = vld [vmem:[#allocation10 + $0x318] sm:$0xff]
    %v1489 = vld [vmem:[#allocation10 + $0x320] sm:$0xff]
    %v1490 = vld [vmem:[#allocation10 + $0x328] sm:$0xff]
    %v1491 = vld [vmem:[#allocation10 + $0x330] sm:$0xff]
    %v1492 = vld [vmem:[#allocation10 + $0x338] sm:$0xff]
    %v1493 = vld [vmem:[#allocation10 + $0x340] sm:$0xff]
    %v1494 = vld [vmem:[#allocation10 + $0x348] sm:$0xff]
    %v1495 = vld [vmem:[#allocation10 + $0x350] sm:$0xff]
    %v1496 = vld [vmem:[#allocation10 + $0x358] sm:$0xff]
    %v1497 = vld [vmem:[#allocation10 + $0x360] sm:$0xff]
    %v1498 = vld [vmem:[#allocation10 + $0x368] sm:$0xff]
    %v1499 = vld [vmem:[#allocation10 + $0x370] sm:$0xff]
    %v1500 = vld [vmem:[#allocation10 + $0x378] sm:$0xff]
    %v1501 = vld [vmem:[#allocation10 + $0x380] sm:$0xff]
    %v1502 = vld [vmem:[#allocation10 + $0x388] sm:$0xff]
    %v1503 = vld [vmem:[#allocation10 + $0x390] sm:$0xff]
    %v1504 = vld [vmem:[#allocation10 + $0x398] sm:$0xff]
    %v1505 = vld [vmem:[#allocation10 + $0x3a0] sm:$0xff]
    %v1506 = vld [vmem:[#allocation10 + $0x3a8] sm:$0xff]
    %v1507 = vld [vmem:[#allocation10 + $0x3b0] sm:$0xff]
    %v1508 = vld [vmem:[#allocation10 + $0x3b8] sm:$0xff]
    %v1509 = vld [vmem:[#allocation10 + $0x3c0] sm:$0xff]
    %v1510 = vld [vmem:[#allocation10 + $0x3c8] sm:$0xff]
    %v1511 = vld [vmem:[#allocation10 + $0x3d0] sm:$0xff]
    %v1512 = vld [vmem:[#allocation10 + $0x3d8] sm:$0xff]
    %v1513 = vld [vmem:[#allocation10 + $0x3e0] sm:$0xff]
    %v1514 = vld [vmem:[#allocation10 + $0x3e8] sm:$0xff]
    %v1515 = vld [vmem:[#allocation10 + $0x3f0] sm:$0xff]
    %v1516 = vld [vmem:[#allocation10 + $0x3f8] sm:$0xff]
    %v1517 = vld [vmem:[%s7] sm:$0xf]
    %v1519 = vlaneseq
    %v1520 = vshrl.u32 %v1519, 7
    %v1521 = vsub.s32 0, %v1520
    %v1522 = vrot.slane %v1517, %v1521
    %v1523 = vlaneseq
    %v1524 = vshrl.u32 %v1523, 7
    %v1525 = vsub.s32 1, %v1524
    %v1526 = vrot.slane %v1517, %v1525
    %v1527 = vlaneseq
    %v1528 = vshrl.u32 %v1527, 7
    %v1529 = vsub.s32 2, %v1528
    %v1530 = vrot.slane %v1517, %v1529
    %v1531 = vlaneseq
    %v1532 = vshrl.u32 %v1531, 7
    %v1533 = vsub.s32 3, %v1532
    %v1534 = vrot.slane %v1517, %v1533
    %v1667 = vunpack.c.l.b16 %v1389
    %v1668 = vunpack.c.h.b16 %v1389
    %v1669 = vunpack.c.l.b16 %v1390
    %v1670 = vunpack.c.h.b16 %v1390
    %v1671 = vunpack.c.l.b16 %v1391
    %v1672 = vunpack.c.h.b16 %v1391
    %v1673 = vunpack.c.l.b16 %v1392
    %v1674 = vunpack.c.h.b16 %v1392
    %v1675 = vunpack.c.l.b16 %v1393
    %v1676 = vunpack.c.h.b16 %v1393
    %v1677 = vunpack.c.l.b16 %v1394
    %v1678 = vunpack.c.h.b16 %v1394
    %v1679 = vunpack.c.l.b16 %v1395
    %v1680 = vunpack.c.h.b16 %v1395
    %v1681 = vunpack.c.l.b16 %v1396
    %v1682 = vunpack.c.h.b16 %v1396
    %v1683 = vunpack.c.l.b16 %v1397
    %v1684 = vunpack.c.h.b16 %v1397
    %v1685 = vunpack.c.l.b16 %v1398
    %v1686 = vunpack.c.h.b16 %v1398
    %v1687 = vunpack.c.l.b16 %v1399
    %v1688 = vunpack.c.h.b16 %v1399
    %v1689 = vunpack.c.l.b16 %v1400
    %v1690 = vunpack.c.h.b16 %v1400
    %v1691 = vunpack.c.l.b16 %v1401
    %v1692 = vunpack.c.h.b16 %v1401
    %v1693 = vunpack.c.l.b16 %v1402
    %v1694 = vunpack.c.h.b16 %v1402
    %v1695 = vunpack.c.l.b16 %v1403
    %v1696 = vunpack.c.h.b16 %v1403
    %v1697 = vunpack.c.l.b16 %v1404
    %v1698 = vunpack.c.h.b16 %v1404
    %v1699 = vunpack.c.l.b16 %v1405
    %v1700 = vunpack.c.h.b16 %v1405
    %v1701 = vunpack.c.l.b16 %v1406
    %v1702 = vunpack.c.h.b16 %v1406
    %v1703 = vunpack.c.l.b16 %v1407
    %v1704 = vunpack.c.h.b16 %v1407
    %v1705 = vunpack.c.l.b16 %v1408
    %v1706 = vunpack.c.h.b16 %v1408
    %v1707 = vunpack.c.l.b16 %v1409
    %v1708 = vunpack.c.h.b16 %v1409
    %v1709 = vunpack.c.l.b16 %v1410
    %v1710 = vunpack.c.h.b16 %v1410
    %v1711 = vunpack.c.l.b16 %v1411
    %v1712 = vunpack.c.h.b16 %v1411
    %v1713 = vunpack.c.l.b16 %v1412
    %v1714 = vunpack.c.h.b16 %v1412
    %v1715 = vunpack.c.l.b16 %v1413
    %v1716 = vunpack.c.h.b16 %v1413
    %v1717 = vunpack.c.l.b16 %v1414
    %v1718 = vunpack.c.h.b16 %v1414
    %v1719 = vunpack.c.l.b16 %v1415
    %v1720 = vunpack.c.h.b16 %v1415
    %v1721 = vunpack.c.l.b16 %v1416
    %v1722 = vunpack.c.h.b16 %v1416
    %v1723 = vunpack.c.l.b16 %v1417
    %v1724 = vunpack.c.h.b16 %v1417
    %v1725 = vunpack.c.l.b16 %v1418
    %v1726 = vunpack.c.h.b16 %v1418
    %v1727 = vunpack.c.l.b16 %v1419
    %v1728 = vunpack.c.h.b16 %v1419
    %v1729 = vunpack.c.l.b16 %v1420
    %v1730 = vunpack.c.h.b16 %v1420
    %v1731 = vunpack.c.l.b16 %v1421
    %v1732 = vunpack.c.h.b16 %v1421
    %v1733 = vunpack.c.l.b16 %v1422
    %v1734 = vunpack.c.h.b16 %v1422
    %v1735 = vunpack.c.l.b16 %v1423
    %v1736 = vunpack.c.h.b16 %v1423
    %v1737 = vunpack.c.l.b16 %v1424
    %v1738 = vunpack.c.h.b16 %v1424
    %v1739 = vunpack.c.l.b16 %v1425
    %v1740 = vunpack.c.h.b16 %v1425
    %v1741 = vunpack.c.l.b16 %v1426
    %v1742 = vunpack.c.h.b16 %v1426
    %v1743 = vunpack.c.l.b16 %v1427
    %v1744 = vunpack.c.h.b16 %v1427
    %v1745 = vunpack.c.l.b16 %v1428
    %v1746 = vunpack.c.h.b16 %v1428
    %v1747 = vunpack.c.l.b16 %v1429
    %v1748 = vunpack.c.h.b16 %v1429
    %v1749 = vunpack.c.l.b16 %v1430
    %v1750 = vunpack.c.h.b16 %v1430
    %v1751 = vunpack.c.l.b16 %v1431
    %v1752 = vunpack.c.h.b16 %v1431
    %v1753 = vunpack.c.l.b16 %v1432
    %v1754 = vunpack.c.h.b16 %v1432
    %v1755 = vunpack.c.l.b16 %v1433
    %v1756 = vunpack.c.h.b16 %v1433
    %v1757 = vunpack.c.l.b16 %v1434
    %v1758 = vunpack.c.h.b16 %v1434
    %v1759 = vunpack.c.l.b16 %v1435
    %v1760 = vunpack.c.h.b16 %v1435
    %v1761 = vunpack.c.l.b16 %v1436
    %v1762 = vunpack.c.h.b16 %v1436
    %v1763 = vunpack.c.l.b16 %v1437
    %v1764 = vunpack.c.h.b16 %v1437
    %v1765 = vunpack.c.l.b16 %v1438
    %v1766 = vunpack.c.h.b16 %v1438
    %v1767 = vunpack.c.l.b16 %v1439
    %v1768 = vunpack.c.h.b16 %v1439
    %v1769 = vunpack.c.l.b16 %v1440
    %v1770 = vunpack.c.h.b16 %v1440
    %v1771 = vunpack.c.l.b16 %v1441
    %v1772 = vunpack.c.h.b16 %v1441
    %v1773 = vunpack.c.l.b16 %v1442
    %v1774 = vunpack.c.h.b16 %v1442
    %v1775 = vunpack.c.l.b16 %v1443
    %v1776 = vunpack.c.h.b16 %v1443
    %v1777 = vunpack.c.l.b16 %v1444
    %v1778 = vunpack.c.h.b16 %v1444
    %v1779 = vunpack.c.l.b16 %v1445
    %v1780 = vunpack.c.h.b16 %v1445
    %v1781 = vunpack.c.l.b16 %v1446
    %v1782 = vunpack.c.h.b16 %v1446
    %v1783 = vunpack.c.l.b16 %v1447
    %v1784 = vunpack.c.h.b16 %v1447
    %v1785 = vunpack.c.l.b16 %v1448
    %v1786 = vunpack.c.h.b16 %v1448
    %v1787 = vunpack.c.l.b16 %v1449
    %v1788 = vunpack.c.h.b16 %v1449
    %v1789 = vunpack.c.l.b16 %v1450
    %v1790 = vunpack.c.h.b16 %v1450
    %v1791 = vunpack.c.l.b16 %v1451
    %v1792 = vunpack.c.h.b16 %v1451
    %v1793 = vunpack.c.l.b16 %v1452
    %v1794 = vunpack.c.h.b16 %v1452
    %v1795 = vunpack.c.l.b16 %v1453
    %v1796 = vunpack.c.h.b16 %v1453
    %v1797 = vunpack.c.l.b16 %v1454
    %v1798 = vunpack.c.h.b16 %v1454
    %v1799 = vunpack.c.l.b16 %v1455
    %v1800 = vunpack.c.h.b16 %v1455
    %v1801 = vunpack.c.l.b16 %v1456
    %v1802 = vunpack.c.h.b16 %v1456
    %v1803 = vunpack.c.l.b16 %v1457
    %v1804 = vunpack.c.h.b16 %v1457
    %v1805 = vunpack.c.l.b16 %v1458
    %v1806 = vunpack.c.h.b16 %v1458
    %v1807 = vunpack.c.l.b16 %v1459
    %v1808 = vunpack.c.h.b16 %v1459
    %v1809 = vunpack.c.l.b16 %v1460
    %v1810 = vunpack.c.h.b16 %v1460
    %v1811 = vunpack.c.l.b16 %v1461
    %v1812 = vunpack.c.h.b16 %v1461
    %v1813 = vunpack.c.l.b16 %v1462
    %v1814 = vunpack.c.h.b16 %v1462
    %v1815 = vunpack.c.l.b16 %v1463
    %v1816 = vunpack.c.h.b16 %v1463
    %v1817 = vunpack.c.l.b16 %v1464
    %v1818 = vunpack.c.h.b16 %v1464
    %v1819 = vunpack.c.l.b16 %v1465
    %v1820 = vunpack.c.h.b16 %v1465
    %v1821 = vunpack.c.l.b16 %v1466
    %v1822 = vunpack.c.h.b16 %v1466
    %v1823 = vunpack.c.l.b16 %v1467
    %v1824 = vunpack.c.h.b16 %v1467
    %v1825 = vunpack.c.l.b16 %v1468
    %v1826 = vunpack.c.h.b16 %v1468
    %v1827 = vunpack.c.l.b16 %v1469
    %v1828 = vunpack.c.h.b16 %v1469
    %v1829 = vunpack.c.l.b16 %v1470
    %v1830 = vunpack.c.h.b16 %v1470
    %v1831 = vunpack.c.l.b16 %v1471
    %v1832 = vunpack.c.h.b16 %v1471
    %v1833 = vunpack.c.l.b16 %v1472
    %v1834 = vunpack.c.h.b16 %v1472
    %v1835 = vunpack.c.l.b16 %v1473
    %v1836 = vunpack.c.h.b16 %v1473
    %v1837 = vunpack.c.l.b16 %v1474
    %v1838 = vunpack.c.h.b16 %v1474
    %v1839 = vunpack.c.l.b16 %v1475
    %v1840 = vunpack.c.h.b16 %v1475
    %v1841 = vunpack.c.l.b16 %v1476
    %v1842 = vunpack.c.h.b16 %v1476
    %v1843 = vunpack.c.l.b16 %v1477
    %v1844 = vunpack.c.h.b16 %v1477
    %v1845 = vunpack.c.l.b16 %v1478
    %v1846 = vunpack.c.h.b16 %v1478
    %v1847 = vunpack.c.l.b16 %v1479
    %v1848 = vunpack.c.h.b16 %v1479
    %v1849 = vunpack.c.l.b16 %v1480
    %v1850 = vunpack.c.h.b16 %v1480
    %v1851 = vunpack.c.l.b16 %v1481
    %v1852 = vunpack.c.h.b16 %v1481
    %v1853 = vunpack.c.l.b16 %v1482
    %v1854 = vunpack.c.h.b16 %v1482
    %v1855 = vunpack.c.l.b16 %v1483
    %v1856 = vunpack.c.h.b16 %v1483
    %v1857 = vunpack.c.l.b16 %v1484
    %v1858 = vunpack.c.h.b16 %v1484
    %v1859 = vunpack.c.l.b16 %v1485
    %v1860 = vunpack.c.h.b16 %v1485
    %v1861 = vunpack.c.l.b16 %v1486
    %v1862 = vunpack.c.h.b16 %v1486
    %v1863 = vunpack.c.l.b16 %v1487
    %v1864 = vunpack.c.h.b16 %v1487
    %v1865 = vunpack.c.l.b16 %v1488
    %v1866 = vunpack.c.h.b16 %v1488
    %v1867 = vunpack.c.l.b16 %v1489
    %v1868 = vunpack.c.h.b16 %v1489
    %v1869 = vunpack.c.l.b16 %v1490
    %v1870 = vunpack.c.h.b16 %v1490
    %v1871 = vunpack.c.l.b16 %v1491
    %v1872 = vunpack.c.h.b16 %v1491
    %v1873 = vunpack.c.l.b16 %v1492
    %v1874 = vunpack.c.h.b16 %v1492
    %v1875 = vunpack.c.l.b16 %v1493
    %v1876 = vunpack.c.h.b16 %v1493
    %v1877 = vunpack.c.l.b16 %v1494
    %v1878 = vunpack.c.h.b16 %v1494
    %v1879 = vunpack.c.l.b16 %v1495
    %v1880 = vunpack.c.h.b16 %v1495
    %v1881 = vunpack.c.l.b16 %v1496
    %v1882 = vunpack.c.h.b16 %v1496
    %v1883 = vunpack.c.l.b16 %v1497
    %v1884 = vunpack.c.h.b16 %v1497
    %v1885 = vunpack.c.l.b16 %v1498
    %v1886 = vunpack.c.h.b16 %v1498
    %v1887 = vunpack.c.l.b16 %v1499
    %v1888 = vunpack.c.h.b16 %v1499
    %v1889 = vunpack.c.l.b16 %v1500
    %v1890 = vunpack.c.h.b16 %v1500
    %v1891 = vunpack.c.l.b16 %v1501
    %v1892 = vunpack.c.h.b16 %v1501
    %v1893 = vunpack.c.l.b16 %v1502
    %v1894 = vunpack.c.h.b16 %v1502
    %v1895 = vunpack.c.l.b16 %v1503
    %v1896 = vunpack.c.h.b16 %v1503
    %v1897 = vunpack.c.l.b16 %v1504
    %v1898 = vunpack.c.h.b16 %v1504
    %v1899 = vunpack.c.l.b16 %v1505
    %v1900 = vunpack.c.h.b16 %v1505
    %v1901 = vunpack.c.l.b16 %v1506
    %v1902 = vunpack.c.h.b16 %v1506
    %v1903 = vunpack.c.l.b16 %v1507
    %v1904 = vunpack.c.h.b16 %v1507
    %v1905 = vunpack.c.l.b16 %v1508
    %v1906 = vunpack.c.h.b16 %v1508
    %v1907 = vunpack.c.l.b16 %v1509
    %v1908 = vunpack.c.h.b16 %v1509
    %v1909 = vunpack.c.l.b16 %v1510
    %v1910 = vunpack.c.h.b16 %v1510
    %v1911 = vunpack.c.l.b16 %v1511
    %v1912 = vunpack.c.h.b16 %v1511
    %v1913 = vunpack.c.l.b16 %v1512
    %v1914 = vunpack.c.h.b16 %v1512
    %v1915 = vunpack.c.l.b16 %v1513
    %v1916 = vunpack.c.h.b16 %v1513
    %v1917 = vunpack.c.l.b16 %v1514
    %v1918 = vunpack.c.h.b16 %v1514
    %v1919 = vunpack.c.l.b16 %v1515
    %v1920 = vunpack.c.h.b16 %v1515
    %v1921 = vunpack.c.l.b16 %v1516
    %v1922 = vunpack.c.h.b16 %v1516
    %v1923 = vpack.c.b16 %v1671, %v1667
    %v1924 = vpack.c.b16 %v1672, %v1668
    %v1925 = vpack.c.b16 %v1673, %v1669
    %v1926 = vpack.c.b16 %v1674, %v1670
    %v1927 = vpack.c.b16 %v1679, %v1675
    %v1928 = vpack.c.b16 %v1680, %v1676
    %v1929 = vpack.c.b16 %v1681, %v1677
    %v1930 = vpack.c.b16 %v1682, %v1678
    %v1931 = vpack.c.b16 %v1687, %v1683
    %v1932 = vpack.c.b16 %v1688, %v1684
    %v1933 = vpack.c.b16 %v1689, %v1685
    %v1934 = vpack.c.b16 %v1690, %v1686
    %v1935 = vpack.c.b16 %v1695, %v1691
    %v1936 = vpack.c.b16 %v1696, %v1692
    %v1937 = vpack.c.b16 %v1697, %v1693
    %v1938 = vpack.c.b16 %v1698, %v1694
    %v1939 = vpack.c.b16 %v1703, %v1699
    %v1940 = vpack.c.b16 %v1704, %v1700
    %v1941 = vpack.c.b16 %v1705, %v1701
    %v1942 = vpack.c.b16 %v1706, %v1702
    %v1943 = vpack.c.b16 %v1711, %v1707
    %v1944 = vpack.c.b16 %v1712, %v1708
    %v1945 = vpack.c.b16 %v1713, %v1709
    %v1946 = vpack.c.b16 %v1714, %v1710
    %v1947 = vpack.c.b16 %v1719, %v1715
    %v1948 = vpack.c.b16 %v1720, %v1716
    %v1949 = vpack.c.b16 %v1721, %v1717
    %v1950 = vpack.c.b16 %v1722, %v1718
    %v1951 = vpack.c.b16 %v1727, %v1723
    %v1952 = vpack.c.b16 %v1728, %v1724
    %v1953 = vpack.c.b16 %v1729, %v1725
    %v1954 = vpack.c.b16 %v1730, %v1726
    %v1955 = vpack.c.b16 %v1735, %v1731
    %v1956 = vpack.c.b16 %v1736, %v1732
    %v1957 = vpack.c.b16 %v1737, %v1733
    %v1958 = vpack.c.b16 %v1738, %v1734
    %v1959 = vpack.c.b16 %v1743, %v1739
    %v1960 = vpack.c.b16 %v1744, %v1740
    %v1961 = vpack.c.b16 %v1745, %v1741
    %v1962 = vpack.c.b16 %v1746, %v1742
    %v1963 = vpack.c.b16 %v1751, %v1747
    %v1964 = vpack.c.b16 %v1752, %v1748
    %v1965 = vpack.c.b16 %v1753, %v1749
    %v1966 = vpack.c.b16 %v1754, %v1750
    %v1967 = vpack.c.b16 %v1759, %v1755
    %v1968 = vpack.c.b16 %v1760, %v1756
    %v1969 = vpack.c.b16 %v1761, %v1757
    %v1970 = vpack.c.b16 %v1762, %v1758
    %v1971 = vpack.c.b16 %v1767, %v1763
    %v1972 = vpack.c.b16 %v1768, %v1764
    %v1973 = vpack.c.b16 %v1769, %v1765
    %v1974 = vpack.c.b16 %v1770, %v1766
    %v1975 = vpack.c.b16 %v1775, %v1771
    %v1976 = vpack.c.b16 %v1776, %v1772
    %v1977 = vpack.c.b16 %v1777, %v1773
    %v1978 = vpack.c.b16 %v1778, %v1774
    %v1979 = vpack.c.b16 %v1783, %v1779
    %v1980 = vpack.c.b16 %v1784, %v1780
    %v1981 = vpack.c.b16 %v1785, %v1781
    %v1982 = vpack.c.b16 %v1786, %v1782
    %v1983 = vpack.c.b16 %v1791, %v1787
    %v1984 = vpack.c.b16 %v1792, %v1788
    %v1985 = vpack.c.b16 %v1793, %v1789
    %v1986 = vpack.c.b16 %v1794, %v1790
    %v1987 = vpack.c.b16 %v1799, %v1795
    %v1988 = vpack.c.b16 %v1800, %v1796
    %v1989 = vpack.c.b16 %v1801, %v1797
    %v1990 = vpack.c.b16 %v1802, %v1798
    %v1991 = vpack.c.b16 %v1807, %v1803
    %v1992 = vpack.c.b16 %v1808, %v1804
    %v1993 = vpack.c.b16 %v1809, %v1805
    %v1994 = vpack.c.b16 %v1810, %v1806
    %v1995 = vpack.c.b16 %v1815, %v1811
    %v1996 = vpack.c.b16 %v1816, %v1812
    %v1997 = vpack.c.b16 %v1817, %v1813
    %v1998 = vpack.c.b16 %v1818, %v1814
    %v1999 = vpack.c.b16 %v1823, %v1819
    %v2000 = vpack.c.b16 %v1824, %v1820
    %v2001 = vpack.c.b16 %v1825, %v1821
    %v2002 = vpack.c.b16 %v1826, %v1822
    %v2003 = vpack.c.b16 %v1831, %v1827
    %v2004 = vpack.c.b16 %v1832, %v1828
    %v2005 = vpack.c.b16 %v1833, %v1829
    %v2006 = vpack.c.b16 %v1834, %v1830
    %v2007 = vpack.c.b16 %v1839, %v1835
    %v2008 = vpack.c.b16 %v1840, %v1836
    %v2009 = vpack.c.b16 %v1841, %v1837
    %v2010 = vpack.c.b16 %v1842, %v1838
    %v2011 = vpack.c.b16 %v1847, %v1843
    %v2012 = vpack.c.b16 %v1848, %v1844
    %v2013 = vpack.c.b16 %v1849, %v1845
    %v2014 = vpack.c.b16 %v1850, %v1846
    %v2015 = vpack.c.b16 %v1855, %v1851
    %v2016 = vpack.c.b16 %v1856, %v1852
    %v2017 = vpack.c.b16 %v1857, %v1853
    %v2018 = vpack.c.b16 %v1858, %v1854
    %v2019 = vpack.c.b16 %v1863, %v1859
    %v2020 = vpack.c.b16 %v1864, %v1860
    %v2021 = vpack.c.b16 %v1865, %v1861
    %v2022 = vpack.c.b16 %v1866, %v1862
    %v2023 = vpack.c.b16 %v1871, %v1867
    %v2024 = vpack.c.b16 %v1872, %v1868
    %v2025 = vpack.c.b16 %v1873, %v1869
    %v2026 = vpack.c.b16 %v1874, %v1870
    %v2027 = vpack.c.b16 %v1879, %v1875
    %v2028 = vpack.c.b16 %v1880, %v1876
    %v2029 = vpack.c.b16 %v1881, %v1877
    %v2030 = vpack.c.b16 %v1882, %v1878
    %v2031 = vpack.c.b16 %v1887, %v1883
    %v2032 = vpack.c.b16 %v1888, %v1884
    %v2033 = vpack.c.b16 %v1889, %v1885
    %v2034 = vpack.c.b16 %v1890, %v1886
    %v2035 = vpack.c.b16 %v1895, %v1891
    %v2036 = vpack.c.b16 %v1896, %v1892
    %v2037 = vpack.c.b16 %v1897, %v1893
    %v2038 = vpack.c.b16 %v1898, %v1894
    %v2039 = vpack.c.b16 %v1903, %v1899
    %v2040 = vpack.c.b16 %v1904, %v1900
    %v2041 = vpack.c.b16 %v1905, %v1901
    %v2042 = vpack.c.b16 %v1906, %v1902
    %v2043 = vpack.c.b16 %v1911, %v1907
    %v2044 = vpack.c.b16 %v1912, %v1908
    %v2045 = vpack.c.b16 %v1913, %v1909
    %v2046 = vpack.c.b16 %v1914, %v1910
    %v2047 = vpack.c.b16 %v1919, %v1915
    %v2048 = vpack.c.b16 %v1920, %v1916
    %v2049 = vpack.c.b16 %v1921, %v1917
    %v2050 = vpack.c.b16 %v1922, %v1918
    %2179 = vmatprep.subr.bf16.mxu0 %v1924
    %2180 = vmatpush1.bf16.msra.mxu0 %v1923
    %2181 = vmatprep.subr.bf16.mxu0 %v1928
    %2182 = vmatpush1.bf16.msra.mxu0 %v1927
    %2183 = vmatprep.subr.bf16.mxu0 %v1932
    %2184 = vmatpush1.bf16.msra.mxu0 %v1931
    %2185 = vmatprep.subr.bf16.mxu0 %v1936
    %2186 = vmatpush1.bf16.msra.mxu0 %v1935
    %2187 = vmatprep.subr.bf16.mxu0 %v1940
    %2188 = vmatpush1.bf16.msra.mxu0 %v1939
    %2189 = vmatprep.subr.bf16.mxu0 %v1944
    %2190 = vmatpush1.bf16.msra.mxu0 %v1943
    %2191 = vmatprep.subr.bf16.mxu0 %v1948
    %2192 = vmatpush1.bf16.msra.mxu0 %v1947
    %2193 = vmatprep.subr.bf16.mxu0 %v1952
    %2194 = vmatpush1.bf16.msra.mxu0 %v1951
    %2195 = vmatprep.subr.bf16.mxu0 %v1956
    %2196 = vmatpush1.bf16.msra.mxu0 %v1955
    %2197 = vmatprep.subr.bf16.mxu0 %v1960
    %2198 = vmatpush1.bf16.msra.mxu0 %v1959
    %2199 = vmatprep.subr.bf16.mxu0 %v1964
    %2200 = vmatpush1.bf16.msra.mxu0 %v1963
    %2201 = vmatprep.subr.bf16.mxu0 %v1968
    %2202 = vmatpush1.bf16.msra.mxu0 %v1967
    %2203 = vmatprep.subr.bf16.mxu0 %v1972
    %2204 = vmatpush1.bf16.msra.mxu0 %v1971
    %2205 = vmatprep.subr.bf16.mxu0 %v1976
    %2206 = vmatpush1.bf16.msra.mxu0 %v1975
    %2207 = vmatprep.subr.bf16.mxu0 %v1980
    %2208 = vmatpush1.bf16.msra.mxu0 %v1979
    %2209 = vmatprep.subr.bf16.mxu0 %v1984
    %2210 = vmatpush1.bf16.msra.mxu0 %v1983
    %2211 = vmatprep.mubr.bf16.mxu0 %v1386
    %2212 = vmatmul.mubr.bf16.gmra.mrb[0].mxu0 %v1385
    %v2213 = vpop.f32.mrb[0].mxu0
    %v2214 = vadd.f32 %v1522, %v2213
    %v2215 = vpop.f32.mrb[0].mxu0
    %v2216 = vadd.f32 %v1526, %v2215
    %v2217 = vpop.f32.mrb[0].mxu0
    %v2218 = vpop.f32.mrb[0].mxu0
    %2219 = vdwg.mxu0
    %2220 = vmatprep.subr.bf16.mxu0 %v1988
    %2221 = vmatpush1.bf16.msra.mxu0 %v1987
    %2222 = vmatprep.subr.bf16.mxu0 %v1992
    %2223 = vmatpush1.bf16.msra.mxu0 %v1991
    %2224 = vmatprep.subr.bf16.mxu0 %v1996
    %2225 = vmatpush1.bf16.msra.mxu0 %v1995
    %2226 = vmatprep.subr.bf16.mxu0 %v2000
    %2227 = vmatpush1.bf16.msra.mxu0 %v1999
    %2228 = vmatprep.subr.bf16.mxu0 %v2004
    %2229 = vmatpush1.bf16.msra.mxu0 %v2003
    %2230 = vmatprep.subr.bf16.mxu0 %v2008
    %2231 = vmatpush1.bf16.msra.mxu0 %v2007
    %2232 = vmatprep.subr.bf16.mxu0 %v2012
    %2233 = vmatpush1.bf16.msra.mxu0 %v2011
    %2234 = vmatprep.subr.bf16.mxu0 %v2016
    %2235 = vmatpush1.bf16.msra.mxu0 %v2015
    %2236 = vmatprep.subr.bf16.mxu0 %v2020
    %2237 = vmatpush1.bf16.msra.mxu0 %v2019
    %2238 = vmatprep.subr.bf16.mxu0 %v2024
    %2239 = vmatpush1.bf16.msra.mxu0 %v2023
    %2240 = vmatprep.subr.bf16.mxu0 %v2028
    %2241 = vmatpush1.bf16.msra.mxu0 %v2027
    %2242 = vmatprep.subr.bf16.mxu0 %v2032
    %2243 = vmatpush1.bf16.msra.mxu0 %v2031
    %2244 = vmatprep.subr.bf16.mxu0 %v2036
    %2245 = vmatpush1.bf16.msra.mxu0 %v2035
    %2246 = vmatprep.subr.bf16.mxu0 %v2040
    %2247 = vmatpush1.bf16.msra.mxu0 %v2039
    %2248 = vmatprep.subr.bf16.mxu0 %v2044
    %2249 = vmatpush1.bf16.msra.mxu0 %v2043
    %2250 = vmatprep.subr.bf16.mxu0 %v2048
    %2251 = vmatpush1.bf16.msra.mxu0 %v2047
    %2252 = vmatprep.mubr.bf16.mxu0 %v1388
    %2253 = vmatmul.mubr.bf16.gmra.mrb[0].mxu0 %v1387
    %v2254 = vpop.f32.mrb[0].mxu0
    %v2255 = vadd.f32 %v2214, %v2254
    %v2256 = vpop.f32.mrb[0].mxu0
    %v2257 = vadd.f32 %v2216, %v2256
    %v2258 = vpop.f32.mrb[0].mxu0
    %v2259 = vpop.f32.mrb[0].mxu0
    %2260 = vdwg.mxu0
    %2261 = vmatprep.subr.bf16.mxu0 %v1926
    %2262 = vmatpush1.bf16.msra.mxu0 %v1925
    %2263 = vmatprep.subr.bf16.mxu0 %v1930
    %2264 = vmatpush1.bf16.msra.mxu0 %v1929
    %2265 = vmatprep.subr.bf16.mxu0 %v1934
    %2266 = vmatpush1.bf16.msra.mxu0 %v1933
    %2267 = vmatprep.subr.bf16.mxu0 %v1938
    %2268 = vmatpush1.bf16.msra.mxu0 %v1937
    %2269 = vmatprep.subr.bf16.mxu0 %v1942
    %2270 = vmatpush1.bf16.msra.mxu0 %v1941
    %2271 = vmatprep.subr.bf16.mxu0 %v1946
    %2272 = vmatpush1.bf16.msra.mxu0 %v1945
    %2273 = vmatprep.subr.bf16.mxu0 %v1950
    %2274 = vmatpush1.bf16.msra.mxu0 %v1949
    %2275 = vmatprep.subr.bf16.mxu0 %v1954
    %2276 = vmatpush1.bf16.msra.mxu0 %v1953
    %2277 = vmatprep.subr.bf16.mxu0 %v1958
    %2278 = vmatpush1.bf16.msra.mxu0 %v1957
    %2279 = vmatprep.subr.bf16.mxu0 %v1962
    %2280 = vmatpush1.bf16.msra.mxu0 %v1961
    %2281 = vmatprep.subr.bf16.mxu0 %v1966
    %2282 = vmatpush1.bf16.msra.mxu0 %v1965
    %2283 = vmatprep.subr.bf16.mxu0 %v1970
    %2284 = vmatpush1.bf16.msra.mxu0 %v1969
    %2285 = vmatprep.subr.bf16.mxu0 %v1974
    %2286 = vmatpush1.bf16.msra.mxu0 %v1973
    %2287 = vmatprep.subr.bf16.mxu0 %v1978
    %2288 = vmatpush1.bf16.msra.mxu0 %v1977
    %2289 = vmatprep.subr.bf16.mxu0 %v1982
    %2290 = vmatpush1.bf16.msra.mxu0 %v1981
    %2291 = vmatprep.subr.bf16.mxu0 %v1986
    %2292 = vmatpush1.bf16.msra.mxu0 %v1985
    %2293 = vmatprep.mubr.bf16.mxu0 %v1386
    %2294 = vmatmul.mubr.bf16.gmra.mrb[0].mxu0 %v1385
    %v2295 = vpop.f32.mrb[0].mxu0
    %v2296 = vadd.f32 %v1530, %v2295
    %v2297 = vpop.f32.mrb[0].mxu0
    %v2298 = vadd.f32 %v1534, %v2297
    %v2299 = vpop.f32.mrb[0].mxu0
    %v2300 = vpop.f32.mrb[0].mxu0
    %2301 = vdwg.mxu0
    %2302 = vmatprep.subr.bf16.mxu0 %v1990
    %2303 = vmatpush1.bf16.msra.mxu0 %v1989
    %2304 = vmatprep.subr.bf16.mxu0 %v1994
    %2305 = vmatpush1.bf16.msra.mxu0 %v1993
    %2306 = vmatprep.subr.bf16.mxu0 %v1998
    %2307 = vmatpush1.bf16.msra.mxu0 %v1997
    %2308 = vmatprep.subr.bf16.mxu0 %v2002
    %2309 = vmatpush1.bf16.msra.mxu0 %v2001
    %2310 = vmatprep.subr.bf16.mxu0 %v2006
    %2311 = vmatpush1.bf16.msra.mxu0 %v2005
    %2312 = vmatprep.subr.bf16.mxu0 %v2010
    %2313 = vmatpush1.bf16.msra.mxu0 %v2009
    %2314 = vmatprep.subr.bf16.mxu0 %v2014
    %2315 = vmatpush1.bf16.msra.mxu0 %v2013
    %2316 = vmatprep.subr.bf16.mxu0 %v2018
    %2317 = vmatpush1.bf16.msra.mxu0 %v2017
    %2318 = vmatprep.subr.bf16.mxu0 %v2022
    %2319 = vmatpush1.bf16.msra.mxu0 %v2021
    %2320 = vmatprep.subr.bf16.mxu0 %v2026
    %2321 = vmatpush1.bf16.msra.mxu0 %v2025
    %2322 = vmatprep.subr.bf16.mxu0 %v2030
    %2323 = vmatpush1.bf16.msra.mxu0 %v2029
    %2324 = vmatprep.subr.bf16.mxu0 %v2034
    %2325 = vmatpush1.bf16.msra.mxu0 %v2033
    %2326 = vmatprep.subr.bf16.mxu0 %v2038
    %2327 = vmatpush1.bf16.msra.mxu0 %v2037
    %2328 = vmatprep.subr.bf16.mxu0 %v2042
    %2329 = vmatpush1.bf16.msra.mxu0 %v2041
    %2330 = vmatprep.subr.bf16.mxu0 %v2046
    %2331 = vmatpush1.bf16.msra.mxu0 %v2045
    %2332 = vmatprep.subr.bf16.mxu0 %v2050
    %2333 = vmatpush1.bf16.msra.mxu0 %v2049
    %2334 = vmatprep.mubr.bf16.mxu0 %v1388
    %2335 = vmatmul.mubr.bf16.gmra.mrb[0].mxu0 %v1387
    %v2336 = vpop.f32.mrb[0].mxu0
    %v2337 = vadd.f32 %v2296, %v2336
    %v2338 = vpop.f32.mrb[0].mxu0
    %v2339 = vadd.f32 %v2298, %v2338
    %v2340 = vpop.f32.mrb[0].mxu0
    %v2341 = vpop.f32.mrb[0].mxu0
    %2342 = vdwg.mxu0
    %vm2343 = vcmp.ge.f32.partialorder %v2255, 0.0
    %vm2344 = vcmp.ge.f32.partialorder %v2257, 0.0
    %vm2345 = vcmp.ge.f32.partialorder %v2337, 0.0
    %vm2346 = vcmp.ge.f32.partialorder %v2339, 0.0
    %v2347 = vstv %s239
    %v2348 = vmul.f32 %v2347, %v2255
    %v2349 = vmul.f32 %v2347, %v2257
    %v2350 = vmul.f32 %v2347, %v2337
    %v2351 = vmul.f32 %v2347, %v2339
    %v2352 = vsel %vm2343, %v2255, %v2348
    %v2353 = vsel %vm2344, %v2257, %v2349
    %v2354 = vsel %vm2345, %v2337, %v2350
    %v2355 = vsel %vm2346, %v2339, %v2351
    %v2356 = vpack.c.bf16 %v2352, %v2352
    %v2357 = vpack.c.bf16 %v2353, %v2353
    %v2358 = vpack.c.bf16 %v2354, %v2354
    %v2359 = vpack.c.bf16 %v2355, %v2355
    %v2360 = vld [vmem:[#allocation12] sm:$0xff]
    %v2361 = vld [vmem:[#allocation12 + $0x8] sm:$0xff]
    %v2362 = vld [vmem:[#allocation12 + $0x10] sm:$0xff]
    %v2363 = vld [vmem:[#allocation12 + $0x18] sm:$0xff]
    %v2364 = vld [vmem:[#allocation12 + $0x20] sm:$0xff]
    %v2365 = vld [vmem:[#allocation12 + $0x28] sm:$0xff]
    %v2366 = vld [vmem:[#allocation12 + $0x30] sm:$0xff]
    %v2367 = vld [vmem:[#allocation12 + $0x38] sm:$0xff]
    %v2368 = vld [vmem:[#allocation12 + $0x40] sm:$0xff]
    %v2369 = vld [vmem:[#allocation12 + $0x48] sm:$0xff]
    %v2370 = vld [vmem:[#allocation12 + $0x50] sm:$0xff]
    %v2371 = vld [vmem:[#allocation12 + $0x58] sm:$0xff]
    %v2372 = vld [vmem:[#allocation12 + $0x60] sm:$0xff]
    %v2373 = vld [vmem:[#allocation12 + $0x68] sm:$0xff]
    %v2374 = vld [vmem:[#allocation12 + $0x70] sm:$0xff]
    %v2375 = vld [vmem:[#allocation12 + $0x78] sm:$0xff]
    %v2376 = vld [vmem:[#allocation12 + $0x80] sm:$0xff]
    %v2377 = vld [vmem:[#allocation12 + $0x88] sm:$0xff]
    %v2378 = vld [vmem:[#allocation12 + $0x90] sm:$0xff]
    %v2379 = vld [vmem:[#allocation12 + $0x98] sm:$0xff]
    %v2380 = vld [vmem:[#allocation12 + $0xa0] sm:$0xff]
    %v2381 = vld [vmem:[#allocation12 + $0xa8] sm:$0xff]
    %v2382 = vld [vmem:[#allocation12 + $0xb0] sm:$0xff]
    %v2383 = vld [vmem:[#allocation12 + $0xb8] sm:$0xff]
    %v2384 = vld [vmem:[#allocation12 + $0xc0] sm:$0xff]
    %v2385 = vld [vmem:[#allocation12 + $0xc8] sm:$0xff]
    %v2386 = vld [vmem:[#allocation12 + $0xd0] sm:$0xff]
    %v2387 = vld [vmem:[#allocation12 + $0xd8] sm:$0xff]
    %v2388 = vld [vmem:[#allocation12 + $0xe0] sm:$0xff]
    %v2389 = vld [vmem:[#allocation12 + $0xe8] sm:$0xff]
    %v2390 = vld [vmem:[#allocation12 + $0xf0] sm:$0xff]
    %v2391 = vld [vmem:[#allocation12 + $0xf8] sm:$0xff]
    %v2392 = vld [vmem:[#allocation12 + $0x100] sm:$0xff]
    %v2393 = vld [vmem:[#allocation12 + $0x108] sm:$0xff]
    %v2394 = vld [vmem:[#allocation12 + $0x110] sm:$0xff]
    %v2395 = vld [vmem:[#allocation12 + $0x118] sm:$0xff]
    %v2396 = vld [vmem:[#allocation12 + $0x120] sm:$0xff]
    %v2397 = vld [vmem:[#allocation12 + $0x128] sm:$0xff]
    %v2398 = vld [vmem:[#allocation12 + $0x130] sm:$0xff]
    %v2399 = vld [vmem:[#allocation12 + $0x138] sm:$0xff]
    %v2400 = vld [vmem:[#allocation12 + $0x140] sm:$0xff]
    %v2401 = vld [vmem:[#allocation12 + $0x148] sm:$0xff]
    %v2402 = vld [vmem:[#allocation12 + $0x150] sm:$0xff]
    %v2403 = vld [vmem:[#allocation12 + $0x158] sm:$0xff]
    %v2404 = vld [vmem:[#allocation12 + $0x160] sm:$0xff]
    %v2405 = vld [vmem:[#allocation12 + $0x168] sm:$0xff]
    %v2406 = vld [vmem:[#allocation12 + $0x170] sm:$0xff]
    %v2407 = vld [vmem:[#allocation12 + $0x178] sm:$0xff]
    %v2408 = vld [vmem:[#allocation12 + $0x180] sm:$0xff]
    %v2409 = vld [vmem:[#allocation12 + $0x188] sm:$0xff]
    %v2410 = vld [vmem:[#allocation12 + $0x190] sm:$0xff]
    %v2411 = vld [vmem:[#allocation12 + $0x198] sm:$0xff]
    %v2412 = vld [vmem:[#allocation12 + $0x1a0] sm:$0xff]
    %v2413 = vld [vmem:[#allocation12 + $0x1a8] sm:$0xff]
    %v2414 = vld [vmem:[#allocation12 + $0x1b0] sm:$0xff]
    %v2415 = vld [vmem:[#allocation12 + $0x1b8] sm:$0xff]
    %v2416 = vld [vmem:[#allocation12 + $0x1c0] sm:$0xff]
    %v2417 = vld [vmem:[#allocation12 + $0x1c8] sm:$0xff]
    %v2418 = vld [vmem:[#allocation12 + $0x1d0] sm:$0xff]
    %v2419 = vld [vmem:[#allocation12 + $0x1d8] sm:$0xff]
    %v2420 = vld [vmem:[#allocation12 + $0x1e0] sm:$0xff]
    %v2421 = vld [vmem:[#allocation12 + $0x1e8] sm:$0xff]
    %v2422 = vld [vmem:[#allocation12 + $0x1f0] sm:$0xff]
    %v2423 = vld [vmem:[#allocation12 + $0x1f8] sm:$0xff]
    %v2424 = vld [vmem:[#allocation12 + $0x200] sm:$0xff]
    %v2425 = vld [vmem:[#allocation12 + $0x208] sm:$0xff]
    %v2426 = vld [vmem:[#allocation12 + $0x210] sm:$0xff]
    %v2427 = vld [vmem:[#allocation12 + $0x218] sm:$0xff]
    %v2428 = vld [vmem:[#allocation12 + $0x220] sm:$0xff]
    %v2429 = vld [vmem:[#allocation12 + $0x228] sm:$0xff]
    %v2430 = vld [vmem:[#allocation12 + $0x230] sm:$0xff]
    %v2431 = vld [vmem:[#allocation12 + $0x238] sm:$0xff]
    %v2432 = vld [vmem:[#allocation12 + $0x240] sm:$0xff]
    %v2433 = vld [vmem:[#allocation12 + $0x248] sm:$0xff]
    %v2434 = vld [vmem:[#allocation12 + $0x250] sm:$0xff]
    %v2435 = vld [vmem:[#allocation12 + $0x258] sm:$0xff]
    %v2436 = vld [vmem:[#allocation12 + $0x260] sm:$0xff]
    %v2437 = vld [vmem:[#allocation12 + $0x268] sm:$0xff]
    %v2438 = vld [vmem:[#allocation12 + $0x270] sm:$0xff]
    %v2439 = vld [vmem:[#allocation12 + $0x278] sm:$0xff]
    %v2440 = vld [vmem:[#allocation12 + $0x280] sm:$0xff]
    %v2441 = vld [vmem:[#allocation12 + $0x288] sm:$0xff]
    %v2442 = vld [vmem:[#allocation12 + $0x290] sm:$0xff]
    %v2443 = vld [vmem:[#allocation12 + $0x298] sm:$0xff]
    %v2444 = vld [vmem:[#allocation12 + $0x2a0] sm:$0xff]
    %v2445 = vld [vmem:[#allocation12 + $0x2a8] sm:$0xff]
    %v2446 = vld [vmem:[#allocation12 + $0x2b0] sm:$0xff]
    %v2447 = vld [vmem:[#allocation12 + $0x2b8] sm:$0xff]
    %v2448 = vld [vmem:[#allocation12 + $0x2c0] sm:$0xff]
    %v2449 = vld [vmem:[#allocation12 + $0x2c8] sm:$0xff]
    %v2450 = vld [vmem:[#allocation12 + $0x2d0] sm:$0xff]
    %v2451 = vld [vmem:[#allocation12 + $0x2d8] sm:$0xff]
    %v2452 = vld [vmem:[#allocation12 + $0x2e0] sm:$0xff]
    %v2453 = vld [vmem:[#allocation12 + $0x2e8] sm:$0xff]
    %v2454 = vld [vmem:[#allocation12 + $0x2f0] sm:$0xff]
    %v2455 = vld [vmem:[#allocation12 + $0x2f8] sm:$0xff]
    %v2456 = vld [vmem:[#allocation12 + $0x300] sm:$0xff]
    %v2457 = vld [vmem:[#allocation12 + $0x308] sm:$0xff]
    %v2458 = vld [vmem:[#allocation12 + $0x310] sm:$0xff]
    %v2459 = vld [vmem:[#allocation12 + $0x318] sm:$0xff]
    %v2460 = vld [vmem:[#allocation12 + $0x320] sm:$0xff]
    %v2461 = vld [vmem:[#allocation12 + $0x328] sm:$0xff]
    %v2462 = vld [vmem:[#allocation12 + $0x330] sm:$0xff]
    %v2463 = vld [vmem:[#allocation12 + $0x338] sm:$0xff]
    %v2464 = vld [vmem:[#allocation12 + $0x340] sm:$0xff]
    %v2465 = vld [vmem:[#allocation12 + $0x348] sm:$0xff]
    %v2466 = vld [vmem:[#allocation12 + $0x350] sm:$0xff]
    %v2467 = vld [vmem:[#allocation12 + $0x358] sm:$0xff]
    %v2468 = vld [vmem:[#allocation12 + $0x360] sm:$0xff]
    %v2469 = vld [vmem:[#allocation12 + $0x368] sm:$0xff]
    %v2470 = vld [vmem:[#allocation12 + $0x370] sm:$0xff]
    %v2471 = vld [vmem:[#allocation12 + $0x378] sm:$0xff]
    %v2472 = vld [vmem:[#allocation12 + $0x380] sm:$0xff]
    %v2473 = vld [vmem:[#allocation12 + $0x388] sm:$0xff]
    %v2474 = vld [vmem:[#allocation12 + $0x390] sm:$0xff]
    %v2475 = vld [vmem:[#allocation12 + $0x398] sm:$0xff]
    %v2476 = vld [vmem:[#allocation12 + $0x3a0] sm:$0xff]
    %v2477 = vld [vmem:[#allocation12 + $0x3a8] sm:$0xff]
    %v2478 = vld [vmem:[#allocation12 + $0x3b0] sm:$0xff]
    %v2479 = vld [vmem:[#allocation12 + $0x3b8] sm:$0xff]
    %v2480 = vld [vmem:[#allocation12 + $0x3c0] sm:$0xff]
    %v2481 = vld [vmem:[#allocation12 + $0x3c8] sm:$0xff]
    %v2482 = vld [vmem:[#allocation12 + $0x3d0] sm:$0xff]
    %v2483 = vld [vmem:[#allocation12 + $0x3d8] sm:$0xff]
    %v2484 = vld [vmem:[#allocation12 + $0x3e0] sm:$0xff]
    %v2485 = vld [vmem:[#allocation12 + $0x3e8] sm:$0xff]
    %v2486 = vld [vmem:[#allocation12 + $0x3f0] sm:$0xff]
    %v2487 = vld [vmem:[#allocation12 + $0x3f8] sm:$0xff]
    %v2488 = vld [vmem:[%s9] sm:$0xf]
    %v2490 = vlaneseq
    %v2491 = vshrl.u32 %v2490, 7
    %v2492 = vsub.s32 0, %v2491
    %v2493 = vrot.slane %v2488, %v2492
    %v2494 = vlaneseq
    %v2495 = vshrl.u32 %v2494, 7
    %v2496 = vsub.s32 1, %v2495
    %v2497 = vrot.slane %v2488, %v2496
    %v2498 = vlaneseq
    %v2499 = vshrl.u32 %v2498, 7
    %v2500 = vsub.s32 2, %v2499
    %v2501 = vrot.slane %v2488, %v2500
    %v2502 = vlaneseq
    %v2503 = vshrl.u32 %v2502, 7
    %v2504 = vsub.s32 3, %v2503
    %v2505 = vrot.slane %v2488, %v2504
    %v2638 = vunpack.c.l.b16 %v2360
    %v2639 = vunpack.c.h.b16 %v2360
    %v2640 = vunpack.c.l.b16 %v2361
    %v2641 = vunpack.c.h.b16 %v2361
    %v2642 = vunpack.c.l.b16 %v2362
    %v2643 = vunpack.c.h.b16 %v2362
    %v2644 = vunpack.c.l.b16 %v2363
    %v2645 = vunpack.c.h.b16 %v2363
    %v2646 = vunpack.c.l.b16 %v2364
    %v2647 = vunpack.c.h.b16 %v2364
    %v2648 = vunpack.c.l.b16 %v2365
    %v2649 = vunpack.c.h.b16 %v2365
    %v2650 = vunpack.c.l.b16 %v2366
    %v2651 = vunpack.c.h.b16 %v2366
    %v2652 = vunpack.c.l.b16 %v2367
    %v2653 = vunpack.c.h.b16 %v2367
    %v2654 = vunpack.c.l.b16 %v2368
    %v2655 = vunpack.c.h.b16 %v2368
    %v2656 = vunpack.c.l.b16 %v2369
    %v2657 = vunpack.c.h.b16 %v2369
    %v2658 = vunpack.c.l.b16 %v2370
    %v2659 = vunpack.c.h.b16 %v2370
    %v2660 = vunpack.c.l.b16 %v2371
    %v2661 = vunpack.c.h.b16 %v2371
    %v2662 = vunpack.c.l.b16 %v2372
    %v2663 = vunpack.c.h.b16 %v2372
    %v2664 = vunpack.c.l.b16 %v2373
    %v2665 = vunpack.c.h.b16 %v2373
    %v2666 = vunpack.c.l.b16 %v2374
    %v2667 = vunpack.c.h.b16 %v2374
    %v2668 = vunpack.c.l.b16 %v2375
    %v2669 = vunpack.c.h.b16 %v2375
    %v2670 = vunpack.c.l.b16 %v2376
    %v2671 = vunpack.c.h.b16 %v2376
    %v2672 = vunpack.c.l.b16 %v2377
    %v2673 = vunpack.c.h.b16 %v2377
    %v2674 = vunpack.c.l.b16 %v2378
    %v2675 = vunpack.c.h.b16 %v2378
    %v2676 = vunpack.c.l.b16 %v2379
    %v2677 = vunpack.c.h.b16 %v2379
    %v2678 = vunpack.c.l.b16 %v2380
    %v2679 = vunpack.c.h.b16 %v2380
    %v2680 = vunpack.c.l.b16 %v2381
    %v2681 = vunpack.c.h.b16 %v2381
    %v2682 = vunpack.c.l.b16 %v2382
    %v2683 = vunpack.c.h.b16 %v2382
    %v2684 = vunpack.c.l.b16 %v2383
    %v2685 = vunpack.c.h.b16 %v2383
    %v2686 = vunpack.c.l.b16 %v2384
    %v2687 = vunpack.c.h.b16 %v2384
    %v2688 = vunpack.c.l.b16 %v2385
    %v2689 = vunpack.c.h.b16 %v2385
    %v2690 = vunpack.c.l.b16 %v2386
    %v2691 = vunpack.c.h.b16 %v2386
    %v2692 = vunpack.c.l.b16 %v2387
    %v2693 = vunpack.c.h.b16 %v2387
    %v2694 = vunpack.c.l.b16 %v2388
    %v2695 = vunpack.c.h.b16 %v2388
    %v2696 = vunpack.c.l.b16 %v2389
    %v2697 = vunpack.c.h.b16 %v2389
    %v2698 = vunpack.c.l.b16 %v2390
    %v2699 = vunpack.c.h.b16 %v2390
    %v2700 = vunpack.c.l.b16 %v2391
    %v2701 = vunpack.c.h.b16 %v2391
    %v2702 = vunpack.c.l.b16 %v2392
    %v2703 = vunpack.c.h.b16 %v2392
    %v2704 = vunpack.c.l.b16 %v2393
    %v2705 = vunpack.c.h.b16 %v2393
    %v2706 = vunpack.c.l.b16 %v2394
    %v2707 = vunpack.c.h.b16 %v2394
    %v2708 = vunpack.c.l.b16 %v2395
    %v2709 = vunpack.c.h.b16 %v2395
    %v2710 = vunpack.c.l.b16 %v2396
    %v2711 = vunpack.c.h.b16 %v2396
    %v2712 = vunpack.c.l.b16 %v2397
    %v2713 = vunpack.c.h.b16 %v2397
    %v2714 = vunpack.c.l.b16 %v2398
    %v2715 = vunpack.c.h.b16 %v2398
    %v2716 = vunpack.c.l.b16 %v2399
    %v2717 = vunpack.c.h.b16 %v2399
    %v2718 = vunpack.c.l.b16 %v2400
    %v2719 = vunpack.c.h.b16 %v2400
    %v2720 = vunpack.c.l.b16 %v2401
    %v2721 = vunpack.c.h.b16 %v2401
    %v2722 = vunpack.c.l.b16 %v2402
    %v2723 = vunpack.c.h.b16 %v2402
    %v2724 = vunpack.c.l.b16 %v2403
    %v2725 = vunpack.c.h.b16 %v2403
    %v2726 = vunpack.c.l.b16 %v2404
    %v2727 = vunpack.c.h.b16 %v2404
    %v2728 = vunpack.c.l.b16 %v2405
    %v2729 = vunpack.c.h.b16 %v2405
    %v2730 = vunpack.c.l.b16 %v2406
    %v2731 = vunpack.c.h.b16 %v2406
    %v2732 = vunpack.c.l.b16 %v2407
    %v2733 = vunpack.c.h.b16 %v2407
    %v2734 = vunpack.c.l.b16 %v2408
    %v2735 = vunpack.c.h.b16 %v2408
    %v2736 = vunpack.c.l.b16 %v2409
    %v2737 = vunpack.c.h.b16 %v2409
    %v2738 = vunpack.c.l.b16 %v2410
    %v2739 = vunpack.c.h.b16 %v2410
    %v2740 = vunpack.c.l.b16 %v2411
    %v2741 = vunpack.c.h.b16 %v2411
    %v2742 = vunpack.c.l.b16 %v2412
    %v2743 = vunpack.c.h.b16 %v2412
    %v2744 = vunpack.c.l.b16 %v2413
    %v2745 = vunpack.c.h.b16 %v2413
    %v2746 = vunpack.c.l.b16 %v2414
    %v2747 = vunpack.c.h.b16 %v2414
    %v2748 = vunpack.c.l.b16 %v2415
    %v2749 = vunpack.c.h.b16 %v2415
    %v2750 = vunpack.c.l.b16 %v2416
    %v2751 = vunpack.c.h.b16 %v2416
    %v2752 = vunpack.c.l.b16 %v2417
    %v2753 = vunpack.c.h.b16 %v2417
    %v2754 = vunpack.c.l.b16 %v2418
    %v2755 = vunpack.c.h.b16 %v2418
    %v2756 = vunpack.c.l.b16 %v2419
    %v2757 = vunpack.c.h.b16 %v2419
    %v2758 = vunpack.c.l.b16 %v2420
    %v2759 = vunpack.c.h.b16 %v2420
    %v2760 = vunpack.c.l.b16 %v2421
    %v2761 = vunpack.c.h.b16 %v2421
    %v2762 = vunpack.c.l.b16 %v2422
    %v2763 = vunpack.c.h.b16 %v2422
    %v2764 = vunpack.c.l.b16 %v2423
    %v2765 = vunpack.c.h.b16 %v2423
    %v2766 = vunpack.c.l.b16 %v2424
    %v2767 = vunpack.c.h.b16 %v2424
    %v2768 = vunpack.c.l.b16 %v2425
    %v2769 = vunpack.c.h.b16 %v2425
    %v2770 = vunpack.c.l.b16 %v2426
    %v2771 = vunpack.c.h.b16 %v2426
    %v2772 = vunpack.c.l.b16 %v2427
    %v2773 = vunpack.c.h.b16 %v2427
    %v2774 = vunpack.c.l.b16 %v2428
    %v2775 = vunpack.c.h.b16 %v2428
    %v2776 = vunpack.c.l.b16 %v2429
    %v2777 = vunpack.c.h.b16 %v2429
    %v2778 = vunpack.c.l.b16 %v2430
    %v2779 = vunpack.c.h.b16 %v2430
    %v2780 = vunpack.c.l.b16 %v2431
    %v2781 = vunpack.c.h.b16 %v2431
    %v2782 = vunpack.c.l.b16 %v2432
    %v2783 = vunpack.c.h.b16 %v2432
    %v2784 = vunpack.c.l.b16 %v2433
    %v2785 = vunpack.c.h.b16 %v2433
    %v2786 = vunpack.c.l.b16 %v2434
    %v2787 = vunpack.c.h.b16 %v2434
    %v2788 = vunpack.c.l.b16 %v2435
    %v2789 = vunpack.c.h.b16 %v2435
    %v2790 = vunpack.c.l.b16 %v2436
    %v2791 = vunpack.c.h.b16 %v2436
    %v2792 = vunpack.c.l.b16 %v2437
    %v2793 = vunpack.c.h.b16 %v2437
    %v2794 = vunpack.c.l.b16 %v2438
    %v2795 = vunpack.c.h.b16 %v2438
    %v2796 = vunpack.c.l.b16 %v2439
    %v2797 = vunpack.c.h.b16 %v2439
    %v2798 = vunpack.c.l.b16 %v2440
    %v2799 = vunpack.c.h.b16 %v2440
    %v2800 = vunpack.c.l.b16 %v2441
    %v2801 = vunpack.c.h.b16 %v2441
    %v2802 = vunpack.c.l.b16 %v2442
    %v2803 = vunpack.c.h.b16 %v2442
    %v2804 = vunpack.c.l.b16 %v2443
    %v2805 = vunpack.c.h.b16 %v2443
    %v2806 = vunpack.c.l.b16 %v2444
    %v2807 = vunpack.c.h.b16 %v2444
    %v2808 = vunpack.c.l.b16 %v2445
    %v2809 = vunpack.c.h.b16 %v2445
    %v2810 = vunpack.c.l.b16 %v2446
    %v2811 = vunpack.c.h.b16 %v2446
    %v2812 = vunpack.c.l.b16 %v2447
    %v2813 = vunpack.c.h.b16 %v2447
    %v2814 = vunpack.c.l.b16 %v2448
    %v2815 = vunpack.c.h.b16 %v2448
    %v2816 = vunpack.c.l.b16 %v2449
    %v2817 = vunpack.c.h.b16 %v2449
    %v2818 = vunpack.c.l.b16 %v2450
    %v2819 = vunpack.c.h.b16 %v2450
    %v2820 = vunpack.c.l.b16 %v2451
    %v2821 = vunpack.c.h.b16 %v2451
    %v2822 = vunpack.c.l.b16 %v2452
    %v2823 = vunpack.c.h.b16 %v2452
    %v2824 = vunpack.c.l.b16 %v2453
    %v2825 = vunpack.c.h.b16 %v2453
    %v2826 = vunpack.c.l.b16 %v2454
    %v2827 = vunpack.c.h.b16 %v2454
    %v2828 = vunpack.c.l.b16 %v2455
    %v2829 = vunpack.c.h.b16 %v2455
    %v2830 = vunpack.c.l.b16 %v2456
    %v2831 = vunpack.c.h.b16 %v2456
    %v2832 = vunpack.c.l.b16 %v2457
    %v2833 = vunpack.c.h.b16 %v2457
    %v2834 = vunpack.c.l.b16 %v2458
    %v2835 = vunpack.c.h.b16 %v2458
    %v2836 = vunpack.c.l.b16 %v2459
    %v2837 = vunpack.c.h.b16 %v2459
    %v2838 = vunpack.c.l.b16 %v2460
    %v2839 = vunpack.c.h.b16 %v2460
    %v2840 = vunpack.c.l.b16 %v2461
    %v2841 = vunpack.c.h.b16 %v2461
    %v2842 = vunpack.c.l.b16 %v2462
    %v2843 = vunpack.c.h.b16 %v2462
    %v2844 = vunpack.c.l.b16 %v2463
    %v2845 = vunpack.c.h.b16 %v2463
    %v2846 = vunpack.c.l.b16 %v2464
    %v2847 = vunpack.c.h.b16 %v2464
    %v2848 = vunpack.c.l.b16 %v2465
    %v2849 = vunpack.c.h.b16 %v2465
    %v2850 = vunpack.c.l.b16 %v2466
    %v2851 = vunpack.c.h.b16 %v2466
    %v2852 = vunpack.c.l.b16 %v2467
    %v2853 = vunpack.c.h.b16 %v2467
    %v2854 = vunpack.c.l.b16 %v2468
    %v2855 = vunpack.c.h.b16 %v2468
    %v2856 = vunpack.c.l.b16 %v2469
    %v2857 = vunpack.c.h.b16 %v2469
    %v2858 = vunpack.c.l.b16 %v2470
    %v2859 = vunpack.c.h.b16 %v2470
    %v2860 = vunpack.c.l.b16 %v2471
    %v2861 = vunpack.c.h.b16 %v2471
    %v2862 = vunpack.c.l.b16 %v2472
    %v2863 = vunpack.c.h.b16 %v2472
    %v2864 = vunpack.c.l.b16 %v2473
    %v2865 = vunpack.c.h.b16 %v2473
    %v2866 = vunpack.c.l.b16 %v2474
    %v2867 = vunpack.c.h.b16 %v2474
    %v2868 = vunpack.c.l.b16 %v2475
    %v2869 = vunpack.c.h.b16 %v2475
    %v2870 = vunpack.c.l.b16 %v2476
    %v2871 = vunpack.c.h.b16 %v2476
    %v2872 = vunpack.c.l.b16 %v2477
    %v2873 = vunpack.c.h.b16 %v2477
    %v2874 = vunpack.c.l.b16 %v2478
    %v2875 = vunpack.c.h.b16 %v2478
    %v2876 = vunpack.c.l.b16 %v2479
    %v2877 = vunpack.c.h.b16 %v2479
    %v2878 = vunpack.c.l.b16 %v2480
    %v2879 = vunpack.c.h.b16 %v2480
    %v2880 = vunpack.c.l.b16 %v2481
    %v2881 = vunpack.c.h.b16 %v2481
    %v2882 = vunpack.c.l.b16 %v2482
    %v2883 = vunpack.c.h.b16 %v2482
    %v2884 = vunpack.c.l.b16 %v2483
    %v2885 = vunpack.c.h.b16 %v2483
    %v2886 = vunpack.c.l.b16 %v2484
    %v2887 = vunpack.c.h.b16 %v2484
    %v2888 = vunpack.c.l.b16 %v2485
    %v2889 = vunpack.c.h.b16 %v2485
    %v2890 = vunpack.c.l.b16 %v2486
    %v2891 = vunpack.c.h.b16 %v2486
    %v2892 = vunpack.c.l.b16 %v2487
    %v2893 = vunpack.c.h.b16 %v2487
    %v2894 = vpack.c.b16 %v2642, %v2638
    %v2895 = vpack.c.b16 %v2643, %v2639
    %v2896 = vpack.c.b16 %v2644, %v2640
    %v2897 = vpack.c.b16 %v2645, %v2641
    %v2898 = vpack.c.b16 %v2650, %v2646
    %v2899 = vpack.c.b16 %v2651, %v2647
    %v2900 = vpack.c.b16 %v2652, %v2648
    %v2901 = vpack.c.b16 %v2653, %v2649
    %v2902 = vpack.c.b16 %v2658, %v2654
    %v2903 = vpack.c.b16 %v2659, %v2655
    %v2904 = vpack.c.b16 %v2660, %v2656
    %v2905 = vpack.c.b16 %v2661, %v2657
    %v2906 = vpack.c.b16 %v2666, %v2662
    %v2907 = vpack.c.b16 %v2667, %v2663
    %v2908 = vpack.c.b16 %v2668, %v2664
    %v2909 = vpack.c.b16 %v2669, %v2665
    %v2910 = vpack.c.b16 %v2674, %v2670
    %v2911 = vpack.c.b16 %v2675, %v2671
    %v2912 = vpack.c.b16 %v2676, %v2672
    %v2913 = vpack.c.b16 %v2677, %v2673
    %v2914 = vpack.c.b16 %v2682, %v2678
    %v2915 = vpack.c.b16 %v2683, %v2679
    %v2916 = vpack.c.b16 %v2684, %v2680
    %v2917 = vpack.c.b16 %v2685, %v2681
    %v2918 = vpack.c.b16 %v2690, %v2686
    %v2919 = vpack.c.b16 %v2691, %v2687
    %v2920 = vpack.c.b16 %v2692, %v2688
    %v2921 = vpack.c.b16 %v2693, %v2689
    %v2922 = vpack.c.b16 %v2698, %v2694
    %v2923 = vpack.c.b16 %v2699, %v2695
    %v2924 = vpack.c.b16 %v2700, %v2696
    %v2925 = vpack.c.b16 %v2701, %v2697
    %v2926 = vpack.c.b16 %v2706, %v2702
    %v2927 = vpack.c.b16 %v2707, %v2703
    %v2928 = vpack.c.b16 %v2708, %v2704
    %v2929 = vpack.c.b16 %v2709, %v2705
    %v2930 = vpack.c.b16 %v2714, %v2710
    %v2931 = vpack.c.b16 %v2715, %v2711
    %v2932 = vpack.c.b16 %v2716, %v2712
    %v2933 = vpack.c.b16 %v2717, %v2713
    %v2934 = vpack.c.b16 %v2722, %v2718
    %v2935 = vpack.c.b16 %v2723, %v2719
    %v2936 = vpack.c.b16 %v2724, %v2720
    %v2937 = vpack.c.b16 %v2725, %v2721
    %v2938 = vpack.c.b16 %v2730, %v2726
    %v2939 = vpack.c.b16 %v2731, %v2727
    %v2940 = vpack.c.b16 %v2732, %v2728
    %v2941 = vpack.c.b16 %v2733, %v2729
    %v2942 = vpack.c.b16 %v2738, %v2734
    %v2943 = vpack.c.b16 %v2739, %v2735
    %v2944 = vpack.c.b16 %v2740, %v2736
    %v2945 = vpack.c.b16 %v2741, %v2737
    %v2946 = vpack.c.b16 %v2746, %v2742
    %v2947 = vpack.c.b16 %v2747, %v2743
    %v2948 = vpack.c.b16 %v2748, %v2744
    %v2949 = vpack.c.b16 %v2749, %v2745
    %v2950 = vpack.c.b16 %v2754, %v2750
    %v2951 = vpack.c.b16 %v2755, %v2751
    %v2952 = vpack.c.b16 %v2756, %v2752
    %v2953 = vpack.c.b16 %v2757, %v2753
    %v2954 = vpack.c.b16 %v2762, %v2758
    %v2955 = vpack.c.b16 %v2763, %v2759
    %v2956 = vpack.c.b16 %v2764, %v2760
    %v2957 = vpack.c.b16 %v2765, %v2761
    %v2958 = vpack.c.b16 %v2770, %v2766
    %v2959 = vpack.c.b16 %v2771, %v2767
    %v2960 = vpack.c.b16 %v2772, %v2768
    %v2961 = vpack.c.b16 %v2773, %v2769
    %v2962 = vpack.c.b16 %v2778, %v2774
    %v2963 = vpack.c.b16 %v2779, %v2775
    %v2964 = vpack.c.b16 %v2780, %v2776
    %v2965 = vpack.c.b16 %v2781, %v2777
    %v2966 = vpack.c.b16 %v2786, %v2782
    %v2967 = vpack.c.b16 %v2787, %v2783
    %v2968 = vpack.c.b16 %v2788, %v2784
    %v2969 = vpack.c.b16 %v2789, %v2785
    %v2970 = vpack.c.b16 %v2794, %v2790
    %v2971 = vpack.c.b16 %v2795, %v2791
    %v2972 = vpack.c.b16 %v2796, %v2792
    %v2973 = vpack.c.b16 %v2797, %v2793
    %v2974 = vpack.c.b16 %v2802, %v2798
    %v2975 = vpack.c.b16 %v2803, %v2799
    %v2976 = vpack.c.b16 %v2804, %v2800
    %v2977 = vpack.c.b16 %v2805, %v2801
    %v2978 = vpack.c.b16 %v2810, %v2806
    %v2979 = vpack.c.b16 %v2811, %v2807
    %v2980 = vpack.c.b16 %v2812, %v2808
    %v2981 = vpack.c.b16 %v2813, %v2809
    %v2982 = vpack.c.b16 %v2818, %v2814
    %v2983 = vpack.c.b16 %v2819, %v2815
    %v2984 = vpack.c.b16 %v2820, %v2816
    %v2985 = vpack.c.b16 %v2821, %v2817
    %v2986 = vpack.c.b16 %v2826, %v2822
    %v2987 = vpack.c.b16 %v2827, %v2823
    %v2988 = vpack.c.b16 %v2828, %v2824
    %v2989 = vpack.c.b16 %v2829, %v2825
    %v2990 = vpack.c.b16 %v2834, %v2830
    %v2991 = vpack.c.b16 %v2835, %v2831
    %v2992 = vpack.c.b16 %v2836, %v2832
    %v2993 = vpack.c.b16 %v2837, %v2833
    %v2994 = vpack.c.b16 %v2842, %v2838
    %v2995 = vpack.c.b16 %v2843, %v2839
    %v2996 = vpack.c.b16 %v2844, %v2840
    %v2997 = vpack.c.b16 %v2845, %v2841
    %v2998 = vpack.c.b16 %v2850, %v2846
    %v2999 = vpack.c.b16 %v2851, %v2847
    %v3000 = vpack.c.b16 %v2852, %v2848
    %v3001 = vpack.c.b16 %v2853, %v2849
    %v3002 = vpack.c.b16 %v2858, %v2854
    %v3003 = vpack.c.b16 %v2859, %v2855
    %v3004 = vpack.c.b16 %v2860, %v2856
    %v3005 = vpack.c.b16 %v2861, %v2857
    %v3006 = vpack.c.b16 %v2866, %v2862
    %v3007 = vpack.c.b16 %v2867, %v2863
    %v3008 = vpack.c.b16 %v2868, %v2864
    %v3009 = vpack.c.b16 %v2869, %v2865
    %v3010 = vpack.c.b16 %v2874, %v2870
    %v3011 = vpack.c.b16 %v2875, %v2871
    %v3012 = vpack.c.b16 %v2876, %v2872
    %v3013 = vpack.c.b16 %v2877, %v2873
    %v3014 = vpack.c.b16 %v2882, %v2878
    %v3015 = vpack.c.b16 %v2883, %v2879
    %v3016 = vpack.c.b16 %v2884, %v2880
    %v3017 = vpack.c.b16 %v2885, %v2881
    %v3018 = vpack.c.b16 %v2890, %v2886
    %v3019 = vpack.c.b16 %v2891, %v2887
    %v3020 = vpack.c.b16 %v2892, %v2888
    %v3021 = vpack.c.b16 %v2893, %v2889
    %3150 = vmatprep.subr.bf16.mxu0 %v2895
    %3151 = vmatpush1.bf16.msra.mxu0 %v2894
    %3152 = vmatprep.subr.bf16.mxu0 %v2899
    %3153 = vmatpush1.bf16.msra.mxu0 %v2898
    %3154 = vmatprep.subr.bf16.mxu0 %v2903
    %3155 = vmatpush1.bf16.msra.mxu0 %v2902
    %3156 = vmatprep.subr.bf16.mxu0 %v2907
    %3157 = vmatpush1.bf16.msra.mxu0 %v2906
    %3158 = vmatprep.subr.bf16.mxu0 %v2911
    %3159 = vmatpush1.bf16.msra.mxu0 %v2910
    %3160 = vmatprep.subr.bf16.mxu0 %v2915
    %3161 = vmatpush1.bf16.msra.mxu0 %v2914
    %3162 = vmatprep.subr.bf16.mxu0 %v2919
    %3163 = vmatpush1.bf16.msra.mxu0 %v2918
    %3164 = vmatprep.subr.bf16.mxu0 %v2923
    %3165 = vmatpush1.bf16.msra.mxu0 %v2922
    %3166 = vmatprep.subr.bf16.mxu0 %v2927
    %3167 = vmatpush1.bf16.msra.mxu0 %v2926
    %3168 = vmatprep.subr.bf16.mxu0 %v2931
    %3169 = vmatpush1.bf16.msra.mxu0 %v2930
    %3170 = vmatprep.subr.bf16.mxu0 %v2935
    %3171 = vmatpush1.bf16.msra.mxu0 %v2934
    %3172 = vmatprep.subr.bf16.mxu0 %v2939
    %3173 = vmatpush1.bf16.msra.mxu0 %v2938
    %3174 = vmatprep.subr.bf16.mxu0 %v2943
    %3175 = vmatpush1.bf16.msra.mxu0 %v2942
    %3176 = vmatprep.subr.bf16.mxu0 %v2947
    %3177 = vmatpush1.bf16.msra.mxu0 %v2946
    %3178 = vmatprep.subr.bf16.mxu0 %v2951
    %3179 = vmatpush1.bf16.msra.mxu0 %v2950
    %3180 = vmatprep.subr.bf16.mxu0 %v2955
    %3181 = vmatpush1.bf16.msra.mxu0 %v2954
    %3182 = vmatprep.mubr.bf16.mxu0 %v2357
    %3183 = vmatmul.mubr.bf16.gmra.mrb[0].mxu0 %v2356
    %v3184 = vpop.f32.mrb[0].mxu0
    %v3185 = vadd.f32 %v2493, %v3184
    %v3186 = vpop.f32.mrb[0].mxu0
    %v3187 = vadd.f32 %v2497, %v3186
    %v3188 = vpop.f32.mrb[0].mxu0
    %v3189 = vpop.f32.mrb[0].mxu0
    %3190 = vdwg.mxu0
    %3191 = vmatprep.subr.bf16.mxu0 %v2959
    %3192 = vmatpush1.bf16.msra.mxu0 %v2958
    %3193 = vmatprep.subr.bf16.mxu0 %v2963
    %3194 = vmatpush1.bf16.msra.mxu0 %v2962
    %3195 = vmatprep.subr.bf16.mxu0 %v2967
    %3196 = vmatpush1.bf16.msra.mxu0 %v2966
    %3197 = vmatprep.subr.bf16.mxu0 %v2971
    %3198 = vmatpush1.bf16.msra.mxu0 %v2970
    %3199 = vmatprep.subr.bf16.mxu0 %v2975
    %3200 = vmatpush1.bf16.msra.mxu0 %v2974
    %3201 = vmatprep.subr.bf16.mxu0 %v2979
    %3202 = vmatpush1.bf16.msra.mxu0 %v2978
    %3203 = vmatprep.subr.bf16.mxu0 %v2983
    %3204 = vmatpush1.bf16.msra.mxu0 %v2982
    %3205 = vmatprep.subr.bf16.mxu0 %v2987
    %3206 = vmatpush1.bf16.msra.mxu0 %v2986
    %3207 = vmatprep.subr.bf16.mxu0 %v2991
    %3208 = vmatpush1.bf16.msra.mxu0 %v2990
    %3209 = vmatprep.subr.bf16.mxu0 %v2995
    %3210 = vmatpush1.bf16.msra.mxu0 %v2994
    %3211 = vmatprep.subr.bf16.mxu0 %v2999
    %3212 = vmatpush1.bf16.msra.mxu0 %v2998
    %3213 = vmatprep.subr.bf16.mxu0 %v3003
    %3214 = vmatpush1.bf16.msra.mxu0 %v3002
    %3215 = vmatprep.subr.bf16.mxu0 %v3007
    %3216 = vmatpush1.bf16.msra.mxu0 %v3006
    %3217 = vmatprep.subr.bf16.mxu0 %v3011
    %3218 = vmatpush1.bf16.msra.mxu0 %v3010
    %3219 = vmatprep.subr.bf16.mxu0 %v3015
    %3220 = vmatpush1.bf16.msra.mxu0 %v3014
    %3221 = vmatprep.subr.bf16.mxu0 %v3019
    %3222 = vmatpush1.bf16.msra.mxu0 %v3018
    %3223 = vmatprep.mubr.bf16.mxu0 %v2359
    %3224 = vmatmul.mubr.bf16.gmra.mrb[0].mxu0 %v2358
    %v3225 = vpop.f32.mrb[0].mxu0
    %v3226 = vadd.f32 %v3185, %v3225
    %v3227 = vpop.f32.mrb[0].mxu0
    %v3228 = vadd.f32 %v3187, %v3227
    %v3229 = vpop.f32.mrb[0].mxu0
    %v3230 = vpop.f32.mrb[0].mxu0
    %3231 = vdwg.mxu0
    %3232 = vmatprep.subr.bf16.mxu0 %v2897
    %3233 = vmatpush1.bf16.msra.mxu0 %v2896
    %3234 = vmatprep.subr.bf16.mxu0 %v2901
    %3235 = vmatpush1.bf16.msra.mxu0 %v2900
    %3236 = vmatprep.subr.bf16.mxu0 %v2905
    %3237 = vmatpush1.bf16.msra.mxu0 %v2904
    %3238 = vmatprep.subr.bf16.mxu0 %v2909
    %3239 = vmatpush1.bf16.msra.mxu0 %v2908
    %3240 = vmatprep.subr.bf16.mxu0 %v2913
    %3241 = vmatpush1.bf16.msra.mxu0 %v2912
    %3242 = vmatprep.subr.bf16.mxu0 %v2917
    %3243 = vmatpush1.bf16.msra.mxu0 %v2916
    %3244 = vmatprep.subr.bf16.mxu0 %v2921
    %3245 = vmatpush1.bf16.msra.mxu0 %v2920
    %3246 = vmatprep.subr.bf16.mxu0 %v2925
    %3247 = vmatpush1.bf16.msra.mxu0 %v2924
    %3248 = vmatprep.subr.bf16.mxu0 %v2929
    %3249 = vmatpush1.bf16.msra.mxu0 %v2928
    %3250 = vmatprep.subr.bf16.mxu0 %v2933
    %3251 = vmatpush1.bf16.msra.mxu0 %v2932
    %3252 = vmatprep.subr.bf16.mxu0 %v2937
    %3253 = vmatpush1.bf16.msra.mxu0 %v2936
    %3254 = vmatprep.subr.bf16.mxu0 %v2941
    %3255 = vmatpush1.bf16.msra.mxu0 %v2940
    %3256 = vmatprep.subr.bf16.mxu0 %v2945
    %3257 = vmatpush1.bf16.msra.mxu0 %v2944
    %3258 = vmatprep.subr.bf16.mxu0 %v2949
    %3259 = vmatpush1.bf16.msra.mxu0 %v2948
    %3260 = vmatprep.subr.bf16.mxu0 %v2953
    %3261 = vmatpush1.bf16.msra.mxu0 %v2952
    %3262 = vmatprep.subr.bf16.mxu0 %v2957
    %3263 = vmatpush1.bf16.msra.mxu0 %v2956
    %3264 = vmatprep.mubr.bf16.mxu0 %v2357
    %3265 = vmatmul.mubr.bf16.gmra.mrb[0].mxu0 %v2356
    %v3266 = vpop.f32.mrb[0].mxu0
    %v3267 = vadd.f32 %v2501, %v3266
    %v3268 = vpop.f32.mrb[0].mxu0
    %v3269 = vadd.f32 %v2505, %v3268
    %v3270 = vpop.f32.mrb[0].mxu0
    %v3271 = vpop.f32.mrb[0].mxu0
    %3272 = vdwg.mxu0
    %3273 = vmatprep.subr.bf16.mxu0 %v2961
    %3274 = vmatpush1.bf16.msra.mxu0 %v2960
    %3275 = vmatprep.subr.bf16.mxu0 %v2965
    %3276 = vmatpush1.bf16.msra.mxu0 %v2964
    %3277 = vmatprep.subr.bf16.mxu0 %v2969
    %3278 = vmatpush1.bf16.msra.mxu0 %v2968
    %3279 = vmatprep.subr.bf16.mxu0 %v2973
    %3280 = vmatpush1.bf16.msra.mxu0 %v2972
    %3281 = vmatprep.subr.bf16.mxu0 %v2977
    %3282 = vmatpush1.bf16.msra.mxu0 %v2976
    %3283 = vmatprep.subr.bf16.mxu0 %v2981
    %3284 = vmatpush1.bf16.msra.mxu0 %v2980
    %3285 = vmatprep.subr.bf16.mxu0 %v2985
    %3286 = vmatpush1.bf16.msra.mxu0 %v2984
    %3287 = vmatprep.subr.bf16.mxu0 %v2989
    %3288 = vmatpush1.bf16.msra.mxu0 %v2988
    %3289 = vmatprep.subr.bf16.mxu0 %v2993
    %3290 = vmatpush1.bf16.msra.mxu0 %v2992
    %3291 = vmatprep.subr.bf16.mxu0 %v2997
    %3292 = vmatpush1.bf16.msra.mxu0 %v2996
    %3293 = vmatprep.subr.bf16.mxu0 %v3001
    %3294 = vmatpush1.bf16.msra.mxu0 %v3000
    %3295 = vmatprep.subr.bf16.mxu0 %v3005
    %3296 = vmatpush1.bf16.msra.mxu0 %v3004
    %3297 = vmatprep.subr.bf16.mxu0 %v3009
    %3298 = vmatpush1.bf16.msra.mxu0 %v3008
    %3299 = vmatprep.subr.bf16.mxu0 %v3013
    %3300 = vmatpush1.bf16.msra.mxu0 %v3012
    %3301 = vmatprep.subr.bf16.mxu0 %v3017
    %3302 = vmatpush1.bf16.msra.mxu0 %v3016
    %3303 = vmatprep.subr.bf16.mxu0 %v3021
    %3304 = vmatpush1.bf16.msra.mxu0 %v3020
    %3305 = vmatprep.mubr.bf16.mxu0 %v2359
    %3306 = vmatmul.mubr.bf16.gmra.mrb[0].mxu0 %v2358
    %v3307 = vpop.f32.mrb[0].mxu0
    %v3308 = vadd.f32 %v3267, %v3307
    %v3309 = vpop.f32.mrb[0].mxu0
    %v3310 = vadd.f32 %v3269, %v3309
    %v3311 = vpop.f32.mrb[0].mxu0
    %v3312 = vpop.f32.mrb[0].mxu0
    %3313 = vdwg.mxu0
    %vm3314 = vcmp.ge.f32.partialorder %v3226, 0.0
    %vm3315 = vcmp.ge.f32.partialorder %v3228, 0.0
    %vm3316 = vcmp.ge.f32.partialorder %v3308, 0.0
    %vm3317 = vcmp.ge.f32.partialorder %v3310, 0.0
    %v3318 = vstv %s240
    %v3319 = vmul.f32 %v3318, %v3226
    %v3320 = vmul.f32 %v3318, %v3228
    %v3321 = vmul.f32 %v3318, %v3308
    %v3322 = vmul.f32 %v3318, %v3310
    %v3323 = vsel %vm3314, %v3226, %v3319
    %v3324 = vsel %vm3315, %v3228, %v3320
    %v3325 = vsel %vm3316, %v3308, %v3321
    %v3326 = vsel %vm3317, %v3310, %v3322
    %v3327 = vpack.c.bf16 %v3323, %v3323
    %v3328 = vpack.c.bf16 %v3324, %v3324
    %v3329 = vpack.c.bf16 %v3325, %v3325
    %v3330 = vpack.c.bf16 %v3326, %v3326
    %v3331 = vld [vmem:[#allocation13] sm:$0xff]
    %v3332 = vld [vmem:[#allocation13 + $0x8] sm:$0xff]
    %v3333 = vld [vmem:[#allocation13 + $0x10] sm:$0xff]
    %v3334 = vld [vmem:[#allocation13 + $0x18] sm:$0xff]
    %v3335 = vld [vmem:[#allocation13 + $0x20] sm:$0xff]
    %v3336 = vld [vmem:[#allocation13 + $0x28] sm:$0xff]
    %v3337 = vld [vmem:[#allocation13 + $0x30] sm:$0xff]
    %v3338 = vld [vmem:[#allocation13 + $0x38] sm:$0xff]
    %v3339 = vld [vmem:[#allocation13 + $0x40] sm:$0xff]
    %v3340 = vld [vmem:[#allocation13 + $0x48] sm:$0xff]
    %v3341 = vld [vmem:[#allocation13 + $0x50] sm:$0xff]
    %v3342 = vld [vmem:[#allocation13 + $0x58] sm:$0xff]
    %v3343 = vld [vmem:[#allocation13 + $0x60] sm:$0xff]
    %v3344 = vld [vmem:[#allocation13 + $0x68] sm:$0xff]
    %v3345 = vld [vmem:[#allocation13 + $0x70] sm:$0xff]
    %v3346 = vld [vmem:[#allocation13 + $0x78] sm:$0xff]
    %v3347 = vld [vmem:[#allocation13 + $0x80] sm:$0xff]
    %v3348 = vld [vmem:[#allocation13 + $0x88] sm:$0xff]
    %v3349 = vld [vmem:[#allocation13 + $0x90] sm:$0xff]
    %v3350 = vld [vmem:[#allocation13 + $0x98] sm:$0xff]
    %v3351 = vld [vmem:[#allocation13 + $0xa0] sm:$0xff]
    %v3352 = vld [vmem:[#allocation13 + $0xa8] sm:$0xff]
    %v3353 = vld [vmem:[#allocation13 + $0xb0] sm:$0xff]
    %v3354 = vld [vmem:[#allocation13 + $0xb8] sm:$0xff]
    %v3355 = vld [vmem:[#allocation13 + $0xc0] sm:$0xff]
    %v3356 = vld [vmem:[#allocation13 + $0xc8] sm:$0xff]
    %v3357 = vld [vmem:[#allocation13 + $0xd0] sm:$0xff]
    %v3358 = vld [vmem:[#allocation13 + $0xd8] sm:$0xff]
    %v3359 = vld [vmem:[#allocation13 + $0xe0] sm:$0xff]
    %v3360 = vld [vmem:[#allocation13 + $0xe8] sm:$0xff]
    %v3361 = vld [vmem:[#allocation13 + $0xf0] sm:$0xff]
    %v3362 = vld [vmem:[#allocation13 + $0xf8] sm:$0xff]
    %v3363 = vld [vmem:[#allocation13 + $0x100] sm:$0xff]
    %v3364 = vld [vmem:[#allocation13 + $0x108] sm:$0xff]
    %v3365 = vld [vmem:[#allocation13 + $0x110] sm:$0xff]
    %v3366 = vld [vmem:[#allocation13 + $0x118] sm:$0xff]
    %v3367 = vld [vmem:[#allocation13 + $0x120] sm:$0xff]
    %v3368 = vld [vmem:[#allocation13 + $0x128] sm:$0xff]
    %v3369 = vld [vmem:[#allocation13 + $0x130] sm:$0xff]
    %v3370 = vld [vmem:[#allocation13 + $0x138] sm:$0xff]
    %v3371 = vld [vmem:[#allocation13 + $0x140] sm:$0xff]
    %v3372 = vld [vmem:[#allocation13 + $0x148] sm:$0xff]
    %v3373 = vld [vmem:[#allocation13 + $0x150] sm:$0xff]
    %v3374 = vld [vmem:[#allocation13 + $0x158] sm:$0xff]
    %v3375 = vld [vmem:[#allocation13 + $0x160] sm:$0xff]
    %v3376 = vld [vmem:[#allocation13 + $0x168] sm:$0xff]
    %v3377 = vld [vmem:[#allocation13 + $0x170] sm:$0xff]
    %v3378 = vld [vmem:[#allocation13 + $0x178] sm:$0xff]
    %v3379 = vld [vmem:[#allocation13 + $0x180] sm:$0xff]
    %v3380 = vld [vmem:[#allocation13 + $0x188] sm:$0xff]
    %v3381 = vld [vmem:[#allocation13 + $0x190] sm:$0xff]
    %v3382 = vld [vmem:[#allocation13 + $0x198] sm:$0xff]
    %v3383 = vld [vmem:[#allocation13 + $0x1a0] sm:$0xff]
    %v3384 = vld [vmem:[#allocation13 + $0x1a8] sm:$0xff]
    %v3385 = vld [vmem:[#allocation13 + $0x1b0] sm:$0xff]
    %v3386 = vld [vmem:[#allocation13 + $0x1b8] sm:$0xff]
    %v3387 = vld [vmem:[#allocation13 + $0x1c0] sm:$0xff]
    %v3388 = vld [vmem:[#allocation13 + $0x1c8] sm:$0xff]
    %v3389 = vld [vmem:[#allocation13 + $0x1d0] sm:$0xff]
    %v3390 = vld [vmem:[#allocation13 + $0x1d8] sm:$0xff]
    %v3391 = vld [vmem:[#allocation13 + $0x1e0] sm:$0xff]
    %v3392 = vld [vmem:[#allocation13 + $0x1e8] sm:$0xff]
    %v3393 = vld [vmem:[#allocation13 + $0x1f0] sm:$0xff]
    %v3394 = vld [vmem:[#allocation13 + $0x1f8] sm:$0xff]
    %v3395 = vld [vmem:[#allocation13 + $0x200] sm:$0xff]
    %v3396 = vld [vmem:[#allocation13 + $0x208] sm:$0xff]
    %v3397 = vld [vmem:[#allocation13 + $0x210] sm:$0xff]
    %v3398 = vld [vmem:[#allocation13 + $0x218] sm:$0xff]
    %v3399 = vld [vmem:[#allocation13 + $0x220] sm:$0xff]
    %v3400 = vld [vmem:[#allocation13 + $0x228] sm:$0xff]
    %v3401 = vld [vmem:[#allocation13 + $0x230] sm:$0xff]
    %v3402 = vld [vmem:[#allocation13 + $0x238] sm:$0xff]
    %v3403 = vld [vmem:[#allocation13 + $0x240] sm:$0xff]
    %v3404 = vld [vmem:[#allocation13 + $0x248] sm:$0xff]
    %v3405 = vld [vmem:[#allocation13 + $0x250] sm:$0xff]
    %v3406 = vld [vmem:[#allocation13 + $0x258] sm:$0xff]
    %v3407 = vld [vmem:[#allocation13 + $0x260] sm:$0xff]
    %v3408 = vld [vmem:[#allocation13 + $0x268] sm:$0xff]
    %v3409 = vld [vmem:[#allocation13 + $0x270] sm:$0xff]
    %v3410 = vld [vmem:[#allocation13 + $0x278] sm:$0xff]
    %v3411 = vld [vmem:[#allocation13 + $0x280] sm:$0xff]
    %v3412 = vld [vmem:[#allocation13 + $0x288] sm:$0xff]
    %v3413 = vld [vmem:[#allocation13 + $0x290] sm:$0xff]
    %v3414 = vld [vmem:[#allocation13 + $0x298] sm:$0xff]
    %v3415 = vld [vmem:[#allocation13 + $0x2a0] sm:$0xff]
    %v3416 = vld [vmem:[#allocation13 + $0x2a8] sm:$0xff]
    %v3417 = vld [vmem:[#allocation13 + $0x2b0] sm:$0xff]
    %v3418 = vld [vmem:[#allocation13 + $0x2b8] sm:$0xff]
    %v3419 = vld [vmem:[#allocation13 + $0x2c0] sm:$0xff]
    %v3420 = vld [vmem:[#allocation13 + $0x2c8] sm:$0xff]
    %v3421 = vld [vmem:[#allocation13 + $0x2d0] sm:$0xff]
    %v3422 = vld [vmem:[#allocation13 + $0x2d8] sm:$0xff]
    %v3423 = vld [vmem:[#allocation13 + $0x2e0] sm:$0xff]
    %v3424 = vld [vmem:[#allocation13 + $0x2e8] sm:$0xff]
    %v3425 = vld [vmem:[#allocation13 + $0x2f0] sm:$0xff]
    %v3426 = vld [vmem:[#allocation13 + $0x2f8] sm:$0xff]
    %v3427 = vld [vmem:[#allocation13 + $0x300] sm:$0xff]
    %v3428 = vld [vmem:[#allocation13 + $0x308] sm:$0xff]
    %v3429 = vld [vmem:[#allocation13 + $0x310] sm:$0xff]
    %v3430 = vld [vmem:[#allocation13 + $0x318] sm:$0xff]
    %v3431 = vld [vmem:[#allocation13 + $0x320] sm:$0xff]
    %v3432 = vld [vmem:[#allocation13 + $0x328] sm:$0xff]
    %v3433 = vld [vmem:[#allocation13 + $0x330] sm:$0xff]
    %v3434 = vld [vmem:[#allocation13 + $0x338] sm:$0xff]
    %v3435 = vld [vmem:[#allocation13 + $0x340] sm:$0xff]
    %v3436 = vld [vmem:[#allocation13 + $0x348] sm:$0xff]
    %v3437 = vld [vmem:[#allocation13 + $0x350] sm:$0xff]
    %v3438 = vld [vmem:[#allocation13 + $0x358] sm:$0xff]
    %v3439 = vld [vmem:[#allocation13 + $0x360] sm:$0xff]
    %v3440 = vld [vmem:[#allocation13 + $0x368] sm:$0xff]
    %v3441 = vld [vmem:[#allocation13 + $0x370] sm:$0xff]
    %v3442 = vld [vmem:[#allocation13 + $0x378] sm:$0xff]
    %v3443 = vld [vmem:[#allocation13 + $0x380] sm:$0xff]
    %v3444 = vld [vmem:[#allocation13 + $0x388] sm:$0xff]
    %v3445 = vld [vmem:[#allocation13 + $0x390] sm:$0xff]
    %v3446 = vld [vmem:[#allocation13 + $0x398] sm:$0xff]
    %v3447 = vld [vmem:[#allocation13 + $0x3a0] sm:$0xff]
    %v3448 = vld [vmem:[#allocation13 + $0x3a8] sm:$0xff]
    %v3449 = vld [vmem:[#allocation13 + $0x3b0] sm:$0xff]
    %v3450 = vld [vmem:[#allocation13 + $0x3b8] sm:$0xff]
    %v3451 = vld [vmem:[#allocation13 + $0x3c0] sm:$0xff]
    %v3452 = vld [vmem:[#allocation13 + $0x3c8] sm:$0xff]
    %v3453 = vld [vmem:[#allocation13 + $0x3d0] sm:$0xff]
    %v3454 = vld [vmem:[#allocation13 + $0x3d8] sm:$0xff]
    %v3455 = vld [vmem:[#allocation13 + $0x3e0] sm:$0xff]
    %v3456 = vld [vmem:[#allocation13 + $0x3e8] sm:$0xff]
    %v3457 = vld [vmem:[#allocation13 + $0x3f0] sm:$0xff]
    %v3458 = vld [vmem:[#allocation13 + $0x3f8] sm:$0xff]
    %v3459 = vld [vmem:[%s11] sm:$0xf]
    %v3461 = vlaneseq
    %v3462 = vshrl.u32 %v3461, 7
    %v3463 = vsub.s32 0, %v3462
    %v3464 = vrot.slane %v3459, %v3463
    %v3465 = vlaneseq
    %v3466 = vshrl.u32 %v3465, 7
    %v3467 = vsub.s32 1, %v3466
    %v3468 = vrot.slane %v3459, %v3467
    %v3469 = vlaneseq
    %v3470 = vshrl.u32 %v3469, 7
    %v3471 = vsub.s32 2, %v3470
    %v3472 = vrot.slane %v3459, %v3471
    %v3473 = vlaneseq
    %v3474 = vshrl.u32 %v3473, 7
    %v3475 = vsub.s32 3, %v3474
    %v3476 = vrot.slane %v3459, %v3475
    %v3609 = vunpack.c.l.b16 %v3331
    %v3610 = vunpack.c.h.b16 %v3331
    %v3611 = vunpack.c.l.b16 %v3332
    %v3612 = vunpack.c.h.b16 %v3332
    %v3613 = vunpack.c.l.b16 %v3333
    %v3614 = vunpack.c.h.b16 %v3333
    %v3615 = vunpack.c.l.b16 %v3334
    %v3616 = vunpack.c.h.b16 %v3334
    %v3617 = vunpack.c.l.b16 %v3335
    %v3618 = vunpack.c.h.b16 %v3335
    %v3619 = vunpack.c.l.b16 %v3336
    %v3620 = vunpack.c.h.b16 %v3336
    %v3621 = vunpack.c.l.b16 %v3337
    %v3622 = vunpack.c.h.b16 %v3337
    %v3623 = vunpack.c.l.b16 %v3338
    %v3624 = vunpack.c.h.b16 %v3338
    %v3625 = vunpack.c.l.b16 %v3339
    %v3626 = vunpack.c.h.b16 %v3339
    %v3627 = vunpack.c.l.b16 %v3340
    %v3628 = vunpack.c.h.b16 %v3340
    %v3629 = vunpack.c.l.b16 %v3341
    %v3630 = vunpack.c.h.b16 %v3341
    %v3631 = vunpack.c.l.b16 %v3342
    %v3632 = vunpack.c.h.b16 %v3342
    %v3633 = vunpack.c.l.b16 %v3343
    %v3634 = vunpack.c.h.b16 %v3343
    %v3635 = vunpack.c.l.b16 %v3344
    %v3636 = vunpack.c.h.b16 %v3344
    %v3637 = vunpack.c.l.b16 %v3345
    %v3638 = vunpack.c.h.b16 %v3345
    %v3639 = vunpack.c.l.b16 %v3346
    %v3640 = vunpack.c.h.b16 %v3346
    %v3641 = vunpack.c.l.b16 %v3347
    %v3642 = vunpack.c.h.b16 %v3347
    %v3643 = vunpack.c.l.b16 %v3348
    %v3644 = vunpack.c.h.b16 %v3348
    %v3645 = vunpack.c.l.b16 %v3349
    %v3646 = vunpack.c.h.b16 %v3349
    %v3647 = vunpack.c.l.b16 %v3350
    %v3648 = vunpack.c.h.b16 %v3350
    %v3649 = vunpack.c.l.b16 %v3351
    %v3650 = vunpack.c.h.b16 %v3351
    %v3651 = vunpack.c.l.b16 %v3352
    %v3652 = vunpack.c.h.b16 %v3352
    %v3653 = vunpack.c.l.b16 %v3353
    %v3654 = vunpack.c.h.b16 %v3353
    %v3655 = vunpack.c.l.b16 %v3354
    %v3656 = vunpack.c.h.b16 %v3354
    %v3657 = vunpack.c.l.b16 %v3355
    %v3658 = vunpack.c.h.b16 %v3355
    %v3659 = vunpack.c.l.b16 %v3356
    %v3660 = vunpack.c.h.b16 %v3356
    %v3661 = vunpack.c.l.b16 %v3357
    %v3662 = vunpack.c.h.b16 %v3357
    %v3663 = vunpack.c.l.b16 %v3358
    %v3664 = vunpack.c.h.b16 %v3358
    %v3665 = vunpack.c.l.b16 %v3359
    %v3666 = vunpack.c.h.b16 %v3359
    %v3667 = vunpack.c.l.b16 %v3360
    %v3668 = vunpack.c.h.b16 %v3360
    %v3669 = vunpack.c.l.b16 %v3361
    %v3670 = vunpack.c.h.b16 %v3361
    %v3671 = vunpack.c.l.b16 %v3362
    %v3672 = vunpack.c.h.b16 %v3362
    %v3673 = vunpack.c.l.b16 %v3363
    %v3674 = vunpack.c.h.b16 %v3363
    %v3675 = vunpack.c.l.b16 %v3364
    %v3676 = vunpack.c.h.b16 %v3364
    %v3677 = vunpack.c.l.b16 %v3365
    %v3678 = vunpack.c.h.b16 %v3365
    %v3679 = vunpack.c.l.b16 %v3366
    %v3680 = vunpack.c.h.b16 %v3366
    %v3681 = vunpack.c.l.b16 %v3367
    %v3682 = vunpack.c.h.b16 %v3367
    %v3683 = vunpack.c.l.b16 %v3368
    %v3684 = vunpack.c.h.b16 %v3368
    %v3685 = vunpack.c.l.b16 %v3369
    %v3686 = vunpack.c.h.b16 %v3369
    %v3687 = vunpack.c.l.b16 %v3370
    %v3688 = vunpack.c.h.b16 %v3370
    %v3689 = vunpack.c.l.b16 %v3371
    %v3690 = vunpack.c.h.b16 %v3371
    %v3691 = vunpack.c.l.b16 %v3372
    %v3692 = vunpack.c.h.b16 %v3372
    %v3693 = vunpack.c.l.b16 %v3373
    %v3694 = vunpack.c.h.b16 %v3373
    %v3695 = vunpack.c.l.b16 %v3374
    %v3696 = vunpack.c.h.b16 %v3374
    %v3697 = vunpack.c.l.b16 %v3375
    %v3698 = vunpack.c.h.b16 %v3375
    %v3699 = vunpack.c.l.b16 %v3376
    %v3700 = vunpack.c.h.b16 %v3376
    %v3701 = vunpack.c.l.b16 %v3377
    %v3702 = vunpack.c.h.b16 %v3377
    %v3703 = vunpack.c.l.b16 %v3378
    %v3704 = vunpack.c.h.b16 %v3378
    %v3705 = vunpack.c.l.b16 %v3379
    %v3706 = vunpack.c.h.b16 %v3379
    %v3707 = vunpack.c.l.b16 %v3380
    %v3708 = vunpack.c.h.b16 %v3380
    %v3709 = vunpack.c.l.b16 %v3381
    %v3710 = vunpack.c.h.b16 %v3381
    %v3711 = vunpack.c.l.b16 %v3382
    %v3712 = vunpack.c.h.b16 %v3382
    %v3713 = vunpack.c.l.b16 %v3383
    %v3714 = vunpack.c.h.b16 %v3383
    %v3715 = vunpack.c.l.b16 %v3384
    %v3716 = vunpack.c.h.b16 %v3384
    %v3717 = vunpack.c.l.b16 %v3385
    %v3718 = vunpack.c.h.b16 %v3385
    %v3719 = vunpack.c.l.b16 %v3386
    %v3720 = vunpack.c.h.b16 %v3386
    %v3721 = vunpack.c.l.b16 %v3387
    %v3722 = vunpack.c.h.b16 %v3387
    %v3723 = vunpack.c.l.b16 %v3388
    %v3724 = vunpack.c.h.b16 %v3388
    %v3725 = vunpack.c.l.b16 %v3389
    %v3726 = vunpack.c.h.b16 %v3389
    %v3727 = vunpack.c.l.b16 %v3390
    %v3728 = vunpack.c.h.b16 %v3390
    %v3729 = vunpack.c.l.b16 %v3391
    %v3730 = vunpack.c.h.b16 %v3391
    %v3731 = vunpack.c.l.b16 %v3392
    %v3732 = vunpack.c.h.b16 %v3392
    %v3733 = vunpack.c.l.b16 %v3393
    %v3734 = vunpack.c.h.b16 %v3393
    %v3735 = vunpack.c.l.b16 %v3394
    %v3736 = vunpack.c.h.b16 %v3394
    %v3737 = vunpack.c.l.b16 %v3395
    %v3738 = vunpack.c.h.b16 %v3395
    %v3739 = vunpack.c.l.b16 %v3396
    %v3740 = vunpack.c.h.b16 %v3396
    %v3741 = vunpack.c.l.b16 %v3397
    %v3742 = vunpack.c.h.b16 %v3397
    %v3743 = vunpack.c.l.b16 %v3398
    %v3744 = vunpack.c.h.b16 %v3398
    %v3745 = vunpack.c.l.b16 %v3399
    %v3746 = vunpack.c.h.b16 %v3399
    %v3747 = vunpack.c.l.b16 %v3400
    %v3748 = vunpack.c.h.b16 %v3400
    %v3749 = vunpack.c.l.b16 %v3401
    %v3750 = vunpack.c.h.b16 %v3401
    %v3751 = vunpack.c.l.b16 %v3402
    %v3752 = vunpack.c.h.b16 %v3402
    %v3753 = vunpack.c.l.b16 %v3403
    %v3754 = vunpack.c.h.b16 %v3403
    %v3755 = vunpack.c.l.b16 %v3404
    %v3756 = vunpack.c.h.b16 %v3404
    %v3757 = vunpack.c.l.b16 %v3405
    %v3758 = vunpack.c.h.b16 %v3405
    %v3759 = vunpack.c.l.b16 %v3406
    %v3760 = vunpack.c.h.b16 %v3406
    %v3761 = vunpack.c.l.b16 %v3407
    %v3762 = vunpack.c.h.b16 %v3407
    %v3763 = vunpack.c.l.b16 %v3408
    %v3764 = vunpack.c.h.b16 %v3408
    %v3765 = vunpack.c.l.b16 %v3409
    %v3766 = vunpack.c.h.b16 %v3409
    %v3767 = vunpack.c.l.b16 %v3410
    %v3768 = vunpack.c.h.b16 %v3410
    %v3769 = vunpack.c.l.b16 %v3411
    %v3770 = vunpack.c.h.b16 %v3411
    %v3771 = vunpack.c.l.b16 %v3412
    %v3772 = vunpack.c.h.b16 %v3412
    %v3773 = vunpack.c.l.b16 %v3413
    %v3774 = vunpack.c.h.b16 %v3413
    %v3775 = vunpack.c.l.b16 %v3414
    %v3776 = vunpack.c.h.b16 %v3414
    %v3777 = vunpack.c.l.b16 %v3415
    %v3778 = vunpack.c.h.b16 %v3415
    %v3779 = vunpack.c.l.b16 %v3416
    %v3780 = vunpack.c.h.b16 %v3416
    %v3781 = vunpack.c.l.b16 %v3417
    %v3782 = vunpack.c.h.b16 %v3417
    %v3783 = vunpack.c.l.b16 %v3418
    %v3784 = vunpack.c.h.b16 %v3418
    %v3785 = vunpack.c.l.b16 %v3419
    %v3786 = vunpack.c.h.b16 %v3419
    %v3787 = vunpack.c.l.b16 %v3420
    %v3788 = vunpack.c.h.b16 %v3420
    %v3789 = vunpack.c.l.b16 %v3421
    %v3790 = vunpack.c.h.b16 %v3421
    %v3791 = vunpack.c.l.b16 %v3422
    %v3792 = vunpack.c.h.b16 %v3422
    %v3793 = vunpack.c.l.b16 %v3423
    %v3794 = vunpack.c.h.b16 %v3423
    %v3795 = vunpack.c.l.b16 %v3424
    %v3796 = vunpack.c.h.b16 %v3424
    %v3797 = vunpack.c.l.b16 %v3425
    %v3798 = vunpack.c.h.b16 %v3425
    %v3799 = vunpack.c.l.b16 %v3426
    %v3800 = vunpack.c.h.b16 %v3426
    %v3801 = vunpack.c.l.b16 %v3427
    %v3802 = vunpack.c.h.b16 %v3427
    %v3803 = vunpack.c.l.b16 %v3428
    %v3804 = vunpack.c.h.b16 %v3428
    %v3805 = vunpack.c.l.b16 %v3429
    %v3806 = vunpack.c.h.b16 %v3429
    %v3807 = vunpack.c.l.b16 %v3430
    %v3808 = vunpack.c.h.b16 %v3430
    %v3809 = vunpack.c.l.b16 %v3431
    %v3810 = vunpack.c.h.b16 %v3431
    %v3811 = vunpack.c.l.b16 %v3432
    %v3812 = vunpack.c.h.b16 %v3432
    %v3813 = vunpack.c.l.b16 %v3433
    %v3814 = vunpack.c.h.b16 %v3433
    %v3815 = vunpack.c.l.b16 %v3434
    %v3816 = vunpack.c.h.b16 %v3434
    %v3817 = vunpack.c.l.b16 %v3435
    %v3818 = vunpack.c.h.b16 %v3435
    %v3819 = vunpack.c.l.b16 %v3436
    %v3820 = vunpack.c.h.b16 %v3436
    %v3821 = vunpack.c.l.b16 %v3437
    %v3822 = vunpack.c.h.b16 %v3437
    %v3823 = vunpack.c.l.b16 %v3438
    %v3824 = vunpack.c.h.b16 %v3438
    %v3825 = vunpack.c.l.b16 %v3439
    %v3826 = vunpack.c.h.b16 %v3439
    %v3827 = vunpack.c.l.b16 %v3440
    %v3828 = vunpack.c.h.b16 %v3440
    %v3829 = vunpack.c.l.b16 %v3441
    %v3830 = vunpack.c.h.b16 %v3441
    %v3831 = vunpack.c.l.b16 %v3442
    %v3832 = vunpack.c.h.b16 %v3442
    %v3833 = vunpack.c.l.b16 %v3443
    %v3834 = vunpack.c.h.b16 %v3443
    %v3835 = vunpack.c.l.b16 %v3444
    %v3836 = vunpack.c.h.b16 %v3444
    %v3837 = vunpack.c.l.b16 %v3445
    %v3838 = vunpack.c.h.b16 %v3445
    %v3839 = vunpack.c.l.b16 %v3446
    %v3840 = vunpack.c.h.b16 %v3446
    %v3841 = vunpack.c.l.b16 %v3447
    %v3842 = vunpack.c.h.b16 %v3447
    %v3843 = vunpack.c.l.b16 %v3448
    %v3844 = vunpack.c.h.b16 %v3448
    %v3845 = vunpack.c.l.b16 %v3449
    %v3846 = vunpack.c.h.b16 %v3449
    %v3847 = vunpack.c.l.b16 %v3450
    %v3848 = vunpack.c.h.b16 %v3450
    %v3849 = vunpack.c.l.b16 %v3451
    %v3850 = vunpack.c.h.b16 %v3451
    %v3851 = vunpack.c.l.b16 %v3452
    %v3852 = vunpack.c.h.b16 %v3452
    %v3853 = vunpack.c.l.b16 %v3453
    %v3854 = vunpack.c.h.b16 %v3453
    %v3855 = vunpack.c.l.b16 %v3454
    %v3856 = vunpack.c.h.b16 %v3454
    %v3857 = vunpack.c.l.b16 %v3455
    %v3858 = vunpack.c.h.b16 %v3455
    %v3859 = vunpack.c.l.b16 %v3456
    %v3860 = vunpack.c.h.b16 %v3456
    %v3861 = vunpack.c.l.b16 %v3457
    %v3862 = vunpack.c.h.b16 %v3457
    %v3863 = vunpack.c.l.b16 %v3458
    %v3864 = vunpack.c.h.b16 %v3458
    %v3865 = vpack.c.b16 %v3613, %v3609
    %v3866 = vpack.c.b16 %v3614, %v3610
    %v3867 = vpack.c.b16 %v3615, %v3611
    %v3868 = vpack.c.b16 %v3616, %v3612
    %v3869 = vpack.c.b16 %v3621, %v3617
    %v3870 = vpack.c.b16 %v3622, %v3618
    %v3871 = vpack.c.b16 %v3623, %v3619
    %v3872 = vpack.c.b16 %v3624, %v3620
    %v3873 = vpack.c.b16 %v3629, %v3625
    %v3874 = vpack.c.b16 %v3630, %v3626
    %v3875 = vpack.c.b16 %v3631, %v3627
    %v3876 = vpack.c.b16 %v3632, %v3628
    %v3877 = vpack.c.b16 %v3637, %v3633
    %v3878 = vpack.c.b16 %v3638, %v3634
    %v3879 = vpack.c.b16 %v3639, %v3635
    %v3880 = vpack.c.b16 %v3640, %v3636
    %v3881 = vpack.c.b16 %v3645, %v3641
    %v3882 = vpack.c.b16 %v3646, %v3642
    %v3883 = vpack.c.b16 %v3647, %v3643
    %v3884 = vpack.c.b16 %v3648, %v3644
    %v3885 = vpack.c.b16 %v3653, %v3649
    %v3886 = vpack.c.b16 %v3654, %v3650
    %v3887 = vpack.c.b16 %v3655, %v3651
    %v3888 = vpack.c.b16 %v3656, %v3652
    %v3889 = vpack.c.b16 %v3661, %v3657
    %v3890 = vpack.c.b16 %v3662, %v3658
    %v3891 = vpack.c.b16 %v3663, %v3659
    %v3892 = vpack.c.b16 %v3664, %v3660
    %v3893 = vpack.c.b16 %v3669, %v3665
    %v3894 = vpack.c.b16 %v3670, %v3666
    %v3895 = vpack.c.b16 %v3671, %v3667
    %v3896 = vpack.c.b16 %v3672, %v3668
    %v3897 = vpack.c.b16 %v3677, %v3673
    %v3898 = vpack.c.b16 %v3678, %v3674
    %v3899 = vpack.c.b16 %v3679, %v3675
    %v3900 = vpack.c.b16 %v3680, %v3676
    %v3901 = vpack.c.b16 %v3685, %v3681
    %v3902 = vpack.c.b16 %v3686, %v3682
    %v3903 = vpack.c.b16 %v3687, %v3683
    %v3904 = vpack.c.b16 %v3688, %v3684
    %v3905 = vpack.c.b16 %v3693, %v3689
    %v3906 = vpack.c.b16 %v3694, %v3690
    %v3907 = vpack.c.b16 %v3695, %v3691
    %v3908 = vpack.c.b16 %v3696, %v3692
    %v3909 = vpack.c.b16 %v3701, %v3697
    %v3910 = vpack.c.b16 %v3702, %v3698
    %v3911 = vpack.c.b16 %v3703, %v3699
    %v3912 = vpack.c.b16 %v3704, %v3700
    %v3913 = vpack.c.b16 %v3709, %v3705
    %v3914 = vpack.c.b16 %v3710, %v3706
    %v3915 = vpack.c.b16 %v3711, %v3707
    %v3916 = vpack.c.b16 %v3712, %v3708
    %v3917 = vpack.c.b16 %v3717, %v3713
    %v3918 = vpack.c.b16 %v3718, %v3714
    %v3919 = vpack.c.b16 %v3719, %v3715
    %v3920 = vpack.c.b16 %v3720, %v3716
    %v3921 = vpack.c.b16 %v3725, %v3721
    %v3922 = vpack.c.b16 %v3726, %v3722
    %v3923 = vpack.c.b16 %v3727, %v3723
    %v3924 = vpack.c.b16 %v3728, %v3724
    %v3925 = vpack.c.b16 %v3733, %v3729
    %v3926 = vpack.c.b16 %v3734, %v3730
    %v3927 = vpack.c.b16 %v3735, %v3731
    %v3928 = vpack.c.b16 %v3736, %v3732
    %v3929 = vpack.c.b16 %v3741, %v3737
    %v3930 = vpack.c.b16 %v3742, %v3738
    %v3931 = vpack.c.b16 %v3743, %v3739
    %v3932 = vpack.c.b16 %v3744, %v3740
    %v3933 = vpack.c.b16 %v3749, %v3745
    %v3934 = vpack.c.b16 %v3750, %v3746
    %v3935 = vpack.c.b16 %v3751, %v3747
    %v3936 = vpack.c.b16 %v3752, %v3748
    %v3937 = vpack.c.b16 %v3757, %v3753
    %v3938 = vpack.c.b16 %v3758, %v3754
    %v3939 = vpack.c.b16 %v3759, %v3755
    %v3940 = vpack.c.b16 %v3760, %v3756
    %v3941 = vpack.c.b16 %v3765, %v3761
    %v3942 = vpack.c.b16 %v3766, %v3762
    %v3943 = vpack.c.b16 %v3767, %v3763
    %v3944 = vpack.c.b16 %v3768, %v3764
    %v3945 = vpack.c.b16 %v3773, %v3769
    %v3946 = vpack.c.b16 %v3774, %v3770
    %v3947 = vpack.c.b16 %v3775, %v3771
    %v3948 = vpack.c.b16 %v3776, %v3772
    %v3949 = vpack.c.b16 %v3781, %v3777
    %v3950 = vpack.c.b16 %v3782, %v3778
    %v3951 = vpack.c.b16 %v3783, %v3779
    %v3952 = vpack.c.b16 %v3784, %v3780
    %v3953 = vpack.c.b16 %v3789, %v3785
    %v3954 = vpack.c.b16 %v3790, %v3786
    %v3955 = vpack.c.b16 %v3791, %v3787
    %v3956 = vpack.c.b16 %v3792, %v3788
    %v3957 = vpack.c.b16 %v3797, %v3793
    %v3958 = vpack.c.b16 %v3798, %v3794
    %v3959 = vpack.c.b16 %v3799, %v3795
    %v3960 = vpack.c.b16 %v3800, %v3796
    %v3961 = vpack.c.b16 %v3805, %v3801
    %v3962 = vpack.c.b16 %v3806, %v3802
    %v3963 = vpack.c.b16 %v3807, %v3803
    %v3964 = vpack.c.b16 %v3808, %v3804
    %v3965 = vpack.c.b16 %v3813, %v3809
    %v3966 = vpack.c.b16 %v3814, %v3810
    %v3967 = vpack.c.b16 %v3815, %v3811
    %v3968 = vpack.c.b16 %v3816, %v3812
    %v3969 = vpack.c.b16 %v3821, %v3817
    %v3970 = vpack.c.b16 %v3822, %v3818
    %v3971 = vpack.c.b16 %v3823, %v3819
    %v3972 = vpack.c.b16 %v3824, %v3820
    %v3973 = vpack.c.b16 %v3829, %v3825
    %v3974 = vpack.c.b16 %v3830, %v3826
    %v3975 = vpack.c.b16 %v3831, %v3827
    %v3976 = vpack.c.b16 %v3832, %v3828
    %v3977 = vpack.c.b16 %v3837, %v3833
    %v3978 = vpack.c.b16 %v3838, %v3834
    %v3979 = vpack.c.b16 %v3839, %v3835
    %v3980 = vpack.c.b16 %v3840, %v3836
    %v3981 = vpack.c.b16 %v3845, %v3841
    %v3982 = vpack.c.b16 %v3846, %v3842
    %v3983 = vpack.c.b16 %v3847, %v3843
    %v3984 = vpack.c.b16 %v3848, %v3844
    %v3985 = vpack.c.b16 %v3853, %v3849
    %v3986 = vpack.c.b16 %v3854, %v3850
    %v3987 = vpack.c.b16 %v3855, %v3851
    %v3988 = vpack.c.b16 %v3856, %v3852
    %v3989 = vpack.c.b16 %v3861, %v3857
    %v3990 = vpack.c.b16 %v3862, %v3858
    %v3991 = vpack.c.b16 %v3863, %v3859
    %v3992 = vpack.c.b16 %v3864, %v3860
    %4121 = vmatprep.subr.bf16.mxu0 %v3866
    %4122 = vmatpush1.bf16.msra.mxu0 %v3865
    %4123 = vmatprep.subr.bf16.mxu0 %v3870
    %4124 = vmatpush1.bf16.msra.mxu0 %v3869
    %4125 = vmatprep.subr.bf16.mxu0 %v3874
    %4126 = vmatpush1.bf16.msra.mxu0 %v3873
    %4127 = vmatprep.subr.bf16.mxu0 %v3878
    %4128 = vmatpush1.bf16.msra.mxu0 %v3877
    %4129 = vmatprep.subr.bf16.mxu0 %v3882
    %4130 = vmatpush1.bf16.msra.mxu0 %v3881
    %4131 = vmatprep.subr.bf16.mxu0 %v3886
    %4132 = vmatpush1.bf16.msra.mxu0 %v3885
    %4133 = vmatprep.subr.bf16.mxu0 %v3890
    %4134 = vmatpush1.bf16.msra.mxu0 %v3889
    %4135 = vmatprep.subr.bf16.mxu0 %v3894
    %4136 = vmatpush1.bf16.msra.mxu0 %v3893
    %4137 = vmatprep.subr.bf16.mxu0 %v3898
    %4138 = vmatpush1.bf16.msra.mxu0 %v3897
    %4139 = vmatprep.subr.bf16.mxu0 %v3902
    %4140 = vmatpush1.bf16.msra.mxu0 %v3901
    %4141 = vmatprep.subr.bf16.mxu0 %v3906
    %4142 = vmatpush1.bf16.msra.mxu0 %v3905
    %4143 = vmatprep.subr.bf16.mxu0 %v3910
    %4144 = vmatpush1.bf16.msra.mxu0 %v3909
    %4145 = vmatprep.subr.bf16.mxu0 %v3914
    %4146 = vmatpush1.bf16.msra.mxu0 %v3913
    %4147 = vmatprep.subr.bf16.mxu0 %v3918
    %4148 = vmatpush1.bf16.msra.mxu0 %v3917
    %4149 = vmatprep.subr.bf16.mxu0 %v3922
    %4150 = vmatpush1.bf16.msra.mxu0 %v3921
    %4151 = vmatprep.subr.bf16.mxu0 %v3926
    %4152 = vmatpush1.bf16.msra.mxu0 %v3925
    %4153 = vmatprep.mubr.bf16.mxu0 %v3328
    %4154 = vmatmul.mubr.bf16.gmra.mrb[0].mxu0 %v3327
    %v4155 = vpop.f32.mrb[0].mxu0
    %v4156 = vadd.f32 %v3464, %v4155
    %v4157 = vpop.f32.mrb[0].mxu0
    %v4158 = vadd.f32 %v3468, %v4157
    %v4159 = vpop.f32.mrb[0].mxu0
    %v4160 = vpop.f32.mrb[0].mxu0
    %4161 = vdwg.mxu0
    %4162 = vmatprep.subr.bf16.mxu0 %v3930
    %4163 = vmatpush1.bf16.msra.mxu0 %v3929
    %4164 = vmatprep.subr.bf16.mxu0 %v3934
    %4165 = vmatpush1.bf16.msra.mxu0 %v3933
    %4166 = vmatprep.subr.bf16.mxu0 %v3938
    %4167 = vmatpush1.bf16.msra.mxu0 %v3937
    %4168 = vmatprep.subr.bf16.mxu0 %v3942
    %4169 = vmatpush1.bf16.msra.mxu0 %v3941
    %4170 = vmatprep.subr.bf16.mxu0 %v3946
    %4171 = vmatpush1.bf16.msra.mxu0 %v3945
    %4172 = vmatprep.subr.bf16.mxu0 %v3950
    %4173 = vmatpush1.bf16.msra.mxu0 %v3949
    %4174 = vmatprep.subr.bf16.mxu0 %v3954
    %4175 = vmatpush1.bf16.msra.mxu0 %v3953
    %4176 = vmatprep.subr.bf16.mxu0 %v3958
    %4177 = vmatpush1.bf16.msra.mxu0 %v3957
    %4178 = vmatprep.subr.bf16.mxu0 %v3962
    %4179 = vmatpush1.bf16.msra.mxu0 %v3961
    %4180 = vmatprep.subr.bf16.mxu0 %v3966
    %4181 = vmatpush1.bf16.msra.mxu0 %v3965
    %4182 = vmatprep.subr.bf16.mxu0 %v3970
    %4183 = vmatpush1.bf16.msra.mxu0 %v3969
    %4184 = vmatprep.subr.bf16.mxu0 %v3974
    %4185 = vmatpush1.bf16.msra.mxu0 %v3973
    %4186 = vmatprep.subr.bf16.mxu0 %v3978
    %4187 = vmatpush1.bf16.msra.mxu0 %v3977
    %4188 = vmatprep.subr.bf16.mxu0 %v3982
    %4189 = vmatpush1.bf16.msra.mxu0 %v3981
    %4190 = vmatprep.subr.bf16.mxu0 %v3986
    %4191 = vmatpush1.bf16.msra.mxu0 %v3985
    %4192 = vmatprep.subr.bf16.mxu0 %v3990
    %4193 = vmatpush1.bf16.msra.mxu0 %v3989
    %4194 = vmatprep.mubr.bf16.mxu0 %v3330
    %4195 = vmatmul.mubr.bf16.gmra.mrb[0].mxu0 %v3329
    %v4196 = vpop.f32.mrb[0].mxu0
    %v4197 = vadd.f32 %v4156, %v4196
    %v4198 = vpop.f32.mrb[0].mxu0
    %v4199 = vadd.f32 %v4158, %v4198
    %v4200 = vpop.f32.mrb[0].mxu0
    %v4201 = vpop.f32.mrb[0].mxu0
    %4202 = vdwg.mxu0
    %4203 = vmatprep.subr.bf16.mxu0 %v3868
    %4204 = vmatpush1.bf16.msra.mxu0 %v3867
    %4205 = vmatprep.subr.bf16.mxu0 %v3872
    %4206 = vmatpush1.bf16.msra.mxu0 %v3871
    %4207 = vmatprep.subr.bf16.mxu0 %v3876
    %4208 = vmatpush1.bf16.msra.mxu0 %v3875
    %4209 = vmatprep.subr.bf16.mxu0 %v3880
    %4210 = vmatpush1.bf16.msra.mxu0 %v3879
    %4211 = vmatprep.subr.bf16.mxu0 %v3884
    %4212 = vmatpush1.bf16.msra.mxu0 %v3883
    %4213 = vmatprep.subr.bf16.mxu0 %v3888
    %4214 = vmatpush1.bf16.msra.mxu0 %v3887
    %4215 = vmatprep.subr.bf16.mxu0 %v3892
    %4216 = vmatpush1.bf16.msra.mxu0 %v3891
    %4217 = vmatprep.subr.bf16.mxu0 %v3896
    %4218 = vmatpush1.bf16.msra.mxu0 %v3895
    %4219 = vmatprep.subr.bf16.mxu0 %v3900
    %4220 = vmatpush1.bf16.msra.mxu0 %v3899
    %4221 = vmatprep.subr.bf16.mxu0 %v3904
    %4222 = vmatpush1.bf16.msra.mxu0 %v3903
    %4223 = vmatprep.subr.bf16.mxu0 %v3908
    %4224 = vmatpush1.bf16.msra.mxu0 %v3907
    %4225 = vmatprep.subr.bf16.mxu0 %v3912
    %4226 = vmatpush1.bf16.msra.mxu0 %v3911
    %4227 = vmatprep.subr.bf16.mxu0 %v3916
    %4228 = vmatpush1.bf16.msra.mxu0 %v3915
    %4229 = vmatprep.subr.bf16.mxu0 %v3920
    %4230 = vmatpush1.bf16.msra.mxu0 %v3919
    %4231 = vmatprep.subr.bf16.mxu0 %v3924
    %4232 = vmatpush1.bf16.msra.mxu0 %v3923
    %4233 = vmatprep.subr.bf16.mxu0 %v3928
    %4234 = vmatpush1.bf16.msra.mxu0 %v3927
    %4235 = vmatprep.mubr.bf16.mxu0 %v3328
    %4236 = vmatmul.mubr.bf16.gmra.mrb[0].mxu0 %v3327
    %v4237 = vpop.f32.mrb[0].mxu0
    %v4238 = vadd.f32 %v3472, %v4237
    %v4239 = vpop.f32.mrb[0].mxu0
    %v4240 = vadd.f32 %v3476, %v4239
    %v4241 = vpop.f32.mrb[0].mxu0
    %v4242 = vpop.f32.mrb[0].mxu0
    %4243 = vdwg.mxu0
    %4244 = vmatprep.subr.bf16.mxu0 %v3932
    %4245 = vmatpush1.bf16.msra.mxu0 %v3931
    %4246 = vmatprep.subr.bf16.mxu0 %v3936
    %4247 = vmatpush1.bf16.msra.mxu0 %v3935
    %4248 = vmatprep.subr.bf16.mxu0 %v3940
    %4249 = vmatpush1.bf16.msra.mxu0 %v3939
    %4250 = vmatprep.subr.bf16.mxu0 %v3944
    %4251 = vmatpush1.bf16.msra.mxu0 %v3943
    %4252 = vmatprep.subr.bf16.mxu0 %v3948
    %4253 = vmatpush1.bf16.msra.mxu0 %v3947
    %4254 = vmatprep.subr.bf16.mxu0 %v3952
    %4255 = vmatpush1.bf16.msra.mxu0 %v3951
    %4256 = vmatprep.subr.bf16.mxu0 %v3956
    %4257 = vmatpush1.bf16.msra.mxu0 %v3955
    %4258 = vmatprep.subr.bf16.mxu0 %v3960
    %4259 = vmatpush1.bf16.msra.mxu0 %v3959
    %4260 = vmatprep.subr.bf16.mxu0 %v3964
    %4261 = vmatpush1.bf16.msra.mxu0 %v3963
    %4262 = vmatprep.subr.bf16.mxu0 %v3968
    %4263 = vmatpush1.bf16.msra.mxu0 %v3967
    %4264 = vmatprep.subr.bf16.mxu0 %v3972
    %4265 = vmatpush1.bf16.msra.mxu0 %v3971
    %4266 = vmatprep.subr.bf16.mxu0 %v3976
    %4267 = vmatpush1.bf16.msra.mxu0 %v3975
    %4268 = vmatprep.subr.bf16.mxu0 %v3980
    %4269 = vmatpush1.bf16.msra.mxu0 %v3979
    %4270 = vmatprep.subr.bf16.mxu0 %v3984
    %4271 = vmatpush1.bf16.msra.mxu0 %v3983
    %4272 = vmatprep.subr.bf16.mxu0 %v3988
    %4273 = vmatpush1.bf16.msra.mxu0 %v3987
    %4274 = vmatprep.subr.bf16.mxu0 %v3992
    %4275 = vmatpush1.bf16.msra.mxu0 %v3991
    %4276 = vmatprep.mubr.bf16.mxu0 %v3330
    %4277 = vmatmul.mubr.bf16.gmra.mrb[0].mxu0 %v3329
    %v4278 = vpop.f32.mrb[0].mxu0
    %v4279 = vadd.f32 %v4238, %v4278
    %v4280 = vpop.f32.mrb[0].mxu0
    %v4281 = vadd.f32 %v4240, %v4280
    %v4282 = vpop.f32.mrb[0].mxu0
    %v4283 = vpop.f32.mrb[0].mxu0
    %4284 = vdwg.mxu0
    %vm4285 = vcmp.ge.f32.partialorder %v4197, 0.0
    %vm4286 = vcmp.ge.f32.partialorder %v4199, 0.0
    %vm4287 = vcmp.ge.f32.partialorder %v4279, 0.0
    %vm4288 = vcmp.ge.f32.partialorder %v4281, 0.0
    %v4289 = vstv %s241
    %v4290 = vmul.f32 %v4289, %v4197
    %v4291 = vmul.f32 %v4289, %v4199
    %v4292 = vmul.f32 %v4289, %v4279
    %v4293 = vmul.f32 %v4289, %v4281
    %v4294 = vsel %vm4285, %v4197, %v4290
    %v4295 = vsel %vm4286, %v4199, %v4291
    %v4296 = vsel %vm4287, %v4279, %v4292
    %v4297 = vsel %vm4288, %v4281, %v4293
    %v4298 = vpack.c.bf16 %v4294, %v4294
    %v4299 = vpack.c.bf16 %v4295, %v4295
    %v4300 = vpack.c.bf16 %v4296, %v4296
    %v4301 = vpack.c.bf16 %v4297, %v4297
    %v4302 = vld [vmem:[#allocation16] sm:$0xff]
    %v4303 = vld [vmem:[#allocation16 + $0x8] sm:$0xff]
    %v4304 = vld [vmem:[#allocation16 + $0x10] sm:$0xff]
    %v4305 = vld [vmem:[#allocation16 + $0x18] sm:$0xff]
    %v4306 = vld [vmem:[#allocation16 + $0x20] sm:$0xff]
    %v4307 = vld [vmem:[#allocation16 + $0x28] sm:$0xff]
    %v4308 = vld [vmem:[#allocation16 + $0x30] sm:$0xff]
    %v4309 = vld [vmem:[#allocation16 + $0x38] sm:$0xff]
    %v4310 = vld [vmem:[#allocation16 + $0x40] sm:$0xff]
    %v4311 = vld [vmem:[#allocation16 + $0x48] sm:$0xff]
    %v4312 = vld [vmem:[#allocation16 + $0x50] sm:$0xff]
    %v4313 = vld [vmem:[#allocation16 + $0x58] sm:$0xff]
    %v4314 = vld [vmem:[#allocation16 + $0x60] sm:$0xff]
    %v4315 = vld [vmem:[#allocation16 + $0x68] sm:$0xff]
    %v4316 = vld [vmem:[#allocation16 + $0x70] sm:$0xff]
    %v4317 = vld [vmem:[#allocation16 + $0x78] sm:$0xff]
    %v4318 = vld [vmem:[#allocation16 + $0x80] sm:$0xff]
    %v4319 = vld [vmem:[#allocation16 + $0x88] sm:$0xff]
    %v4320 = vld [vmem:[#allocation16 + $0x90] sm:$0xff]
    %v4321 = vld [vmem:[#allocation16 + $0x98] sm:$0xff]
    %v4322 = vld [vmem:[#allocation16 + $0xa0] sm:$0xff]
    %v4323 = vld [vmem:[#allocation16 + $0xa8] sm:$0xff]
    %v4324 = vld [vmem:[#allocation16 + $0xb0] sm:$0xff]
    %v4325 = vld [vmem:[#allocation16 + $0xb8] sm:$0xff]
    %v4326 = vld [vmem:[#allocation16 + $0xc0] sm:$0xff]
    %v4327 = vld [vmem:[#allocation16 + $0xc8] sm:$0xff]
    %v4328 = vld [vmem:[#allocation16 + $0xd0] sm:$0xff]
    %v4329 = vld [vmem:[#allocation16 + $0xd8] sm:$0xff]
    %v4330 = vld [vmem:[#allocation16 + $0xe0] sm:$0xff]
    %v4331 = vld [vmem:[#allocation16 + $0xe8] sm:$0xff]
    %v4332 = vld [vmem:[#allocation16 + $0xf0] sm:$0xff]
    %v4333 = vld [vmem:[#allocation16 + $0xf8] sm:$0xff]
    %v4334 = vld [vmem:[#allocation16 + $0x100] sm:$0xff]
    %v4335 = vld [vmem:[#allocation16 + $0x108] sm:$0xff]
    %v4336 = vld [vmem:[#allocation16 + $0x110] sm:$0xff]
    %v4337 = vld [vmem:[#allocation16 + $0x118] sm:$0xff]
    %v4338 = vld [vmem:[#allocation16 + $0x120] sm:$0xff]
    %v4339 = vld [vmem:[#allocation16 + $0x128] sm:$0xff]
    %v4340 = vld [vmem:[#allocation16 + $0x130] sm:$0xff]
    %v4341 = vld [vmem:[#allocation16 + $0x138] sm:$0xff]
    %v4342 = vld [vmem:[#allocation16 + $0x140] sm:$0xff]
    %v4343 = vld [vmem:[#allocation16 + $0x148] sm:$0xff]
    %v4344 = vld [vmem:[#allocation16 + $0x150] sm:$0xff]
    %v4345 = vld [vmem:[#allocation16 + $0x158] sm:$0xff]
    %v4346 = vld [vmem:[#allocation16 + $0x160] sm:$0xff]
    %v4347 = vld [vmem:[#allocation16 + $0x168] sm:$0xff]
    %v4348 = vld [vmem:[#allocation16 + $0x170] sm:$0xff]
    %v4349 = vld [vmem:[#allocation16 + $0x178] sm:$0xff]
    %v4350 = vld [vmem:[#allocation16 + $0x180] sm:$0xff]
    %v4351 = vld [vmem:[#allocation16 + $0x188] sm:$0xff]
    %v4352 = vld [vmem:[#allocation16 + $0x190] sm:$0xff]
    %v4353 = vld [vmem:[#allocation16 + $0x198] sm:$0xff]
    %v4354 = vld [vmem:[#allocation16 + $0x1a0] sm:$0xff]
    %v4355 = vld [vmem:[#allocation16 + $0x1a8] sm:$0xff]
    %v4356 = vld [vmem:[#allocation16 + $0x1b0] sm:$0xff]
    %v4357 = vld [vmem:[#allocation16 + $0x1b8] sm:$0xff]
    %v4358 = vld [vmem:[#allocation16 + $0x1c0] sm:$0xff]
    %v4359 = vld [vmem:[#allocation16 + $0x1c8] sm:$0xff]
    %v4360 = vld [vmem:[#allocation16 + $0x1d0] sm:$0xff]
    %v4361 = vld [vmem:[#allocation16 + $0x1d8] sm:$0xff]
    %v4362 = vld [vmem:[#allocation16 + $0x1e0] sm:$0xff]
    %v4363 = vld [vmem:[#allocation16 + $0x1e8] sm:$0xff]
    %v4364 = vld [vmem:[#allocation16 + $0x1f0] sm:$0xff]
    %v4365 = vld [vmem:[#allocation16 + $0x1f8] sm:$0xff]
    %v4366 = vld [vmem:[#allocation16 + $0x200] sm:$0xff]
    %v4367 = vld [vmem:[#allocation16 + $0x208] sm:$0xff]
    %v4368 = vld [vmem:[#allocation16 + $0x210] sm:$0xff]
    %v4369 = vld [vmem:[#allocation16 + $0x218] sm:$0xff]
    %v4370 = vld [vmem:[#allocation16 + $0x220] sm:$0xff]
    %v4371 = vld [vmem:[#allocation16 + $0x228] sm:$0xff]
    %v4372 = vld [vmem:[#allocation16 + $0x230] sm:$0xff]
    %v4373 = vld [vmem:[#allocation16 + $0x238] sm:$0xff]
    %v4374 = vld [vmem:[#allocation16 + $0x240] sm:$0xff]
    %v4375 = vld [vmem:[#allocation16 + $0x248] sm:$0xff]
    %v4376 = vld [vmem:[#allocation16 + $0x250] sm:$0xff]
    %v4377 = vld [vmem:[#allocation16 + $0x258] sm:$0xff]
    %v4378 = vld [vmem:[#allocation16 + $0x260] sm:$0xff]
    %v4379 = vld [vmem:[#allocation16 + $0x268] sm:$0xff]
    %v4380 = vld [vmem:[#allocation16 + $0x270] sm:$0xff]
    %v4381 = vld [vmem:[#allocation16 + $0x278] sm:$0xff]
    %v4382 = vld [vmem:[#allocation16 + $0x280] sm:$0xff]
    %v4383 = vld [vmem:[#allocation16 + $0x288] sm:$0xff]
    %v4384 = vld [vmem:[#allocation16 + $0x290] sm:$0xff]
    %v4385 = vld [vmem:[#allocation16 + $0x298] sm:$0xff]
    %v4386 = vld [vmem:[#allocation16 + $0x2a0] sm:$0xff]
    %v4387 = vld [vmem:[#allocation16 + $0x2a8] sm:$0xff]
    %v4388 = vld [vmem:[#allocation16 + $0x2b0] sm:$0xff]
    %v4389 = vld [vmem:[#allocation16 + $0x2b8] sm:$0xff]
    %v4390 = vld [vmem:[#allocation16 + $0x2c0] sm:$0xff]
    %v4391 = vld [vmem:[#allocation16 + $0x2c8] sm:$0xff]
    %v4392 = vld [vmem:[#allocation16 + $0x2d0] sm:$0xff]
    %v4393 = vld [vmem:[#allocation16 + $0x2d8] sm:$0xff]
    %v4394 = vld [vmem:[#allocation16 + $0x2e0] sm:$0xff]
    %v4395 = vld [vmem:[#allocation16 + $0x2e8] sm:$0xff]
    %v4396 = vld [vmem:[#allocation16 + $0x2f0] sm:$0xff]
    %v4397 = vld [vmem:[#allocation16 + $0x2f8] sm:$0xff]
    %v4398 = vld [vmem:[#allocation16 + $0x300] sm:$0xff]
    %v4399 = vld [vmem:[#allocation16 + $0x308] sm:$0xff]
    %v4400 = vld [vmem:[#allocation16 + $0x310] sm:$0xff]
    %v4401 = vld [vmem:[#allocation16 + $0x318] sm:$0xff]
    %v4402 = vld [vmem:[#allocation16 + $0x320] sm:$0xff]
    %v4403 = vld [vmem:[#allocation16 + $0x328] sm:$0xff]
    %v4404 = vld [vmem:[#allocation16 + $0x330] sm:$0xff]
    %v4405 = vld [vmem:[#allocation16 + $0x338] sm:$0xff]
    %v4406 = vld [vmem:[#allocation16 + $0x340] sm:$0xff]
    %v4407 = vld [vmem:[#allocation16 + $0x348] sm:$0xff]
    %v4408 = vld [vmem:[#allocation16 + $0x350] sm:$0xff]
    %v4409 = vld [vmem:[#allocation16 + $0x358] sm:$0xff]
    %v4410 = vld [vmem:[#allocation16 + $0x360] sm:$0xff]
    %v4411 = vld [vmem:[#allocation16 + $0x368] sm:$0xff]
    %v4412 = vld [vmem:[#allocation16 + $0x370] sm:$0xff]
    %v4413 = vld [vmem:[#allocation16 + $0x378] sm:$0xff]
    %v4414 = vld [vmem:[#allocation16 + $0x380] sm:$0xff]
    %v4415 = vld [vmem:[#allocation16 + $0x388] sm:$0xff]
    %v4416 = vld [vmem:[#allocation16 + $0x390] sm:$0xff]
    %v4417 = vld [vmem:[#allocation16 + $0x398] sm:$0xff]
    %v4418 = vld [vmem:[#allocation16 + $0x3a0] sm:$0xff]
    %v4419 = vld [vmem:[#allocation16 + $0x3a8] sm:$0xff]
    %v4420 = vld [vmem:[#allocation16 + $0x3b0] sm:$0xff]
    %v4421 = vld [vmem:[#allocation16 + $0x3b8] sm:$0xff]
    %v4422 = vld [vmem:[#allocation16 + $0x3c0] sm:$0xff]
    %v4423 = vld [vmem:[#allocation16 + $0x3c8] sm:$0xff]
    %v4424 = vld [vmem:[#allocation16 + $0x3d0] sm:$0xff]
    %v4425 = vld [vmem:[#allocation16 + $0x3d8] sm:$0xff]
    %v4426 = vld [vmem:[#allocation16 + $0x3e0] sm:$0xff]
    %v4427 = vld [vmem:[#allocation16 + $0x3e8] sm:$0xff]
    %v4428 = vld [vmem:[#allocation16 + $0x3f0] sm:$0xff]
    %v4429 = vld [vmem:[#allocation16 + $0x3f8] sm:$0xff]
    %v4430 = vld [vmem:[%s15] sm:$0xf]
    %v4432 = vlaneseq
    %v4433 = vshrl.u32 %v4432, 7
    %v4434 = vsub.s32 0, %v4433
    %v4435 = vrot.slane %v4430, %v4434
    %v4436 = vlaneseq
    %v4437 = vshrl.u32 %v4436, 7
    %v4438 = vsub.s32 1, %v4437
    %v4439 = vrot.slane %v4430, %v4438
    %v4440 = vlaneseq
    %v4441 = vshrl.u32 %v4440, 7
    %v4442 = vsub.s32 2, %v4441
    %v4443 = vrot.slane %v4430, %v4442
    %v4444 = vlaneseq
    %v4445 = vshrl.u32 %v4444, 7
    %v4446 = vsub.s32 3, %v4445
    %v4447 = vrot.slane %v4430, %v4446
    %v4580 = vunpack.c.l.b16 %v4302
    %v4581 = vunpack.c.h.b16 %v4302
    %v4582 = vunpack.c.l.b16 %v4303
    %v4583 = vunpack.c.h.b16 %v4303
    %v4584 = vunpack.c.l.b16 %v4304
    %v4585 = vunpack.c.h.b16 %v4304
    %v4586 = vunpack.c.l.b16 %v4305
    %v4587 = vunpack.c.h.b16 %v4305
    %v4588 = vunpack.c.l.b16 %v4306
    %v4589 = vunpack.c.h.b16 %v4306
    %v4590 = vunpack.c.l.b16 %v4307
    %v4591 = vunpack.c.h.b16 %v4307
    %v4592 = vunpack.c.l.b16 %v4308
    %v4593 = vunpack.c.h.b16 %v4308
    %v4594 = vunpack.c.l.b16 %v4309
    %v4595 = vunpack.c.h.b16 %v4309
    %v4596 = vunpack.c.l.b16 %v4310
    %v4597 = vunpack.c.h.b16 %v4310
    %v4598 = vunpack.c.l.b16 %v4311
    %v4599 = vunpack.c.h.b16 %v4311
    %v4600 = vunpack.c.l.b16 %v4312
    %v4601 = vunpack.c.h.b16 %v4312
    %v4602 = vunpack.c.l.b16 %v4313
    %v4603 = vunpack.c.h.b16 %v4313
    %v4604 = vunpack.c.l.b16 %v4314
    %v4605 = vunpack.c.h.b16 %v4314
    %v4606 = vunpack.c.l.b16 %v4315
    %v4607 = vunpack.c.h.b16 %v4315
    %v4608 = vunpack.c.l.b16 %v4316
    %v4609 = vunpack.c.h.b16 %v4316
    %v4610 = vunpack.c.l.b16 %v4317
    %v4611 = vunpack.c.h.b16 %v4317
    %v4612 = vunpack.c.l.b16 %v4318
    %v4613 = vunpack.c.h.b16 %v4318
    %v4614 = vunpack.c.l.b16 %v4319
    %v4615 = vunpack.c.h.b16 %v4319
    %v4616 = vunpack.c.l.b16 %v4320
    %v4617 = vunpack.c.h.b16 %v4320
    %v4618 = vunpack.c.l.b16 %v4321
    %v4619 = vunpack.c.h.b16 %v4321
    %v4620 = vunpack.c.l.b16 %v4322
    %v4621 = vunpack.c.h.b16 %v4322
    %v4622 = vunpack.c.l.b16 %v4323
    %v4623 = vunpack.c.h.b16 %v4323
    %v4624 = vunpack.c.l.b16 %v4324
    %v4625 = vunpack.c.h.b16 %v4324
    %v4626 = vunpack.c.l.b16 %v4325
    %v4627 = vunpack.c.h.b16 %v4325
    %v4628 = vunpack.c.l.b16 %v4326
    %v4629 = vunpack.c.h.b16 %v4326
    %v4630 = vunpack.c.l.b16 %v4327
    %v4631 = vunpack.c.h.b16 %v4327
    %v4632 = vunpack.c.l.b16 %v4328
    %v4633 = vunpack.c.h.b16 %v4328
    %v4634 = vunpack.c.l.b16 %v4329
    %v4635 = vunpack.c.h.b16 %v4329
    %v4636 = vunpack.c.l.b16 %v4330
    %v4637 = vunpack.c.h.b16 %v4330
    %v4638 = vunpack.c.l.b16 %v4331
    %v4639 = vunpack.c.h.b16 %v4331
    %v4640 = vunpack.c.l.b16 %v4332
    %v4641 = vunpack.c.h.b16 %v4332
    %v4642 = vunpack.c.l.b16 %v4333
    %v4643 = vunpack.c.h.b16 %v4333
    %v4644 = vunpack.c.l.b16 %v4334
    %v4645 = vunpack.c.h.b16 %v4334
    %v4646 = vunpack.c.l.b16 %v4335
    %v4647 = vunpack.c.h.b16 %v4335
    %v4648 = vunpack.c.l.b16 %v4336
    %v4649 = vunpack.c.h.b16 %v4336
    %v4650 = vunpack.c.l.b16 %v4337
    %v4651 = vunpack.c.h.b16 %v4337
    %v4652 = vunpack.c.l.b16 %v4338
    %v4653 = vunpack.c.h.b16 %v4338
    %v4654 = vunpack.c.l.b16 %v4339
    %v4655 = vunpack.c.h.b16 %v4339
    %v4656 = vunpack.c.l.b16 %v4340
    %v4657 = vunpack.c.h.b16 %v4340
    %v4658 = vunpack.c.l.b16 %v4341
    %v4659 = vunpack.c.h.b16 %v4341
    %v4660 = vunpack.c.l.b16 %v4342
    %v4661 = vunpack.c.h.b16 %v4342
    %v4662 = vunpack.c.l.b16 %v4343
    %v4663 = vunpack.c.h.b16 %v4343
    %v4664 = vunpack.c.l.b16 %v4344
    %v4665 = vunpack.c.h.b16 %v4344
    %v4666 = vunpack.c.l.b16 %v4345
    %v4667 = vunpack.c.h.b16 %v4345
    %v4668 = vunpack.c.l.b16 %v4346
    %v4669 = vunpack.c.h.b16 %v4346
    %v4670 = vunpack.c.l.b16 %v4347
    %v4671 = vunpack.c.h.b16 %v4347
    %v4672 = vunpack.c.l.b16 %v4348
    %v4673 = vunpack.c.h.b16 %v4348
    %v4674 = vunpack.c.l.b16 %v4349
    %v4675 = vunpack.c.h.b16 %v4349
    %v4676 = vunpack.c.l.b16 %v4350
    %v4677 = vunpack.c.h.b16 %v4350
    %v4678 = vunpack.c.l.b16 %v4351
    %v4679 = vunpack.c.h.b16 %v4351
    %v4680 = vunpack.c.l.b16 %v4352
    %v4681 = vunpack.c.h.b16 %v4352
    %v4682 = vunpack.c.l.b16 %v4353
    %v4683 = vunpack.c.h.b16 %v4353
    %v4684 = vunpack.c.l.b16 %v4354
    %v4685 = vunpack.c.h.b16 %v4354
    %v4686 = vunpack.c.l.b16 %v4355
    %v4687 = vunpack.c.h.b16 %v4355
    %v4688 = vunpack.c.l.b16 %v4356
    %v4689 = vunpack.c.h.b16 %v4356
    %v4690 = vunpack.c.l.b16 %v4357
    %v4691 = vunpack.c.h.b16 %v4357
    %v4692 = vunpack.c.l.b16 %v4358
    %v4693 = vunpack.c.h.b16 %v4358
    %v4694 = vunpack.c.l.b16 %v4359
    %v4695 = vunpack.c.h.b16 %v4359
    %v4696 = vunpack.c.l.b16 %v4360
    %v4697 = vunpack.c.h.b16 %v4360
    %v4698 = vunpack.c.l.b16 %v4361
    %v4699 = vunpack.c.h.b16 %v4361
    %v4700 = vunpack.c.l.b16 %v4362
    %v4701 = vunpack.c.h.b16 %v4362
    %v4702 = vunpack.c.l.b16 %v4363
    %v4703 = vunpack.c.h.b16 %v4363
    %v4704 = vunpack.c.l.b16 %v4364
    %v4705 = vunpack.c.h.b16 %v4364
    %v4706 = vunpack.c.l.b16 %v4365
    %v4707 = vunpack.c.h.b16 %v4365
    %v4708 = vunpack.c.l.b16 %v4366
    %v4709 = vunpack.c.h.b16 %v4366
    %v4710 = vunpack.c.l.b16 %v4367
    %v4711 = vunpack.c.h.b16 %v4367
    %v4712 = vunpack.c.l.b16 %v4368
    %v4713 = vunpack.c.h.b16 %v4368
    %v4714 = vunpack.c.l.b16 %v4369
    %v4715 = vunpack.c.h.b16 %v4369
    %v4716 = vunpack.c.l.b16 %v4370
    %v4717 = vunpack.c.h.b16 %v4370
    %v4718 = vunpack.c.l.b16 %v4371
    %v4719 = vunpack.c.h.b16 %v4371
    %v4720 = vunpack.c.l.b16 %v4372
    %v4721 = vunpack.c.h.b16 %v4372
    %v4722 = vunpack.c.l.b16 %v4373
    %v4723 = vunpack.c.h.b16 %v4373
    %v4724 = vunpack.c.l.b16 %v4374
    %v4725 = vunpack.c.h.b16 %v4374
    %v4726 = vunpack.c.l.b16 %v4375
    %v4727 = vunpack.c.h.b16 %v4375
    %v4728 = vunpack.c.l.b16 %v4376
    %v4729 = vunpack.c.h.b16 %v4376
    %v4730 = vunpack.c.l.b16 %v4377
    %v4731 = vunpack.c.h.b16 %v4377
    %v4732 = vunpack.c.l.b16 %v4378
    %v4733 = vunpack.c.h.b16 %v4378
    %v4734 = vunpack.c.l.b16 %v4379
    %v4735 = vunpack.c.h.b16 %v4379
    %v4736 = vunpack.c.l.b16 %v4380
    %v4737 = vunpack.c.h.b16 %v4380
    %v4738 = vunpack.c.l.b16 %v4381
    %v4739 = vunpack.c.h.b16 %v4381
    %v4740 = vunpack.c.l.b16 %v4382
    %v4741 = vunpack.c.h.b16 %v4382
    %v4742 = vunpack.c.l.b16 %v4383
    %v4743 = vunpack.c.h.b16 %v4383
    %v4744 = vunpack.c.l.b16 %v4384
    %v4745 = vunpack.c.h.b16 %v4384
    %v4746 = vunpack.c.l.b16 %v4385
    %v4747 = vunpack.c.h.b16 %v4385
    %v4748 = vunpack.c.l.b16 %v4386
    %v4749 = vunpack.c.h.b16 %v4386
    %v4750 = vunpack.c.l.b16 %v4387
    %v4751 = vunpack.c.h.b16 %v4387
    %v4752 = vunpack.c.l.b16 %v4388
    %v4753 = vunpack.c.h.b16 %v4388
    %v4754 = vunpack.c.l.b16 %v4389
    %v4755 = vunpack.c.h.b16 %v4389
    %v4756 = vunpack.c.l.b16 %v4390
    %v4757 = vunpack.c.h.b16 %v4390
    %v4758 = vunpack.c.l.b16 %v4391
    %v4759 = vunpack.c.h.b16 %v4391
    %v4760 = vunpack.c.l.b16 %v4392
    %v4761 = vunpack.c.h.b16 %v4392
    %v4762 = vunpack.c.l.b16 %v4393
    %v4763 = vunpack.c.h.b16 %v4393
    %v4764 = vunpack.c.l.b16 %v4394
    %v4765 = vunpack.c.h.b16 %v4394
    %v4766 = vunpack.c.l.b16 %v4395
    %v4767 = vunpack.c.h.b16 %v4395
    %v4768 = vunpack.c.l.b16 %v4396
    %v4769 = vunpack.c.h.b16 %v4396
    %v4770 = vunpack.c.l.b16 %v4397
    %v4771 = vunpack.c.h.b16 %v4397
    %v4772 = vunpack.c.l.b16 %v4398
    %v4773 = vunpack.c.h.b16 %v4398
    %v4774 = vunpack.c.l.b16 %v4399
    %v4775 = vunpack.c.h.b16 %v4399
    %v4776 = vunpack.c.l.b16 %v4400
    %v4777 = vunpack.c.h.b16 %v4400
    %v4778 = vunpack.c.l.b16 %v4401
    %v4779 = vunpack.c.h.b16 %v4401
    %v4780 = vunpack.c.l.b16 %v4402
    %v4781 = vunpack.c.h.b16 %v4402
    %v4782 = vunpack.c.l.b16 %v4403
    %v4783 = vunpack.c.h.b16 %v4403
    %v4784 = vunpack.c.l.b16 %v4404
    %v4785 = vunpack.c.h.b16 %v4404
    %v4786 = vunpack.c.l.b16 %v4405
    %v4787 = vunpack.c.h.b16 %v4405
    %v4788 = vunpack.c.l.b16 %v4406
    %v4789 = vunpack.c.h.b16 %v4406
    %v4790 = vunpack.c.l.b16 %v4407
    %v4791 = vunpack.c.h.b16 %v4407
    %v4792 = vunpack.c.l.b16 %v4408
    %v4793 = vunpack.c.h.b16 %v4408
    %v4794 = vunpack.c.l.b16 %v4409
    %v4795 = vunpack.c.h.b16 %v4409
    %v4796 = vunpack.c.l.b16 %v4410
    %v4797 = vunpack.c.h.b16 %v4410
    %v4798 = vunpack.c.l.b16 %v4411
    %v4799 = vunpack.c.h.b16 %v4411
    %v4800 = vunpack.c.l.b16 %v4412
    %v4801 = vunpack.c.h.b16 %v4412
    %v4802 = vunpack.c.l.b16 %v4413
    %v4803 = vunpack.c.h.b16 %v4413
    %v4804 = vunpack.c.l.b16 %v4414
    %v4805 = vunpack.c.h.b16 %v4414
    %v4806 = vunpack.c.l.b16 %v4415
    %v4807 = vunpack.c.h.b16 %v4415
    %v4808 = vunpack.c.l.b16 %v4416
    %v4809 = vunpack.c.h.b16 %v4416
    %v4810 = vunpack.c.l.b16 %v4417
    %v4811 = vunpack.c.h.b16 %v4417
    %v4812 = vunpack.c.l.b16 %v4418
    %v4813 = vunpack.c.h.b16 %v4418
    %v4814 = vunpack.c.l.b16 %v4419
    %v4815 = vunpack.c.h.b16 %v4419
    %v4816 = vunpack.c.l.b16 %v4420
    %v4817 = vunpack.c.h.b16 %v4420
    %v4818 = vunpack.c.l.b16 %v4421
    %v4819 = vunpack.c.h.b16 %v4421
    %v4820 = vunpack.c.l.b16 %v4422
    %v4821 = vunpack.c.h.b16 %v4422
    %v4822 = vunpack.c.l.b16 %v4423
    %v4823 = vunpack.c.h.b16 %v4423
    %v4824 = vunpack.c.l.b16 %v4424
    %v4825 = vunpack.c.h.b16 %v4424
    %v4826 = vunpack.c.l.b16 %v4425
    %v4827 = vunpack.c.h.b16 %v4425
    %v4828 = vunpack.c.l.b16 %v4426
    %v4829 = vunpack.c.h.b16 %v4426
    %v4830 = vunpack.c.l.b16 %v4427
    %v4831 = vunpack.c.h.b16 %v4427
    %v4832 = vunpack.c.l.b16 %v4428
    %v4833 = vunpack.c.h.b16 %v4428
    %v4834 = vunpack.c.l.b16 %v4429
    %v4835 = vunpack.c.h.b16 %v4429
    %v4836 = vpack.c.b16 %v4584, %v4580
    %v4837 = vpack.c.b16 %v4585, %v4581
    %v4838 = vpack.c.b16 %v4586, %v4582
    %v4839 = vpack.c.b16 %v4587, %v4583
    %v4840 = vpack.c.b16 %v4592, %v4588
    %v4841 = vpack.c.b16 %v4593, %v4589
    %v4842 = vpack.c.b16 %v4594, %v4590
    %v4843 = vpack.c.b16 %v4595, %v4591
    %v4844 = vpack.c.b16 %v4600, %v4596
    %v4845 = vpack.c.b16 %v4601, %v4597
    %v4846 = vpack.c.b16 %v4602, %v4598
    %v4847 = vpack.c.b16 %v4603, %v4599
    %v4848 = vpack.c.b16 %v4608, %v4604
    %v4849 = vpack.c.b16 %v4609, %v4605
    %v4850 = vpack.c.b16 %v4610, %v4606
    %v4851 = vpack.c.b16 %v4611, %v4607
    %v4852 = vpack.c.b16 %v4616, %v4612
    %v4853 = vpack.c.b16 %v4617, %v4613
    %v4854 = vpack.c.b16 %v4618, %v4614
    %v4855 = vpack.c.b16 %v4619, %v4615
    %v4856 = vpack.c.b16 %v4624, %v4620
    %v4857 = vpack.c.b16 %v4625, %v4621
    %v4858 = vpack.c.b16 %v4626, %v4622
    %v4859 = vpack.c.b16 %v4627, %v4623
    %v4860 = vpack.c.b16 %v4632, %v4628
    %v4861 = vpack.c.b16 %v4633, %v4629
    %v4862 = vpack.c.b16 %v4634, %v4630
    %v4863 = vpack.c.b16 %v4635, %v4631
    %v4864 = vpack.c.b16 %v4640, %v4636
    %v4865 = vpack.c.b16 %v4641, %v4637
    %v4866 = vpack.c.b16 %v4642, %v4638
    %v4867 = vpack.c.b16 %v4643, %v4639
    %v4868 = vpack.c.b16 %v4648, %v4644
    %v4869 = vpack.c.b16 %v4649, %v4645
    %v4870 = vpack.c.b16 %v4650, %v4646
    %v4871 = vpack.c.b16 %v4651, %v4647
    %v4872 = vpack.c.b16 %v4656, %v4652
    %v4873 = vpack.c.b16 %v4657, %v4653
    %v4874 = vpack.c.b16 %v4658, %v4654
    %v4875 = vpack.c.b16 %v4659, %v4655
    %v4876 = vpack.c.b16 %v4664, %v4660
    %v4877 = vpack.c.b16 %v4665, %v4661
    %v4878 = vpack.c.b16 %v4666, %v4662
    %v4879 = vpack.c.b16 %v4667, %v4663
    %v4880 = vpack.c.b16 %v4672, %v4668
    %v4881 = vpack.c.b16 %v4673, %v4669
    %v4882 = vpack.c.b16 %v4674, %v4670
    %v4883 = vpack.c.b16 %v4675, %v4671
    %v4884 = vpack.c.b16 %v4680, %v4676
    %v4885 = vpack.c.b16 %v4681, %v4677
    %v4886 = vpack.c.b16 %v4682, %v4678
    %v4887 = vpack.c.b16 %v4683, %v4679
    %v4888 = vpack.c.b16 %v4688, %v4684
    %v4889 = vpack.c.b16 %v4689, %v4685
    %v4890 = vpack.c.b16 %v4690, %v4686
    %v4891 = vpack.c.b16 %v4691, %v4687
    %v4892 = vpack.c.b16 %v4696, %v4692
    %v4893 = vpack.c.b16 %v4697, %v4693
    %v4894 = vpack.c.b16 %v4698, %v4694
    %v4895 = vpack.c.b16 %v4699, %v4695
    %v4896 = vpack.c.b16 %v4704, %v4700
    %v4897 = vpack.c.b16 %v4705, %v4701
    %v4898 = vpack.c.b16 %v4706, %v4702
    %v4899 = vpack.c.b16 %v4707, %v4703
    %v4900 = vpack.c.b16 %v4712, %v4708
    %v4901 = vpack.c.b16 %v4713, %v4709
    %v4902 = vpack.c.b16 %v4714, %v4710
    %v4903 = vpack.c.b16 %v4715, %v4711
    %v4904 = vpack.c.b16 %v4720, %v4716
    %v4905 = vpack.c.b16 %v4721, %v4717
    %v4906 = vpack.c.b16 %v4722, %v4718
    %v4907 = vpack.c.b16 %v4723, %v4719
    %v4908 = vpack.c.b16 %v4728, %v4724
    %v4909 = vpack.c.b16 %v4729, %v4725
    %v4910 = vpack.c.b16 %v4730, %v4726
    %v4911 = vpack.c.b16 %v4731, %v4727
    %v4912 = vpack.c.b16 %v4736, %v4732
    %v4913 = vpack.c.b16 %v4737, %v4733
    %v4914 = vpack.c.b16 %v4738, %v4734
    %v4915 = vpack.c.b16 %v4739, %v4735
    %v4916 = vpack.c.b16 %v4744, %v4740
    %v4917 = vpack.c.b16 %v4745, %v4741
    %v4918 = vpack.c.b16 %v4746, %v4742
    %v4919 = vpack.c.b16 %v4747, %v4743
    %v4920 = vpack.c.b16 %v4752, %v4748
    %v4921 = vpack.c.b16 %v4753, %v4749
    %v4922 = vpack.c.b16 %v4754, %v4750
    %v4923 = vpack.c.b16 %v4755, %v4751
    %v4924 = vpack.c.b16 %v4760, %v4756
    %v4925 = vpack.c.b16 %v4761, %v4757
    %v4926 = vpack.c.b16 %v4762, %v4758
    %v4927 = vpack.c.b16 %v4763, %v4759
    %v4928 = vpack.c.b16 %v4768, %v4764
    %v4929 = vpack.c.b16 %v4769, %v4765
    %v4930 = vpack.c.b16 %v4770, %v4766
    %v4931 = vpack.c.b16 %v4771, %v4767
    %v4932 = vpack.c.b16 %v4776, %v4772
    %v4933 = vpack.c.b16 %v4777, %v4773
    %v4934 = vpack.c.b16 %v4778, %v4774
    %v4935 = vpack.c.b16 %v4779, %v4775
    %v4936 = vpack.c.b16 %v4784, %v4780
    %v4937 = vpack.c.b16 %v4785, %v4781
    %v4938 = vpack.c.b16 %v4786, %v4782
    %v4939 = vpack.c.b16 %v4787, %v4783
    %v4940 = vpack.c.b16 %v4792, %v4788
    %v4941 = vpack.c.b16 %v4793, %v4789
    %v4942 = vpack.c.b16 %v4794, %v4790
    %v4943 = vpack.c.b16 %v4795, %v4791
    %v4944 = vpack.c.b16 %v4800, %v4796
    %v4945 = vpack.c.b16 %v4801, %v4797
    %v4946 = vpack.c.b16 %v4802, %v4798
    %v4947 = vpack.c.b16 %v4803, %v4799
    %v4948 = vpack.c.b16 %v4808, %v4804
    %v4949 = vpack.c.b16 %v4809, %v4805
    %v4950 = vpack.c.b16 %v4810, %v4806
    %v4951 = vpack.c.b16 %v4811, %v4807
    %v4952 = vpack.c.b16 %v4816, %v4812
    %v4953 = vpack.c.b16 %v4817, %v4813
    %v4954 = vpack.c.b16 %v4818, %v4814
    %v4955 = vpack.c.b16 %v4819, %v4815
    %v4956 = vpack.c.b16 %v4824, %v4820
    %v4957 = vpack.c.b16 %v4825, %v4821
    %v4958 = vpack.c.b16 %v4826, %v4822
    %v4959 = vpack.c.b16 %v4827, %v4823
    %v4960 = vpack.c.b16 %v4832, %v4828
    %v4961 = vpack.c.b16 %v4833, %v4829
    %v4962 = vpack.c.b16 %v4834, %v4830
    %v4963 = vpack.c.b16 %v4835, %v4831
    %5092 = vmatprep.subr.bf16.mxu0 %v4837
    %5093 = vmatpush1.bf16.msra.mxu0 %v4836
    %5094 = vmatprep.subr.bf16.mxu0 %v4841
    %5095 = vmatpush1.bf16.msra.mxu0 %v4840
    %5096 = vmatprep.subr.bf16.mxu0 %v4845
    %5097 = vmatpush1.bf16.msra.mxu0 %v4844
    %5098 = vmatprep.subr.bf16.mxu0 %v4849
    %5099 = vmatpush1.bf16.msra.mxu0 %v4848
    %5100 = vmatprep.subr.bf16.mxu0 %v4853
    %5101 = vmatpush1.bf16.msra.mxu0 %v4852
    %5102 = vmatprep.subr.bf16.mxu0 %v4857
    %5103 = vmatpush1.bf16.msra.mxu0 %v4856
    %5104 = vmatprep.subr.bf16.mxu0 %v4861
    %5105 = vmatpush1.bf16.msra.mxu0 %v4860
    %5106 = vmatprep.subr.bf16.mxu0 %v4865
    %5107 = vmatpush1.bf16.msra.mxu0 %v4864
    %5108 = vmatprep.subr.bf16.mxu0 %v4869
    %5109 = vmatpush1.bf16.msra.mxu0 %v4868
    %5110 = vmatprep.subr.bf16.mxu0 %v4873
    %5111 = vmatpush1.bf16.msra.mxu0 %v4872
    %5112 = vmatprep.subr.bf16.mxu0 %v4877
    %5113 = vmatpush1.bf16.msra.mxu0 %v4876
    %5114 = vmatprep.subr.bf16.mxu0 %v4881
    %5115 = vmatpush1.bf16.msra.mxu0 %v4880
    %5116 = vmatprep.subr.bf16.mxu0 %v4885
    %5117 = vmatpush1.bf16.msra.mxu0 %v4884
    %5118 = vmatprep.subr.bf16.mxu0 %v4889
    %5119 = vmatpush1.bf16.msra.mxu0 %v4888
    %5120 = vmatprep.subr.bf16.mxu0 %v4893
    %5121 = vmatpush1.bf16.msra.mxu0 %v4892
    %5122 = vmatprep.subr.bf16.mxu0 %v4897
    %5123 = vmatpush1.bf16.msra.mxu0 %v4896
    %5124 = vmatprep.mubr.bf16.mxu0 %v4299
    %5125 = vmatmul.mubr.bf16.gmra.mrb[0].mxu0 %v4298
    %v5126 = vpop.f32.mrb[0].mxu0
    %v5127 = vadd.f32 %v4435, %v5126
    %v5128 = vpop.f32.mrb[0].mxu0
    %v5129 = vadd.f32 %v4439, %v5128
    %v5130 = vpop.f32.mrb[0].mxu0
    %v5131 = vpop.f32.mrb[0].mxu0
    %5132 = vdwg.mxu0
    %5133 = vmatprep.subr.bf16.mxu0 %v4901
    %5134 = vmatpush1.bf16.msra.mxu0 %v4900
    %5135 = vmatprep.subr.bf16.mxu0 %v4905
    %5136 = vmatpush1.bf16.msra.mxu0 %v4904
    %5137 = vmatprep.subr.bf16.mxu0 %v4909
    %5138 = vmatpush1.bf16.msra.mxu0 %v4908
    %5139 = vmatprep.subr.bf16.mxu0 %v4913
    %5140 = vmatpush1.bf16.msra.mxu0 %v4912
    %5141 = vmatprep.subr.bf16.mxu0 %v4917
    %5142 = vmatpush1.bf16.msra.mxu0 %v4916
    %5143 = vmatprep.subr.bf16.mxu0 %v4921
    %5144 = vmatpush1.bf16.msra.mxu0 %v4920
    %5145 = vmatprep.subr.bf16.mxu0 %v4925
    %5146 = vmatpush1.bf16.msra.mxu0 %v4924
    %5147 = vmatprep.subr.bf16.mxu0 %v4929
    %5148 = vmatpush1.bf16.msra.mxu0 %v4928
    %5149 = vmatprep.subr.bf16.mxu0 %v4933
    %5150 = vmatpush1.bf16.msra.mxu0 %v4932
    %5151 = vmatprep.subr.bf16.mxu0 %v4937
    %5152 = vmatpush1.bf16.msra.mxu0 %v4936
    %5153 = vmatprep.subr.bf16.mxu0 %v4941
    %5154 = vmatpush1.bf16.msra.mxu0 %v4940
    %5155 = vmatprep.subr.bf16.mxu0 %v4945
    %5156 = vmatpush1.bf16.msra.mxu0 %v4944
    %5157 = vmatprep.subr.bf16.mxu0 %v4949
    %5158 = vmatpush1.bf16.msra.mxu0 %v4948
    %5159 = vmatprep.subr.bf16.mxu0 %v4953
    %5160 = vmatpush1.bf16.msra.mxu0 %v4952
    %5161 = vmatprep.subr.bf16.mxu0 %v4957
    %5162 = vmatpush1.bf16.msra.mxu0 %v4956
    %5163 = vmatprep.subr.bf16.mxu0 %v4961
    %5164 = vmatpush1.bf16.msra.mxu0 %v4960
    %5165 = vmatprep.mubr.bf16.mxu0 %v4301
    %5166 = vmatmul.mubr.bf16.gmra.mrb[0].mxu0 %v4300
    %v5167 = vpop.f32.mrb[0].mxu0
    %v5168 = vadd.f32 %v5127, %v5167
    %v5169 = vpop.f32.mrb[0].mxu0
    %v5170 = vadd.f32 %v5129, %v5169
    %v5171 = vpop.f32.mrb[0].mxu0
    %v5172 = vpop.f32.mrb[0].mxu0
    %5173 = vdwg.mxu0
    %5174 = vmatprep.subr.bf16.mxu0 %v4839
    %5175 = vmatpush1.bf16.msra.mxu0 %v4838
    %5176 = vmatprep.subr.bf16.mxu0 %v4843
    %5177 = vmatpush1.bf16.msra.mxu0 %v4842
    %5178 = vmatprep.subr.bf16.mxu0 %v4847
    %5179 = vmatpush1.bf16.msra.mxu0 %v4846
    %5180 = vmatprep.subr.bf16.mxu0 %v4851
    %5181 = vmatpush1.bf16.msra.mxu0 %v4850
    %5182 = vmatprep.subr.bf16.mxu0 %v4855
    %5183 = vmatpush1.bf16.msra.mxu0 %v4854
    %5184 = vmatprep.subr.bf16.mxu0 %v4859
    %5185 = vmatpush1.bf16.msra.mxu0 %v4858
    %5186 = vmatprep.subr.bf16.mxu0 %v4863
    %5187 = vmatpush1.bf16.msra.mxu0 %v4862
    %5188 = vmatprep.subr.bf16.mxu0 %v4867
    %5189 = vmatpush1.bf16.msra.mxu0 %v4866
    %5190 = vmatprep.subr.bf16.mxu0 %v4871
    %5191 = vmatpush1.bf16.msra.mxu0 %v4870
    %5192 = vmatprep.subr.bf16.mxu0 %v4875
    %5193 = vmatpush1.bf16.msra.mxu0 %v4874
    %5194 = vmatprep.subr.bf16.mxu0 %v4879
    %5195 = vmatpush1.bf16.msra.mxu0 %v4878
    %5196 = vmatprep.subr.bf16.mxu0 %v4883
    %5197 = vmatpush1.bf16.msra.mxu0 %v4882
    %5198 = vmatprep.subr.bf16.mxu0 %v4887
    %5199 = vmatpush1.bf16.msra.mxu0 %v4886
    %5200 = vmatprep.subr.bf16.mxu0 %v4891
    %5201 = vmatpush1.bf16.msra.mxu0 %v4890
    %5202 = vmatprep.subr.bf16.mxu0 %v4895
    %5203 = vmatpush1.bf16.msra.mxu0 %v4894
    %5204 = vmatprep.subr.bf16.mxu0 %v4899
    %5205 = vmatpush1.bf16.msra.mxu0 %v4898
    %5206 = vmatprep.mubr.bf16.mxu0 %v4299
    %5207 = vmatmul.mubr.bf16.gmra.mrb[0].mxu0 %v4298
    %v5208 = vpop.f32.mrb[0].mxu0
    %v5209 = vadd.f32 %v4443, %v5208
    %v5210 = vpop.f32.mrb[0].mxu0
    %v5211 = vadd.f32 %v4447, %v5210
    %v5212 = vpop.f32.mrb[0].mxu0
    %v5213 = vpop.f32.mrb[0].mxu0
    %5214 = vdwg.mxu0
    %5215 = vmatprep.subr.bf16.mxu0 %v4903
    %5216 = vmatpush1.bf16.msra.mxu0 %v4902
    %5217 = vmatprep.subr.bf16.mxu0 %v4907
    %5218 = vmatpush1.bf16.msra.mxu0 %v4906
    %5219 = vmatprep.subr.bf16.mxu0 %v4911
    %5220 = vmatpush1.bf16.msra.mxu0 %v4910
    %5221 = vmatprep.subr.bf16.mxu0 %v4915
    %5222 = vmatpush1.bf16.msra.mxu0 %v4914
    %5223 = vmatprep.subr.bf16.mxu0 %v4919
    %5224 = vmatpush1.bf16.msra.mxu0 %v4918
    %5225 = vmatprep.subr.bf16.mxu0 %v4923
    %5226 = vmatpush1.bf16.msra.mxu0 %v4922
    %5227 = vmatprep.subr.bf16.mxu0 %v4927
    %5228 = vmatpush1.bf16.msra.mxu0 %v4926
    %5229 = vmatprep.subr.bf16.mxu0 %v4931
    %5230 = vmatpush1.bf16.msra.mxu0 %v4930
    %5231 = vmatprep.subr.bf16.mxu0 %v4935
    %5232 = vmatpush1.bf16.msra.mxu0 %v4934
    %5233 = vmatprep.subr.bf16.mxu0 %v4939
    %5234 = vmatpush1.bf16.msra.mxu0 %v4938
    %5235 = vmatprep.subr.bf16.mxu0 %v4943
    %5236 = vmatpush1.bf16.msra.mxu0 %v4942
    %5237 = vmatprep.subr.bf16.mxu0 %v4947
    %5238 = vmatpush1.bf16.msra.mxu0 %v4946
    %5239 = vmatprep.subr.bf16.mxu0 %v4951
    %5240 = vmatpush1.bf16.msra.mxu0 %v4950
    %5241 = vmatprep.subr.bf16.mxu0 %v4955
    %5242 = vmatpush1.bf16.msra.mxu0 %v4954
    %5243 = vmatprep.subr.bf16.mxu0 %v4959
    %5244 = vmatpush1.bf16.msra.mxu0 %v4958
    %5245 = vmatprep.subr.bf16.mxu0 %v4963
    %5246 = vmatpush1.bf16.msra.mxu0 %v4962
    %5247 = vmatprep.mubr.bf16.mxu0 %v4301
    %5248 = vmatmul.mubr.bf16.gmra.mrb[0].mxu0 %v4300
    %v5249 = vpop.f32.mrb[0].mxu0
    %v5250 = vadd.f32 %v5209, %v5249
    %v5251 = vpop.f32.mrb[0].mxu0
    %v5252 = vadd.f32 %v5211, %v5251
    %v5253 = vpop.f32.mrb[0].mxu0
    %v5254 = vpop.f32.mrb[0].mxu0
    %5255 = vdwg.mxu0
    %v5256 = vsub.f32 0.0, %v5168
    %v5257 = vsub.f32 0.0, %v5170
    %v5258 = vsub.f32 0.0, %v5250
    %v5259 = vsub.f32 0.0, %v5252
    %v5260 = vmul.f32 %v5256, 1.442695
    %v5261 = vpow.pop %v5260
    %v5262 = vmul.f32 %v5257, 1.442695
    %v5263 = vpow.pop %v5262
    %v5264 = vmul.f32 %v5258, 1.442695
    %v5265 = vpow.pop %v5264
    %v5266 = vmul.f32 %v5259, 1.442695
    %v5267 = vpow.pop %v5266
    %v5268 = vadd.f32 %v5261, 1.0
    %v5269 = vadd.f32 %v5263, 1.0
    %v5270 = vadd.f32 %v5265, 1.0
    %v5271 = vadd.f32 %v5267, 1.0
    %v5272 = vrcp.pop %v5268
    %v5273 = vrcp.pop %v5269
    %v5274 = vrcp.pop %v5270
    %v5275 = vrcp.pop %v5271
    %v5280 = vcombine.low %v5272, %v5273
    %v5281 = vcombine.low %v5274, %v5275
    %v5283 = vunpack.c.l.s4 1983009808
    %v5284 = vunpack.c.0.s8 %v5283
    %v5285 = vlaneseq
    %v5286 = vshrl.u32 %v5285, 7
    %v5287 = vsub.s32 %v5284, %v5286
    %v5288 = vrot.slane %v5280, %v5287
    %v5290 = vunpack.c.l.s4 1983009808
    %v5291 = vunpack.c.0.s8 %v5290
    %v5292 = vlaneseq
    %v5293 = vshrl.u32 %v5292, 7
    %v5294 = vsub.s32 %v5291, %v5293
    %v5295 = vrot.slane %v5281, %v5294
    %v5296 = vcombine.low %v5288, %v5295
    %5298 = vst [vmem:[#allocation22] sm:$0xff] %v5296
    %v5299 = vld [vmem:[#allocation18] sm:$0xff]
    %v5300 = vld [vmem:[#allocation18 + $0x8] sm:$0xff]
    %v5301 = vld [vmem:[#allocation18 + $0x10] sm:$0xff]
    %v5302 = vld [vmem:[#allocation18 + $0x18] sm:$0xff]
    %v5303 = vld [vmem:[#allocation18 + $0x20] sm:$0xff]
    %v5304 = vld [vmem:[#allocation18 + $0x28] sm:$0xff]
    %v5305 = vld [vmem:[#allocation18 + $0x30] sm:$0xff]
    %v5306 = vld [vmem:[#allocation18 + $0x38] sm:$0xff]
    %v5307 = vld [vmem:[#allocation18 + $0x40] sm:$0xff]
    %v5308 = vld [vmem:[#allocation18 + $0x48] sm:$0xff]
    %v5309 = vld [vmem:[#allocation18 + $0x50] sm:$0xff]
    %v5310 = vld [vmem:[#allocation18 + $0x58] sm:$0xff]
    %v5311 = vld [vmem:[#allocation18 + $0x60] sm:$0xff]
    %v5312 = vld [vmem:[#allocation18 + $0x68] sm:$0xff]
    %v5313 = vld [vmem:[#allocation18 + $0x70] sm:$0xff]
    %v5314 = vld [vmem:[#allocation18 + $0x78] sm:$0xff]
    %v5315 = vld [vmem:[#allocation18 + $0x80] sm:$0xff]
    %v5316 = vld [vmem:[#allocation18 + $0x88] sm:$0xff]
    %v5317 = vld [vmem:[#allocation18 + $0x90] sm:$0xff]
    %v5318 = vld [vmem:[#allocation18 + $0x98] sm:$0xff]
    %v5319 = vld [vmem:[#allocation18 + $0xa0] sm:$0xff]
    %v5320 = vld [vmem:[#allocation18 + $0xa8] sm:$0xff]
    %v5321 = vld [vmem:[#allocation18 + $0xb0] sm:$0xff]
    %v5322 = vld [vmem:[#allocation18 + $0xb8] sm:$0xff]
    %v5323 = vld [vmem:[#allocation18 + $0xc0] sm:$0xff]
    %v5324 = vld [vmem:[#allocation18 + $0xc8] sm:$0xff]
    %v5325 = vld [vmem:[#allocation18 + $0xd0] sm:$0xff]
    %v5326 = vld [vmem:[#allocation18 + $0xd8] sm:$0xff]
    %v5327 = vld [vmem:[#allocation18 + $0xe0] sm:$0xff]
    %v5328 = vld [vmem:[#allocation18 + $0xe8] sm:$0xff]
    %v5329 = vld [vmem:[#allocation18 + $0xf0] sm:$0xff]
    %v5330 = vld [vmem:[#allocation18 + $0xf8] sm:$0xff]
    %v5331 = vld [vmem:[#allocation18 + $0x100] sm:$0xff]
    %v5332 = vld [vmem:[#allocation18 + $0x108] sm:$0xff]
    %v5333 = vld [vmem:[#allocation18 + $0x110] sm:$0xff]
    %v5334 = vld [vmem:[#allocation18 + $0x118] sm:$0xff]
    %v5335 = vld [vmem:[#allocation18 + $0x120] sm:$0xff]
    %v5336 = vld [vmem:[#allocation18 + $0x128] sm:$0xff]
    %v5337 = vld [vmem:[#allocation18 + $0x130] sm:$0xff]
    %v5338 = vld [vmem:[#allocation18 + $0x138] sm:$0xff]
    %v5339 = vld [vmem:[#allocation18 + $0x140] sm:$0xff]
    %v5340 = vld [vmem:[#allocation18 + $0x148] sm:$0xff]
    %v5341 = vld [vmem:[#allocation18 + $0x150] sm:$0xff]
    %v5342 = vld [vmem:[#allocation18 + $0x158] sm:$0xff]
    %v5343 = vld [vmem:[#allocation18 + $0x160] sm:$0xff]
    %v5344 = vld [vmem:[#allocation18 + $0x168] sm:$0xff]
    %v5345 = vld [vmem:[#allocation18 + $0x170] sm:$0xff]
    %v5346 = vld [vmem:[#allocation18 + $0x178] sm:$0xff]
    %v5347 = vld [vmem:[#allocation18 + $0x180] sm:$0xff]
    %v5348 = vld [vmem:[#allocation18 + $0x188] sm:$0xff]
    %v5349 = vld [vmem:[#allocation18 + $0x190] sm:$0xff]
    %v5350 = vld [vmem:[#allocation18 + $0x198] sm:$0xff]
    %v5351 = vld [vmem:[#allocation18 + $0x1a0] sm:$0xff]
    %v5352 = vld [vmem:[#allocation18 + $0x1a8] sm:$0xff]
    %v5353 = vld [vmem:[#allocation18 + $0x1b0] sm:$0xff]
    %v5354 = vld [vmem:[#allocation18 + $0x1b8] sm:$0xff]
    %v5355 = vld [vmem:[#allocation18 + $0x1c0] sm:$0xff]
    %v5356 = vld [vmem:[#allocation18 + $0x1c8] sm:$0xff]
    %v5357 = vld [vmem:[#allocation18 + $0x1d0] sm:$0xff]
    %v5358 = vld [vmem:[#allocation18 + $0x1d8] sm:$0xff]
    %v5359 = vld [vmem:[#allocation18 + $0x1e0] sm:$0xff]
    %v5360 = vld [vmem:[#allocation18 + $0x1e8] sm:$0xff]
    %v5361 = vld [vmem:[#allocation18 + $0x1f0] sm:$0xff]
    %v5362 = vld [vmem:[#allocation18 + $0x1f8] sm:$0xff]
    %v5363 = vld [vmem:[#allocation18 + $0x200] sm:$0xff]
    %v5364 = vld [vmem:[#allocation18 + $0x208] sm:$0xff]
    %v5365 = vld [vmem:[#allocation18 + $0x210] sm:$0xff]
    %v5366 = vld [vmem:[#allocation18 + $0x218] sm:$0xff]
    %v5367 = vld [vmem:[#allocation18 + $0x220] sm:$0xff]
    %v5368 = vld [vmem:[#allocation18 + $0x228] sm:$0xff]
    %v5369 = vld [vmem:[#allocation18 + $0x230] sm:$0xff]
    %v5370 = vld [vmem:[#allocation18 + $0x238] sm:$0xff]
    %v5371 = vld [vmem:[#allocation18 + $0x240] sm:$0xff]
    %v5372 = vld [vmem:[#allocation18 + $0x248] sm:$0xff]
    %v5373 = vld [vmem:[#allocation18 + $0x250] sm:$0xff]
    %v5374 = vld [vmem:[#allocation18 + $0x258] sm:$0xff]
    %v5375 = vld [vmem:[#allocation18 + $0x260] sm:$0xff]
    %v5376 = vld [vmem:[#allocation18 + $0x268] sm:$0xff]
    %v5377 = vld [vmem:[#allocation18 + $0x270] sm:$0xff]
    %v5378 = vld [vmem:[#allocation18 + $0x278] sm:$0xff]
    %v5379 = vld [vmem:[#allocation18 + $0x280] sm:$0xff]
    %v5380 = vld [vmem:[#allocation18 + $0x288] sm:$0xff]
    %v5381 = vld [vmem:[#allocation18 + $0x290] sm:$0xff]
    %v5382 = vld [vmem:[#allocation18 + $0x298] sm:$0xff]
    %v5383 = vld [vmem:[#allocation18 + $0x2a0] sm:$0xff]
    %v5384 = vld [vmem:[#allocation18 + $0x2a8] sm:$0xff]
    %v5385 = vld [vmem:[#allocation18 + $0x2b0] sm:$0xff]
    %v5386 = vld [vmem:[#allocation18 + $0x2b8] sm:$0xff]
    %v5387 = vld [vmem:[#allocation18 + $0x2c0] sm:$0xff]
    %v5388 = vld [vmem:[#allocation18 + $0x2c8] sm:$0xff]
    %v5389 = vld [vmem:[#allocation18 + $0x2d0] sm:$0xff]
    %v5390 = vld [vmem:[#allocation18 + $0x2d8] sm:$0xff]
    %v5391 = vld [vmem:[#allocation18 + $0x2e0] sm:$0xff]
    %v5392 = vld [vmem:[#allocation18 + $0x2e8] sm:$0xff]
    %v5393 = vld [vmem:[#allocation18 + $0x2f0] sm:$0xff]
    %v5394 = vld [vmem:[#allocation18 + $0x2f8] sm:$0xff]
    %v5395 = vld [vmem:[#allocation18 + $0x300] sm:$0xff]
    %v5396 = vld [vmem:[#allocation18 + $0x308] sm:$0xff]
    %v5397 = vld [vmem:[#allocation18 + $0x310] sm:$0xff]
    %v5398 = vld [vmem:[#allocation18 + $0x318] sm:$0xff]
    %v5399 = vld [vmem:[#allocation18 + $0x320] sm:$0xff]
    %v5400 = vld [vmem:[#allocation18 + $0x328] sm:$0xff]
    %v5401 = vld [vmem:[#allocation18 + $0x330] sm:$0xff]
    %v5402 = vld [vmem:[#allocation18 + $0x338] sm:$0xff]
    %v5403 = vld [vmem:[#allocation18 + $0x340] sm:$0xff]
    %v5404 = vld [vmem:[#allocation18 + $0x348] sm:$0xff]
    %v5405 = vld [vmem:[#allocation18 + $0x350] sm:$0xff]
    %v5406 = vld [vmem:[#allocation18 + $0x358] sm:$0xff]
    %v5407 = vld [vmem:[#allocation18 + $0x360] sm:$0xff]
    %v5408 = vld [vmem:[#allocation18 + $0x368] sm:$0xff]
    %v5409 = vld [vmem:[#allocation18 + $0x370] sm:$0xff]
    %v5410 = vld [vmem:[#allocation18 + $0x378] sm:$0xff]
    %v5411 = vld [vmem:[#allocation18 + $0x380] sm:$0xff]
    %v5412 = vld [vmem:[#allocation18 + $0x388] sm:$0xff]
    %v5413 = vld [vmem:[#allocation18 + $0x390] sm:$0xff]
    %v5414 = vld [vmem:[#allocation18 + $0x398] sm:$0xff]
    %v5415 = vld [vmem:[#allocation18 + $0x3a0] sm:$0xff]
    %v5416 = vld [vmem:[#allocation18 + $0x3a8] sm:$0xff]
    %v5417 = vld [vmem:[#allocation18 + $0x3b0] sm:$0xff]
    %v5418 = vld [vmem:[#allocation18 + $0x3b8] sm:$0xff]
    %v5419 = vld [vmem:[#allocation18 + $0x3c0] sm:$0xff]
    %v5420 = vld [vmem:[#allocation18 + $0x3c8] sm:$0xff]
    %v5421 = vld [vmem:[#allocation18 + $0x3d0] sm:$0xff]
    %v5422 = vld [vmem:[#allocation18 + $0x3d8] sm:$0xff]
    %v5423 = vld [vmem:[#allocation18 + $0x3e0] sm:$0xff]
    %v5424 = vld [vmem:[#allocation18 + $0x3e8] sm:$0xff]
    %v5425 = vld [vmem:[#allocation18 + $0x3f0] sm:$0xff]
    %v5426 = vld [vmem:[#allocation18 + $0x3f8] sm:$0xff]
    %v5427 = vld [vmem:[%s17] sm:$0xf]
    %v5429 = vlaneseq
    %v5430 = vshrl.u32 %v5429, 7
    %v5431 = vsub.s32 0, %v5430
    %v5432 = vrot.slane %v5427, %v5431
    %v5433 = vlaneseq
    %v5434 = vshrl.u32 %v5433, 7
    %v5435 = vsub.s32 1, %v5434
    %v5436 = vrot.slane %v5427, %v5435
    %v5437 = vlaneseq
    %v5438 = vshrl.u32 %v5437, 7
    %v5439 = vsub.s32 2, %v5438
    %v5440 = vrot.slane %v5427, %v5439
    %v5441 = vlaneseq
    %v5442 = vshrl.u32 %v5441, 7
    %v5443 = vsub.s32 3, %v5442
    %v5444 = vrot.slane %v5427, %v5443
    %v5577 = vunpack.c.l.b16 %v5299
    %v5578 = vunpack.c.h.b16 %v5299
    %v5579 = vunpack.c.l.b16 %v5300
    %v5580 = vunpack.c.h.b16 %v5300
    %v5581 = vunpack.c.l.b16 %v5301
    %v5582 = vunpack.c.h.b16 %v5301
    %v5583 = vunpack.c.l.b16 %v5302
    %v5584 = vunpack.c.h.b16 %v5302
    %v5585 = vunpack.c.l.b16 %v5303
    %v5586 = vunpack.c.h.b16 %v5303
    %v5587 = vunpack.c.l.b16 %v5304
    %v5588 = vunpack.c.h.b16 %v5304
    %v5589 = vunpack.c.l.b16 %v5305
    %v5590 = vunpack.c.h.b16 %v5305
    %v5591 = vunpack.c.l.b16 %v5306
    %v5592 = vunpack.c.h.b16 %v5306
    %v5593 = vunpack.c.l.b16 %v5307
    %v5594 = vunpack.c.h.b16 %v5307
    %v5595 = vunpack.c.l.b16 %v5308
    %v5596 = vunpack.c.h.b16 %v5308
    %v5597 = vunpack.c.l.b16 %v5309
    %v5598 = vunpack.c.h.b16 %v5309
    %v5599 = vunpack.c.l.b16 %v5310
    %v5600 = vunpack.c.h.b16 %v5310
    %v5601 = vunpack.c.l.b16 %v5311
    %v5602 = vunpack.c.h.b16 %v5311
    %v5603 = vunpack.c.l.b16 %v5312
    %v5604 = vunpack.c.h.b16 %v5312
    %v5605 = vunpack.c.l.b16 %v5313
    %v5606 = vunpack.c.h.b16 %v5313
    %v5607 = vunpack.c.l.b16 %v5314
    %v5608 = vunpack.c.h.b16 %v5314
    %v5609 = vunpack.c.l.b16 %v5315
    %v5610 = vunpack.c.h.b16 %v5315
    %v5611 = vunpack.c.l.b16 %v5316
    %v5612 = vunpack.c.h.b16 %v5316
    %v5613 = vunpack.c.l.b16 %v5317
    %v5614 = vunpack.c.h.b16 %v5317
    %v5615 = vunpack.c.l.b16 %v5318
    %v5616 = vunpack.c.h.b16 %v5318
    %v5617 = vunpack.c.l.b16 %v5319
    %v5618 = vunpack.c.h.b16 %v5319
    %v5619 = vunpack.c.l.b16 %v5320
    %v5620 = vunpack.c.h.b16 %v5320
    %v5621 = vunpack.c.l.b16 %v5321
    %v5622 = vunpack.c.h.b16 %v5321
    %v5623 = vunpack.c.l.b16 %v5322
    %v5624 = vunpack.c.h.b16 %v5322
    %v5625 = vunpack.c.l.b16 %v5323
    %v5626 = vunpack.c.h.b16 %v5323
    %v5627 = vunpack.c.l.b16 %v5324
    %v5628 = vunpack.c.h.b16 %v5324
    %v5629 = vunpack.c.l.b16 %v5325
    %v5630 = vunpack.c.h.b16 %v5325
    %v5631 = vunpack.c.l.b16 %v5326
    %v5632 = vunpack.c.h.b16 %v5326
    %v5633 = vunpack.c.l.b16 %v5327
    %v5634 = vunpack.c.h.b16 %v5327
    %v5635 = vunpack.c.l.b16 %v5328
    %v5636 = vunpack.c.h.b16 %v5328
    %v5637 = vunpack.c.l.b16 %v5329
    %v5638 = vunpack.c.h.b16 %v5329
    %v5639 = vunpack.c.l.b16 %v5330
    %v5640 = vunpack.c.h.b16 %v5330
    %v5641 = vunpack.c.l.b16 %v5331
    %v5642 = vunpack.c.h.b16 %v5331
    %v5643 = vunpack.c.l.b16 %v5332
    %v5644 = vunpack.c.h.b16 %v5332
    %v5645 = vunpack.c.l.b16 %v5333
    %v5646 = vunpack.c.h.b16 %v5333
    %v5647 = vunpack.c.l.b16 %v5334
    %v5648 = vunpack.c.h.b16 %v5334
    %v5649 = vunpack.c.l.b16 %v5335
    %v5650 = vunpack.c.h.b16 %v5335
    %v5651 = vunpack.c.l.b16 %v5336
    %v5652 = vunpack.c.h.b16 %v5336
    %v5653 = vunpack.c.l.b16 %v5337
    %v5654 = vunpack.c.h.b16 %v5337
    %v5655 = vunpack.c.l.b16 %v5338
    %v5656 = vunpack.c.h.b16 %v5338
    %v5657 = vunpack.c.l.b16 %v5339
    %v5658 = vunpack.c.h.b16 %v5339
    %v5659 = vunpack.c.l.b16 %v5340
    %v5660 = vunpack.c.h.b16 %v5340
    %v5661 = vunpack.c.l.b16 %v5341
    %v5662 = vunpack.c.h.b16 %v5341
    %v5663 = vunpack.c.l.b16 %v5342
    %v5664 = vunpack.c.h.b16 %v5342
    %v5665 = vunpack.c.l.b16 %v5343
    %v5666 = vunpack.c.h.b16 %v5343
    %v5667 = vunpack.c.l.b16 %v5344
    %v5668 = vunpack.c.h.b16 %v5344
    %v5669 = vunpack.c.l.b16 %v5345
    %v5670 = vunpack.c.h.b16 %v5345
    %v5671 = vunpack.c.l.b16 %v5346
    %v5672 = vunpack.c.h.b16 %v5346
    %v5673 = vunpack.c.l.b16 %v5347
    %v5674 = vunpack.c.h.b16 %v5347
    %v5675 = vunpack.c.l.b16 %v5348
    %v5676 = vunpack.c.h.b16 %v5348
    %v5677 = vunpack.c.l.b16 %v5349
    %v5678 = vunpack.c.h.b16 %v5349
    %v5679 = vunpack.c.l.b16 %v5350
    %v5680 = vunpack.c.h.b16 %v5350
    %v5681 = vunpack.c.l.b16 %v5351
    %v5682 = vunpack.c.h.b16 %v5351
    %v5683 = vunpack.c.l.b16 %v5352
    %v5684 = vunpack.c.h.b16 %v5352
    %v5685 = vunpack.c.l.b16 %v5353
    %v5686 = vunpack.c.h.b16 %v5353
    %v5687 = vunpack.c.l.b16 %v5354
    %v5688 = vunpack.c.h.b16 %v5354
    %v5689 = vunpack.c.l.b16 %v5355
    %v5690 = vunpack.c.h.b16 %v5355
    %v5691 = vunpack.c.l.b16 %v5356
    %v5692 = vunpack.c.h.b16 %v5356
    %v5693 = vunpack.c.l.b16 %v5357
    %v5694 = vunpack.c.h.b16 %v5357
    %v5695 = vunpack.c.l.b16 %v5358
    %v5696 = vunpack.c.h.b16 %v5358
    %v5697 = vunpack.c.l.b16 %v5359
    %v5698 = vunpack.c.h.b16 %v5359
    %v5699 = vunpack.c.l.b16 %v5360
    %v5700 = vunpack.c.h.b16 %v5360
    %v5701 = vunpack.c.l.b16 %v5361
    %v5702 = vunpack.c.h.b16 %v5361
    %v5703 = vunpack.c.l.b16 %v5362
    %v5704 = vunpack.c.h.b16 %v5362
    %v5705 = vunpack.c.l.b16 %v5363
    %v5706 = vunpack.c.h.b16 %v5363
    %v5707 = vunpack.c.l.b16 %v5364
    %v5708 = vunpack.c.h.b16 %v5364
    %v5709 = vunpack.c.l.b16 %v5365
    %v5710 = vunpack.c.h.b16 %v5365
    %v5711 = vunpack.c.l.b16 %v5366
    %v5712 = vunpack.c.h.b16 %v5366
    %v5713 = vunpack.c.l.b16 %v5367
    %v5714 = vunpack.c.h.b16 %v5367
    %v5715 = vunpack.c.l.b16 %v5368
    %v5716 = vunpack.c.h.b16 %v5368
    %v5717 = vunpack.c.l.b16 %v5369
    %v5718 = vunpack.c.h.b16 %v5369
    %v5719 = vunpack.c.l.b16 %v5370
    %v5720 = vunpack.c.h.b16 %v5370
    %v5721 = vunpack.c.l.b16 %v5371
    %v5722 = vunpack.c.h.b16 %v5371
    %v5723 = vunpack.c.l.b16 %v5372
    %v5724 = vunpack.c.h.b16 %v5372
    %v5725 = vunpack.c.l.b16 %v5373
    %v5726 = vunpack.c.h.b16 %v5373
    %v5727 = vunpack.c.l.b16 %v5374
    %v5728 = vunpack.c.h.b16 %v5374
    %v5729 = vunpack.c.l.b16 %v5375
    %v5730 = vunpack.c.h.b16 %v5375
    %v5731 = vunpack.c.l.b16 %v5376
    %v5732 = vunpack.c.h.b16 %v5376
    %v5733 = vunpack.c.l.b16 %v5377
    %v5734 = vunpack.c.h.b16 %v5377
    %v5735 = vunpack.c.l.b16 %v5378
    %v5736 = vunpack.c.h.b16 %v5378
    %v5737 = vunpack.c.l.b16 %v5379
    %v5738 = vunpack.c.h.b16 %v5379
    %v5739 = vunpack.c.l.b16 %v5380
    %v5740 = vunpack.c.h.b16 %v5380
    %v5741 = vunpack.c.l.b16 %v5381
    %v5742 = vunpack.c.h.b16 %v5381
    %v5743 = vunpack.c.l.b16 %v5382
    %v5744 = vunpack.c.h.b16 %v5382
    %v5745 = vunpack.c.l.b16 %v5383
    %v5746 = vunpack.c.h.b16 %v5383
    %v5747 = vunpack.c.l.b16 %v5384
    %v5748 = vunpack.c.h.b16 %v5384
    %v5749 = vunpack.c.l.b16 %v5385
    %v5750 = vunpack.c.h.b16 %v5385
    %v5751 = vunpack.c.l.b16 %v5386
    %v5752 = vunpack.c.h.b16 %v5386
    %v5753 = vunpack.c.l.b16 %v5387
    %v5754 = vunpack.c.h.b16 %v5387
    %v5755 = vunpack.c.l.b16 %v5388
    %v5756 = vunpack.c.h.b16 %v5388
    %v5757 = vunpack.c.l.b16 %v5389
    %v5758 = vunpack.c.h.b16 %v5389
    %v5759 = vunpack.c.l.b16 %v5390
    %v5760 = vunpack.c.h.b16 %v5390
    %v5761 = vunpack.c.l.b16 %v5391
    %v5762 = vunpack.c.h.b16 %v5391
    %v5763 = vunpack.c.l.b16 %v5392
    %v5764 = vunpack.c.h.b16 %v5392
    %v5765 = vunpack.c.l.b16 %v5393
    %v5766 = vunpack.c.h.b16 %v5393
    %v5767 = vunpack.c.l.b16 %v5394
    %v5768 = vunpack.c.h.b16 %v5394
    %v5769 = vunpack.c.l.b16 %v5395
    %v5770 = vunpack.c.h.b16 %v5395
    %v5771 = vunpack.c.l.b16 %v5396
    %v5772 = vunpack.c.h.b16 %v5396
    %v5773 = vunpack.c.l.b16 %v5397
    %v5774 = vunpack.c.h.b16 %v5397
    %v5775 = vunpack.c.l.b16 %v5398
    %v5776 = vunpack.c.h.b16 %v5398
    %v5777 = vunpack.c.l.b16 %v5399
    %v5778 = vunpack.c.h.b16 %v5399
    %v5779 = vunpack.c.l.b16 %v5400
    %v5780 = vunpack.c.h.b16 %v5400
    %v5781 = vunpack.c.l.b16 %v5401
    %v5782 = vunpack.c.h.b16 %v5401
    %v5783 = vunpack.c.l.b16 %v5402
    %v5784 = vunpack.c.h.b16 %v5402
    %v5785 = vunpack.c.l.b16 %v5403
    %v5786 = vunpack.c.h.b16 %v5403
    %v5787 = vunpack.c.l.b16 %v5404
    %v5788 = vunpack.c.h.b16 %v5404
    %v5789 = vunpack.c.l.b16 %v5405
    %v5790 = vunpack.c.h.b16 %v5405
    %v5791 = vunpack.c.l.b16 %v5406
    %v5792 = vunpack.c.h.b16 %v5406
    %v5793 = vunpack.c.l.b16 %v5407
    %v5794 = vunpack.c.h.b16 %v5407
    %v5795 = vunpack.c.l.b16 %v5408
    %v5796 = vunpack.c.h.b16 %v5408
    %v5797 = vunpack.c.l.b16 %v5409
    %v5798 = vunpack.c.h.b16 %v5409
    %v5799 = vunpack.c.l.b16 %v5410
    %v5800 = vunpack.c.h.b16 %v5410
    %v5801 = vunpack.c.l.b16 %v5411
    %v5802 = vunpack.c.h.b16 %v5411
    %v5803 = vunpack.c.l.b16 %v5412
    %v5804 = vunpack.c.h.b16 %v5412
    %v5805 = vunpack.c.l.b16 %v5413
    %v5806 = vunpack.c.h.b16 %v5413
    %v5807 = vunpack.c.l.b16 %v5414
    %v5808 = vunpack.c.h.b16 %v5414
    %v5809 = vunpack.c.l.b16 %v5415
    %v5810 = vunpack.c.h.b16 %v5415
    %v5811 = vunpack.c.l.b16 %v5416
    %v5812 = vunpack.c.h.b16 %v5416
    %v5813 = vunpack.c.l.b16 %v5417
    %v5814 = vunpack.c.h.b16 %v5417
    %v5815 = vunpack.c.l.b16 %v5418
    %v5816 = vunpack.c.h.b16 %v5418
    %v5817 = vunpack.c.l.b16 %v5419
    %v5818 = vunpack.c.h.b16 %v5419
    %v5819 = vunpack.c.l.b16 %v5420
    %v5820 = vunpack.c.h.b16 %v5420
    %v5821 = vunpack.c.l.b16 %v5421
    %v5822 = vunpack.c.h.b16 %v5421
    %v5823 = vunpack.c.l.b16 %v5422
    %v5824 = vunpack.c.h.b16 %v5422
    %v5825 = vunpack.c.l.b16 %v5423
    %v5826 = vunpack.c.h.b16 %v5423
    %v5827 = vunpack.c.l.b16 %v5424
    %v5828 = vunpack.c.h.b16 %v5424
    %v5829 = vunpack.c.l.b16 %v5425
    %v5830 = vunpack.c.h.b16 %v5425
    %v5831 = vunpack.c.l.b16 %v5426
    %v5832 = vunpack.c.h.b16 %v5426
    %v5833 = vpack.c.b16 %v5581, %v5577
    %v5834 = vpack.c.b16 %v5582, %v5578
    %v5835 = vpack.c.b16 %v5583, %v5579
    %v5836 = vpack.c.b16 %v5584, %v5580
    %v5837 = vpack.c.b16 %v5589, %v5585
    %v5838 = vpack.c.b16 %v5590, %v5586
    %v5839 = vpack.c.b16 %v5591, %v5587
    %v5840 = vpack.c.b16 %v5592, %v5588
    %v5841 = vpack.c.b16 %v5597, %v5593
    %v5842 = vpack.c.b16 %v5598, %v5594
    %v5843 = vpack.c.b16 %v5599, %v5595
    %v5844 = vpack.c.b16 %v5600, %v5596
    %v5845 = vpack.c.b16 %v5605, %v5601
    %v5846 = vpack.c.b16 %v5606, %v5602
    %v5847 = vpack.c.b16 %v5607, %v5603
    %v5848 = vpack.c.b16 %v5608, %v5604
    %v5849 = vpack.c.b16 %v5613, %v5609
    %v5850 = vpack.c.b16 %v5614, %v5610
    %v5851 = vpack.c.b16 %v5615, %v5611
    %v5852 = vpack.c.b16 %v5616, %v5612
    %v5853 = vpack.c.b16 %v5621, %v5617
    %v5854 = vpack.c.b16 %v5622, %v5618
    %v5855 = vpack.c.b16 %v5623, %v5619
    %v5856 = vpack.c.b16 %v5624, %v5620
    %v5857 = vpack.c.b16 %v5629, %v5625
    %v5858 = vpack.c.b16 %v5630, %v5626
    %v5859 = vpack.c.b16 %v5631, %v5627
    %v5860 = vpack.c.b16 %v5632, %v5628
    %v5861 = vpack.c.b16 %v5637, %v5633
    %v5862 = vpack.c.b16 %v5638, %v5634
    %v5863 = vpack.c.b16 %v5639, %v5635
    %v5864 = vpack.c.b16 %v5640, %v5636
    %v5865 = vpack.c.b16 %v5645, %v5641
    %v5866 = vpack.c.b16 %v5646, %v5642
    %v5867 = vpack.c.b16 %v5647, %v5643
    %v5868 = vpack.c.b16 %v5648, %v5644
    %v5869 = vpack.c.b16 %v5653, %v5649
    %v5870 = vpack.c.b16 %v5654, %v5650
    %v5871 = vpack.c.b16 %v5655, %v5651
    %v5872 = vpack.c.b16 %v5656, %v5652
    %v5873 = vpack.c.b16 %v5661, %v5657
    %v5874 = vpack.c.b16 %v5662, %v5658
    %v5875 = vpack.c.b16 %v5663, %v5659
    %v5876 = vpack.c.b16 %v5664, %v5660
    %v5877 = vpack.c.b16 %v5669, %v5665
    %v5878 = vpack.c.b16 %v5670, %v5666
    %v5879 = vpack.c.b16 %v5671, %v5667
    %v5880 = vpack.c.b16 %v5672, %v5668
    %v5881 = vpack.c.b16 %v5677, %v5673
    %v5882 = vpack.c.b16 %v5678, %v5674
    %v5883 = vpack.c.b16 %v5679, %v5675
    %v5884 = vpack.c.b16 %v5680, %v5676
    %v5885 = vpack.c.b16 %v5685, %v5681
    %v5886 = vpack.c.b16 %v5686, %v5682
    %v5887 = vpack.c.b16 %v5687, %v5683
    %v5888 = vpack.c.b16 %v5688, %v5684
    %v5889 = vpack.c.b16 %v5693, %v5689
    %v5890 = vpack.c.b16 %v5694, %v5690
    %v5891 = vpack.c.b16 %v5695, %v5691
    %v5892 = vpack.c.b16 %v5696, %v5692
    %v5893 = vpack.c.b16 %v5701, %v5697
    %v5894 = vpack.c.b16 %v5702, %v5698
    %v5895 = vpack.c.b16 %v5703, %v5699
    %v5896 = vpack.c.b16 %v5704, %v5700
    %v5897 = vpack.c.b16 %v5709, %v5705
    %v5898 = vpack.c.b16 %v5710, %v5706
    %v5899 = vpack.c.b16 %v5711, %v5707
    %v5900 = vpack.c.b16 %v5712, %v5708
    %v5901 = vpack.c.b16 %v5717, %v5713
    %v5902 = vpack.c.b16 %v5718, %v5714
    %v5903 = vpack.c.b16 %v5719, %v5715
    %v5904 = vpack.c.b16 %v5720, %v5716
    %v5905 = vpack.c.b16 %v5725, %v5721
    %v5906 = vpack.c.b16 %v5726, %v5722
    %v5907 = vpack.c.b16 %v5727, %v5723
    %v5908 = vpack.c.b16 %v5728, %v5724
    %v5909 = vpack.c.b16 %v5733, %v5729
    %v5910 = vpack.c.b16 %v5734, %v5730
    %v5911 = vpack.c.b16 %v5735, %v5731
    %v5912 = vpack.c.b16 %v5736, %v5732
    %v5913 = vpack.c.b16 %v5741, %v5737
    %v5914 = vpack.c.b16 %v5742, %v5738
    %v5915 = vpack.c.b16 %v5743, %v5739
    %v5916 = vpack.c.b16 %v5744, %v5740
    %v5917 = vpack.c.b16 %v5749, %v5745
    %v5918 = vpack.c.b16 %v5750, %v5746
    %v5919 = vpack.c.b16 %v5751, %v5747
    %v5920 = vpack.c.b16 %v5752, %v5748
    %v5921 = vpack.c.b16 %v5757, %v5753
    %v5922 = vpack.c.b16 %v5758, %v5754
    %v5923 = vpack.c.b16 %v5759, %v5755
    %v5924 = vpack.c.b16 %v5760, %v5756
    %v5925 = vpack.c.b16 %v5765, %v5761
    %v5926 = vpack.c.b16 %v5766, %v5762
    %v5927 = vpack.c.b16 %v5767, %v5763
    %v5928 = vpack.c.b16 %v5768, %v5764
    %v5929 = vpack.c.b16 %v5773, %v5769
    %v5930 = vpack.c.b16 %v5774, %v5770
    %v5931 = vpack.c.b16 %v5775, %v5771
    %v5932 = vpack.c.b16 %v5776, %v5772
    %v5933 = vpack.c.b16 %v5781, %v5777
    %v5934 = vpack.c.b16 %v5782, %v5778
    %v5935 = vpack.c.b16 %v5783, %v5779
    %v5936 = vpack.c.b16 %v5784, %v5780
    %v5937 = vpack.c.b16 %v5789, %v5785
    %v5938 = vpack.c.b16 %v5790, %v5786
    %v5939 = vpack.c.b16 %v5791, %v5787
    %v5940 = vpack.c.b16 %v5792, %v5788
    %v5941 = vpack.c.b16 %v5797, %v5793
    %v5942 = vpack.c.b16 %v5798, %v5794
    %v5943 = vpack.c.b16 %v5799, %v5795
    %v5944 = vpack.c.b16 %v5800, %v5796
    %v5945 = vpack.c.b16 %v5805, %v5801
    %v5946 = vpack.c.b16 %v5806, %v5802
    %v5947 = vpack.c.b16 %v5807, %v5803
    %v5948 = vpack.c.b16 %v5808, %v5804
    %v5949 = vpack.c.b16 %v5813, %v5809
    %v5950 = vpack.c.b16 %v5814, %v5810
    %v5951 = vpack.c.b16 %v5815, %v5811
    %v5952 = vpack.c.b16 %v5816, %v5812
    %v5953 = vpack.c.b16 %v5821, %v5817
    %v5954 = vpack.c.b16 %v5822, %v5818
    %v5955 = vpack.c.b16 %v5823, %v5819
    %v5956 = vpack.c.b16 %v5824, %v5820
    %v5957 = vpack.c.b16 %v5829, %v5825
    %v5958 = vpack.c.b16 %v5830, %v5826
    %v5959 = vpack.c.b16 %v5831, %v5827
    %v5960 = vpack.c.b16 %v5832, %v5828
    %6089 = vmatprep.subr.bf16.mxu0 %v5834
    %6090 = vmatpush1.bf16.msra.mxu0 %v5833
    %6091 = vmatprep.subr.bf16.mxu0 %v5838
    %6092 = vmatpush1.bf16.msra.mxu0 %v5837
    %6093 = vmatprep.subr.bf16.mxu0 %v5842
    %6094 = vmatpush1.bf16.msra.mxu0 %v5841
    %6095 = vmatprep.subr.bf16.mxu0 %v5846
    %6096 = vmatpush1.bf16.msra.mxu0 %v5845
    %6097 = vmatprep.subr.bf16.mxu0 %v5850
    %6098 = vmatpush1.bf16.msra.mxu0 %v5849
    %6099 = vmatprep.subr.bf16.mxu0 %v5854
    %6100 = vmatpush1.bf16.msra.mxu0 %v5853
    %6101 = vmatprep.subr.bf16.mxu0 %v5858
    %6102 = vmatpush1.bf16.msra.mxu0 %v5857
    %6103 = vmatprep.subr.bf16.mxu0 %v5862
    %6104 = vmatpush1.bf16.msra.mxu0 %v5861
    %6105 = vmatprep.subr.bf16.mxu0 %v5866
    %6106 = vmatpush1.bf16.msra.mxu0 %v5865
    %6107 = vmatprep.subr.bf16.mxu0 %v5870
    %6108 = vmatpush1.bf16.msra.mxu0 %v5869
    %6109 = vmatprep.subr.bf16.mxu0 %v5874
    %6110 = vmatpush1.bf16.msra.mxu0 %v5873
    %6111 = vmatprep.subr.bf16.mxu0 %v5878
    %6112 = vmatpush1.bf16.msra.mxu0 %v5877
    %6113 = vmatprep.subr.bf16.mxu0 %v5882
    %6114 = vmatpush1.bf16.msra.mxu0 %v5881
    %6115 = vmatprep.subr.bf16.mxu0 %v5886
    %6116 = vmatpush1.bf16.msra.mxu0 %v5885
    %6117 = vmatprep.subr.bf16.mxu0 %v5890
    %6118 = vmatpush1.bf16.msra.mxu0 %v5889
    %6119 = vmatprep.subr.bf16.mxu0 %v5894
    %6120 = vmatpush1.bf16.msra.mxu0 %v5893
    %6121 = vmatprep.mubr.bf16.mxu0 %v4299
    %6122 = vmatmul.mubr.bf16.gmra.mrb[0].mxu0 %v4298
    %v6123 = vpop.f32.mrb[0].mxu0
    %v6124 = vadd.f32 %v5432, %v6123
    %v6125 = vpop.f32.mrb[0].mxu0
    %v6126 = vadd.f32 %v5436, %v6125
    %v6127 = vpop.f32.mrb[0].mxu0
    %v6128 = vpop.f32.mrb[0].mxu0
    %6129 = vdwg.mxu0
    %6130 = vmatprep.subr.bf16.mxu0 %v5898
    %6131 = vmatpush1.bf16.msra.mxu0 %v5897
    %6132 = vmatprep.subr.bf16.mxu0 %v5902
    %6133 = vmatpush1.bf16.msra.mxu0 %v5901
    %6134 = vmatprep.subr.bf16.mxu0 %v5906
    %6135 = vmatpush1.bf16.msra.mxu0 %v5905
    %6136 = vmatprep.subr.bf16.mxu0 %v5910
    %6137 = vmatpush1.bf16.msra.mxu0 %v5909
    %6138 = vmatprep.subr.bf16.mxu0 %v5914
    %6139 = vmatpush1.bf16.msra.mxu0 %v5913
    %6140 = vmatprep.subr.bf16.mxu0 %v5918
    %6141 = vmatpush1.bf16.msra.mxu0 %v5917
    %6142 = vmatprep.subr.bf16.mxu0 %v5922
    %6143 = vmatpush1.bf16.msra.mxu0 %v5921
    %6144 = vmatprep.subr.bf16.mxu0 %v5926
    %6145 = vmatpush1.bf16.msra.mxu0 %v5925
    %6146 = vmatprep.subr.bf16.mxu0 %v5930
    %6147 = vmatpush1.bf16.msra.mxu0 %v5929
    %6148 = vmatprep.subr.bf16.mxu0 %v5934
    %6149 = vmatpush1.bf16.msra.mxu0 %v5933
    %6150 = vmatprep.subr.bf16.mxu0 %v5938
    %6151 = vmatpush1.bf16.msra.mxu0 %v5937
    %6152 = vmatprep.subr.bf16.mxu0 %v5942
    %6153 = vmatpush1.bf16.msra.mxu0 %v5941
    %6154 = vmatprep.subr.bf16.mxu0 %v5946
    %6155 = vmatpush1.bf16.msra.mxu0 %v5945
    %6156 = vmatprep.subr.bf16.mxu0 %v5950
    %6157 = vmatpush1.bf16.msra.mxu0 %v5949
    %6158 = vmatprep.subr.bf16.mxu0 %v5954
    %6159 = vmatpush1.bf16.msra.mxu0 %v5953
    %6160 = vmatprep.subr.bf16.mxu0 %v5958
    %6161 = vmatpush1.bf16.msra.mxu0 %v5957
    %6162 = vmatprep.mubr.bf16.mxu0 %v4301
    %6163 = vmatmul.mubr.bf16.gmra.mrb[0].mxu0 %v4300
    %v6164 = vpop.f32.mrb[0].mxu0
    %v6165 = vadd.f32 %v6124, %v6164
    %v6166 = vpop.f32.mrb[0].mxu0
    %v6167 = vadd.f32 %v6126, %v6166
    %v6168 = vpop.f32.mrb[0].mxu0
    %v6169 = vpop.f32.mrb[0].mxu0
    %6170 = vdwg.mxu0
    %6171 = vmatprep.subr.bf16.mxu0 %v5836
    %6172 = vmatpush1.bf16.msra.mxu0 %v5835
    %6173 = vmatprep.subr.bf16.mxu0 %v5840
    %6174 = vmatpush1.bf16.msra.mxu0 %v5839
    %6175 = vmatprep.subr.bf16.mxu0 %v5844
    %6176 = vmatpush1.bf16.msra.mxu0 %v5843
    %6177 = vmatprep.subr.bf16.mxu0 %v5848
    %6178 = vmatpush1.bf16.msra.mxu0 %v5847
    %6179 = vmatprep.subr.bf16.mxu0 %v5852
    %6180 = vmatpush1.bf16.msra.mxu0 %v5851
    %6181 = vmatprep.subr.bf16.mxu0 %v5856
    %6182 = vmatpush1.bf16.msra.mxu0 %v5855
    %6183 = vmatprep.subr.bf16.mxu0 %v5860
    %6184 = vmatpush1.bf16.msra.mxu0 %v5859
    %6185 = vmatprep.subr.bf16.mxu0 %v5864
    %6186 = vmatpush1.bf16.msra.mxu0 %v5863
    %6187 = vmatprep.subr.bf16.mxu0 %v5868
    %6188 = vmatpush1.bf16.msra.mxu0 %v5867
    %6189 = vmatprep.subr.bf16.mxu0 %v5872
    %6190 = vmatpush1.bf16.msra.mxu0 %v5871
    %6191 = vmatprep.subr.bf16.mxu0 %v5876
    %6192 = vmatpush1.bf16.msra.mxu0 %v5875
    %6193 = vmatprep.subr.bf16.mxu0 %v5880
    %6194 = vmatpush1.bf16.msra.mxu0 %v5879
    %6195 = vmatprep.subr.bf16.mxu0 %v5884
    %6196 = vmatpush1.bf16.msra.mxu0 %v5883
    %6197 = vmatprep.subr.bf16.mxu0 %v5888
    %6198 = vmatpush1.bf16.msra.mxu0 %v5887
    %6199 = vmatprep.subr.bf16.mxu0 %v5892
    %6200 = vmatpush1.bf16.msra.mxu0 %v5891
    %6201 = vmatprep.subr.bf16.mxu0 %v5896
    %6202 = vmatpush1.bf16.msra.mxu0 %v5895
    %6203 = vmatprep.mubr.bf16.mxu0 %v4299
    %6204 = vmatmul.mubr.bf16.gmra.mrb[0].mxu0 %v4298
    %v6205 = vpop.f32.mrb[0].mxu0
    %v6206 = vadd.f32 %v5440, %v6205
    %v6207 = vpop.f32.mrb[0].mxu0
    %v6208 = vadd.f32 %v5444, %v6207
    %v6209 = vpop.f32.mrb[0].mxu0
    %v6210 = vpop.f32.mrb[0].mxu0
    %6211 = vdwg.mxu0
    %6212 = vmatprep.subr.bf16.mxu0 %v5900
    %6213 = vmatpush1.bf16.msra.mxu0 %v5899
    %6214 = vmatprep.subr.bf16.mxu0 %v5904
    %6215 = vmatpush1.bf16.msra.mxu0 %v5903
    %6216 = vmatprep.subr.bf16.mxu0 %v5908
    %6217 = vmatpush1.bf16.msra.mxu0 %v5907
    %6218 = vmatprep.subr.bf16.mxu0 %v5912
    %6219 = vmatpush1.bf16.msra.mxu0 %v5911
    %6220 = vmatprep.subr.bf16.mxu0 %v5916
    %6221 = vmatpush1.bf16.msra.mxu0 %v5915
    %6222 = vmatprep.subr.bf16.mxu0 %v5920
    %6223 = vmatpush1.bf16.msra.mxu0 %v5919
    %6224 = vmatprep.subr.bf16.mxu0 %v5924
    %6225 = vmatpush1.bf16.msra.mxu0 %v5923
    %6226 = vmatprep.subr.bf16.mxu0 %v5928
    %6227 = vmatpush1.bf16.msra.mxu0 %v5927
    %6228 = vmatprep.subr.bf16.mxu0 %v5932
    %6229 = vmatpush1.bf16.msra.mxu0 %v5931
    %6230 = vmatprep.subr.bf16.mxu0 %v5936
    %6231 = vmatpush1.bf16.msra.mxu0 %v5935
    %6232 = vmatprep.subr.bf16.mxu0 %v5940
    %6233 = vmatpush1.bf16.msra.mxu0 %v5939
    %6234 = vmatprep.subr.bf16.mxu0 %v5944
    %6235 = vmatpush1.bf16.msra.mxu0 %v5943
    %6236 = vmatprep.subr.bf16.mxu0 %v5948
    %6237 = vmatpush1.bf16.msra.mxu0 %v5947
    %6238 = vmatprep.subr.bf16.mxu0 %v5952
    %6239 = vmatpush1.bf16.msra.mxu0 %v5951
    %6240 = vmatprep.subr.bf16.mxu0 %v5956
    %6241 = vmatpush1.bf16.msra.mxu0 %v5955
    %6242 = vmatprep.subr.bf16.mxu0 %v5960
    %6243 = vmatpush1.bf16.msra.mxu0 %v5959
    %6244 = vmatprep.mubr.bf16.mxu0 %v4301
    %6245 = vmatmul.mubr.bf16.gmra.mrb[0].mxu0 %v4300
    %v6246 = vpop.f32.mrb[0].mxu0
    %v6247 = vadd.f32 %v6206, %v6246
    %v6248 = vpop.f32.mrb[0].mxu0
    %v6249 = vadd.f32 %v6208, %v6248
    %v6250 = vpop.f32.mrb[0].mxu0
    %v6251 = vpop.f32.mrb[0].mxu0
    %6252 = vdwg.mxu0
    %v6253 = vsub.f32 0.0, %v6165
    %v6254 = vsub.f32 0.0, %v6167
    %v6255 = vsub.f32 0.0, %v6247
    %v6256 = vsub.f32 0.0, %v6249
    %v6257 = vmul.f32 %v6253, 1.442695
    %v6258 = vpow.pop %v6257
    %v6259 = vmul.f32 %v6254, 1.442695
    %v6260 = vpow.pop %v6259
    %v6261 = vmul.f32 %v6255, 1.442695
    %v6262 = vpow.pop %v6261
    %v6263 = vmul.f32 %v6256, 1.442695
    %v6264 = vpow.pop %v6263
    %v6265 = vadd.f32 %v6258, 1.0
    %v6266 = vadd.f32 %v6260, 1.0
    %v6267 = vadd.f32 %v6262, 1.0
    %v6268 = vadd.f32 %v6264, 1.0
    %v6269 = vrcp.pop %v6265
    %v6270 = vrcp.pop %v6266
    %v6271 = vrcp.pop %v6267
    %v6272 = vrcp.pop %v6268
    %v6277 = vcombine.low %v6269, %v6270
    %v6278 = vcombine.low %v6271, %v6272
    %v6280 = vunpack.c.l.s4 1983009808
    %v6281 = vunpack.c.0.s8 %v6280
    %v6282 = vlaneseq
    %v6283 = vshrl.u32 %v6282, 7
    %v6284 = vsub.s32 %v6281, %v6283
    %v6285 = vrot.slane %v6277, %v6284
    %v6287 = vunpack.c.l.s4 1983009808
    %v6288 = vunpack.c.0.s8 %v6287
    %v6289 = vlaneseq
    %v6290 = vshrl.u32 %v6289, 7
    %v6291 = vsub.s32 %v6288, %v6290
    %v6292 = vrot.slane %v6278, %v6291
    %v6293 = vcombine.low %v6285, %v6292
    %6295 = vst [vmem:[#allocation23] sm:$0xff] %v6293
    %v6296 = vld [vmem:[#allocation15] sm:$0xff]
    %v6297 = vld [vmem:[#allocation15 + $0x8] sm:$0xff]
    %v6298 = vld [vmem:[#allocation15 + $0x10] sm:$0xff]
    %v6299 = vld [vmem:[#allocation15 + $0x18] sm:$0xff]
    %v6300 = vld [vmem:[#allocation15 + $0x20] sm:$0xff]
    %v6301 = vld [vmem:[#allocation15 + $0x28] sm:$0xff]
    %v6302 = vld [vmem:[#allocation15 + $0x30] sm:$0xff]
    %v6303 = vld [vmem:[#allocation15 + $0x38] sm:$0xff]
    %v6304 = vld [vmem:[#allocation15 + $0x40] sm:$0xff]
    %v6305 = vld [vmem:[#allocation15 + $0x48] sm:$0xff]
    %v6306 = vld [vmem:[#allocation15 + $0x50] sm:$0xff]
    %v6307 = vld [vmem:[#allocation15 + $0x58] sm:$0xff]
    %v6308 = vld [vmem:[#allocation15 + $0x60] sm:$0xff]
    %v6309 = vld [vmem:[#allocation15 + $0x68] sm:$0xff]
    %v6310 = vld [vmem:[#allocation15 + $0x70] sm:$0xff]
    %v6311 = vld [vmem:[#allocation15 + $0x78] sm:$0xff]
    %v6312 = vld [vmem:[#allocation15 + $0x80] sm:$0xff]
    %v6313 = vld [vmem:[#allocation15 + $0x88] sm:$0xff]
    %v6314 = vld [vmem:[#allocation15 + $0x90] sm:$0xff]
    %v6315 = vld [vmem:[#allocation15 + $0x98] sm:$0xff]
    %v6316 = vld [vmem:[#allocation15 + $0xa0] sm:$0xff]
    %v6317 = vld [vmem:[#allocation15 + $0xa8] sm:$0xff]
    %v6318 = vld [vmem:[#allocation15 + $0xb0] sm:$0xff]
    %v6319 = vld [vmem:[#allocation15 + $0xb8] sm:$0xff]
    %v6320 = vld [vmem:[#allocation15 + $0xc0] sm:$0xff]
    %v6321 = vld [vmem:[#allocation15 + $0xc8] sm:$0xff]
    %v6322 = vld [vmem:[#allocation15 + $0xd0] sm:$0xff]
    %v6323 = vld [vmem:[#allocation15 + $0xd8] sm:$0xff]
    %v6324 = vld [vmem:[#allocation15 + $0xe0] sm:$0xff]
    %v6325 = vld [vmem:[#allocation15 + $0xe8] sm:$0xff]
    %v6326 = vld [vmem:[#allocation15 + $0xf0] sm:$0xff]
    %v6327 = vld [vmem:[#allocation15 + $0xf8] sm:$0xff]
    %v6328 = vld [vmem:[#allocation15 + $0x100] sm:$0xff]
    %v6329 = vld [vmem:[#allocation15 + $0x108] sm:$0xff]
    %v6330 = vld [vmem:[#allocation15 + $0x110] sm:$0xff]
    %v6331 = vld [vmem:[#allocation15 + $0x118] sm:$0xff]
    %v6332 = vld [vmem:[#allocation15 + $0x120] sm:$0xff]
    %v6333 = vld [vmem:[#allocation15 + $0x128] sm:$0xff]
    %v6334 = vld [vmem:[#allocation15 + $0x130] sm:$0xff]
    %v6335 = vld [vmem:[#allocation15 + $0x138] sm:$0xff]
    %v6336 = vld [vmem:[#allocation15 + $0x140] sm:$0xff]
    %v6337 = vld [vmem:[#allocation15 + $0x148] sm:$0xff]
    %v6338 = vld [vmem:[#allocation15 + $0x150] sm:$0xff]
    %v6339 = vld [vmem:[#allocation15 + $0x158] sm:$0xff]
    %v6340 = vld [vmem:[#allocation15 + $0x160] sm:$0xff]
    %v6341 = vld [vmem:[#allocation15 + $0x168] sm:$0xff]
    %v6342 = vld [vmem:[#allocation15 + $0x170] sm:$0xff]
    %v6343 = vld [vmem:[#allocation15 + $0x178] sm:$0xff]
    %v6344 = vld [vmem:[#allocation15 + $0x180] sm:$0xff]
    %v6345 = vld [vmem:[#allocation15 + $0x188] sm:$0xff]
    %v6346 = vld [vmem:[#allocation15 + $0x190] sm:$0xff]
    %v6347 = vld [vmem:[#allocation15 + $0x198] sm:$0xff]
    %v6348 = vld [vmem:[#allocation15 + $0x1a0] sm:$0xff]
    %v6349 = vld [vmem:[#allocation15 + $0x1a8] sm:$0xff]
    %v6350 = vld [vmem:[#allocation15 + $0x1b0] sm:$0xff]
    %v6351 = vld [vmem:[#allocation15 + $0x1b8] sm:$0xff]
    %v6352 = vld [vmem:[#allocation15 + $0x1c0] sm:$0xff]
    %v6353 = vld [vmem:[#allocation15 + $0x1c8] sm:$0xff]
    %v6354 = vld [vmem:[#allocation15 + $0x1d0] sm:$0xff]
    %v6355 = vld [vmem:[#allocation15 + $0x1d8] sm:$0xff]
    %v6356 = vld [vmem:[#allocation15 + $0x1e0] sm:$0xff]
    %v6357 = vld [vmem:[#allocation15 + $0x1e8] sm:$0xff]
    %v6358 = vld [vmem:[#allocation15 + $0x1f0] sm:$0xff]
    %v6359 = vld [vmem:[#allocation15 + $0x1f8] sm:$0xff]
    %v6360 = vld [vmem:[#allocation15 + $0x200] sm:$0xff]
    %v6361 = vld [vmem:[#allocation15 + $0x208] sm:$0xff]
    %v6362 = vld [vmem:[#allocation15 + $0x210] sm:$0xff]
    %v6363 = vld [vmem:[#allocation15 + $0x218] sm:$0xff]
    %v6364 = vld [vmem:[#allocation15 + $0x220] sm:$0xff]
    %v6365 = vld [vmem:[#allocation15 + $0x228] sm:$0xff]
    %v6366 = vld [vmem:[#allocation15 + $0x230] sm:$0xff]
    %v6367 = vld [vmem:[#allocation15 + $0x238] sm:$0xff]
    %v6368 = vld [vmem:[#allocation15 + $0x240] sm:$0xff]
    %v6369 = vld [vmem:[#allocation15 + $0x248] sm:$0xff]
    %v6370 = vld [vmem:[#allocation15 + $0x250] sm:$0xff]
    %v6371 = vld [vmem:[#allocation15 + $0x258] sm:$0xff]
    %v6372 = vld [vmem:[#allocation15 + $0x260] sm:$0xff]
    %v6373 = vld [vmem:[#allocation15 + $0x268] sm:$0xff]
    %v6374 = vld [vmem:[#allocation15 + $0x270] sm:$0xff]
    %v6375 = vld [vmem:[#allocation15 + $0x278] sm:$0xff]
    %v6376 = vld [vmem:[#allocation15 + $0x280] sm:$0xff]
    %v6377 = vld [vmem:[#allocation15 + $0x288] sm:$0xff]
    %v6378 = vld [vmem:[#allocation15 + $0x290] sm:$0xff]
    %v6379 = vld [vmem:[#allocation15 + $0x298] sm:$0xff]
    %v6380 = vld [vmem:[#allocation15 + $0x2a0] sm:$0xff]
    %v6381 = vld [vmem:[#allocation15 + $0x2a8] sm:$0xff]
    %v6382 = vld [vmem:[#allocation15 + $0x2b0] sm:$0xff]
    %v6383 = vld [vmem:[#allocation15 + $0x2b8] sm:$0xff]
    %v6384 = vld [vmem:[#allocation15 + $0x2c0] sm:$0xff]
    %v6385 = vld [vmem:[#allocation15 + $0x2c8] sm:$0xff]
    %v6386 = vld [vmem:[#allocation15 + $0x2d0] sm:$0xff]
    %v6387 = vld [vmem:[#allocation15 + $0x2d8] sm:$0xff]
    %v6388 = vld [vmem:[#allocation15 + $0x2e0] sm:$0xff]
    %v6389 = vld [vmem:[#allocation15 + $0x2e8] sm:$0xff]
    %v6390 = vld [vmem:[#allocation15 + $0x2f0] sm:$0xff]
    %v6391 = vld [vmem:[#allocation15 + $0x2f8] sm:$0xff]
    %v6392 = vld [vmem:[#allocation15 + $0x300] sm:$0xff]
    %v6393 = vld [vmem:[#allocation15 + $0x308] sm:$0xff]
    %v6394 = vld [vmem:[#allocation15 + $0x310] sm:$0xff]
    %v6395 = vld [vmem:[#allocation15 + $0x318] sm:$0xff]
    %v6396 = vld [vmem:[#allocation15 + $0x320] sm:$0xff]
    %v6397 = vld [vmem:[#allocation15 + $0x328] sm:$0xff]
    %v6398 = vld [vmem:[#allocation15 + $0x330] sm:$0xff]
    %v6399 = vld [vmem:[#allocation15 + $0x338] sm:$0xff]
    %v6400 = vld [vmem:[#allocation15 + $0x340] sm:$0xff]
    %v6401 = vld [vmem:[#allocation15 + $0x348] sm:$0xff]
    %v6402 = vld [vmem:[#allocation15 + $0x350] sm:$0xff]
    %v6403 = vld [vmem:[#allocation15 + $0x358] sm:$0xff]
    %v6404 = vld [vmem:[#allocation15 + $0x360] sm:$0xff]
    %v6405 = vld [vmem:[#allocation15 + $0x368] sm:$0xff]
    %v6406 = vld [vmem:[#allocation15 + $0x370] sm:$0xff]
    %v6407 = vld [vmem:[#allocation15 + $0x378] sm:$0xff]
    %v6408 = vld [vmem:[#allocation15 + $0x380] sm:$0xff]
    %v6409 = vld [vmem:[#allocation15 + $0x388] sm:$0xff]
    %v6410 = vld [vmem:[#allocation15 + $0x390] sm:$0xff]
    %v6411 = vld [vmem:[#allocation15 + $0x398] sm:$0xff]
    %v6412 = vld [vmem:[#allocation15 + $0x3a0] sm:$0xff]
    %v6413 = vld [vmem:[#allocation15 + $0x3a8] sm:$0xff]
    %v6414 = vld [vmem:[#allocation15 + $0x3b0] sm:$0xff]
    %v6415 = vld [vmem:[#allocation15 + $0x3b8] sm:$0xff]
    %v6416 = vld [vmem:[#allocation15 + $0x3c0] sm:$0xff]
    %v6417 = vld [vmem:[#allocation15 + $0x3c8] sm:$0xff]
    %v6418 = vld [vmem:[#allocation15 + $0x3d0] sm:$0xff]
    %v6419 = vld [vmem:[#allocation15 + $0x3d8] sm:$0xff]
    %v6420 = vld [vmem:[#allocation15 + $0x3e0] sm:$0xff]
    %v6421 = vld [vmem:[#allocation15 + $0x3e8] sm:$0xff]
    %v6422 = vld [vmem:[#allocation15 + $0x3f0] sm:$0xff]
    %v6423 = vld [vmem:[#allocation15 + $0x3f8] sm:$0xff]
    %v6424 = vld [vmem:[%s13] sm:$0xf]
    %v6426 = vlaneseq
    %v6427 = vshrl.u32 %v6426, 7
    %v6428 = vsub.s32 0, %v6427
    %v6429 = vrot.slane %v6424, %v6428
    %v6430 = vlaneseq
    %v6431 = vshrl.u32 %v6430, 7
    %v6432 = vsub.s32 1, %v6431
    %v6433 = vrot.slane %v6424, %v6432
    %v6434 = vlaneseq
    %v6435 = vshrl.u32 %v6434, 7
    %v6436 = vsub.s32 2, %v6435
    %v6437 = vrot.slane %v6424, %v6436
    %v6438 = vlaneseq
    %v6439 = vshrl.u32 %v6438, 7
    %v6440 = vsub.s32 3, %v6439
    %v6441 = vrot.slane %v6424, %v6440
    %v6574 = vunpack.c.l.b16 %v6296
    %v6575 = vunpack.c.h.b16 %v6296
    %v6576 = vunpack.c.l.b16 %v6297
    %v6577 = vunpack.c.h.b16 %v6297
    %v6578 = vunpack.c.l.b16 %v6298
    %v6579 = vunpack.c.h.b16 %v6298
    %v6580 = vunpack.c.l.b16 %v6299
    %v6581 = vunpack.c.h.b16 %v6299
    %v6582 = vunpack.c.l.b16 %v6300
    %v6583 = vunpack.c.h.b16 %v6300
    %v6584 = vunpack.c.l.b16 %v6301
    %v6585 = vunpack.c.h.b16 %v6301
    %v6586 = vunpack.c.l.b16 %v6302
    %v6587 = vunpack.c.h.b16 %v6302
    %v6588 = vunpack.c.l.b16 %v6303
    %v6589 = vunpack.c.h.b16 %v6303
    %v6590 = vunpack.c.l.b16 %v6304
    %v6591 = vunpack.c.h.b16 %v6304
    %v6592 = vunpack.c.l.b16 %v6305
    %v6593 = vunpack.c.h.b16 %v6305
    %v6594 = vunpack.c.l.b16 %v6306
    %v6595 = vunpack.c.h.b16 %v6306
    %v6596 = vunpack.c.l.b16 %v6307
    %v6597 = vunpack.c.h.b16 %v6307
    %v6598 = vunpack.c.l.b16 %v6308
    %v6599 = vunpack.c.h.b16 %v6308
    %v6600 = vunpack.c.l.b16 %v6309
    %v6601 = vunpack.c.h.b16 %v6309
    %v6602 = vunpack.c.l.b16 %v6310
    %v6603 = vunpack.c.h.b16 %v6310
    %v6604 = vunpack.c.l.b16 %v6311
    %v6605 = vunpack.c.h.b16 %v6311
    %v6606 = vunpack.c.l.b16 %v6312
    %v6607 = vunpack.c.h.b16 %v6312
    %v6608 = vunpack.c.l.b16 %v6313
    %v6609 = vunpack.c.h.b16 %v6313
    %v6610 = vunpack.c.l.b16 %v6314
    %v6611 = vunpack.c.h.b16 %v6314
    %v6612 = vunpack.c.l.b16 %v6315
    %v6613 = vunpack.c.h.b16 %v6315
    %v6614 = vunpack.c.l.b16 %v6316
    %v6615 = vunpack.c.h.b16 %v6316
    %v6616 = vunpack.c.l.b16 %v6317
    %v6617 = vunpack.c.h.b16 %v6317
    %v6618 = vunpack.c.l.b16 %v6318
    %v6619 = vunpack.c.h.b16 %v6318
    %v6620 = vunpack.c.l.b16 %v6319
    %v6621 = vunpack.c.h.b16 %v6319
    %v6622 = vunpack.c.l.b16 %v6320
    %v6623 = vunpack.c.h.b16 %v6320
    %v6624 = vunpack.c.l.b16 %v6321
    %v6625 = vunpack.c.h.b16 %v6321
    %v6626 = vunpack.c.l.b16 %v6322
    %v6627 = vunpack.c.h.b16 %v6322
    %v6628 = vunpack.c.l.b16 %v6323
    %v6629 = vunpack.c.h.b16 %v6323
    %v6630 = vunpack.c.l.b16 %v6324
    %v6631 = vunpack.c.h.b16 %v6324
    %v6632 = vunpack.c.l.b16 %v6325
    %v6633 = vunpack.c.h.b16 %v6325
    %v6634 = vunpack.c.l.b16 %v6326
    %v6635 = vunpack.c.h.b16 %v6326
    %v6636 = vunpack.c.l.b16 %v6327
    %v6637 = vunpack.c.h.b16 %v6327
    %v6638 = vunpack.c.l.b16 %v6328
    %v6639 = vunpack.c.h.b16 %v6328
    %v6640 = vunpack.c.l.b16 %v6329
    %v6641 = vunpack.c.h.b16 %v6329
    %v6642 = vunpack.c.l.b16 %v6330
    %v6643 = vunpack.c.h.b16 %v6330
    %v6644 = vunpack.c.l.b16 %v6331
    %v6645 = vunpack.c.h.b16 %v6331
    %v6646 = vunpack.c.l.b16 %v6332
    %v6647 = vunpack.c.h.b16 %v6332
    %v6648 = vunpack.c.l.b16 %v6333
    %v6649 = vunpack.c.h.b16 %v6333
    %v6650 = vunpack.c.l.b16 %v6334
    %v6651 = vunpack.c.h.b16 %v6334
    %v6652 = vunpack.c.l.b16 %v6335
    %v6653 = vunpack.c.h.b16 %v6335
    %v6654 = vunpack.c.l.b16 %v6336
    %v6655 = vunpack.c.h.b16 %v6336
    %v6656 = vunpack.c.l.b16 %v6337
    %v6657 = vunpack.c.h.b16 %v6337
    %v6658 = vunpack.c.l.b16 %v6338
    %v6659 = vunpack.c.h.b16 %v6338
    %v6660 = vunpack.c.l.b16 %v6339
    %v6661 = vunpack.c.h.b16 %v6339
    %v6662 = vunpack.c.l.b16 %v6340
    %v6663 = vunpack.c.h.b16 %v6340
    %v6664 = vunpack.c.l.b16 %v6341
    %v6665 = vunpack.c.h.b16 %v6341
    %v6666 = vunpack.c.l.b16 %v6342
    %v6667 = vunpack.c.h.b16 %v6342
    %v6668 = vunpack.c.l.b16 %v6343
    %v6669 = vunpack.c.h.b16 %v6343
    %v6670 = vunpack.c.l.b16 %v6344
    %v6671 = vunpack.c.h.b16 %v6344
    %v6672 = vunpack.c.l.b16 %v6345
    %v6673 = vunpack.c.h.b16 %v6345
    %v6674 = vunpack.c.l.b16 %v6346
    %v6675 = vunpack.c.h.b16 %v6346
    %v6676 = vunpack.c.l.b16 %v6347
    %v6677 = vunpack.c.h.b16 %v6347
    %v6678 = vunpack.c.l.b16 %v6348
    %v6679 = vunpack.c.h.b16 %v6348
    %v6680 = vunpack.c.l.b16 %v6349
    %v6681 = vunpack.c.h.b16 %v6349
    %v6682 = vunpack.c.l.b16 %v6350
    %v6683 = vunpack.c.h.b16 %v6350
    %v6684 = vunpack.c.l.b16 %v6351
    %v6685 = vunpack.c.h.b16 %v6351
    %v6686 = vunpack.c.l.b16 %v6352
    %v6687 = vunpack.c.h.b16 %v6352
    %v6688 = vunpack.c.l.b16 %v6353
    %v6689 = vunpack.c.h.b16 %v6353
    %v6690 = vunpack.c.l.b16 %v6354
    %v6691 = vunpack.c.h.b16 %v6354
    %v6692 = vunpack.c.l.b16 %v6355
    %v6693 = vunpack.c.h.b16 %v6355
    %v6694 = vunpack.c.l.b16 %v6356
    %v6695 = vunpack.c.h.b16 %v6356
    %v6696 = vunpack.c.l.b16 %v6357
    %v6697 = vunpack.c.h.b16 %v6357
    %v6698 = vunpack.c.l.b16 %v6358
    %v6699 = vunpack.c.h.b16 %v6358
    %v6700 = vunpack.c.l.b16 %v6359
    %v6701 = vunpack.c.h.b16 %v6359
    %v6702 = vunpack.c.l.b16 %v6360
    %v6703 = vunpack.c.h.b16 %v6360
    %v6704 = vunpack.c.l.b16 %v6361
    %v6705 = vunpack.c.h.b16 %v6361
    %v6706 = vunpack.c.l.b16 %v6362
    %v6707 = vunpack.c.h.b16 %v6362
    %v6708 = vunpack.c.l.b16 %v6363
    %v6709 = vunpack.c.h.b16 %v6363
    %v6710 = vunpack.c.l.b16 %v6364
    %v6711 = vunpack.c.h.b16 %v6364
    %v6712 = vunpack.c.l.b16 %v6365
    %v6713 = vunpack.c.h.b16 %v6365
    %v6714 = vunpack.c.l.b16 %v6366
    %v6715 = vunpack.c.h.b16 %v6366
    %v6716 = vunpack.c.l.b16 %v6367
    %v6717 = vunpack.c.h.b16 %v6367
    %v6718 = vunpack.c.l.b16 %v6368
    %v6719 = vunpack.c.h.b16 %v6368
    %v6720 = vunpack.c.l.b16 %v6369
    %v6721 = vunpack.c.h.b16 %v6369
    %v6722 = vunpack.c.l.b16 %v6370
    %v6723 = vunpack.c.h.b16 %v6370
    %v6724 = vunpack.c.l.b16 %v6371
    %v6725 = vunpack.c.h.b16 %v6371
    %v6726 = vunpack.c.l.b16 %v6372
    %v6727 = vunpack.c.h.b16 %v6372
    %v6728 = vunpack.c.l.b16 %v6373
    %v6729 = vunpack.c.h.b16 %v6373
    %v6730 = vunpack.c.l.b16 %v6374
    %v6731 = vunpack.c.h.b16 %v6374
    %v6732 = vunpack.c.l.b16 %v6375
    %v6733 = vunpack.c.h.b16 %v6375
    %v6734 = vunpack.c.l.b16 %v6376
    %v6735 = vunpack.c.h.b16 %v6376
    %v6736 = vunpack.c.l.b16 %v6377
    %v6737 = vunpack.c.h.b16 %v6377
    %v6738 = vunpack.c.l.b16 %v6378
    %v6739 = vunpack.c.h.b16 %v6378
    %v6740 = vunpack.c.l.b16 %v6379
    %v6741 = vunpack.c.h.b16 %v6379
    %v6742 = vunpack.c.l.b16 %v6380
    %v6743 = vunpack.c.h.b16 %v6380
    %v6744 = vunpack.c.l.b16 %v6381
    %v6745 = vunpack.c.h.b16 %v6381
    %v6746 = vunpack.c.l.b16 %v6382
    %v6747 = vunpack.c.h.b16 %v6382
    %v6748 = vunpack.c.l.b16 %v6383
    %v6749 = vunpack.c.h.b16 %v6383
    %v6750 = vunpack.c.l.b16 %v6384
    %v6751 = vunpack.c.h.b16 %v6384
    %v6752 = vunpack.c.l.b16 %v6385
    %v6753 = vunpack.c.h.b16 %v6385
    %v6754 = vunpack.c.l.b16 %v6386
    %v6755 = vunpack.c.h.b16 %v6386
    %v6756 = vunpack.c.l.b16 %v6387
    %v6757 = vunpack.c.h.b16 %v6387
    %v6758 = vunpack.c.l.b16 %v6388
    %v6759 = vunpack.c.h.b16 %v6388
    %v6760 = vunpack.c.l.b16 %v6389
    %v6761 = vunpack.c.h.b16 %v6389
    %v6762 = vunpack.c.l.b16 %v6390
    %v6763 = vunpack.c.h.b16 %v6390
    %v6764 = vunpack.c.l.b16 %v6391
    %v6765 = vunpack.c.h.b16 %v6391
    %v6766 = vunpack.c.l.b16 %v6392
    %v6767 = vunpack.c.h.b16 %v6392
    %v6768 = vunpack.c.l.b16 %v6393
    %v6769 = vunpack.c.h.b16 %v6393
    %v6770 = vunpack.c.l.b16 %v6394
    %v6771 = vunpack.c.h.b16 %v6394
    %v6772 = vunpack.c.l.b16 %v6395
    %v6773 = vunpack.c.h.b16 %v6395
    %v6774 = vunpack.c.l.b16 %v6396
    %v6775 = vunpack.c.h.b16 %v6396
    %v6776 = vunpack.c.l.b16 %v6397
    %v6777 = vunpack.c.h.b16 %v6397
    %v6778 = vunpack.c.l.b16 %v6398
    %v6779 = vunpack.c.h.b16 %v6398
    %v6780 = vunpack.c.l.b16 %v6399
    %v6781 = vunpack.c.h.b16 %v6399
    %v6782 = vunpack.c.l.b16 %v6400
    %v6783 = vunpack.c.h.b16 %v6400
    %v6784 = vunpack.c.l.b16 %v6401
    %v6785 = vunpack.c.h.b16 %v6401
    %v6786 = vunpack.c.l.b16 %v6402
    %v6787 = vunpack.c.h.b16 %v6402
    %v6788 = vunpack.c.l.b16 %v6403
    %v6789 = vunpack.c.h.b16 %v6403
    %v6790 = vunpack.c.l.b16 %v6404
    %v6791 = vunpack.c.h.b16 %v6404
    %v6792 = vunpack.c.l.b16 %v6405
    %v6793 = vunpack.c.h.b16 %v6405
    %v6794 = vunpack.c.l.b16 %v6406
    %v6795 = vunpack.c.h.b16 %v6406
    %v6796 = vunpack.c.l.b16 %v6407
    %v6797 = vunpack.c.h.b16 %v6407
    %v6798 = vunpack.c.l.b16 %v6408
    %v6799 = vunpack.c.h.b16 %v6408
    %v6800 = vunpack.c.l.b16 %v6409
    %v6801 = vunpack.c.h.b16 %v6409
    %v6802 = vunpack.c.l.b16 %v6410
    %v6803 = vunpack.c.h.b16 %v6410
    %v6804 = vunpack.c.l.b16 %v6411
    %v6805 = vunpack.c.h.b16 %v6411
    %v6806 = vunpack.c.l.b16 %v6412
    %v6807 = vunpack.c.h.b16 %v6412
    %v6808 = vunpack.c.l.b16 %v6413
    %v6809 = vunpack.c.h.b16 %v6413
    %v6810 = vunpack.c.l.b16 %v6414
    %v6811 = vunpack.c.h.b16 %v6414
    %v6812 = vunpack.c.l.b16 %v6415
    %v6813 = vunpack.c.h.b16 %v6415
    %v6814 = vunpack.c.l.b16 %v6416
    %v6815 = vunpack.c.h.b16 %v6416
    %v6816 = vunpack.c.l.b16 %v6417
    %v6817 = vunpack.c.h.b16 %v6417
    %v6818 = vunpack.c.l.b16 %v6418
    %v6819 = vunpack.c.h.b16 %v6418
    %v6820 = vunpack.c.l.b16 %v6419
    %v6821 = vunpack.c.h.b16 %v6419
    %v6822 = vunpack.c.l.b16 %v6420
    %v6823 = vunpack.c.h.b16 %v6420
    %v6824 = vunpack.c.l.b16 %v6421
    %v6825 = vunpack.c.h.b16 %v6421
    %v6826 = vunpack.c.l.b16 %v6422
    %v6827 = vunpack.c.h.b16 %v6422
    %v6828 = vunpack.c.l.b16 %v6423
    %v6829 = vunpack.c.h.b16 %v6423
    %v6830 = vpack.c.b16 %v6578, %v6574
    %v6831 = vpack.c.b16 %v6579, %v6575
    %v6832 = vpack.c.b16 %v6580, %v6576
    %v6833 = vpack.c.b16 %v6581, %v6577
    %v6834 = vpack.c.b16 %v6586, %v6582
    %v6835 = vpack.c.b16 %v6587, %v6583
    %v6836 = vpack.c.b16 %v6588, %v6584
    %v6837 = vpack.c.b16 %v6589, %v6585
    %v6838 = vpack.c.b16 %v6594, %v6590
    %v6839 = vpack.c.b16 %v6595, %v6591
    %v6840 = vpack.c.b16 %v6596, %v6592
    %v6841 = vpack.c.b16 %v6597, %v6593
    %v6842 = vpack.c.b16 %v6602, %v6598
    %v6843 = vpack.c.b16 %v6603, %v6599
    %v6844 = vpack.c.b16 %v6604, %v6600
    %v6845 = vpack.c.b16 %v6605, %v6601
    %v6846 = vpack.c.b16 %v6610, %v6606
    %v6847 = vpack.c.b16 %v6611, %v6607
    %v6848 = vpack.c.b16 %v6612, %v6608
    %v6849 = vpack.c.b16 %v6613, %v6609
    %v6850 = vpack.c.b16 %v6618, %v6614
    %v6851 = vpack.c.b16 %v6619, %v6615
    %v6852 = vpack.c.b16 %v6620, %v6616
    %v6853 = vpack.c.b16 %v6621, %v6617
    %v6854 = vpack.c.b16 %v6626, %v6622
    %v6855 = vpack.c.b16 %v6627, %v6623
    %v6856 = vpack.c.b16 %v6628, %v6624
    %v6857 = vpack.c.b16 %v6629, %v6625
    %v6858 = vpack.c.b16 %v6634, %v6630
    %v6859 = vpack.c.b16 %v6635, %v6631
    %v6860 = vpack.c.b16 %v6636, %v6632
    %v6861 = vpack.c.b16 %v6637, %v6633
    %v6862 = vpack.c.b16 %v6642, %v6638
    %v6863 = vpack.c.b16 %v6643, %v6639
    %v6864 = vpack.c.b16 %v6644, %v6640
    %v6865 = vpack.c.b16 %v6645, %v6641
    %v6866 = vpack.c.b16 %v6650, %v6646
    %v6867 = vpack.c.b16 %v6651, %v6647
    %v6868 = vpack.c.b16 %v6652, %v6648
    %v6869 = vpack.c.b16 %v6653, %v6649
    %v6870 = vpack.c.b16 %v6658, %v6654
    %v6871 = vpack.c.b16 %v6659, %v6655
    %v6872 = vpack.c.b16 %v6660, %v6656
    %v6873 = vpack.c.b16 %v6661, %v6657
    %v6874 = vpack.c.b16 %v6666, %v6662
    %v6875 = vpack.c.b16 %v6667, %v6663
    %v6876 = vpack.c.b16 %v6668, %v6664
    %v6877 = vpack.c.b16 %v6669, %v6665
    %v6878 = vpack.c.b16 %v6674, %v6670
    %v6879 = vpack.c.b16 %v6675, %v6671
    %v6880 = vpack.c.b16 %v6676, %v6672
    %v6881 = vpack.c.b16 %v6677, %v6673
    %v6882 = vpack.c.b16 %v6682, %v6678
    %v6883 = vpack.c.b16 %v6683, %v6679
    %v6884 = vpack.c.b16 %v6684, %v6680
    %v6885 = vpack.c.b16 %v6685, %v6681
    %v6886 = vpack.c.b16 %v6690, %v6686
    %v6887 = vpack.c.b16 %v6691, %v6687
    %v6888 = vpack.c.b16 %v6692, %v6688
    %v6889 = vpack.c.b16 %v6693, %v6689
    %v6890 = vpack.c.b16 %v6698, %v6694
    %v6891 = vpack.c.b16 %v6699, %v6695
    %v6892 = vpack.c.b16 %v6700, %v6696
    %v6893 = vpack.c.b16 %v6701, %v6697
    %v6894 = vpack.c.b16 %v6706, %v6702
    %v6895 = vpack.c.b16 %v6707, %v6703
    %v6896 = vpack.c.b16 %v6708, %v6704
    %v6897 = vpack.c.b16 %v6709, %v6705
    %v6898 = vpack.c.b16 %v6714, %v6710
    %v6899 = vpack.c.b16 %v6715, %v6711
    %v6900 = vpack.c.b16 %v6716, %v6712
    %v6901 = vpack.c.b16 %v6717, %v6713
    %v6902 = vpack.c.b16 %v6722, %v6718
    %v6903 = vpack.c.b16 %v6723, %v6719
    %v6904 = vpack.c.b16 %v6724, %v6720
    %v6905 = vpack.c.b16 %v6725, %v6721
    %v6906 = vpack.c.b16 %v6730, %v6726
    %v6907 = vpack.c.b16 %v6731, %v6727
    %v6908 = vpack.c.b16 %v6732, %v6728
    %v6909 = vpack.c.b16 %v6733, %v6729
    %v6910 = vpack.c.b16 %v6738, %v6734
    %v6911 = vpack.c.b16 %v6739, %v6735
    %v6912 = vpack.c.b16 %v6740, %v6736
    %v6913 = vpack.c.b16 %v6741, %v6737
    %v6914 = vpack.c.b16 %v6746, %v6742
    %v6915 = vpack.c.b16 %v6747, %v6743
    %v6916 = vpack.c.b16 %v6748, %v6744
    %v6917 = vpack.c.b16 %v6749, %v6745
    %v6918 = vpack.c.b16 %v6754, %v6750
    %v6919 = vpack.c.b16 %v6755, %v6751
    %v6920 = vpack.c.b16 %v6756, %v6752
    %v6921 = vpack.c.b16 %v6757, %v6753
    %v6922 = vpack.c.b16 %v6762, %v6758
    %v6923 = vpack.c.b16 %v6763, %v6759
    %v6924 = vpack.c.b16 %v6764, %v6760
    %v6925 = vpack.c.b16 %v6765, %v6761
    %v6926 = vpack.c.b16 %v6770, %v6766
    %v6927 = vpack.c.b16 %v6771, %v6767
    %v6928 = vpack.c.b16 %v6772, %v6768
    %v6929 = vpack.c.b16 %v6773, %v6769
    %v6930 = vpack.c.b16 %v6778, %v6774
    %v6931 = vpack.c.b16 %v6779, %v6775
    %v6932 = vpack.c.b16 %v6780, %v6776
    %v6933 = vpack.c.b16 %v6781, %v6777
    %v6934 = vpack.c.b16 %v6786, %v6782
    %v6935 = vpack.c.b16 %v6787, %v6783
    %v6936 = vpack.c.b16 %v6788, %v6784
    %v6937 = vpack.c.b16 %v6789, %v6785
    %v6938 = vpack.c.b16 %v6794, %v6790
    %v6939 = vpack.c.b16 %v6795, %v6791
    %v6940 = vpack.c.b16 %v6796, %v6792
    %v6941 = vpack.c.b16 %v6797, %v6793
    %v6942 = vpack.c.b16 %v6802, %v6798
    %v6943 = vpack.c.b16 %v6803, %v6799
    %v6944 = vpack.c.b16 %v6804, %v6800
    %v6945 = vpack.c.b16 %v6805, %v6801
    %v6946 = vpack.c.b16 %v6810, %v6806
    %v6947 = vpack.c.b16 %v6811, %v6807
    %v6948 = vpack.c.b16 %v6812, %v6808
    %v6949 = vpack.c.b16 %v6813, %v6809
    %v6950 = vpack.c.b16 %v6818, %v6814
    %v6951 = vpack.c.b16 %v6819, %v6815
    %v6952 = vpack.c.b16 %v6820, %v6816
    %v6953 = vpack.c.b16 %v6821, %v6817
    %v6954 = vpack.c.b16 %v6826, %v6822
    %v6955 = vpack.c.b16 %v6827, %v6823
    %v6956 = vpack.c.b16 %v6828, %v6824
    %v6957 = vpack.c.b16 %v6829, %v6825
    %7086 = vmatprep.subr.bf16.mxu0 %v6831
    %7087 = vmatpush1.bf16.msra.mxu0 %v6830
    %7088 = vmatprep.subr.bf16.mxu0 %v6835
    %7089 = vmatpush1.bf16.msra.mxu0 %v6834
    %7090 = vmatprep.subr.bf16.mxu0 %v6839
    %7091 = vmatpush1.bf16.msra.mxu0 %v6838
    %7092 = vmatprep.subr.bf16.mxu0 %v6843
    %7093 = vmatpush1.bf16.msra.mxu0 %v6842
    %7094 = vmatprep.subr.bf16.mxu0 %v6847
    %7095 = vmatpush1.bf16.msra.mxu0 %v6846
    %7096 = vmatprep.subr.bf16.mxu0 %v6851
    %7097 = vmatpush1.bf16.msra.mxu0 %v6850
    %7098 = vmatprep.subr.bf16.mxu0 %v6855
    %7099 = vmatpush1.bf16.msra.mxu0 %v6854
    %7100 = vmatprep.subr.bf16.mxu0 %v6859
    %7101 = vmatpush1.bf16.msra.mxu0 %v6858
    %7102 = vmatprep.subr.bf16.mxu0 %v6863
    %7103 = vmatpush1.bf16.msra.mxu0 %v6862
    %7104 = vmatprep.subr.bf16.mxu0 %v6867
    %7105 = vmatpush1.bf16.msra.mxu0 %v6866
    %7106 = vmatprep.subr.bf16.mxu0 %v6871
    %7107 = vmatpush1.bf16.msra.mxu0 %v6870
    %7108 = vmatprep.subr.bf16.mxu0 %v6875
    %7109 = vmatpush1.bf16.msra.mxu0 %v6874
    %7110 = vmatprep.subr.bf16.mxu0 %v6879
    %7111 = vmatpush1.bf16.msra.mxu0 %v6878
    %7112 = vmatprep.subr.bf16.mxu0 %v6883
    %7113 = vmatpush1.bf16.msra.mxu0 %v6882
    %7114 = vmatprep.subr.bf16.mxu0 %v6887
    %7115 = vmatpush1.bf16.msra.mxu0 %v6886
    %7116 = vmatprep.subr.bf16.mxu0 %v6891
    %7117 = vmatpush1.bf16.msra.mxu0 %v6890
    %7118 = vmatprep.mubr.bf16.mxu0 %v3328
    %7119 = vmatmul.mubr.bf16.gmra.mrb[0].mxu0 %v3327
    %v7120 = vpop.f32.mrb[0].mxu0
    %v7121 = vadd.f32 %v6429, %v7120
    %v7122 = vpop.f32.mrb[0].mxu0
    %v7123 = vadd.f32 %v6433, %v7122
    %v7124 = vpop.f32.mrb[0].mxu0
    %v7125 = vpop.f32.mrb[0].mxu0
    %7126 = vdwg.mxu0
    %7127 = vmatprep.subr.bf16.mxu0 %v6895
    %7128 = vmatpush1.bf16.msra.mxu0 %v6894
    %7129 = vmatprep.subr.bf16.mxu0 %v6899
    %7130 = vmatpush1.bf16.msra.mxu0 %v6898
    %7131 = vmatprep.subr.bf16.mxu0 %v6903
    %7132 = vmatpush1.bf16.msra.mxu0 %v6902
    %7133 = vmatprep.subr.bf16.mxu0 %v6907
    %7134 = vmatpush1.bf16.msra.mxu0 %v6906
    %7135 = vmatprep.subr.bf16.mxu0 %v6911
    %7136 = vmatpush1.bf16.msra.mxu0 %v6910
    %7137 = vmatprep.subr.bf16.mxu0 %v6915
    %7138 = vmatpush1.bf16.msra.mxu0 %v6914
    %7139 = vmatprep.subr.bf16.mxu0 %v6919
    %7140 = vmatpush1.bf16.msra.mxu0 %v6918
    %7141 = vmatprep.subr.bf16.mxu0 %v6923
    %7142 = vmatpush1.bf16.msra.mxu0 %v6922
    %7143 = vmatprep.subr.bf16.mxu0 %v6927
    %7144 = vmatpush1.bf16.msra.mxu0 %v6926
    %7145 = vmatprep.subr.bf16.mxu0 %v6931
    %7146 = vmatpush1.bf16.msra.mxu0 %v6930
    %7147 = vmatprep.subr.bf16.mxu0 %v6935
    %7148 = vmatpush1.bf16.msra.mxu0 %v6934
    %7149 = vmatprep.subr.bf16.mxu0 %v6939
    %7150 = vmatpush1.bf16.msra.mxu0 %v6938
    %7151 = vmatprep.subr.bf16.mxu0 %v6943
    %7152 = vmatpush1.bf16.msra.mxu0 %v6942
    %7153 = vmatprep.subr.bf16.mxu0 %v6947
    %7154 = vmatpush1.bf16.msra.mxu0 %v6946
    %7155 = vmatprep.subr.bf16.mxu0 %v6951
    %7156 = vmatpush1.bf16.msra.mxu0 %v6950
    %7157 = vmatprep.subr.bf16.mxu0 %v6955
    %7158 = vmatpush1.bf16.msra.mxu0 %v6954
    %7159 = vmatprep.mubr.bf16.mxu0 %v3330
    %7160 = vmatmul.mubr.bf16.gmra.mrb[0].mxu0 %v3329
    %v7161 = vpop.f32.mrb[0].mxu0
    %v7162 = vadd.f32 %v7121, %v7161
    %v7163 = vpop.f32.mrb[0].mxu0
    %v7164 = vadd.f32 %v7123, %v7163
    %v7165 = vpop.f32.mrb[0].mxu0
    %v7166 = vpop.f32.mrb[0].mxu0
    %7167 = vdwg.mxu0
    %7168 = vmatprep.subr.bf16.mxu0 %v6833
    %7169 = vmatpush1.bf16.msra.mxu0 %v6832
    %7170 = vmatprep.subr.bf16.mxu0 %v6837
    %7171 = vmatpush1.bf16.msra.mxu0 %v6836
    %7172 = vmatprep.subr.bf16.mxu0 %v6841
    %7173 = vmatpush1.bf16.msra.mxu0 %v6840
    %7174 = vmatprep.subr.bf16.mxu0 %v6845
    %7175 = vmatpush1.bf16.msra.mxu0 %v6844
    %7176 = vmatprep.subr.bf16.mxu0 %v6849
    %7177 = vmatpush1.bf16.msra.mxu0 %v6848
    %7178 = vmatprep.subr.bf16.mxu0 %v6853
    %7179 = vmatpush1.bf16.msra.mxu0 %v6852
    %7180 = vmatprep.subr.bf16.mxu0 %v6857
    %7181 = vmatpush1.bf16.msra.mxu0 %v6856
    %7182 = vmatprep.subr.bf16.mxu0 %v6861
    %7183 = vmatpush1.bf16.msra.mxu0 %v6860
    %7184 = vmatprep.subr.bf16.mxu0 %v6865
    %7185 = vmatpush1.bf16.msra.mxu0 %v6864
    %7186 = vmatprep.subr.bf16.mxu0 %v6869
    %7187 = vmatpush1.bf16.msra.mxu0 %v6868
    %7188 = vmatprep.subr.bf16.mxu0 %v6873
    %7189 = vmatpush1.bf16.msra.mxu0 %v6872
    %7190 = vmatprep.subr.bf16.mxu0 %v6877
    %7191 = vmatpush1.bf16.msra.mxu0 %v6876
    %7192 = vmatprep.subr.bf16.mxu0 %v6881
    %7193 = vmatpush1.bf16.msra.mxu0 %v6880
    %7194 = vmatprep.subr.bf16.mxu0 %v6885
    %7195 = vmatpush1.bf16.msra.mxu0 %v6884
    %7196 = vmatprep.subr.bf16.mxu0 %v6889
    %7197 = vmatpush1.bf16.msra.mxu0 %v6888
    %7198 = vmatprep.subr.bf16.mxu0 %v6893
    %7199 = vmatpush1.bf16.msra.mxu0 %v6892
    %7200 = vmatprep.mubr.bf16.mxu0 %v3328
    %7201 = vmatmul.mubr.bf16.gmra.mrb[0].mxu0 %v3327
    %v7202 = vpop.f32.mrb[0].mxu0
    %v7203 = vadd.f32 %v6437, %v7202
    %v7204 = vpop.f32.mrb[0].mxu0
    %v7205 = vadd.f32 %v6441, %v7204
    %v7206 = vpop.f32.mrb[0].mxu0
    %v7207 = vpop.f32.mrb[0].mxu0
    %7208 = vdwg.mxu0
    %7209 = vmatprep.subr.bf16.mxu0 %v6897
    %7210 = vmatpush1.bf16.msra.mxu0 %v6896
    %7211 = vmatprep.subr.bf16.mxu0 %v6901
    %7212 = vmatpush1.bf16.msra.mxu0 %v6900
    %7213 = vmatprep.subr.bf16.mxu0 %v6905
    %7214 = vmatpush1.bf16.msra.mxu0 %v6904
    %7215 = vmatprep.subr.bf16.mxu0 %v6909
    %7216 = vmatpush1.bf16.msra.mxu0 %v6908
    %7217 = vmatprep.subr.bf16.mxu0 %v6913
    %7218 = vmatpush1.bf16.msra.mxu0 %v6912
    %7219 = vmatprep.subr.bf16.mxu0 %v6917
    %7220 = vmatpush1.bf16.msra.mxu0 %v6916
    %7221 = vmatprep.subr.bf16.mxu0 %v6921
    %7222 = vmatpush1.bf16.msra.mxu0 %v6920
    %7223 = vmatprep.subr.bf16.mxu0 %v6925
    %7224 = vmatpush1.bf16.msra.mxu0 %v6924
    %7225 = vmatprep.subr.bf16.mxu0 %v6929
    %7226 = vmatpush1.bf16.msra.mxu0 %v6928
    %7227 = vmatprep.subr.bf16.mxu0 %v6933
    %7228 = vmatpush1.bf16.msra.mxu0 %v6932
    %7229 = vmatprep.subr.bf16.mxu0 %v6937
    %7230 = vmatpush1.bf16.msra.mxu0 %v6936
    %7231 = vmatprep.subr.bf16.mxu0 %v6941
    %7232 = vmatpush1.bf16.msra.mxu0 %v6940
    %7233 = vmatprep.subr.bf16.mxu0 %v6945
    %7234 = vmatpush1.bf16.msra.mxu0 %v6944
    %7235 = vmatprep.subr.bf16.mxu0 %v6949
    %7236 = vmatpush1.bf16.msra.mxu0 %v6948
    %7237 = vmatprep.subr.bf16.mxu0 %v6953
    %7238 = vmatpush1.bf16.msra.mxu0 %v6952
    %7239 = vmatprep.subr.bf16.mxu0 %v6957
    %7240 = vmatpush1.bf16.msra.mxu0 %v6956
    %7241 = vmatprep.mubr.bf16.mxu0 %v3330
    %7242 = vmatmul.mubr.bf16.gmra.mrb[0].mxu0 %v3329
    %v7243 = vpop.f32.mrb[0].mxu0
    %v7244 = vadd.f32 %v7203, %v7243
    %v7245 = vpop.f32.mrb[0].mxu0
    %v7246 = vadd.f32 %v7205, %v7245
    %v7247 = vpop.f32.mrb[0].mxu0
    %v7248 = vpop.f32.mrb[0].mxu0
    %7249 = vdwg.mxu0
    %vm7250 = vcmp.ge.f32.partialorder %v7162, 0.0
    %vm7251 = vcmp.ge.f32.partialorder %v7164, 0.0
    %vm7252 = vcmp.ge.f32.partialorder %v7244, 0.0
    %vm7253 = vcmp.ge.f32.partialorder %v7246, 0.0
    %v7254 = vstv %s242
    %v7255 = vmul.f32 %v7254, %v7162
    %v7256 = vmul.f32 %v7254, %v7164
    %v7257 = vmul.f32 %v7254, %v7244
    %v7258 = vmul.f32 %v7254, %v7246
    %v7259 = vsel %vm7250, %v7162, %v7255
    %v7260 = vsel %vm7251, %v7164, %v7256
    %v7261 = vsel %vm7252, %v7244, %v7257
    %v7262 = vsel %vm7253, %v7246, %v7258
    %v7263 = vpack.c.bf16 %v7259, %v7259
    %v7264 = vpack.c.bf16 %v7260, %v7260
    %v7265 = vpack.c.bf16 %v7261, %v7261
    %v7266 = vpack.c.bf16 %v7262, %v7262
    %v7267 = vld [vmem:[#allocation19] sm:$0xff]
    %v7268 = vld [vmem:[#allocation19 + $0x8] sm:$0xff]
    %v7269 = vld [vmem:[#allocation19 + $0x10] sm:$0xff]
    %v7270 = vld [vmem:[#allocation19 + $0x18] sm:$0xff]
    %v7271 = vld [vmem:[#allocation19 + $0x20] sm:$0xff]
    %v7272 = vld [vmem:[#allocation19 + $0x28] sm:$0xff]
    %v7273 = vld [vmem:[#allocation19 + $0x30] sm:$0xff]
    %v7274 = vld [vmem:[#allocation19 + $0x38] sm:$0xff]
    %v7275 = vld [vmem:[#allocation19 + $0x40] sm:$0xff]
    %v7276 = vld [vmem:[#allocation19 + $0x48] sm:$0xff]
    %v7277 = vld [vmem:[#allocation19 + $0x50] sm:$0xff]
    %v7278 = vld [vmem:[#allocation19 + $0x58] sm:$0xff]
    %v7279 = vld [vmem:[#allocation19 + $0x60] sm:$0xff]
    %v7280 = vld [vmem:[#allocation19 + $0x68] sm:$0xff]
    %v7281 = vld [vmem:[#allocation19 + $0x70] sm:$0xff]
    %v7282 = vld [vmem:[#allocation19 + $0x78] sm:$0xff]
    %v7283 = vld [vmem:[#allocation19 + $0x80] sm:$0xff]
    %v7284 = vld [vmem:[#allocation19 + $0x88] sm:$0xff]
    %v7285 = vld [vmem:[#allocation19 + $0x90] sm:$0xff]
    %v7286 = vld [vmem:[#allocation19 + $0x98] sm:$0xff]
    %v7287 = vld [vmem:[#allocation19 + $0xa0] sm:$0xff]
    %v7288 = vld [vmem:[#allocation19 + $0xa8] sm:$0xff]
    %v7289 = vld [vmem:[#allocation19 + $0xb0] sm:$0xff]
    %v7290 = vld [vmem:[#allocation19 + $0xb8] sm:$0xff]
    %v7291 = vld [vmem:[#allocation19 + $0xc0] sm:$0xff]
    %v7292 = vld [vmem:[#allocation19 + $0xc8] sm:$0xff]
    %v7293 = vld [vmem:[#allocation19 + $0xd0] sm:$0xff]
    %v7294 = vld [vmem:[#allocation19 + $0xd8] sm:$0xff]
    %v7295 = vld [vmem:[#allocation19 + $0xe0] sm:$0xff]
    %v7296 = vld [vmem:[#allocation19 + $0xe8] sm:$0xff]
    %v7297 = vld [vmem:[#allocation19 + $0xf0] sm:$0xff]
    %v7298 = vld [vmem:[#allocation19 + $0xf8] sm:$0xff]
    %v7299 = vld [vmem:[#allocation19 + $0x100] sm:$0xff]
    %v7300 = vld [vmem:[#allocation19 + $0x108] sm:$0xff]
    %v7301 = vld [vmem:[#allocation19 + $0x110] sm:$0xff]
    %v7302 = vld [vmem:[#allocation19 + $0x118] sm:$0xff]
    %v7303 = vld [vmem:[#allocation19 + $0x120] sm:$0xff]
    %v7304 = vld [vmem:[#allocation19 + $0x128] sm:$0xff]
    %v7305 = vld [vmem:[#allocation19 + $0x130] sm:$0xff]
    %v7306 = vld [vmem:[#allocation19 + $0x138] sm:$0xff]
    %v7307 = vld [vmem:[#allocation19 + $0x140] sm:$0xff]
    %v7308 = vld [vmem:[#allocation19 + $0x148] sm:$0xff]
    %v7309 = vld [vmem:[#allocation19 + $0x150] sm:$0xff]
    %v7310 = vld [vmem:[#allocation19 + $0x158] sm:$0xff]
    %v7311 = vld [vmem:[#allocation19 + $0x160] sm:$0xff]
    %v7312 = vld [vmem:[#allocation19 + $0x168] sm:$0xff]
    %v7313 = vld [vmem:[#allocation19 + $0x170] sm:$0xff]
    %v7314 = vld [vmem:[#allocation19 + $0x178] sm:$0xff]
    %v7315 = vld [vmem:[#allocation19 + $0x180] sm:$0xff]
    %v7316 = vld [vmem:[#allocation19 + $0x188] sm:$0xff]
    %v7317 = vld [vmem:[#allocation19 + $0x190] sm:$0xff]
    %v7318 = vld [vmem:[#allocation19 + $0x198] sm:$0xff]
    %v7319 = vld [vmem:[#allocation19 + $0x1a0] sm:$0xff]
    %v7320 = vld [vmem:[#allocation19 + $0x1a8] sm:$0xff]
    %v7321 = vld [vmem:[#allocation19 + $0x1b0] sm:$0xff]
    %v7322 = vld [vmem:[#allocation19 + $0x1b8] sm:$0xff]
    %v7323 = vld [vmem:[#allocation19 + $0x1c0] sm:$0xff]
    %v7324 = vld [vmem:[#allocation19 + $0x1c8] sm:$0xff]
    %v7325 = vld [vmem:[#allocation19 + $0x1d0] sm:$0xff]
    %v7326 = vld [vmem:[#allocation19 + $0x1d8] sm:$0xff]
    %v7327 = vld [vmem:[#allocation19 + $0x1e0] sm:$0xff]
    %v7328 = vld [vmem:[#allocation19 + $0x1e8] sm:$0xff]
    %v7329 = vld [vmem:[#allocation19 + $0x1f0] sm:$0xff]
    %v7330 = vld [vmem:[#allocation19 + $0x1f8] sm:$0xff]
    %v7331 = vld [vmem:[#allocation19 + $0x200] sm:$0xff]
    %v7332 = vld [vmem:[#allocation19 + $0x208] sm:$0xff]
    %v7333 = vld [vmem:[#allocation19 + $0x210] sm:$0xff]
    %v7334 = vld [vmem:[#allocation19 + $0x218] sm:$0xff]
    %v7335 = vld [vmem:[#allocation19 + $0x220] sm:$0xff]
    %v7336 = vld [vmem:[#allocation19 + $0x228] sm:$0xff]
    %v7337 = vld [vmem:[#allocation19 + $0x230] sm:$0xff]
    %v7338 = vld [vmem:[#allocation19 + $0x238] sm:$0xff]
    %v7339 = vld [vmem:[#allocation19 + $0x240] sm:$0xff]
    %v7340 = vld [vmem:[#allocation19 + $0x248] sm:$0xff]
    %v7341 = vld [vmem:[#allocation19 + $0x250] sm:$0xff]
    %v7342 = vld [vmem:[#allocation19 + $0x258] sm:$0xff]
    %v7343 = vld [vmem:[#allocation19 + $0x260] sm:$0xff]
    %v7344 = vld [vmem:[#allocation19 + $0x268] sm:$0xff]
    %v7345 = vld [vmem:[#allocation19 + $0x270] sm:$0xff]
    %v7346 = vld [vmem:[#allocation19 + $0x278] sm:$0xff]
    %v7347 = vld [vmem:[#allocation19 + $0x280] sm:$0xff]
    %v7348 = vld [vmem:[#allocation19 + $0x288] sm:$0xff]
    %v7349 = vld [vmem:[#allocation19 + $0x290] sm:$0xff]
    %v7350 = vld [vmem:[#allocation19 + $0x298] sm:$0xff]
    %v7351 = vld [vmem:[#allocation19 + $0x2a0] sm:$0xff]
    %v7352 = vld [vmem:[#allocation19 + $0x2a8] sm:$0xff]
    %v7353 = vld [vmem:[#allocation19 + $0x2b0] sm:$0xff]
    %v7354 = vld [vmem:[#allocation19 + $0x2b8] sm:$0xff]
    %v7355 = vld [vmem:[#allocation19 + $0x2c0] sm:$0xff]
    %v7356 = vld [vmem:[#allocation19 + $0x2c8] sm:$0xff]
    %v7357 = vld [vmem:[#allocation19 + $0x2d0] sm:$0xff]
    %v7358 = vld [vmem:[#allocation19 + $0x2d8] sm:$0xff]
    %v7359 = vld [vmem:[#allocation19 + $0x2e0] sm:$0xff]
    %v7360 = vld [vmem:[#allocation19 + $0x2e8] sm:$0xff]
    %v7361 = vld [vmem:[#allocation19 + $0x2f0] sm:$0xff]
    %v7362 = vld [vmem:[#allocation19 + $0x2f8] sm:$0xff]
    %v7363 = vld [vmem:[#allocation19 + $0x300] sm:$0xff]
    %v7364 = vld [vmem:[#allocation19 + $0x308] sm:$0xff]
    %v7365 = vld [vmem:[#allocation19 + $0x310] sm:$0xff]
    %v7366 = vld [vmem:[#allocation19 + $0x318] sm:$0xff]
    %v7367 = vld [vmem:[#allocation19 + $0x320] sm:$0xff]
    %v7368 = vld [vmem:[#allocation19 + $0x328] sm:$0xff]
    %v7369 = vld [vmem:[#allocation19 + $0x330] sm:$0xff]
    %v7370 = vld [vmem:[#allocation19 + $0x338] sm:$0xff]
    %v7371 = vld [vmem:[#allocation19 + $0x340] sm:$0xff]
    %v7372 = vld [vmem:[#allocation19 + $0x348] sm:$0xff]
    %v7373 = vld [vmem:[#allocation19 + $0x350] sm:$0xff]
    %v7374 = vld [vmem:[#allocation19 + $0x358] sm:$0xff]
    %v7375 = vld [vmem:[#allocation19 + $0x360] sm:$0xff]
    %v7376 = vld [vmem:[#allocation19 + $0x368] sm:$0xff]
    %v7377 = vld [vmem:[#allocation19 + $0x370] sm:$0xff]
    %v7378 = vld [vmem:[#allocation19 + $0x378] sm:$0xff]
    %v7379 = vld [vmem:[#allocation19 + $0x380] sm:$0xff]
    %v7380 = vld [vmem:[#allocation19 + $0x388] sm:$0xff]
    %v7381 = vld [vmem:[#allocation19 + $0x390] sm:$0xff]
    %v7382 = vld [vmem:[#allocation19 + $0x398] sm:$0xff]
    %v7383 = vld [vmem:[#allocation19 + $0x3a0] sm:$0xff]
    %v7384 = vld [vmem:[#allocation19 + $0x3a8] sm:$0xff]
    %v7385 = vld [vmem:[#allocation19 + $0x3b0] sm:$0xff]
    %v7386 = vld [vmem:[#allocation19 + $0x3b8] sm:$0xff]
    %v7387 = vld [vmem:[#allocation19 + $0x3c0] sm:$0xff]
    %v7388 = vld [vmem:[#allocation19 + $0x3c8] sm:$0xff]
    %v7389 = vld [vmem:[#allocation19 + $0x3d0] sm:$0xff]
    %v7390 = vld [vmem:[#allocation19 + $0x3d8] sm:$0xff]
    %v7391 = vld [vmem:[#allocation19 + $0x3e0] sm:$0xff]
    %v7392 = vld [vmem:[#allocation19 + $0x3e8] sm:$0xff]
    %v7393 = vld [vmem:[#allocation19 + $0x3f0] sm:$0xff]
    %v7394 = vld [vmem:[#allocation19 + $0x3f8] sm:$0xff]
    %v7395 = vld [vmem:[%s19] sm:$0xf]
    %v7397 = vlaneseq
    %v7398 = vshrl.u32 %v7397, 7
    %v7399 = vsub.s32 0, %v7398
    %v7400 = vrot.slane %v7395, %v7399
    %v7401 = vlaneseq
    %v7402 = vshrl.u32 %v7401, 7
    %v7403 = vsub.s32 1, %v7402
    %v7404 = vrot.slane %v7395, %v7403
    %v7405 = vlaneseq
    %v7406 = vshrl.u32 %v7405, 7
    %v7407 = vsub.s32 2, %v7406
    %v7408 = vrot.slane %v7395, %v7407
    %v7409 = vlaneseq
    %v7410 = vshrl.u32 %v7409, 7
    %v7411 = vsub.s32 3, %v7410
    %v7412 = vrot.slane %v7395, %v7411
    %v7545 = vunpack.c.l.b16 %v7267
    %v7546 = vunpack.c.h.b16 %v7267
    %v7547 = vunpack.c.l.b16 %v7268
    %v7548 = vunpack.c.h.b16 %v7268
    %v7549 = vunpack.c.l.b16 %v7269
    %v7550 = vunpack.c.h.b16 %v7269
    %v7551 = vunpack.c.l.b16 %v7270
    %v7552 = vunpack.c.h.b16 %v7270
    %v7553 = vunpack.c.l.b16 %v7271
    %v7554 = vunpack.c.h.b16 %v7271
    %v7555 = vunpack.c.l.b16 %v7272
    %v7556 = vunpack.c.h.b16 %v7272
    %v7557 = vunpack.c.l.b16 %v7273
    %v7558 = vunpack.c.h.b16 %v7273
    %v7559 = vunpack.c.l.b16 %v7274
    %v7560 = vunpack.c.h.b16 %v7274
    %v7561 = vunpack.c.l.b16 %v7275
    %v7562 = vunpack.c.h.b16 %v7275
    %v7563 = vunpack.c.l.b16 %v7276
    %v7564 = vunpack.c.h.b16 %v7276
    %v7565 = vunpack.c.l.b16 %v7277
    %v7566 = vunpack.c.h.b16 %v7277
    %v7567 = vunpack.c.l.b16 %v7278
    %v7568 = vunpack.c.h.b16 %v7278
    %v7569 = vunpack.c.l.b16 %v7279
    %v7570 = vunpack.c.h.b16 %v7279
    %v7571 = vunpack.c.l.b16 %v7280
    %v7572 = vunpack.c.h.b16 %v7280
    %v7573 = vunpack.c.l.b16 %v7281
    %v7574 = vunpack.c.h.b16 %v7281
    %v7575 = vunpack.c.l.b16 %v7282
    %v7576 = vunpack.c.h.b16 %v7282
    %v7577 = vunpack.c.l.b16 %v7283
    %v7578 = vunpack.c.h.b16 %v7283
    %v7579 = vunpack.c.l.b16 %v7284
    %v7580 = vunpack.c.h.b16 %v7284
    %v7581 = vunpack.c.l.b16 %v7285
    %v7582 = vunpack.c.h.b16 %v7285
    %v7583 = vunpack.c.l.b16 %v7286
    %v7584 = vunpack.c.h.b16 %v7286
    %v7585 = vunpack.c.l.b16 %v7287
    %v7586 = vunpack.c.h.b16 %v7287
    %v7587 = vunpack.c.l.b16 %v7288
    %v7588 = vunpack.c.h.b16 %v7288
    %v7589 = vunpack.c.l.b16 %v7289
    %v7590 = vunpack.c.h.b16 %v7289
    %v7591 = vunpack.c.l.b16 %v7290
    %v7592 = vunpack.c.h.b16 %v7290
    %v7593 = vunpack.c.l.b16 %v7291
    %v7594 = vunpack.c.h.b16 %v7291
    %v7595 = vunpack.c.l.b16 %v7292
    %v7596 = vunpack.c.h.b16 %v7292
    %v7597 = vunpack.c.l.b16 %v7293
    %v7598 = vunpack.c.h.b16 %v7293
    %v7599 = vunpack.c.l.b16 %v7294
    %v7600 = vunpack.c.h.b16 %v7294
    %v7601 = vunpack.c.l.b16 %v7295
    %v7602 = vunpack.c.h.b16 %v7295
    %v7603 = vunpack.c.l.b16 %v7296
    %v7604 = vunpack.c.h.b16 %v7296
    %v7605 = vunpack.c.l.b16 %v7297
    %v7606 = vunpack.c.h.b16 %v7297
    %v7607 = vunpack.c.l.b16 %v7298
    %v7608 = vunpack.c.h.b16 %v7298
    %v7609 = vunpack.c.l.b16 %v7299
    %v7610 = vunpack.c.h.b16 %v7299
    %v7611 = vunpack.c.l.b16 %v7300
    %v7612 = vunpack.c.h.b16 %v7300
    %v7613 = vunpack.c.l.b16 %v7301
    %v7614 = vunpack.c.h.b16 %v7301
    %v7615 = vunpack.c.l.b16 %v7302
    %v7616 = vunpack.c.h.b16 %v7302
    %v7617 = vunpack.c.l.b16 %v7303
    %v7618 = vunpack.c.h.b16 %v7303
    %v7619 = vunpack.c.l.b16 %v7304
    %v7620 = vunpack.c.h.b16 %v7304
    %v7621 = vunpack.c.l.b16 %v7305
    %v7622 = vunpack.c.h.b16 %v7305
    %v7623 = vunpack.c.l.b16 %v7306
    %v7624 = vunpack.c.h.b16 %v7306
    %v7625 = vunpack.c.l.b16 %v7307
    %v7626 = vunpack.c.h.b16 %v7307
    %v7627 = vunpack.c.l.b16 %v7308
    %v7628 = vunpack.c.h.b16 %v7308
    %v7629 = vunpack.c.l.b16 %v7309
    %v7630 = vunpack.c.h.b16 %v7309
    %v7631 = vunpack.c.l.b16 %v7310
    %v7632 = vunpack.c.h.b16 %v7310
    %v7633 = vunpack.c.l.b16 %v7311
    %v7634 = vunpack.c.h.b16 %v7311
    %v7635 = vunpack.c.l.b16 %v7312
    %v7636 = vunpack.c.h.b16 %v7312
    %v7637 = vunpack.c.l.b16 %v7313
    %v7638 = vunpack.c.h.b16 %v7313
    %v7639 = vunpack.c.l.b16 %v7314
    %v7640 = vunpack.c.h.b16 %v7314
    %v7641 = vunpack.c.l.b16 %v7315
    %v7642 = vunpack.c.h.b16 %v7315
    %v7643 = vunpack.c.l.b16 %v7316
    %v7644 = vunpack.c.h.b16 %v7316
    %v7645 = vunpack.c.l.b16 %v7317
    %v7646 = vunpack.c.h.b16 %v7317
    %v7647 = vunpack.c.l.b16 %v7318
    %v7648 = vunpack.c.h.b16 %v7318
    %v7649 = vunpack.c.l.b16 %v7319
    %v7650 = vunpack.c.h.b16 %v7319
    %v7651 = vunpack.c.l.b16 %v7320
    %v7652 = vunpack.c.h.b16 %v7320
    %v7653 = vunpack.c.l.b16 %v7321
    %v7654 = vunpack.c.h.b16 %v7321
    %v7655 = vunpack.c.l.b16 %v7322
    %v7656 = vunpack.c.h.b16 %v7322
    %v7657 = vunpack.c.l.b16 %v7323
    %v7658 = vunpack.c.h.b16 %v7323
    %v7659 = vunpack.c.l.b16 %v7324
    %v7660 = vunpack.c.h.b16 %v7324
    %v7661 = vunpack.c.l.b16 %v7325
    %v7662 = vunpack.c.h.b16 %v7325
    %v7663 = vunpack.c.l.b16 %v7326
    %v7664 = vunpack.c.h.b16 %v7326
    %v7665 = vunpack.c.l.b16 %v7327
    %v7666 = vunpack.c.h.b16 %v7327
    %v7667 = vunpack.c.l.b16 %v7328
    %v7668 = vunpack.c.h.b16 %v7328
    %v7669 = vunpack.c.l.b16 %v7329
    %v7670 = vunpack.c.h.b16 %v7329
    %v7671 = vunpack.c.l.b16 %v7330
    %v7672 = vunpack.c.h.b16 %v7330
    %v7673 = vunpack.c.l.b16 %v7331
    %v7674 = vunpack.c.h.b16 %v7331
    %v7675 = vunpack.c.l.b16 %v7332
    %v7676 = vunpack.c.h.b16 %v7332
    %v7677 = vunpack.c.l.b16 %v7333
    %v7678 = vunpack.c.h.b16 %v7333
    %v7679 = vunpack.c.l.b16 %v7334
    %v7680 = vunpack.c.h.b16 %v7334
    %v7681 = vunpack.c.l.b16 %v7335
    %v7682 = vunpack.c.h.b16 %v7335
    %v7683 = vunpack.c.l.b16 %v7336
    %v7684 = vunpack.c.h.b16 %v7336
    %v7685 = vunpack.c.l.b16 %v7337
    %v7686 = vunpack.c.h.b16 %v7337
    %v7687 = vunpack.c.l.b16 %v7338
    %v7688 = vunpack.c.h.b16 %v7338
    %v7689 = vunpack.c.l.b16 %v7339
    %v7690 = vunpack.c.h.b16 %v7339
    %v7691 = vunpack.c.l.b16 %v7340
    %v7692 = vunpack.c.h.b16 %v7340
    %v7693 = vunpack.c.l.b16 %v7341
    %v7694 = vunpack.c.h.b16 %v7341
    %v7695 = vunpack.c.l.b16 %v7342
    %v7696 = vunpack.c.h.b16 %v7342
    %v7697 = vunpack.c.l.b16 %v7343
    %v7698 = vunpack.c.h.b16 %v7343
    %v7699 = vunpack.c.l.b16 %v7344
    %v7700 = vunpack.c.h.b16 %v7344
    %v7701 = vunpack.c.l.b16 %v7345
    %v7702 = vunpack.c.h.b16 %v7345
    %v7703 = vunpack.c.l.b16 %v7346
    %v7704 = vunpack.c.h.b16 %v7346
    %v7705 = vunpack.c.l.b16 %v7347
    %v7706 = vunpack.c.h.b16 %v7347
    %v7707 = vunpack.c.l.b16 %v7348
    %v7708 = vunpack.c.h.b16 %v7348
    %v7709 = vunpack.c.l.b16 %v7349
    %v7710 = vunpack.c.h.b16 %v7349
    %v7711 = vunpack.c.l.b16 %v7350
    %v7712 = vunpack.c.h.b16 %v7350
    %v7713 = vunpack.c.l.b16 %v7351
    %v7714 = vunpack.c.h.b16 %v7351
    %v7715 = vunpack.c.l.b16 %v7352
    %v7716 = vunpack.c.h.b16 %v7352
    %v7717 = vunpack.c.l.b16 %v7353
    %v7718 = vunpack.c.h.b16 %v7353
    %v7719 = vunpack.c.l.b16 %v7354
    %v7720 = vunpack.c.h.b16 %v7354
    %v7721 = vunpack.c.l.b16 %v7355
    %v7722 = vunpack.c.h.b16 %v7355
    %v7723 = vunpack.c.l.b16 %v7356
    %v7724 = vunpack.c.h.b16 %v7356
    %v7725 = vunpack.c.l.b16 %v7357
    %v7726 = vunpack.c.h.b16 %v7357
    %v7727 = vunpack.c.l.b16 %v7358
    %v7728 = vunpack.c.h.b16 %v7358
    %v7729 = vunpack.c.l.b16 %v7359
    %v7730 = vunpack.c.h.b16 %v7359
    %v7731 = vunpack.c.l.b16 %v7360
    %v7732 = vunpack.c.h.b16 %v7360
    %v7733 = vunpack.c.l.b16 %v7361
    %v7734 = vunpack.c.h.b16 %v7361
    %v7735 = vunpack.c.l.b16 %v7362
    %v7736 = vunpack.c.h.b16 %v7362
    %v7737 = vunpack.c.l.b16 %v7363
    %v7738 = vunpack.c.h.b16 %v7363
    %v7739 = vunpack.c.l.b16 %v7364
    %v7740 = vunpack.c.h.b16 %v7364
    %v7741 = vunpack.c.l.b16 %v7365
    %v7742 = vunpack.c.h.b16 %v7365
    %v7743 = vunpack.c.l.b16 %v7366
    %v7744 = vunpack.c.h.b16 %v7366
    %v7745 = vunpack.c.l.b16 %v7367
    %v7746 = vunpack.c.h.b16 %v7367
    %v7747 = vunpack.c.l.b16 %v7368
    %v7748 = vunpack.c.h.b16 %v7368
    %v7749 = vunpack.c.l.b16 %v7369
    %v7750 = vunpack.c.h.b16 %v7369
    %v7751 = vunpack.c.l.b16 %v7370
    %v7752 = vunpack.c.h.b16 %v7370
    %v7753 = vunpack.c.l.b16 %v7371
    %v7754 = vunpack.c.h.b16 %v7371
    %v7755 = vunpack.c.l.b16 %v7372
    %v7756 = vunpack.c.h.b16 %v7372
    %v7757 = vunpack.c.l.b16 %v7373
    %v7758 = vunpack.c.h.b16 %v7373
    %v7759 = vunpack.c.l.b16 %v7374
    %v7760 = vunpack.c.h.b16 %v7374
    %v7761 = vunpack.c.l.b16 %v7375
    %v7762 = vunpack.c.h.b16 %v7375
    %v7763 = vunpack.c.l.b16 %v7376
    %v7764 = vunpack.c.h.b16 %v7376
    %v7765 = vunpack.c.l.b16 %v7377
    %v7766 = vunpack.c.h.b16 %v7377
    %v7767 = vunpack.c.l.b16 %v7378
    %v7768 = vunpack.c.h.b16 %v7378
    %v7769 = vunpack.c.l.b16 %v7379
    %v7770 = vunpack.c.h.b16 %v7379
    %v7771 = vunpack.c.l.b16 %v7380
    %v7772 = vunpack.c.h.b16 %v7380
    %v7773 = vunpack.c.l.b16 %v7381
    %v7774 = vunpack.c.h.b16 %v7381
    %v7775 = vunpack.c.l.b16 %v7382
    %v7776 = vunpack.c.h.b16 %v7382
    %v7777 = vunpack.c.l.b16 %v7383
    %v7778 = vunpack.c.h.b16 %v7383
    %v7779 = vunpack.c.l.b16 %v7384
    %v7780 = vunpack.c.h.b16 %v7384
    %v7781 = vunpack.c.l.b16 %v7385
    %v7782 = vunpack.c.h.b16 %v7385
    %v7783 = vunpack.c.l.b16 %v7386
    %v7784 = vunpack.c.h.b16 %v7386
    %v7785 = vunpack.c.l.b16 %v7387
    %v7786 = vunpack.c.h.b16 %v7387
    %v7787 = vunpack.c.l.b16 %v7388
    %v7788 = vunpack.c.h.b16 %v7388
    %v7789 = vunpack.c.l.b16 %v7389
    %v7790 = vunpack.c.h.b16 %v7389
    %v7791 = vunpack.c.l.b16 %v7390
    %v7792 = vunpack.c.h.b16 %v7390
    %v7793 = vunpack.c.l.b16 %v7391
    %v7794 = vunpack.c.h.b16 %v7391
    %v7795 = vunpack.c.l.b16 %v7392
    %v7796 = vunpack.c.h.b16 %v7392
    %v7797 = vunpack.c.l.b16 %v7393
    %v7798 = vunpack.c.h.b16 %v7393
    %v7799 = vunpack.c.l.b16 %v7394
    %v7800 = vunpack.c.h.b16 %v7394
    %v7801 = vpack.c.b16 %v7549, %v7545
    %v7802 = vpack.c.b16 %v7550, %v7546
    %v7803 = vpack.c.b16 %v7551, %v7547
    %v7804 = vpack.c.b16 %v7552, %v7548
    %v7805 = vpack.c.b16 %v7557, %v7553
    %v7806 = vpack.c.b16 %v7558, %v7554
    %v7807 = vpack.c.b16 %v7559, %v7555
    %v7808 = vpack.c.b16 %v7560, %v7556
    %v7809 = vpack.c.b16 %v7565, %v7561
    %v7810 = vpack.c.b16 %v7566, %v7562
    %v7811 = vpack.c.b16 %v7567, %v7563
    %v7812 = vpack.c.b16 %v7568, %v7564
    %v7813 = vpack.c.b16 %v7573, %v7569
    %v7814 = vpack.c.b16 %v7574, %v7570
    %v7815 = vpack.c.b16 %v7575, %v7571
    %v7816 = vpack.c.b16 %v7576, %v7572
    %v7817 = vpack.c.b16 %v7581, %v7577
    %v7818 = vpack.c.b16 %v7582, %v7578
    %v7819 = vpack.c.b16 %v7583, %v7579
    %v7820 = vpack.c.b16 %v7584, %v7580
    %v7821 = vpack.c.b16 %v7589, %v7585
    %v7822 = vpack.c.b16 %v7590, %v7586
    %v7823 = vpack.c.b16 %v7591, %v7587
    %v7824 = vpack.c.b16 %v7592, %v7588
    %v7825 = vpack.c.b16 %v7597, %v7593
    %v7826 = vpack.c.b16 %v7598, %v7594
    %v7827 = vpack.c.b16 %v7599, %v7595
    %v7828 = vpack.c.b16 %v7600, %v7596
    %v7829 = vpack.c.b16 %v7605, %v7601
    %v7830 = vpack.c.b16 %v7606, %v7602
    %v7831 = vpack.c.b16 %v7607, %v7603
    %v7832 = vpack.c.b16 %v7608, %v7604
    %v7833 = vpack.c.b16 %v7613, %v7609
    %v7834 = vpack.c.b16 %v7614, %v7610
    %v7835 = vpack.c.b16 %v7615, %v7611
    %v7836 = vpack.c.b16 %v7616, %v7612
    %v7837 = vpack.c.b16 %v7621, %v7617
    %v7838 = vpack.c.b16 %v7622, %v7618
    %v7839 = vpack.c.b16 %v7623, %v7619
    %v7840 = vpack.c.b16 %v7624, %v7620
    %v7841 = vpack.c.b16 %v7629, %v7625
    %v7842 = vpack.c.b16 %v7630, %v7626
    %v7843 = vpack.c.b16 %v7631, %v7627
    %v7844 = vpack.c.b16 %v7632, %v7628
    %v7845 = vpack.c.b16 %v7637, %v7633
    %v7846 = vpack.c.b16 %v7638, %v7634
    %v7847 = vpack.c.b16 %v7639, %v7635
    %v7848 = vpack.c.b16 %v7640, %v7636
    %v7849 = vpack.c.b16 %v7645, %v7641
    %v7850 = vpack.c.b16 %v7646, %v7642
    %v7851 = vpack.c.b16 %v7647, %v7643
    %v7852 = vpack.c.b16 %v7648, %v7644
    %v7853 = vpack.c.b16 %v7653, %v7649
    %v7854 = vpack.c.b16 %v7654, %v7650
    %v7855 = vpack.c.b16 %v7655, %v7651
    %v7856 = vpack.c.b16 %v7656, %v7652
    %v7857 = vpack.c.b16 %v7661, %v7657
    %v7858 = vpack.c.b16 %v7662, %v7658
    %v7859 = vpack.c.b16 %v7663, %v7659
    %v7860 = vpack.c.b16 %v7664, %v7660
    %v7861 = vpack.c.b16 %v7669, %v7665
    %v7862 = vpack.c.b16 %v7670, %v7666
    %v7863 = vpack.c.b16 %v7671, %v7667
    %v7864 = vpack.c.b16 %v7672, %v7668
    %v7865 = vpack.c.b16 %v7677, %v7673
    %v7866 = vpack.c.b16 %v7678, %v7674
    %v7867 = vpack.c.b16 %v7679, %v7675
    %v7868 = vpack.c.b16 %v7680, %v7676
    %v7869 = vpack.c.b16 %v7685, %v7681
    %v7870 = vpack.c.b16 %v7686, %v7682
    %v7871 = vpack.c.b16 %v7687, %v7683
    %v7872 = vpack.c.b16 %v7688, %v7684
    %v7873 = vpack.c.b16 %v7693, %v7689
    %v7874 = vpack.c.b16 %v7694, %v7690
    %v7875 = vpack.c.b16 %v7695, %v7691
    %v7876 = vpack.c.b16 %v7696, %v7692
    %v7877 = vpack.c.b16 %v7701, %v7697
    %v7878 = vpack.c.b16 %v7702, %v7698
    %v7879 = vpack.c.b16 %v7703, %v7699
    %v7880 = vpack.c.b16 %v7704, %v7700
    %v7881 = vpack.c.b16 %v7709, %v7705
    %v7882 = vpack.c.b16 %v7710, %v7706
    %v7883 = vpack.c.b16 %v7711, %v7707
    %v7884 = vpack.c.b16 %v7712, %v7708
    %v7885 = vpack.c.b16 %v7717, %v7713
    %v7886 = vpack.c.b16 %v7718, %v7714
    %v7887 = vpack.c.b16 %v7719, %v7715
    %v7888 = vpack.c.b16 %v7720, %v7716
    %v7889 = vpack.c.b16 %v7725, %v7721
    %v7890 = vpack.c.b16 %v7726, %v7722
    %v7891 = vpack.c.b16 %v7727, %v7723
    %v7892 = vpack.c.b16 %v7728, %v7724
    %v7893 = vpack.c.b16 %v7733, %v7729
    %v7894 = vpack.c.b16 %v7734, %v7730
    %v7895 = vpack.c.b16 %v7735, %v7731
    %v7896 = vpack.c.b16 %v7736, %v7732
    %v7897 = vpack.c.b16 %v7741, %v7737
    %v7898 = vpack.c.b16 %v7742, %v7738
    %v7899 = vpack.c.b16 %v7743, %v7739
    %v7900 = vpack.c.b16 %v7744, %v7740
    %v7901 = vpack.c.b16 %v7749, %v7745
    %v7902 = vpack.c.b16 %v7750, %v7746
    %v7903 = vpack.c.b16 %v7751, %v7747
    %v7904 = vpack.c.b16 %v7752, %v7748
    %v7905 = vpack.c.b16 %v7757, %v7753
    %v7906 = vpack.c.b16 %v7758, %v7754
    %v7907 = vpack.c.b16 %v7759, %v7755
    %v7908 = vpack.c.b16 %v7760, %v7756
    %v7909 = vpack.c.b16 %v7765, %v7761
    %v7910 = vpack.c.b16 %v7766, %v7762
    %v7911 = vpack.c.b16 %v7767, %v7763
    %v7912 = vpack.c.b16 %v7768, %v7764
    %v7913 = vpack.c.b16 %v7773, %v7769
    %v7914 = vpack.c.b16 %v7774, %v7770
    %v7915 = vpack.c.b16 %v7775, %v7771
    %v7916 = vpack.c.b16 %v7776, %v7772
    %v7917 = vpack.c.b16 %v7781, %v7777
    %v7918 = vpack.c.b16 %v7782, %v7778
    %v7919 = vpack.c.b16 %v7783, %v7779
    %v7920 = vpack.c.b16 %v7784, %v7780
    %v7921 = vpack.c.b16 %v7789, %v7785
    %v7922 = vpack.c.b16 %v7790, %v7786
    %v7923 = vpack.c.b16 %v7791, %v7787
    %v7924 = vpack.c.b16 %v7792, %v7788
    %v7925 = vpack.c.b16 %v7797, %v7793
    %v7926 = vpack.c.b16 %v7798, %v7794
    %v7927 = vpack.c.b16 %v7799, %v7795
    %v7928 = vpack.c.b16 %v7800, %v7796
    %8057 = vmatprep.subr.bf16.mxu0 %v7802
    %8058 = vmatpush1.bf16.msra.mxu0 %v7801
    %8059 = vmatprep.subr.bf16.mxu0 %v7806
    %8060 = vmatpush1.bf16.msra.mxu0 %v7805
    %8061 = vmatprep.subr.bf16.mxu0 %v7810
    %8062 = vmatpush1.bf16.msra.mxu0 %v7809
    %8063 = vmatprep.subr.bf16.mxu0 %v7814
    %8064 = vmatpush1.bf16.msra.mxu0 %v7813
    %8065 = vmatprep.subr.bf16.mxu0 %v7818
    %8066 = vmatpush1.bf16.msra.mxu0 %v7817
    %8067 = vmatprep.subr.bf16.mxu0 %v7822
    %8068 = vmatpush1.bf16.msra.mxu0 %v7821
    %8069 = vmatprep.subr.bf16.mxu0 %v7826
    %8070 = vmatpush1.bf16.msra.mxu0 %v7825
    %8071 = vmatprep.subr.bf16.mxu0 %v7830
    %8072 = vmatpush1.bf16.msra.mxu0 %v7829
    %8073 = vmatprep.subr.bf16.mxu0 %v7834
    %8074 = vmatpush1.bf16.msra.mxu0 %v7833
    %8075 = vmatprep.subr.bf16.mxu0 %v7838
    %8076 = vmatpush1.bf16.msra.mxu0 %v7837
    %8077 = vmatprep.subr.bf16.mxu0 %v7842
    %8078 = vmatpush1.bf16.msra.mxu0 %v7841
    %8079 = vmatprep.subr.bf16.mxu0 %v7846
    %8080 = vmatpush1.bf16.msra.mxu0 %v7845
    %8081 = vmatprep.subr.bf16.mxu0 %v7850
    %8082 = vmatpush1.bf16.msra.mxu0 %v7849
    %8083 = vmatprep.subr.bf16.mxu0 %v7854
    %8084 = vmatpush1.bf16.msra.mxu0 %v7853
    %8085 = vmatprep.subr.bf16.mxu0 %v7858
    %8086 = vmatpush1.bf16.msra.mxu0 %v7857
    %8087 = vmatprep.subr.bf16.mxu0 %v7862
    %8088 = vmatpush1.bf16.msra.mxu0 %v7861
    %8089 = vmatprep.mubr.bf16.mxu0 %v7264
    %8090 = vmatmul.mubr.bf16.gmra.mrb[0].mxu0 %v7263
    %v8091 = vpop.f32.mrb[0].mxu0
    %v8092 = vadd.f32 %v7400, %v8091
    %v8093 = vpop.f32.mrb[0].mxu0
    %v8094 = vadd.f32 %v7404, %v8093
    %v8095 = vpop.f32.mrb[0].mxu0
    %v8096 = vpop.f32.mrb[0].mxu0
    %8097 = vdwg.mxu0
    %8098 = vmatprep.subr.bf16.mxu0 %v7866
    %8099 = vmatpush1.bf16.msra.mxu0 %v7865
    %8100 = vmatprep.subr.bf16.mxu0 %v7870
    %8101 = vmatpush1.bf16.msra.mxu0 %v7869
    %8102 = vmatprep.subr.bf16.mxu0 %v7874
    %8103 = vmatpush1.bf16.msra.mxu0 %v7873
    %8104 = vmatprep.subr.bf16.mxu0 %v7878
    %8105 = vmatpush1.bf16.msra.mxu0 %v7877
    %8106 = vmatprep.subr.bf16.mxu0 %v7882
    %8107 = vmatpush1.bf16.msra.mxu0 %v7881
    %8108 = vmatprep.subr.bf16.mxu0 %v7886
    %8109 = vmatpush1.bf16.msra.mxu0 %v7885
    %8110 = vmatprep.subr.bf16.mxu0 %v7890
    %8111 = vmatpush1.bf16.msra.mxu0 %v7889
    %8112 = vmatprep.subr.bf16.mxu0 %v7894
    %8113 = vmatpush1.bf16.msra.mxu0 %v7893
    %8114 = vmatprep.subr.bf16.mxu0 %v7898
    %8115 = vmatpush1.bf16.msra.mxu0 %v7897
    %8116 = vmatprep.subr.bf16.mxu0 %v7902
    %8117 = vmatpush1.bf16.msra.mxu0 %v7901
    %8118 = vmatprep.subr.bf16.mxu0 %v7906
    %8119 = vmatpush1.bf16.msra.mxu0 %v7905
    %8120 = vmatprep.subr.bf16.mxu0 %v7910
    %8121 = vmatpush1.bf16.msra.mxu0 %v7909
    %8122 = vmatprep.subr.bf16.mxu0 %v7914
    %8123 = vmatpush1.bf16.msra.mxu0 %v7913
    %8124 = vmatprep.subr.bf16.mxu0 %v7918
    %8125 = vmatpush1.bf16.msra.mxu0 %v7917
    %8126 = vmatprep.subr.bf16.mxu0 %v7922
    %8127 = vmatpush1.bf16.msra.mxu0 %v7921
    %8128 = vmatprep.subr.bf16.mxu0 %v7926
    %8129 = vmatpush1.bf16.msra.mxu0 %v7925
    %8130 = vmatprep.mubr.bf16.mxu0 %v7266
    %8131 = vmatmul.mubr.bf16.gmra.mrb[0].mxu0 %v7265
    %v8132 = vpop.f32.mrb[0].mxu0
    %v8133 = vadd.f32 %v8092, %v8132
    %v8134 = vpop.f32.mrb[0].mxu0
    %v8135 = vadd.f32 %v8094, %v8134
    %v8136 = vpop.f32.mrb[0].mxu0
    %v8137 = vpop.f32.mrb[0].mxu0
    %8138 = vdwg.mxu0
    %8139 = vmatprep.subr.bf16.mxu0 %v7804
    %8140 = vmatpush1.bf16.msra.mxu0 %v7803
    %8141 = vmatprep.subr.bf16.mxu0 %v7808
    %8142 = vmatpush1.bf16.msra.mxu0 %v7807
    %8143 = vmatprep.subr.bf16.mxu0 %v7812
    %8144 = vmatpush1.bf16.msra.mxu0 %v7811
    %8145 = vmatprep.subr.bf16.mxu0 %v7816
    %8146 = vmatpush1.bf16.msra.mxu0 %v7815
    %8147 = vmatprep.subr.bf16.mxu0 %v7820
    %8148 = vmatpush1.bf16.msra.mxu0 %v7819
    %8149 = vmatprep.subr.bf16.mxu0 %v7824
    %8150 = vmatpush1.bf16.msra.mxu0 %v7823
    %8151 = vmatprep.subr.bf16.mxu0 %v7828
    %8152 = vmatpush1.bf16.msra.mxu0 %v7827
    %8153 = vmatprep.subr.bf16.mxu0 %v7832
    %8154 = vmatpush1.bf16.msra.mxu0 %v7831
    %8155 = vmatprep.subr.bf16.mxu0 %v7836
    %8156 = vmatpush1.bf16.msra.mxu0 %v7835
    %8157 = vmatprep.subr.bf16.mxu0 %v7840
    %8158 = vmatpush1.bf16.msra.mxu0 %v7839
    %8159 = vmatprep.subr.bf16.mxu0 %v7844
    %8160 = vmatpush1.bf16.msra.mxu0 %v7843
    %8161 = vmatprep.subr.bf16.mxu0 %v7848
    %8162 = vmatpush1.bf16.msra.mxu0 %v7847
    %8163 = vmatprep.subr.bf16.mxu0 %v7852
    %8164 = vmatpush1.bf16.msra.mxu0 %v7851
    %8165 = vmatprep.subr.bf16.mxu0 %v7856
    %8166 = vmatpush1.bf16.msra.mxu0 %v7855
    %8167 = vmatprep.subr.bf16.mxu0 %v7860
    %8168 = vmatpush1.bf16.msra.mxu0 %v7859
    %8169 = vmatprep.subr.bf16.mxu0 %v7864
    %8170 = vmatpush1.bf16.msra.mxu0 %v7863
    %8171 = vmatprep.mubr.bf16.mxu0 %v7264
    %8172 = vmatmul.mubr.bf16.gmra.mrb[0].mxu0 %v7263
    %v8173 = vpop.f32.mrb[0].mxu0
    %v8174 = vadd.f32 %v7408, %v8173
    %v8175 = vpop.f32.mrb[0].mxu0
    %v8176 = vadd.f32 %v7412, %v8175
    %v8177 = vpop.f32.mrb[0].mxu0
    %v8178 = vpop.f32.mrb[0].mxu0
    %8179 = vdwg.mxu0
    %8180 = vmatprep.subr.bf16.mxu0 %v7868
    %8181 = vmatpush1.bf16.msra.mxu0 %v7867
    %8182 = vmatprep.subr.bf16.mxu0 %v7872
    %8183 = vmatpush1.bf16.msra.mxu0 %v7871
    %8184 = vmatprep.subr.bf16.mxu0 %v7876
    %8185 = vmatpush1.bf16.msra.mxu0 %v7875
    %8186 = vmatprep.subr.bf16.mxu0 %v7880
    %8187 = vmatpush1.bf16.msra.mxu0 %v7879
    %8188 = vmatprep.subr.bf16.mxu0 %v7884
    %8189 = vmatpush1.bf16.msra.mxu0 %v7883
    %8190 = vmatprep.subr.bf16.mxu0 %v7888
    %8191 = vmatpush1.bf16.msra.mxu0 %v7887
    %8192 = vmatprep.subr.bf16.mxu0 %v7892
    %8193 = vmatpush1.bf16.msra.mxu0 %v7891
    %8194 = vmatprep.subr.bf16.mxu0 %v7896
    %8195 = vmatpush1.bf16.msra.mxu0 %v7895
    %8196 = vmatprep.subr.bf16.mxu0 %v7900
    %8197 = vmatpush1.bf16.msra.mxu0 %v7899
    %8198 = vmatprep.subr.bf16.mxu0 %v7904
    %8199 = vmatpush1.bf16.msra.mxu0 %v7903
    %8200 = vmatprep.subr.bf16.mxu0 %v7908
    %8201 = vmatpush1.bf16.msra.mxu0 %v7907
    %8202 = vmatprep.subr.bf16.mxu0 %v7912
    %8203 = vmatpush1.bf16.msra.mxu0 %v7911
    %8204 = vmatprep.subr.bf16.mxu0 %v7916
    %8205 = vmatpush1.bf16.msra.mxu0 %v7915
    %8206 = vmatprep.subr.bf16.mxu0 %v7920
    %8207 = vmatpush1.bf16.msra.mxu0 %v7919
    %8208 = vmatprep.subr.bf16.mxu0 %v7924
    %8209 = vmatpush1.bf16.msra.mxu0 %v7923
    %8210 = vmatprep.subr.bf16.mxu0 %v7928
    %8211 = vmatpush1.bf16.msra.mxu0 %v7927
    %8212 = vmatprep.mubr.bf16.mxu0 %v7266
    %8213 = vmatmul.mubr.bf16.gmra.mrb[0].mxu0 %v7265
    %v8214 = vpop.f32.mrb[0].mxu0
    %v8215 = vadd.f32 %v8174, %v8214
    %v8216 = vpop.f32.mrb[0].mxu0
    %v8217 = vadd.f32 %v8176, %v8216
    %v8218 = vpop.f32.mrb[0].mxu0
    %v8219 = vpop.f32.mrb[0].mxu0
    %8220 = vdwg.mxu0
    %v8221 = vsub.f32 0.0, %v8133
    %v8222 = vsub.f32 0.0, %v8135
    %v8223 = vsub.f32 0.0, %v8215
    %v8224 = vsub.f32 0.0, %v8217
    %v8225 = vmul.f32 %v8221, 1.442695
    %v8226 = vpow.pop %v8225
    %v8227 = vmul.f32 %v8222, 1.442695
    %v8228 = vpow.pop %v8227
    %v8229 = vmul.f32 %v8223, 1.442695
    %v8230 = vpow.pop %v8229
    %v8231 = vmul.f32 %v8224, 1.442695
    %v8232 = vpow.pop %v8231
    %v8233 = vadd.f32 %v8226, 1.0
    %v8234 = vadd.f32 %v8228, 1.0
    %v8235 = vadd.f32 %v8230, 1.0
    %v8236 = vadd.f32 %v8232, 1.0
    %v8237 = vrcp.pop %v8233
    %v8238 = vrcp.pop %v8234
    %v8239 = vrcp.pop %v8235
    %v8240 = vrcp.pop %v8236
    %v8245 = vcombine.low %v8237, %v8238
    %v8246 = vcombine.low %v8239, %v8240
    %v8248 = vunpack.c.l.s4 1983009808
    %v8249 = vunpack.c.0.s8 %v8248
    %v8250 = vlaneseq
    %v8251 = vshrl.u32 %v8250, 7
    %v8252 = vsub.s32 %v8249, %v8251
    %v8253 = vrot.slane %v8245, %v8252
    %v8255 = vunpack.c.l.s4 1983009808
    %v8256 = vunpack.c.0.s8 %v8255
    %v8257 = vlaneseq
    %v8258 = vshrl.u32 %v8257, 7
    %v8259 = vsub.s32 %v8256, %v8258
    %v8260 = vrot.slane %v8246, %v8259
    %v8261 = vcombine.low %v8253, %v8260
    %8263 = vst [vmem:[#allocation25] sm:$0xff] %v8261
    %v8264 = vld [vmem:[#allocation21] sm:$0xff]
    %v8265 = vld [vmem:[#allocation21 + $0x8] sm:$0xff]
    %v8266 = vld [vmem:[#allocation21 + $0x10] sm:$0xff]
    %v8267 = vld [vmem:[#allocation21 + $0x18] sm:$0xff]
    %v8268 = vld [vmem:[#allocation21 + $0x20] sm:$0xff]
    %v8269 = vld [vmem:[#allocation21 + $0x28] sm:$0xff]
    %v8270 = vld [vmem:[#allocation21 + $0x30] sm:$0xff]
    %v8271 = vld [vmem:[#allocation21 + $0x38] sm:$0xff]
    %v8272 = vld [vmem:[#allocation21 + $0x40] sm:$0xff]
    %v8273 = vld [vmem:[#allocation21 + $0x48] sm:$0xff]
    %v8274 = vld [vmem:[#allocation21 + $0x50] sm:$0xff]
    %v8275 = vld [vmem:[#allocation21 + $0x58] sm:$0xff]
    %v8276 = vld [vmem:[#allocation21 + $0x60] sm:$0xff]
    %v8277 = vld [vmem:[#allocation21 + $0x68] sm:$0xff]
    %v8278 = vld [vmem:[#allocation21 + $0x70] sm:$0xff]
    %v8279 = vld [vmem:[#allocation21 + $0x78] sm:$0xff]
    %v8280 = vld [vmem:[#allocation21 + $0x80] sm:$0xff]
    %v8281 = vld [vmem:[#allocation21 + $0x88] sm:$0xff]
    %v8282 = vld [vmem:[#allocation21 + $0x90] sm:$0xff]
    %v8283 = vld [vmem:[#allocation21 + $0x98] sm:$0xff]
    %v8284 = vld [vmem:[#allocation21 + $0xa0] sm:$0xff]
    %v8285 = vld [vmem:[#allocation21 + $0xa8] sm:$0xff]
    %v8286 = vld [vmem:[#allocation21 + $0xb0] sm:$0xff]
    %v8287 = vld [vmem:[#allocation21 + $0xb8] sm:$0xff]
    %v8288 = vld [vmem:[#allocation21 + $0xc0] sm:$0xff]
    %v8289 = vld [vmem:[#allocation21 + $0xc8] sm:$0xff]
    %v8290 = vld [vmem:[#allocation21 + $0xd0] sm:$0xff]
    %v8291 = vld [vmem:[#allocation21 + $0xd8] sm:$0xff]
    %v8292 = vld [vmem:[#allocation21 + $0xe0] sm:$0xff]
    %v8293 = vld [vmem:[#allocation21 + $0xe8] sm:$0xff]
    %v8294 = vld [vmem:[#allocation21 + $0xf0] sm:$0xff]
    %v8295 = vld [vmem:[#allocation21 + $0xf8] sm:$0xff]
    %v8296 = vld [vmem:[#allocation21 + $0x100] sm:$0xff]
    %v8297 = vld [vmem:[#allocation21 + $0x108] sm:$0xff]
    %v8298 = vld [vmem:[#allocation21 + $0x110] sm:$0xff]
    %v8299 = vld [vmem:[#allocation21 + $0x118] sm:$0xff]
    %v8300 = vld [vmem:[#allocation21 + $0x120] sm:$0xff]
    %v8301 = vld [vmem:[#allocation21 + $0x128] sm:$0xff]
    %v8302 = vld [vmem:[#allocation21 + $0x130] sm:$0xff]
    %v8303 = vld [vmem:[#allocation21 + $0x138] sm:$0xff]
    %v8304 = vld [vmem:[#allocation21 + $0x140] sm:$0xff]
    %v8305 = vld [vmem:[#allocation21 + $0x148] sm:$0xff]
    %v8306 = vld [vmem:[#allocation21 + $0x150] sm:$0xff]
    %v8307 = vld [vmem:[#allocation21 + $0x158] sm:$0xff]
    %v8308 = vld [vmem:[#allocation21 + $0x160] sm:$0xff]
    %v8309 = vld [vmem:[#allocation21 + $0x168] sm:$0xff]
    %v8310 = vld [vmem:[#allocation21 + $0x170] sm:$0xff]
    %v8311 = vld [vmem:[#allocation21 + $0x178] sm:$0xff]
    %v8312 = vld [vmem:[#allocation21 + $0x180] sm:$0xff]
    %v8313 = vld [vmem:[#allocation21 + $0x188] sm:$0xff]
    %v8314 = vld [vmem:[#allocation21 + $0x190] sm:$0xff]
    %v8315 = vld [vmem:[#allocation21 + $0x198] sm:$0xff]
    %v8316 = vld [vmem:[#allocation21 + $0x1a0] sm:$0xff]
    %v8317 = vld [vmem:[#allocation21 + $0x1a8] sm:$0xff]
    %v8318 = vld [vmem:[#allocation21 + $0x1b0] sm:$0xff]
    %v8319 = vld [vmem:[#allocation21 + $0x1b8] sm:$0xff]
    %v8320 = vld [vmem:[#allocation21 + $0x1c0] sm:$0xff]
    %v8321 = vld [vmem:[#allocation21 + $0x1c8] sm:$0xff]
    %v8322 = vld [vmem:[#allocation21 + $0x1d0] sm:$0xff]
    %v8323 = vld [vmem:[#allocation21 + $0x1d8] sm:$0xff]
    %v8324 = vld [vmem:[#allocation21 + $0x1e0] sm:$0xff]
    %v8325 = vld [vmem:[#allocation21 + $0x1e8] sm:$0xff]
    %v8326 = vld [vmem:[#allocation21 + $0x1f0] sm:$0xff]
    %v8327 = vld [vmem:[#allocation21 + $0x1f8] sm:$0xff]
    %v8328 = vld [vmem:[#allocation21 + $0x200] sm:$0xff]
    %v8329 = vld [vmem:[#allocation21 + $0x208] sm:$0xff]
    %v8330 = vld [vmem:[#allocation21 + $0x210] sm:$0xff]
    %v8331 = vld [vmem:[#allocation21 + $0x218] sm:$0xff]
    %v8332 = vld [vmem:[#allocation21 + $0x220] sm:$0xff]
    %v8333 = vld [vmem:[#allocation21 + $0x228] sm:$0xff]
    %v8334 = vld [vmem:[#allocation21 + $0x230] sm:$0xff]
    %v8335 = vld [vmem:[#allocation21 + $0x238] sm:$0xff]
    %v8336 = vld [vmem:[#allocation21 + $0x240] sm:$0xff]
    %v8337 = vld [vmem:[#allocation21 + $0x248] sm:$0xff]
    %v8338 = vld [vmem:[#allocation21 + $0x250] sm:$0xff]
    %v8339 = vld [vmem:[#allocation21 + $0x258] sm:$0xff]
    %v8340 = vld [vmem:[#allocation21 + $0x260] sm:$0xff]
    %v8341 = vld [vmem:[#allocation21 + $0x268] sm:$0xff]
    %v8342 = vld [vmem:[#allocation21 + $0x270] sm:$0xff]
    %v8343 = vld [vmem:[#allocation21 + $0x278] sm:$0xff]
    %v8344 = vld [vmem:[#allocation21 + $0x280] sm:$0xff]
    %v8345 = vld [vmem:[#allocation21 + $0x288] sm:$0xff]
    %v8346 = vld [vmem:[#allocation21 + $0x290] sm:$0xff]
    %v8347 = vld [vmem:[#allocation21 + $0x298] sm:$0xff]
    %v8348 = vld [vmem:[#allocation21 + $0x2a0] sm:$0xff]
    %v8349 = vld [vmem:[#allocation21 + $0x2a8] sm:$0xff]
    %v8350 = vld [vmem:[#allocation21 + $0x2b0] sm:$0xff]
    %v8351 = vld [vmem:[#allocation21 + $0x2b8] sm:$0xff]
    %v8352 = vld [vmem:[#allocation21 + $0x2c0] sm:$0xff]
    %v8353 = vld [vmem:[#allocation21 + $0x2c8] sm:$0xff]
    %v8354 = vld [vmem:[#allocation21 + $0x2d0] sm:$0xff]
    %v8355 = vld [vmem:[#allocation21 + $0x2d8] sm:$0xff]
    %v8356 = vld [vmem:[#allocation21 + $0x2e0] sm:$0xff]
    %v8357 = vld [vmem:[#allocation21 + $0x2e8] sm:$0xff]
    %v8358 = vld [vmem:[#allocation21 + $0x2f0] sm:$0xff]
    %v8359 = vld [vmem:[#allocation21 + $0x2f8] sm:$0xff]
    %v8360 = vld [vmem:[#allocation21 + $0x300] sm:$0xff]
    %v8361 = vld [vmem:[#allocation21 + $0x308] sm:$0xff]
    %v8362 = vld [vmem:[#allocation21 + $0x310] sm:$0xff]
    %v8363 = vld [vmem:[#allocation21 + $0x318] sm:$0xff]
    %v8364 = vld [vmem:[#allocation21 + $0x320] sm:$0xff]
    %v8365 = vld [vmem:[#allocation21 + $0x328] sm:$0xff]
    %v8366 = vld [vmem:[#allocation21 + $0x330] sm:$0xff]
    %v8367 = vld [vmem:[#allocation21 + $0x338] sm:$0xff]
    %v8368 = vld [vmem:[#allocation21 + $0x340] sm:$0xff]
    %v8369 = vld [vmem:[#allocation21 + $0x348] sm:$0xff]
    %v8370 = vld [vmem:[#allocation21 + $0x350] sm:$0xff]
    %v8371 = vld [vmem:[#allocation21 + $0x358] sm:$0xff]
    %v8372 = vld [vmem:[#allocation21 + $0x360] sm:$0xff]
    %v8373 = vld [vmem:[#allocation21 + $0x368] sm:$0xff]
    %v8374 = vld [vmem:[#allocation21 + $0x370] sm:$0xff]
    %v8375 = vld [vmem:[#allocation21 + $0x378] sm:$0xff]
    %v8376 = vld [vmem:[#allocation21 + $0x380] sm:$0xff]
    %v8377 = vld [vmem:[#allocation21 + $0x388] sm:$0xff]
    %v8378 = vld [vmem:[#allocation21 + $0x390] sm:$0xff]
    %v8379 = vld [vmem:[#allocation21 + $0x398] sm:$0xff]
    %v8380 = vld [vmem:[#allocation21 + $0x3a0] sm:$0xff]
    %v8381 = vld [vmem:[#allocation21 + $0x3a8] sm:$0xff]
    %v8382 = vld [vmem:[#allocation21 + $0x3b0] sm:$0xff]
    %v8383 = vld [vmem:[#allocation21 + $0x3b8] sm:$0xff]
    %v8384 = vld [vmem:[#allocation21 + $0x3c0] sm:$0xff]
    %v8385 = vld [vmem:[#allocation21 + $0x3c8] sm:$0xff]
    %v8386 = vld [vmem:[#allocation21 + $0x3d0] sm:$0xff]
    %v8387 = vld [vmem:[#allocation21 + $0x3d8] sm:$0xff]
    %v8388 = vld [vmem:[#allocation21 + $0x3e0] sm:$0xff]
    %v8389 = vld [vmem:[#allocation21 + $0x3e8] sm:$0xff]
    %v8390 = vld [vmem:[#allocation21 + $0x3f0] sm:$0xff]
    %v8391 = vld [vmem:[#allocation21 + $0x3f8] sm:$0xff]
    %v8392 = vld [vmem:[%s21] sm:$0xf]
    %v8394 = vlaneseq
    %v8395 = vshrl.u32 %v8394, 7
    %v8396 = vsub.s32 0, %v8395
    %v8397 = vrot.slane %v8392, %v8396
    %v8398 = vlaneseq
    %v8399 = vshrl.u32 %v8398, 7
    %v8400 = vsub.s32 1, %v8399
    %v8401 = vrot.slane %v8392, %v8400
    %v8402 = vlaneseq
    %v8403 = vshrl.u32 %v8402, 7
    %v8404 = vsub.s32 2, %v8403
    %v8405 = vrot.slane %v8392, %v8404
    %v8406 = vlaneseq
    %v8407 = vshrl.u32 %v8406, 7
    %v8408 = vsub.s32 3, %v8407
    %v8409 = vrot.slane %v8392, %v8408
    %v8542 = vunpack.c.l.b16 %v8264
    %v8543 = vunpack.c.h.b16 %v8264
    %v8544 = vunpack.c.l.b16 %v8265
    %v8545 = vunpack.c.h.b16 %v8265
    %v8546 = vunpack.c.l.b16 %v8266
    %v8547 = vunpack.c.h.b16 %v8266
    %v8548 = vunpack.c.l.b16 %v8267
    %v8549 = vunpack.c.h.b16 %v8267
    %v8550 = vunpack.c.l.b16 %v8268
    %v8551 = vunpack.c.h.b16 %v8268
    %v8552 = vunpack.c.l.b16 %v8269
    %v8553 = vunpack.c.h.b16 %v8269
    %v8554 = vunpack.c.l.b16 %v8270
    %v8555 = vunpack.c.h.b16 %v8270
    %v8556 = vunpack.c.l.b16 %v8271
    %v8557 = vunpack.c.h.b16 %v8271
    %v8558 = vunpack.c.l.b16 %v8272
    %v8559 = vunpack.c.h.b16 %v8272
    %v8560 = vunpack.c.l.b16 %v8273
    %v8561 = vunpack.c.h.b16 %v8273
    %v8562 = vunpack.c.l.b16 %v8274
    %v8563 = vunpack.c.h.b16 %v8274
    %v8564 = vunpack.c.l.b16 %v8275
    %v8565 = vunpack.c.h.b16 %v8275
    %v8566 = vunpack.c.l.b16 %v8276
    %v8567 = vunpack.c.h.b16 %v8276
    %v8568 = vunpack.c.l.b16 %v8277
    %v8569 = vunpack.c.h.b16 %v8277
    %v8570 = vunpack.c.l.b16 %v8278
    %v8571 = vunpack.c.h.b16 %v8278
    %v8572 = vunpack.c.l.b16 %v8279
    %v8573 = vunpack.c.h.b16 %v8279
    %v8574 = vunpack.c.l.b16 %v8280
    %v8575 = vunpack.c.h.b16 %v8280
    %v8576 = vunpack.c.l.b16 %v8281
    %v8577 = vunpack.c.h.b16 %v8281
    %v8578 = vunpack.c.l.b16 %v8282
    %v8579 = vunpack.c.h.b16 %v8282
    %v8580 = vunpack.c.l.b16 %v8283
    %v8581 = vunpack.c.h.b16 %v8283
    %v8582 = vunpack.c.l.b16 %v8284
    %v8583 = vunpack.c.h.b16 %v8284
    %v8584 = vunpack.c.l.b16 %v8285
    %v8585 = vunpack.c.h.b16 %v8285
    %v8586 = vunpack.c.l.b16 %v8286
    %v8587 = vunpack.c.h.b16 %v8286
    %v8588 = vunpack.c.l.b16 %v8287
    %v8589 = vunpack.c.h.b16 %v8287
    %v8590 = vunpack.c.l.b16 %v8288
    %v8591 = vunpack.c.h.b16 %v8288
    %v8592 = vunpack.c.l.b16 %v8289
    %v8593 = vunpack.c.h.b16 %v8289
    %v8594 = vunpack.c.l.b16 %v8290
    %v8595 = vunpack.c.h.b16 %v8290
    %v8596 = vunpack.c.l.b16 %v8291
    %v8597 = vunpack.c.h.b16 %v8291
    %v8598 = vunpack.c.l.b16 %v8292
    %v8599 = vunpack.c.h.b16 %v8292
    %v8600 = vunpack.c.l.b16 %v8293
    %v8601 = vunpack.c.h.b16 %v8293
    %v8602 = vunpack.c.l.b16 %v8294
    %v8603 = vunpack.c.h.b16 %v8294
    %v8604 = vunpack.c.l.b16 %v8295
    %v8605 = vunpack.c.h.b16 %v8295
    %v8606 = vunpack.c.l.b16 %v8296
    %v8607 = vunpack.c.h.b16 %v8296
    %v8608 = vunpack.c.l.b16 %v8297
    %v8609 = vunpack.c.h.b16 %v8297
    %v8610 = vunpack.c.l.b16 %v8298
    %v8611 = vunpack.c.h.b16 %v8298
    %v8612 = vunpack.c.l.b16 %v8299
    %v8613 = vunpack.c.h.b16 %v8299
    %v8614 = vunpack.c.l.b16 %v8300
    %v8615 = vunpack.c.h.b16 %v8300
    %v8616 = vunpack.c.l.b16 %v8301
    %v8617 = vunpack.c.h.b16 %v8301
    %v8618 = vunpack.c.l.b16 %v8302
    %v8619 = vunpack.c.h.b16 %v8302
    %v8620 = vunpack.c.l.b16 %v8303
    %v8621 = vunpack.c.h.b16 %v8303
    %v8622 = vunpack.c.l.b16 %v8304
    %v8623 = vunpack.c.h.b16 %v8304
    %v8624 = vunpack.c.l.b16 %v8305
    %v8625 = vunpack.c.h.b16 %v8305
    %v8626 = vunpack.c.l.b16 %v8306
    %v8627 = vunpack.c.h.b16 %v8306
    %v8628 = vunpack.c.l.b16 %v8307
    %v8629 = vunpack.c.h.b16 %v8307
    %v8630 = vunpack.c.l.b16 %v8308
    %v8631 = vunpack.c.h.b16 %v8308
    %v8632 = vunpack.c.l.b16 %v8309
    %v8633 = vunpack.c.h.b16 %v8309
    %v8634 = vunpack.c.l.b16 %v8310
    %v8635 = vunpack.c.h.b16 %v8310
    %v8636 = vunpack.c.l.b16 %v8311
    %v8637 = vunpack.c.h.b16 %v8311
    %v8638 = vunpack.c.l.b16 %v8312
    %v8639 = vunpack.c.h.b16 %v8312
    %v8640 = vunpack.c.l.b16 %v8313
    %v8641 = vunpack.c.h.b16 %v8313
    %v8642 = vunpack.c.l.b16 %v8314
    %v8643 = vunpack.c.h.b16 %v8314
    %v8644 = vunpack.c.l.b16 %v8315
    %v8645 = vunpack.c.h.b16 %v8315
    %v8646 = vunpack.c.l.b16 %v8316
    %v8647 = vunpack.c.h.b16 %v8316
    %v8648 = vunpack.c.l.b16 %v8317
    %v8649 = vunpack.c.h.b16 %v8317
    %v8650 = vunpack.c.l.b16 %v8318
    %v8651 = vunpack.c.h.b16 %v8318
    %v8652 = vunpack.c.l.b16 %v8319
    %v8653 = vunpack.c.h.b16 %v8319
    %v8654 = vunpack.c.l.b16 %v8320
    %v8655 = vunpack.c.h.b16 %v8320
    %v8656 = vunpack.c.l.b16 %v8321
    %v8657 = vunpack.c.h.b16 %v8321
    %v8658 = vunpack.c.l.b16 %v8322
    %v8659 = vunpack.c.h.b16 %v8322
    %v8660 = vunpack.c.l.b16 %v8323
    %v8661 = vunpack.c.h.b16 %v8323
    %v8662 = vunpack.c.l.b16 %v8324
    %v8663 = vunpack.c.h.b16 %v8324
    %v8664 = vunpack.c.l.b16 %v8325
    %v8665 = vunpack.c.h.b16 %v8325
    %v8666 = vunpack.c.l.b16 %v8326
    %v8667 = vunpack.c.h.b16 %v8326
    %v8668 = vunpack.c.l.b16 %v8327
    %v8669 = vunpack.c.h.b16 %v8327
    %v8670 = vunpack.c.l.b16 %v8328
    %v8671 = vunpack.c.h.b16 %v8328
    %v8672 = vunpack.c.l.b16 %v8329
    %v8673 = vunpack.c.h.b16 %v8329
    %v8674 = vunpack.c.l.b16 %v8330
    %v8675 = vunpack.c.h.b16 %v8330
    %v8676 = vunpack.c.l.b16 %v8331
    %v8677 = vunpack.c.h.b16 %v8331
    %v8678 = vunpack.c.l.b16 %v8332
    %v8679 = vunpack.c.h.b16 %v8332
    %v8680 = vunpack.c.l.b16 %v8333
    %v8681 = vunpack.c.h.b16 %v8333
    %v8682 = vunpack.c.l.b16 %v8334
    %v8683 = vunpack.c.h.b16 %v8334
    %v8684 = vunpack.c.l.b16 %v8335
    %v8685 = vunpack.c.h.b16 %v8335
    %v8686 = vunpack.c.l.b16 %v8336
    %v8687 = vunpack.c.h.b16 %v8336
    %v8688 = vunpack.c.l.b16 %v8337
    %v8689 = vunpack.c.h.b16 %v8337
    %v8690 = vunpack.c.l.b16 %v8338
    %v8691 = vunpack.c.h.b16 %v8338
    %v8692 = vunpack.c.l.b16 %v8339
    %v8693 = vunpack.c.h.b16 %v8339
    %v8694 = vunpack.c.l.b16 %v8340
    %v8695 = vunpack.c.h.b16 %v8340
    %v8696 = vunpack.c.l.b16 %v8341
    %v8697 = vunpack.c.h.b16 %v8341
    %v8698 = vunpack.c.l.b16 %v8342
    %v8699 = vunpack.c.h.b16 %v8342
    %v8700 = vunpack.c.l.b16 %v8343
    %v8701 = vunpack.c.h.b16 %v8343
    %v8702 = vunpack.c.l.b16 %v8344
    %v8703 = vunpack.c.h.b16 %v8344
    %v8704 = vunpack.c.l.b16 %v8345
    %v8705 = vunpack.c.h.b16 %v8345
    %v8706 = vunpack.c.l.b16 %v8346
    %v8707 = vunpack.c.h.b16 %v8346
    %v8708 = vunpack.c.l.b16 %v8347
    %v8709 = vunpack.c.h.b16 %v8347
    %v8710 = vunpack.c.l.b16 %v8348
    %v8711 = vunpack.c.h.b16 %v8348
    %v8712 = vunpack.c.l.b16 %v8349
    %v8713 = vunpack.c.h.b16 %v8349
    %v8714 = vunpack.c.l.b16 %v8350
    %v8715 = vunpack.c.h.b16 %v8350
    %v8716 = vunpack.c.l.b16 %v8351
    %v8717 = vunpack.c.h.b16 %v8351
    %v8718 = vunpack.c.l.b16 %v8352
    %v8719 = vunpack.c.h.b16 %v8352
    %v8720 = vunpack.c.l.b16 %v8353
    %v8721 = vunpack.c.h.b16 %v8353
    %v8722 = vunpack.c.l.b16 %v8354
    %v8723 = vunpack.c.h.b16 %v8354
    %v8724 = vunpack.c.l.b16 %v8355
    %v8725 = vunpack.c.h.b16 %v8355
    %v8726 = vunpack.c.l.b16 %v8356
    %v8727 = vunpack.c.h.b16 %v8356
    %v8728 = vunpack.c.l.b16 %v8357
    %v8729 = vunpack.c.h.b16 %v8357
    %v8730 = vunpack.c.l.b16 %v8358
    %v8731 = vunpack.c.h.b16 %v8358
    %v8732 = vunpack.c.l.b16 %v8359
    %v8733 = vunpack.c.h.b16 %v8359
    %v8734 = vunpack.c.l.b16 %v8360
    %v8735 = vunpack.c.h.b16 %v8360
    %v8736 = vunpack.c.l.b16 %v8361
    %v8737 = vunpack.c.h.b16 %v8361
    %v8738 = vunpack.c.l.b16 %v8362
    %v8739 = vunpack.c.h.b16 %v8362
    %v8740 = vunpack.c.l.b16 %v8363
    %v8741 = vunpack.c.h.b16 %v8363
    %v8742 = vunpack.c.l.b16 %v8364
    %v8743 = vunpack.c.h.b16 %v8364
    %v8744 = vunpack.c.l.b16 %v8365
    %v8745 = vunpack.c.h.b16 %v8365
    %v8746 = vunpack.c.l.b16 %v8366
    %v8747 = vunpack.c.h.b16 %v8366
    %v8748 = vunpack.c.l.b16 %v8367
    %v8749 = vunpack.c.h.b16 %v8367
    %v8750 = vunpack.c.l.b16 %v8368
    %v8751 = vunpack.c.h.b16 %v8368
    %v8752 = vunpack.c.l.b16 %v8369
    %v8753 = vunpack.c.h.b16 %v8369
    %v8754 = vunpack.c.l.b16 %v8370
    %v8755 = vunpack.c.h.b16 %v8370
    %v8756 = vunpack.c.l.b16 %v8371
    %v8757 = vunpack.c.h.b16 %v8371
    %v8758 = vunpack.c.l.b16 %v8372
    %v8759 = vunpack.c.h.b16 %v8372
    %v8760 = vunpack.c.l.b16 %v8373
    %v8761 = vunpack.c.h.b16 %v8373
    %v8762 = vunpack.c.l.b16 %v8374
    %v8763 = vunpack.c.h.b16 %v8374
    %v8764 = vunpack.c.l.b16 %v8375
    %v8765 = vunpack.c.h.b16 %v8375
    %v8766 = vunpack.c.l.b16 %v8376
    %v8767 = vunpack.c.h.b16 %v8376
    %v8768 = vunpack.c.l.b16 %v8377
    %v8769 = vunpack.c.h.b16 %v8377
    %v8770 = vunpack.c.l.b16 %v8378
    %v8771 = vunpack.c.h.b16 %v8378
    %v8772 = vunpack.c.l.b16 %v8379
    %v8773 = vunpack.c.h.b16 %v8379
    %v8774 = vunpack.c.l.b16 %v8380
    %v8775 = vunpack.c.h.b16 %v8380
    %v8776 = vunpack.c.l.b16 %v8381
    %v8777 = vunpack.c.h.b16 %v8381
    %v8778 = vunpack.c.l.b16 %v8382
    %v8779 = vunpack.c.h.b16 %v8382
    %v8780 = vunpack.c.l.b16 %v8383
    %v8781 = vunpack.c.h.b16 %v8383
    %v8782 = vunpack.c.l.b16 %v8384
    %v8783 = vunpack.c.h.b16 %v8384
    %v8784 = vunpack.c.l.b16 %v8385
    %v8785 = vunpack.c.h.b16 %v8385
    %v8786 = vunpack.c.l.b16 %v8386
    %v8787 = vunpack.c.h.b16 %v8386
    %v8788 = vunpack.c.l.b16 %v8387
    %v8789 = vunpack.c.h.b16 %v8387
    %v8790 = vunpack.c.l.b16 %v8388
    %v8791 = vunpack.c.h.b16 %v8388
    %v8792 = vunpack.c.l.b16 %v8389
    %v8793 = vunpack.c.h.b16 %v8389
    %v8794 = vunpack.c.l.b16 %v8390
    %v8795 = vunpack.c.h.b16 %v8390
    %v8796 = vunpack.c.l.b16 %v8391
    %v8797 = vunpack.c.h.b16 %v8391
    %v8798 = vpack.c.b16 %v8546, %v8542
    %v8799 = vpack.c.b16 %v8547, %v8543
    %v8800 = vpack.c.b16 %v8548, %v8544
    %v8801 = vpack.c.b16 %v8549, %v8545
    %v8802 = vpack.c.b16 %v8554, %v8550
    %v8803 = vpack.c.b16 %v8555, %v8551
    %v8804 = vpack.c.b16 %v8556, %v8552
    %v8805 = vpack.c.b16 %v8557, %v8553
    %v8806 = vpack.c.b16 %v8562, %v8558
    %v8807 = vpack.c.b16 %v8563, %v8559
    %v8808 = vpack.c.b16 %v8564, %v8560
    %v8809 = vpack.c.b16 %v8565, %v8561
    %v8810 = vpack.c.b16 %v8570, %v8566
    %v8811 = vpack.c.b16 %v8571, %v8567
    %v8812 = vpack.c.b16 %v8572, %v8568
    %v8813 = vpack.c.b16 %v8573, %v8569
    %v8814 = vpack.c.b16 %v8578, %v8574
    %v8815 = vpack.c.b16 %v8579, %v8575
    %v8816 = vpack.c.b16 %v8580, %v8576
    %v8817 = vpack.c.b16 %v8581, %v8577
    %v8818 = vpack.c.b16 %v8586, %v8582
    %v8819 = vpack.c.b16 %v8587, %v8583
    %v8820 = vpack.c.b16 %v8588, %v8584
    %v8821 = vpack.c.b16 %v8589, %v8585
    %v8822 = vpack.c.b16 %v8594, %v8590
    %v8823 = vpack.c.b16 %v8595, %v8591
    %v8824 = vpack.c.b16 %v8596, %v8592
    %v8825 = vpack.c.b16 %v8597, %v8593
    %v8826 = vpack.c.b16 %v8602, %v8598
    %v8827 = vpack.c.b16 %v8603, %v8599
    %v8828 = vpack.c.b16 %v8604, %v8600
    %v8829 = vpack.c.b16 %v8605, %v8601
    %v8830 = vpack.c.b16 %v8610, %v8606
    %v8831 = vpack.c.b16 %v8611, %v8607
    %v8832 = vpack.c.b16 %v8612, %v8608
    %v8833 = vpack.c.b16 %v8613, %v8609
    %v8834 = vpack.c.b16 %v8618, %v8614
    %v8835 = vpack.c.b16 %v8619, %v8615
    %v8836 = vpack.c.b16 %v8620, %v8616
    %v8837 = vpack.c.b16 %v8621, %v8617
    %v8838 = vpack.c.b16 %v8626, %v8622
    %v8839 = vpack.c.b16 %v8627, %v8623
    %v8840 = vpack.c.b16 %v8628, %v8624
    %v8841 = vpack.c.b16 %v8629, %v8625
    %v8842 = vpack.c.b16 %v8634, %v8630
    %v8843 = vpack.c.b16 %v8635, %v8631
    %v8844 = vpack.c.b16 %v8636, %v8632
    %v8845 = vpack.c.b16 %v8637, %v8633
    %v8846 = vpack.c.b16 %v8642, %v8638
    %v8847 = vpack.c.b16 %v8643, %v8639
    %v8848 = vpack.c.b16 %v8644, %v8640
    %v8849 = vpack.c.b16 %v8645, %v8641
    %v8850 = vpack.c.b16 %v8650, %v8646
    %v8851 = vpack.c.b16 %v8651, %v8647
    %v8852 = vpack.c.b16 %v8652, %v8648
    %v8853 = vpack.c.b16 %v8653, %v8649
    %v8854 = vpack.c.b16 %v8658, %v8654
    %v8855 = vpack.c.b16 %v8659, %v8655
    %v8856 = vpack.c.b16 %v8660, %v8656
    %v8857 = vpack.c.b16 %v8661, %v8657
    %v8858 = vpack.c.b16 %v8666, %v8662
    %v8859 = vpack.c.b16 %v8667, %v8663
    %v8860 = vpack.c.b16 %v8668, %v8664
    %v8861 = vpack.c.b16 %v8669, %v8665
    %v8862 = vpack.c.b16 %v8674, %v8670
    %v8863 = vpack.c.b16 %v8675, %v8671
    %v8864 = vpack.c.b16 %v8676, %v8672
    %v8865 = vpack.c.b16 %v8677, %v8673
    %v8866 = vpack.c.b16 %v8682, %v8678
    %v8867 = vpack.c.b16 %v8683, %v8679
    %v8868 = vpack.c.b16 %v8684, %v8680
    %v8869 = vpack.c.b16 %v8685, %v8681
    %v8870 = vpack.c.b16 %v8690, %v8686
    %v8871 = vpack.c.b16 %v8691, %v8687
    %v8872 = vpack.c.b16 %v8692, %v8688
    %v8873 = vpack.c.b16 %v8693, %v8689
    %v8874 = vpack.c.b16 %v8698, %v8694
    %v8875 = vpack.c.b16 %v8699, %v8695
    %v8876 = vpack.c.b16 %v8700, %v8696
    %v8877 = vpack.c.b16 %v8701, %v8697
    %v8878 = vpack.c.b16 %v8706, %v8702
    %v8879 = vpack.c.b16 %v8707, %v8703
    %v8880 = vpack.c.b16 %v8708, %v8704
    %v8881 = vpack.c.b16 %v8709, %v8705
    %v8882 = vpack.c.b16 %v8714, %v8710
    %v8883 = vpack.c.b16 %v8715, %v8711
    %v8884 = vpack.c.b16 %v8716, %v8712
    %v8885 = vpack.c.b16 %v8717, %v8713
    %v8886 = vpack.c.b16 %v8722, %v8718
    %v8887 = vpack.c.b16 %v8723, %v8719
    %v8888 = vpack.c.b16 %v8724, %v8720
    %v8889 = vpack.c.b16 %v8725, %v8721
    %v8890 = vpack.c.b16 %v8730, %v8726
    %v8891 = vpack.c.b16 %v8731, %v8727
    %v8892 = vpack.c.b16 %v8732, %v8728
    %v8893 = vpack.c.b16 %v8733, %v8729
    %v8894 = vpack.c.b16 %v8738, %v8734
    %v8895 = vpack.c.b16 %v8739, %v8735
    %v8896 = vpack.c.b16 %v8740, %v8736
    %v8897 = vpack.c.b16 %v8741, %v8737
    %v8898 = vpack.c.b16 %v8746, %v8742
    %v8899 = vpack.c.b16 %v8747, %v8743
    %v8900 = vpack.c.b16 %v8748, %v8744
    %v8901 = vpack.c.b16 %v8749, %v8745
    %v8902 = vpack.c.b16 %v8754, %v8750
    %v8903 = vpack.c.b16 %v8755, %v8751
    %v8904 = vpack.c.b16 %v8756, %v8752
    %v8905 = vpack.c.b16 %v8757, %v8753
    %v8906 = vpack.c.b16 %v8762, %v8758
    %v8907 = vpack.c.b16 %v8763, %v8759
    %v8908 = vpack.c.b16 %v8764, %v8760
    %v8909 = vpack.c.b16 %v8765, %v8761
    %v8910 = vpack.c.b16 %v8770, %v8766
    %v8911 = vpack.c.b16 %v8771, %v8767
    %v8912 = vpack.c.b16 %v8772, %v8768
    %v8913 = vpack.c.b16 %v8773, %v8769
    %v8914 = vpack.c.b16 %v8778, %v8774
    %v8915 = vpack.c.b16 %v8779, %v8775
    %v8916 = vpack.c.b16 %v8780, %v8776
    %v8917 = vpack.c.b16 %v8781, %v8777
    %v8918 = vpack.c.b16 %v8786, %v8782
    %v8919 = vpack.c.b16 %v8787, %v8783
    %v8920 = vpack.c.b16 %v8788, %v8784
    %v8921 = vpack.c.b16 %v8789, %v8785
    %v8922 = vpack.c.b16 %v8794, %v8790
    %v8923 = vpack.c.b16 %v8795, %v8791
    %v8924 = vpack.c.b16 %v8796, %v8792
    %v8925 = vpack.c.b16 %v8797, %v8793
    %9054 = vmatprep.subr.bf16.mxu0 %v8799
    %9055 = vmatpush1.bf16.msra.mxu0 %v8798
    %9056 = vmatprep.subr.bf16.mxu0 %v8803
    %9057 = vmatpush1.bf16.msra.mxu0 %v8802
    %9058 = vmatprep.subr.bf16.mxu0 %v8807
    %9059 = vmatpush1.bf16.msra.mxu0 %v8806
    %9060 = vmatprep.subr.bf16.mxu0 %v8811
    %9061 = vmatpush1.bf16.msra.mxu0 %v8810
    %9062 = vmatprep.subr.bf16.mxu0 %v8815
    %9063 = vmatpush1.bf16.msra.mxu0 %v8814
    %9064 = vmatprep.subr.bf16.mxu0 %v8819
    %9065 = vmatpush1.bf16.msra.mxu0 %v8818
    %9066 = vmatprep.subr.bf16.mxu0 %v8823
    %9067 = vmatpush1.bf16.msra.mxu0 %v8822
    %9068 = vmatprep.subr.bf16.mxu0 %v8827
    %9069 = vmatpush1.bf16.msra.mxu0 %v8826
    %9070 = vmatprep.subr.bf16.mxu0 %v8831
    %9071 = vmatpush1.bf16.msra.mxu0 %v8830
    %9072 = vmatprep.subr.bf16.mxu0 %v8835
    %9073 = vmatpush1.bf16.msra.mxu0 %v8834
    %9074 = vmatprep.subr.bf16.mxu0 %v8839
    %9075 = vmatpush1.bf16.msra.mxu0 %v8838
    %9076 = vmatprep.subr.bf16.mxu0 %v8843
    %9077 = vmatpush1.bf16.msra.mxu0 %v8842
    %9078 = vmatprep.subr.bf16.mxu0 %v8847
    %9079 = vmatpush1.bf16.msra.mxu0 %v8846
    %9080 = vmatprep.subr.bf16.mxu0 %v8851
    %9081 = vmatpush1.bf16.msra.mxu0 %v8850
    %9082 = vmatprep.subr.bf16.mxu0 %v8855
    %9083 = vmatpush1.bf16.msra.mxu0 %v8854
    %9084 = vmatprep.subr.bf16.mxu0 %v8859
    %9085 = vmatpush1.bf16.msra.mxu0 %v8858
    %9086 = vmatprep.mubr.bf16.mxu0 %v7264
    %9087 = vmatmul.mubr.bf16.gmra.mrb[0].mxu0 %v7263
    %v9088 = vpop.f32.mrb[0].mxu0
    %v9089 = vadd.f32 %v8397, %v9088
    %v9090 = vpop.f32.mrb[0].mxu0
    %v9091 = vadd.f32 %v8401, %v9090
    %v9092 = vpop.f32.mrb[0].mxu0
    %v9093 = vpop.f32.mrb[0].mxu0
    %9094 = vdwg.mxu0
    %9095 = vmatprep.subr.bf16.mxu0 %v8863
    %9096 = vmatpush1.bf16.msra.mxu0 %v8862
    %9097 = vmatprep.subr.bf16.mxu0 %v8867
    %9098 = vmatpush1.bf16.msra.mxu0 %v8866
    %9099 = vmatprep.subr.bf16.mxu0 %v8871
    %9100 = vmatpush1.bf16.msra.mxu0 %v8870
    %9101 = vmatprep.subr.bf16.mxu0 %v8875
    %9102 = vmatpush1.bf16.msra.mxu0 %v8874
    %9103 = vmatprep.subr.bf16.mxu0 %v8879
    %9104 = vmatpush1.bf16.msra.mxu0 %v8878
    %9105 = vmatprep.subr.bf16.mxu0 %v8883
    %9106 = vmatpush1.bf16.msra.mxu0 %v8882
    %9107 = vmatprep.subr.bf16.mxu0 %v8887
    %9108 = vmatpush1.bf16.msra.mxu0 %v8886
    %9109 = vmatprep.subr.bf16.mxu0 %v8891
    %9110 = vmatpush1.bf16.msra.mxu0 %v8890
    %9111 = vmatprep.subr.bf16.mxu0 %v8895
    %9112 = vmatpush1.bf16.msra.mxu0 %v8894
    %9113 = vmatprep.subr.bf16.mxu0 %v8899
    %9114 = vmatpush1.bf16.msra.mxu0 %v8898
    %9115 = vmatprep.subr.bf16.mxu0 %v8903
    %9116 = vmatpush1.bf16.msra.mxu0 %v8902
    %9117 = vmatprep.subr.bf16.mxu0 %v8907
    %9118 = vmatpush1.bf16.msra.mxu0 %v8906
    %9119 = vmatprep.subr.bf16.mxu0 %v8911
    %9120 = vmatpush1.bf16.msra.mxu0 %v8910
    %9121 = vmatprep.subr.bf16.mxu0 %v8915
    %9122 = vmatpush1.bf16.msra.mxu0 %v8914
    %9123 = vmatprep.subr.bf16.mxu0 %v8919
    %9124 = vmatpush1.bf16.msra.mxu0 %v8918
    %9125 = vmatprep.subr.bf16.mxu0 %v8923
    %9126 = vmatpush1.bf16.msra.mxu0 %v8922
    %9127 = vmatprep.mubr.bf16.mxu0 %v7266
    %9128 = vmatmul.mubr.bf16.gmra.mrb[0].mxu0 %v7265
    %v9129 = vpop.f32.mrb[0].mxu0
    %v9130 = vadd.f32 %v9089, %v9129
    %v9131 = vpop.f32.mrb[0].mxu0
    %v9132 = vadd.f32 %v9091, %v9131
    %v9133 = vpop.f32.mrb[0].mxu0
    %v9134 = vpop.f32.mrb[0].mxu0
    %9135 = vdwg.mxu0
    %9136 = vmatprep.subr.bf16.mxu0 %v8801
    %9137 = vmatpush1.bf16.msra.mxu0 %v8800
    %9138 = vmatprep.subr.bf16.mxu0 %v8805
    %9139 = vmatpush1.bf16.msra.mxu0 %v8804
    %9140 = vmatprep.subr.bf16.mxu0 %v8809
    %9141 = vmatpush1.bf16.msra.mxu0 %v8808
    %9142 = vmatprep.subr.bf16.mxu0 %v8813
    %9143 = vmatpush1.bf16.msra.mxu0 %v8812
    %9144 = vmatprep.subr.bf16.mxu0 %v8817
    %9145 = vmatpush1.bf16.msra.mxu0 %v8816
    %9146 = vmatprep.subr.bf16.mxu0 %v8821
    %9147 = vmatpush1.bf16.msra.mxu0 %v8820
    %9148 = vmatprep.subr.bf16.mxu0 %v8825
    %9149 = vmatpush1.bf16.msra.mxu0 %v8824
    %9150 = vmatprep.subr.bf16.mxu0 %v8829
    %9151 = vmatpush1.bf16.msra.mxu0 %v8828
    %9152 = vmatprep.subr.bf16.mxu0 %v8833
    %9153 = vmatpush1.bf16.msra.mxu0 %v8832
    %9154 = vmatprep.subr.bf16.mxu0 %v8837
    %9155 = vmatpush1.bf16.msra.mxu0 %v8836
    %9156 = vmatprep.subr.bf16.mxu0 %v8841
    %9157 = vmatpush1.bf16.msra.mxu0 %v8840
    %9158 = vmatprep.subr.bf16.mxu0 %v8845
    %9159 = vmatpush1.bf16.msra.mxu0 %v8844
    %9160 = vmatprep.subr.bf16.mxu0 %v8849
    %9161 = vmatpush1.bf16.msra.mxu0 %v8848
    %9162 = vmatprep.subr.bf16.mxu0 %v8853
    %9163 = vmatpush1.bf16.msra.mxu0 %v8852
    %9164 = vmatprep.subr.bf16.mxu0 %v8857
    %9165 = vmatpush1.bf16.msra.mxu0 %v8856
    %9166 = vmatprep.subr.bf16.mxu0 %v8861
    %9167 = vmatpush1.bf16.msra.mxu0 %v8860
    %9168 = vmatprep.mubr.bf16.mxu0 %v7264
    %9169 = vmatmul.mubr.bf16.gmra.mrb[0].mxu0 %v7263
    %v9170 = vpop.f32.mrb[0].mxu0
    %v9171 = vadd.f32 %v8405, %v9170
    %v9172 = vpop.f32.mrb[0].mxu0
    %v9173 = vadd.f32 %v8409, %v9172
    %v9174 = vpop.f32.mrb[0].mxu0
    %v9175 = vpop.f32.mrb[0].mxu0
    %9176 = vdwg.mxu0
    %9177 = vmatprep.subr.bf16.mxu0 %v8865
    %9178 = vmatpush1.bf16.msra.mxu0 %v8864
    %9179 = vmatprep.subr.bf16.mxu0 %v8869
    %9180 = vmatpush1.bf16.msra.mxu0 %v8868
    %9181 = vmatprep.subr.bf16.mxu0 %v8873
    %9182 = vmatpush1.bf16.msra.mxu0 %v8872
    %9183 = vmatprep.subr.bf16.mxu0 %v8877
    %9184 = vmatpush1.bf16.msra.mxu0 %v8876
    %9185 = vmatprep.subr.bf16.mxu0 %v8881
    %9186 = vmatpush1.bf16.msra.mxu0 %v8880
    %9187 = vmatprep.subr.bf16.mxu0 %v8885
    %9188 = vmatpush1.bf16.msra.mxu0 %v8884
    %9189 = vmatprep.subr.bf16.mxu0 %v8889
    %9190 = vmatpush1.bf16.msra.mxu0 %v8888
    %9191 = vmatprep.subr.bf16.mxu0 %v8893
    %9192 = vmatpush1.bf16.msra.mxu0 %v8892
    %9193 = vmatprep.subr.bf16.mxu0 %v8897
    %9194 = vmatpush1.bf16.msra.mxu0 %v8896
    %9195 = vmatprep.subr.bf16.mxu0 %v8901
    %9196 = vmatpush1.bf16.msra.mxu0 %v8900
    %9197 = vmatprep.subr.bf16.mxu0 %v8905
    %9198 = vmatpush1.bf16.msra.mxu0 %v8904
    %9199 = vmatprep.subr.bf16.mxu0 %v8909
    %9200 = vmatpush1.bf16.msra.mxu0 %v8908
    %9201 = vmatprep.subr.bf16.mxu0 %v8913
    %9202 = vmatpush1.bf16.msra.mxu0 %v8912
    %9203 = vmatprep.subr.bf16.mxu0 %v8917
    %9204 = vmatpush1.bf16.msra.mxu0 %v8916
    %9205 = vmatprep.subr.bf16.mxu0 %v8921
    %9206 = vmatpush1.bf16.msra.mxu0 %v8920
    %9207 = vmatprep.subr.bf16.mxu0 %v8925
    %9208 = vmatpush1.bf16.msra.mxu0 %v8924
    %9209 = vmatprep.mubr.bf16.mxu0 %v7266
    %9210 = vmatmul.mubr.bf16.gmra.mrb[0].mxu0 %v7265
    %v9211 = vpop.f32.mrb[0].mxu0
    %v9212 = vadd.f32 %v9171, %v9211
    %v9213 = vpop.f32.mrb[0].mxu0
    %v9214 = vadd.f32 %v9173, %v9213
    %v9215 = vpop.f32.mrb[0].mxu0
    %v9216 = vpop.f32.mrb[0].mxu0
    %9217 = vdwg.mxu0
    %v9218 = vsub.f32 0.0, %v9130
    %v9219 = vsub.f32 0.0, %v9132
    %v9220 = vsub.f32 0.0, %v9212
    %v9221 = vsub.f32 0.0, %v9214
    %v9222 = vmul.f32 %v9218, 1.442695
    %v9223 = vpow.pop %v9222
    %v9224 = vmul.f32 %v9219, 1.442695
    %v9225 = vpow.pop %v9224
    %v9226 = vmul.f32 %v9220, 1.442695
    %v9227 = vpow.pop %v9226
    %v9228 = vmul.f32 %v9221, 1.442695
    %v9229 = vpow.pop %v9228
    %v9230 = vadd.f32 %v9223, 1.0
    %v9231 = vadd.f32 %v9225, 1.0
    %v9232 = vadd.f32 %v9227, 1.0
    %v9233 = vadd.f32 %v9229, 1.0
    %v9234 = vrcp.pop %v9230
    %v9235 = vrcp.pop %v9231
    %v9236 = vrcp.pop %v9232
    %v9237 = vrcp.pop %v9233
    %v9242 = vcombine.low %v9234, %v9235
    %v9243 = vcombine.low %v9236, %v9237
    %v9245 = vunpack.c.l.s4 1983009808
    %v9246 = vunpack.c.0.s8 %v9245
    %v9247 = vlaneseq
    %v9248 = vshrl.u32 %v9247, 7
    %v9249 = vsub.s32 %v9246, %v9248
    %v9250 = vrot.slane %v9242, %v9249
    %v9252 = vunpack.c.l.s4 1983009808
    %v9253 = vunpack.c.0.s8 %v9252
    %v9254 = vlaneseq
    %v9255 = vshrl.u32 %v9254, 7
    %v9256 = vsub.s32 %v9253, %v9255
    %v9257 = vrot.slane %v9243, %v9256
    %v9258 = vcombine.low %v9250, %v9257
    %9260 = vst [vmem:[#allocation26] sm:$0xff] %v9258
    // Predicated region
    $region138: #{tpu_custom_call.1} parent=1 // pred_check
      _
    $region139: #{tpu_custom_call.1} parent=1 // pred_check_branch
      %9262 = sbr.rel (0) target = $region141
    $region140: #{tpu_custom_call.1} parent=1 // pred_region
      %s9264 = ssub.s32 128, 128
      %9265 = vsyncadd [#allocation4], %s9264
      %s9267 = sshll.u32 [#allocation22], 4
      %s9268 = int_to_ptr.vmem [resolvable:$true] %s9267
      %9270 = dma.vmem_to_hbm [thread:$0]  %s9268, 128, %s22, [#allocation4]
    $region141: #{tpu_custom_call.1} parent=1 // pred_fallthru
      _
    // Predicated region
    $region142: #{tpu_custom_call.1} parent=1 // pred_check
      _
    $region143: #{tpu_custom_call.1} parent=1 // pred_check_branch
      %9272 = sbr.rel (0) target = $region145
    $region144: #{tpu_custom_call.1} parent=1 // pred_region
      %s9274 = ssub.s32 128, 128
      %9275 = vsyncadd [#allocation24], %s9274
      %s9277 = sshll.u32 [#allocation23], 4
      %s9278 = int_to_ptr.vmem [resolvable:$true] %s9277
      %9280 = dma.vmem_to_hbm [thread:$0]  %s9278, 128, %s23, [#allocation24]
    $region145: #{tpu_custom_call.1} parent=1 // pred_fallthru
      _
    // Predicated region
    $region146: #{tpu_custom_call.1} parent=1 // pred_check
      _
    $region147: #{tpu_custom_call.1} parent=1 // pred_check_branch
      %9282 = sbr.rel (0) target = $region149
    $region148: #{tpu_custom_call.1} parent=1 // pred_region
      %s9284 = ssub.s32 128, 128
      %9285 = vsyncadd [#allocation24], %s9284
      %s9287 = sshll.u32 [#allocation25], 4
      %s9288 = int_to_ptr.vmem [resolvable:$true] %s9287
      %9290 = dma.vmem_to_hbm [thread:$0]  %s9288, 128, %s24, [#allocation24]
    $region149: #{tpu_custom_call.1} parent=1 // pred_fallthru
      _
    // Predicated region
    $region150: #{tpu_custom_call.1} parent=1 // pred_check
      _
    $region151: #{tpu_custom_call.1} parent=1 // pred_check_branch
      %9292 = sbr.rel (0) target = $region153
    $region152: #{tpu_custom_call.1} parent=1 // pred_region
      %s9294 = ssub.s32 128, 128
      %9295 = vsyncadd [#allocation27], %s9294
      %s9297 = sshll.u32 [#allocation26], 4
      %s9298 = int_to_ptr.vmem [resolvable:$true] %s9297
      %9300 = dma.vmem_to_hbm [thread:$0]  %s9298, 128, %s25, [#allocation27]
    $region153: #{tpu_custom_call.1} parent=1 // pred_fallthru
      _
    // Predicated region
    $region154: #{tpu_custom_call.1} parent=1 // pred_check
      _
    $region155: #{tpu_custom_call.1} parent=1 // pred_check_branch
      %9302 = sbr.rel (0) target = $region157
    $region156: #{tpu_custom_call.1} parent=1 // pred_region
      %9303 = dma.done [#allocation4], 128
    $region157: #{tpu_custom_call.1} parent=1 // pred_fallthru
      _
    // Predicated region
    $region158: #{tpu_custom_call.1} parent=1 // pred_check
      _
    $region159: #{tpu_custom_call.1} parent=1 // pred_check_branch
      %9305 = sbr.rel (0) target = $region161
    $region160: #{tpu_custom_call.1} parent=1 // pred_region
      %9306 = dma.done [#allocation24], 128
    $region161: #{tpu_custom_call.1} parent=1 // pred_fallthru
      _
    // Predicated region
    $region162: #{tpu_custom_call.1} parent=1 // pred_check
      _
    $region163: #{tpu_custom_call.1} parent=1 // pred_check_branch
      %9308 = sbr.rel (0) target = $region165
    $region164: #{tpu_custom_call.1} parent=1 // pred_region
      %9309 = dma.done [#allocation24], 128
    $region165: #{tpu_custom_call.1} parent=1 // pred_fallthru
      _
    // Predicated region
    $region166: #{tpu_custom_call.1} parent=1 // pred_check
      _
    $region167: #{tpu_custom_call.1} parent=1 // pred_check_branch
      %9311 = sbr.rel (0) target = $region169
    $region168: #{tpu_custom_call.1} parent=1 // pred_region
      %9312 = dma.done [#allocation27], 128
    $region169: #{tpu_custom_call.1} parent=1 // pred_fallthru
      _
    %9313 = vsyncpa [#allocation3], 1
    %9314 = vsyncpa [#allocation8], 1
    %9315 = vsyncpa [#allocation11], 1
    %9316 = vsyncpa [#allocation14], 1
    %9317 = vsyncpa [#allocation17], 1
    %9318 = vsyncpa [#allocation20], 1
    %9319 = vsyncpa [#allocation4], 1
    %9320 = vsyncpa [#allocation24], 1
    %9321 = vsyncpa [#allocation27], 1
    %9322 = vsyncpa [#allocation5], 1

</llo_original>
